<compile_context>
chip_gen: v5e
topology: v5e:2x2
jax: 0.10.0
libtpu: 0.0.40
codegen_flags: <defaults>
</compile_context>

<pallas_src>
import functools
import numpy as np

import jax
import jax.numpy as jnp
from jax.experimental import pallas as pl
from jax.experimental.pallas import tpu as pltpu

_BF16 = jnp.bfloat16


# --------------------------------------------------------------------------
# Kernel 1: embedder — nn.Linear(4096, n_units) over all x and y rows, tiled over rows
# --------------------------------------------------------------------------

def _embed_kernel(x_ref, w_ref, b_ref, o_ref):
    # cast the 4096-wide rows to bf16 *inside* the kernel (no bf16 copy in HBM)
    o_ref[...] = (
        jnp.dot(x_ref[...].astype(_BF16), w_ref[...],
                preferred_element_type=jnp.float32)
        + b_ref[...]
    )


def _pick_row_tile(m):
    for t in (512, 256, 128, 64, 32, 16, 8):
        if m % t == 0:
            return t
    return m


def pallas_embed(rows_f32, w_bf16, b_f32):
    M, K = rows_f32.shape
    N = w_bf16.shape[1]
    tm = _pick_row_tile(M)
    return pl.pallas_call(
        _embed_kernel,
        out_shape=jax.ShapeDtypeStruct((M, N), jnp.float32),
        grid=(M // tm,),
        in_specs=[
            pl.BlockSpec((tm, K), lambda i: (i, 0)),
            pl.BlockSpec((K, N), lambda i: (0, 0)),
            pl.BlockSpec((1, N), lambda i: (0, 0)),
        ],
        out_specs=pl.BlockSpec((tm, N), lambda i: (i, 0)),
        compiler_params=pltpu.CompilerParams(
            dimension_semantics=("parallel",)),
    )(rows_f32, w_bf16, b_f32.reshape(1, N))


# --------------------------------------------------------------------------
# Shared in-kernel building blocks (traced inside the kernels)
# --------------------------------------------------------------------------

def _stacked_mha(q_in, kv_in, mask_all, bias_all, sel, ones_blk,
                 wq, wk, wv, wo, n_heads, scale):
    """All heads at once: one score matmul, one softmax pass, one context matmul.

    sel      : (H*S, U) 0/1 — row h*S+t selects head-h channels.
    ones_blk : (H*S, H*S) block-diagonal ones — per-head softmax denominators.
    mask_all / bias_all : (Sq, H*S) head-tiled attention mask / -1e30 bias.
    """
    q = jnp.dot(q_in.astype(_BF16), wq, preferred_element_type=jnp.float32)   # (Sq, U)
    k = jnp.dot(kv_in.astype(_BF16), wk, preferred_element_type=jnp.float32)  # (Sk, U)
    v = jnp.dot(kv_in.astype(_BF16), wv, preferred_element_type=jnp.float32)

    # head-stacked, channel-masked K' / V'  (H*Sk, U)
    k_stk = (jnp.concatenate([k] * n_heads, axis=0) * sel).astype(_BF16)
    v_stk = (jnp.concatenate([v] * n_heads, axis=0) * sel).astype(_BF16)

    # all heads' scores in one MXU push: column block h holds Q_h . K_h^T
    s_all = jax.lax.dot_general(q.astype(_BF16), k_stk, (((1,), (1,)), ((), ())),
                                preferred_element_type=jnp.float32)           # (Sq, H*Sk)
    s_all = s_all * scale + bias_all
    # a single per-row (all-heads) max is a valid stabiliser for each head's softmax
    # (subtracting a per-row constant cancels in the per-head ratio).
    s_all = s_all - jnp.max(s_all, axis=-1, keepdims=True)
    e_all = jnp.exp(s_all) * mask_all
    # per-head denominators via a block-diagonal ones matmul (one push, f32)
    denom = jnp.dot(e_all, ones_blk, preferred_element_type=jnp.float32)
    a_all = e_all * pl.reciprocal(jnp.maximum(denom, 1e-30), approx=True)
    ctx = jnp.dot(a_all.astype(_BF16), v_stk, preferred_element_type=jnp.float32)  # (Sq, U)
    return jnp.dot(ctx.astype(_BF16), wo, preferred_element_type=jnp.float32)


def _add_ln(xin, sub, g, b):
    z = xin + sub
    mu = jnp.mean(z, axis=-1, keepdims=True)
    var = jnp.mean(jnp.square(z - mu), axis=-1, keepdims=True)
    return (z - mu) * jax.lax.rsqrt(var + 1e-5) * g + b


def _ffn(xin, w1, b1, w2, b2):
    h = jnp.maximum(
        jnp.dot(xin.astype(_BF16), w1, preferred_element_type=jnp.float32) + b1, 0.0)
    return jnp.dot(h.astype(_BF16), w2, preferred_element_type=jnp.float32) + b2


def _block(q_in, kv_in, mask_all, bias_all, sel, ones_blk, wts, n_heads, scale):
    (wq, wk, wv, wo, w1, b1, w2, b2, g1, be1, g2, be2) = wts
    h = _add_ln(q_in,
                _stacked_mha(q_in, kv_in, mask_all, bias_all, sel, ones_blk,
                             wq, wk, wv, wo, n_heads, scale),
                g1, be1)
    return _add_ln(h, _ffn(h, w1, b1, w2, b2), g2, be2)


# --------------------------------------------------------------------------
# Kernel 2: hoisted iteration-0 SetEncoder (depends only on its own set) — grid=(B,)
# --------------------------------------------------------------------------

def _pre_encode_kernel(xe_ref, ye_ref, xmr_ref, xmc_ref, ymr_ref, ymc_ref,
                       sel_ref, ones_ref,
                       wq_ref, wk_ref, wv_ref, wo_ref,
                       w1_ref, b1_ref, w2_ref, b2_ref,
                       g1_ref, be1_ref, g2_ref, be2_ref,
                       ox_ref, oy_ref, *, n_heads):
    x = xe_ref[0]                 # (Nx, U)
    y = ye_ref[0]                 # (Ny, U)
    Nx, U = x.shape
    Ny = y.shape[0]
    H = n_heads
    dh = U // H
    scale = 1.0 / (dh ** 0.5)

    xmr = xmr_ref[0]              # (1, Nx)
    xmc = xmc_ref[0]              # (Nx, 1)
    ymr = ymr_ref[0]              # (1, Ny)
    ymc = ymc_ref[0]              # (Ny, 1)

    zc_x = jnp.zeros((Nx, 1), jnp.float32)
    zc_y = jnp.zeros((Ny, 1), jnp.float32)
    zr_x = jnp.zeros((1, Nx), jnp.float32)
    zr_y = jnp.zeros((1, Ny), jnp.float32)
    qx = jnp.concatenate([xmc, zc_y], axis=0)      # (S, 1)
    qy = jnp.concatenate([zc_x, ymc], axis=0)

    # block-diagonal self-attention mask over the concat [x; y] slab, head-tiled
    kx_t = jnp.concatenate([xmr, zr_y] * H, axis=1)          # (1, H*S)
    ky_t = jnp.concatenate([zr_x, ymr] * H, axis=1)
    mask_all = qx * kx_t + qy * ky_t                          # (S, H*S)
    bias_all = jnp.where(mask_all > 0, 0.0, -1e30)

    wts = (wq_ref[0], wk_ref[0], wv_ref[0], wo_ref[0],
           w1_ref[0], b1_ref[0], w2_ref[0], b2_ref[0],
           g1_ref[0], be1_ref[0], g2_ref[0], be2_ref[0])

    s = jnp.concatenate([x, y], axis=0)                       # (S, U)
    s = _block(s, s, mask_all, bias_all, sel_ref[...], ones_ref[...], wts,
               H, scale)
    ox_ref[0] = s[:Nx]
    oy_ref[0] = s[Nx:]


# --------------------------------------------------------------------------
# Kernel 3: fused dec_0 / enc_1 / dec_1 / ... + expectation head per (i, j) pair
# --------------------------------------------------------------------------

def _pair_kernel(xe_ref, ye_ref, xmr_ref, xmc_ref, ymr_ref, ymc_ref,
                 sel_ref, ones_ref,
                 wq_ref, wk_ref, wv_ref, wo_ref,
                 w1_ref, b1_ref, w2_ref, b2_ref,
                 g1_ref, be1_ref, g2_ref, be2_ref,
                 wx_ref, wy_ref, wcomb_ref,
                 o_ref, *, n_heads, n_iterative):
    x = xe_ref[0]                 # (Nx, U) — already through the hoisted enc_0
    y = ye_ref[0]                 # (Ny, U)
    Nx, U = x.shape
    Ny = y.shape[0]
    H = n_heads
    dh = U // H
    scale = 1.0 / (dh ** 0.5)

    xmr = xmr_ref[0]              # (1, Nx)
    xmc = xmc_ref[0]              # (Nx, 1)
    ymr = ymr_ref[0]              # (1, Ny)
    ymc = ymc_ref[0]              # (Ny, 1)

    zc_x = jnp.zeros((Nx, 1), jnp.float32)
    zc_y = jnp.zeros((Ny, 1), jnp.float32)
    zr_x = jnp.zeros((1, Nx), jnp.float32)
    zr_y = jnp.zeros((1, Ny), jnp.float32)
    qx = jnp.concatenate([xmc, zc_y], axis=0)      # (S, 1) x-query rows
    qy = jnp.concatenate([zc_x, ymc], axis=0)      # (S, 1) y-query rows

    # masks / -1e30 biases built ONCE (hoisted out of the layer loop), head-tiled
    # encoder: queries [x; y], keys [x; y] (block diagonal)
    enc_mask_all = (qx * jnp.concatenate([xmr, zr_y] * H, axis=1)
                    + qy * jnp.concatenate([zr_x, ymr] * H, axis=1))   # (S, H*S)
    enc_bias_all = jnp.where(enc_mask_all > 0, 0.0, -1e30)
    # decoder: queries [x; y], keys/values [y; x] (cross blocks)
    dec_mask_all = (qx * jnp.concatenate([ymr, zr_x] * H, axis=1)
                    + qy * jnp.concatenate([zr_y, xmr] * H, axis=1))   # (S, H*S)
    dec_bias_all = jnp.where(dec_mask_all > 0, 0.0, -1e30)

    sel = sel_ref[...]
    ones_blk = ones_ref[...]

    def layer_w(l):
        return (wq_ref[l], wk_ref[l], wv_ref[l], wo_ref[l],
                w1_ref[l], b1_ref[l], w2_ref[l], b2_ref[l],
                g1_ref[l], be1_ref[l], g2_ref[l], be2_ref[l])

    # stacked layer order: [enc_0, dec_0, enc_1, dec_1, ...]; enc_0 was hoisted.
    for it in range(n_iterative):
        le, ld = 2 * it, 2 * it + 1
        if it > 0:
            s = jnp.concatenate([x, y], axis=0)
            s = _block(s, s, enc_mask_all, enc_bias_all, sel, ones_blk,
                       layer_w(le), H, scale)
            x, y = s[:Nx], s[Nx:]
        sq = jnp.concatenate([x, y], axis=0)       # decoder queries
        skv = jnp.concatenate([y, x], axis=0)      # decoder keys/values
        d = _block(sq, skv, dec_mask_all, dec_bias_all, sel, ones_blk,
                   layer_w(ld), H, scale)
        x = x + d[:Nx]
        y = y + d[Nx:]

    # ---- MultiHeadExpectation epilogue (head_w & 1/sqrt(dh) folded into wcomb) ----
    xpj = jnp.dot(x.astype(_BF16), wx_ref[...], preferred_element_type=jnp.float32)
    ypj = jnp.dot(y.astype(_BF16), wy_ref[...], preferred_element_type=jnp.float32)
    xy_m = xmc * ymr                                                    # (Nx, Ny)
    z = jnp.dot(xy_m, ypj, preferred_element_type=jnp.float32)          # (Nx, U)
    c = jnp.sum(xpj * z, axis=0, keepdims=True)                         # (1, U)
    raw = jnp.sum(c * wcomb_ref[...], axis=1, keepdims=True)            # (1, 1)
    cnt = jnp.sum(jnp.sum(xy_m, axis=0, keepdims=True), axis=1, keepdims=True)
    result = raw * pl.reciprocal(jnp.maximum(cnt, 1e-30), approx=True)  # (1, 1)

    # lane-dense score row for this i: the (1, 1, B) output block is resident across
    # the j ("arbitrary") axis and written back to HBM once per i.
    j = pl.program_id(1)

    @pl.when(j == 0)
    def _():
        o_ref[...] = jnp.zeros_like(o_ref)

    ncols = o_ref.shape[-1]
    lane = jax.lax.broadcasted_iota(jnp.int32, (1, 1, ncols), 2)
    o_ref[...] = o_ref[...] + jnp.where(lane == j, result.reshape(1, 1, 1), 0.0)


# --------------------------------------------------------------------------
# Forward wrapper
# --------------------------------------------------------------------------

def set_matching_forward(params, x, x_mask, y, y_mask, *, n_units, n_heads, n_iterative):
    B, Nx, D = x.shape
    Ny = y.shape[1]
    U, H = n_units, n_heads
    dh = U // H
    L = 2 * n_iterative
    HID = params["ff_w1"].shape[-1]
    S = Nx + Ny
    HS = H * S

    # ---- 1) embedder over all x and y rows (rows stay f32 in HBM) ----
    rows = jnp.concatenate([x.reshape(B * Nx, D), y.reshape(B * Ny, D)], axis=0)
    emb = pallas_embed(rows, params["emb_w"], params["emb_b"])
    xe = emb[:B * Nx].reshape(B, Nx, U)
    ye = emb[B * Nx:].reshape(B, Ny, U)

    xm = x_mask.astype(jnp.float32)
    ym = y_mask.astype(jnp.float32)
    xm_row = xm.reshape(B, 1, Nx)
    xm_col = xm.reshape(B, Nx, 1)
    ym_row = ym.reshape(B, 1, Ny)
    ym_col = ym.reshape(B, Ny, 1)

    # constants for the lane-stacked multi-head attention
    head_of_row = jnp.arange(HS, dtype=jnp.int32) // S
    chan_head = jnp.arange(U, dtype=jnp.int32) // dh
    sel = (head_of_row[:, None] == chan_head[None, :]).astype(jnp.float32)        # (HS, U)
    ones_blk = (head_of_row[:, None] == head_of_row[None, :]).astype(jnp.float32)  # (HS, HS)
    wcomb = (jnp.repeat(params["head_w"], dh) / (dh ** 0.5)).reshape(1, U)

    wstack_args = (params["wq"], params["wk"], params["wv"], params["wo"],
                   params["ff_w1"], params["ff_b1"], params["ff_w2"], params["ff_b2"],
                   params["ln1_g"], params["ln1_b"], params["ln2_g"], params["ln2_b"])
    wstack_shapes = [(L, U, U)] * 4 + [(L, U, HID), (L, 1, HID), (L, HID, U), (L, 1, U)] \
                    + [(L, 1, U)] * 4

    # NOTE(perf): at realistic n_units consider pipeline_mode=pl.Buffered(1) / pl.ANY
    # staging for these constant weight blocks to fit v7x's 64 MiB VMEM.

    # ---- 2) pre-pass: hoisted iteration-0 SetEncoder, once per set ----
    pre_in_specs = [
        pl.BlockSpec((1, Nx, U), lambda i: (i, 0, 0)),
        pl.BlockSpec((1, Ny, U), lambda i: (i, 0, 0)),
        pl.BlockSpec((1, 1, Nx), lambda i: (i, 0, 0)),
        pl.BlockSpec((1, Nx, 1), lambda i: (i, 0, 0)),
        pl.BlockSpec((1, 1, Ny), lambda i: (i, 0, 0)),
        pl.BlockSpec((1, Ny, 1), lambda i: (i, 0, 0)),
        pl.BlockSpec((HS, U), lambda i: (0, 0)),
        pl.BlockSpec((HS, HS), lambda i: (0, 0)),
    ] + [pl.BlockSpec(s, lambda i: (0, 0, 0)) for s in wstack_shapes]

    xe_enc, ye_enc = pl.pallas_call(
        functools.partial(_pre_encode_kernel, n_heads=H),
        out_shape=(jax.ShapeDtypeStruct((B, Nx, U), jnp.float32),
                   jax.ShapeDtypeStruct((B, Ny, U), jnp.float32)),
        grid=(B,),
        in_specs=pre_in_specs,
        out_specs=(pl.BlockSpec((1, Nx, U), lambda i: (i, 0, 0)),
                   pl.BlockSpec((1, Ny, U), lambda i: (i, 0, 0))),
        compiler_params=pltpu.CompilerParams(
            dimension_semantics=("parallel",),
            vmem_limit_bytes=32 * 1024 * 1024),
    )(xe, ye, xm_row, xm_col, ym_row, ym_col, sel, ones_blk, *wstack_args)

    # ---- 3) fused pair kernel: dec_0, enc_1, dec_1, ..., expectation head ----
    pair_in_specs = [
        pl.BlockSpec((1, Nx, U), lambda i, j: (i, 0, 0)),    # x (by i)
        pl.BlockSpec((1, Ny, U), lambda i, j: (j, 0, 0)),    # y (by j)
        pl.BlockSpec((1, 1, Nx), lambda i, j: (i, 0, 0)),    # x mask row
        pl.BlockSpec((1, Nx, 1), lambda i, j: (i, 0, 0)),    # x mask col
        pl.BlockSpec((1, 1, Ny), lambda i, j: (j, 0, 0)),    # y mask row
        pl.BlockSpec((1, Ny, 1), lambda i, j: (j, 0, 0)),    # y mask col
        pl.BlockSpec((HS, U), lambda i, j: (0, 0)),          # head-channel selector
        pl.BlockSpec((HS, HS), lambda i, j: (0, 0)),         # block-diag ones
    ] + [pl.BlockSpec(s, lambda i, j: (0, 0, 0)) for s in wstack_shapes] + [
        pl.BlockSpec((U, U), lambda i, j: (0, 0)),           # wx
        pl.BlockSpec((U, U), lambda i, j: (0, 0)),           # wy
        pl.BlockSpec((1, U), lambda i, j: (0, 0)),           # head_w/sqrt(dh) per channel
    ]

    out = pl.pallas_call(
        functools.partial(_pair_kernel, n_heads=H, n_iterative=n_iterative),
        out_shape=jax.ShapeDtypeStruct((B, 1, B), jnp.float32),
        grid=(B, B),
        in_specs=pair_in_specs,
        out_specs=pl.BlockSpec((1, 1, B), lambda i, j: (i, 0, 0)),
        compiler_params=pltpu.CompilerParams(
            dimension_semantics=("parallel", "arbitrary"),
            vmem_limit_bytes=32 * 1024 * 1024),
    )(xe_enc, ye_enc, xm_row, xm_col, ym_row, ym_col, sel, ones_blk,
      *wstack_args, params["wx"], params["wy"], wcomb)

    return out.reshape(B, B) + params["head_b"]


# --------------------------------------------------------------------------
# Pure-JAX reference (same math — bf16 matmul operands, f32 accumulation)
# --------------------------------------------------------------------------

def ref_forward(params, x, x_mask, y, y_mask, n_units, n_heads, n_iterative):
    bf = jnp.bfloat16
    B, Nx, D = x.shape
    Ny = y.shape[1]
    U, H = n_units, n_heads
    dh = U // H

    rows = jnp.concatenate([x.reshape(B * Nx, D), y.reshape(B * Ny, D)], axis=0)
    emb = jnp.dot(rows.astype(bf), params["emb_w"],
                  preferred_element_type=jnp.float32) + params["emb_b"]
    xe = emb[:B * Nx].reshape(B, Nx, U)
    ye = emb[B * Nx:].reshape(B, Ny, U)

    P = B * B
    xp = jnp.broadcast_to(xe[:, None], (B, B, Nx, U)).reshape(P, Nx, U)
    yp = jnp.broadcast_to(ye[None, :], (B, B, Ny, U)).reshape(P, Ny, U)
    xm = jnp.broadcast_to(x_mask[:, None].astype(jnp.float32), (B, B, Nx)).reshape(P, Nx)
    ym = jnp.broadcast_to(y_mask[None, :].astype(jnp.float32), (B, B, Ny)).reshape(P, Ny)

    def attn_mask(qm, km):
        return qm[:, :, None] * km[:, None, :]

    xx, xy = attn_mask(xm, xm), attn_mask(xm, ym)
    yy, yx = attn_mask(ym, ym), attn_mask(ym, xm)

    def mha(xq, xkv, mask, l):
        q = jnp.einsum("pnu,uv->pnv", xq.astype(bf), params["wq"][l],
                       preferred_element_type=jnp.float32)
        k = jnp.einsum("pnu,uv->pnv", xkv.astype(bf), params["wk"][l],
                       preferred_element_type=jnp.float32)
        v = jnp.einsum("pnu,uv->pnv", xkv.astype(bf), params["wv"][l],
                       preferred_element_type=jnp.float32)
        qh = q.reshape(P, -1, H, dh)
        kh = k.reshape(P, -1, H, dh)
        vh = v.reshape(P, -1, H, dh)
        s = jnp.einsum("pqhd,pkhd->phqk", qh.astype(bf), kh.astype(bf),
                       preferred_element_type=jnp.float32) / (dh ** 0.5)
        m = mask[:, None]
        s = jnp.where(m > 0, s, -1e30)
        s = s - s.max(-1, keepdims=True)
        e = jnp.exp(s) * m
        a = e / jnp.maximum(e.sum(-1, keepdims=True), 1e-30)
        c = jnp.einsum("phqk,pkhd->pqhd", a.astype(bf), vh.astype(bf),
                       preferred_element_type=jnp.float32).reshape(P, -1, U)
        return jnp.einsum("pnu,uv->pnv", c.astype(bf), params["wo"][l],
                          preferred_element_type=jnp.float32)

    def add_ln(xin, sub, g, b):
        z = xin + sub
        mu = z.mean(-1, keepdims=True)
        var = jnp.square(z - mu).mean(-1, keepdims=True)
        return (z - mu) * jax.lax.rsqrt(var + 1e-5) * g + b

    def ffn(xin, l):
        h = jnp.maximum(
            jnp.einsum("pnu,uk->pnk", xin.astype(bf), params["ff_w1"][l],
                       preferred_element_type=jnp.float32) + params["ff_b1"][l], 0.0)
        return jnp.einsum("pnk,ku->pnu", h.astype(bf), params["ff_w2"][l],
                          preferred_element_type=jnp.float32) + params["ff_b2"][l]

    def block(xq, xkv, mask, l):
        h = add_ln(xq, mha(xq, xkv, mask, l), params["ln1_g"][l], params["ln1_b"][l])
        return add_ln(h, ffn(h, l), params["ln2_g"][l], params["ln2_b"][l])

    for it in range(n_iterative):
        le, ld = 2 * it, 2 * it + 1
        xp = block(xp, xp, xx, le)
        yp = block(yp, yp, yy, le)
        x_ = xp + block(xp, yp, xy, ld)
        y_ = yp + block(yp, xp, yx, ld)
        xp, yp = x_, y_

    xpj = jnp.einsum("pnu,uv->pnv", xp.astype(bf), params["wx"],
                     preferred_element_type=jnp.float32)
    ypj = jnp.einsum("pmu,uv->pmv", yp.astype(bf), params["wy"],
                     preferred_element_type=jnp.float32)
    z = jnp.einsum("pnm,pmv->pnv", xy, ypj, preferred_element_type=jnp.float32)
    c = jnp.sum(xpj * z, axis=1)                                  # (P, U)
    cnt = jnp.maximum(xy.sum((1, 2)), 1e-30)
    per_head = c.reshape(P, H, dh).sum(-1) / (dh ** 0.5) / cnt[:, None]
    score = per_head @ params["head_w"] + params["head_b"]
    return score.reshape(B, B)


# --------------------------------------------------------------------------
# Deterministic parameter init (synthetic; layers stacked [enc_0, dec_0, enc_1, dec_1])
# --------------------------------------------------------------------------

def init_params(key, d_in, n_units, n_heads, n_iterative):
    U, H = n_units, n_heads
    L = 2 * n_iterative
    HID = 4 * U
    keys = jax.random.split(key, 10)
    it = iter(keys)

    def dense(k, fan_in, shape):
        return (jax.random.normal(k, shape, jnp.float32) / (fan_in ** 0.5)).astype(jnp.bfloat16)

    return {
        "emb_w": dense(next(it), d_in, (d_in, U)),
        "emb_b": jnp.zeros((U,), jnp.float32),
        "wq": dense(next(it), U, (L, U, U)),
        "wk": dense(next(it), U, (L, U, U)),
        "wv": dense(next(it), U, (L, U, U)),
        "wo": dense(next(it), U, (L, U, U)),
        "ff_w1": dense(next(it), U, (L, U, HID)),
        "ff_b1": jnp.zeros((L, 1, HID), jnp.float32),
        "ff_w2": dense(next(it), HID, (L, HID, U)),
        "ff_b2": jnp.zeros((L, 1, U), jnp.float32),
        "ln1_g": jnp.ones((L, 1, U), jnp.float32),
        "ln1_b": jnp.zeros((L, 1, U), jnp.float32),
        "ln2_g": jnp.ones((L, 1, U), jnp.float32),
        "ln2_b": jnp.zeros((L, 1, U), jnp.float32),
        "wx": dense(next(it), U, (U, U)),
        "wy": dense(next(it), U, (U, U)),
        "head_w": jax.random.normal(next(it), (H,), jnp.float32) / (H ** 0.5),
        "head_b": jnp.zeros((), jnp.float32),
    }


# --------------------------------------------------------------------------
# main
# --------------------------------------------------------------------------

if __name__ == "__main__":
    B, Nx, Ny = 2, 8, 8
    D_IN, N_UNITS, N_HEADS, N_ITER = 4096, 32, 8, 2

    key = jax.random.PRNGKey(0)
    kp, kx, ky = jax.random.split(key, 3)
    params = init_params(kp, D_IN, N_UNITS, N_HEADS, N_ITER)

    x = jax.random.normal(kx, (B, Nx, D_IN), jnp.float32)
    y = jax.random.normal(ky, (B, Ny, D_IN), jnp.float32)
    x_mask = (jnp.arange(Nx)[None, :] < jnp.array([Nx, Nx - 2])[:, None]).astype(jnp.float32)
    y_mask = (jnp.arange(Ny)[None, :] < jnp.array([Ny - 3, Ny])[:, None]).astype(jnp.float32)

    pallas_fwd = jax.jit(functools.partial(
        set_matching_forward, n_units=N_UNITS, n_heads=N_HEADS, n_iterative=N_ITER))

    score = pallas_fwd(params, x, x_mask, y, y_mask)
    score = jax.block_until_ready(score)
    assert score.shape == (B, B)

    ref = ref_forward(params, x, x_mask, y, y_mask, N_UNITS, N_HEADS, N_ITER)
    np.testing.assert_allclose(np.asarray(score), np.asarray(ref), rtol=2e-2, atol=2e-2)

    print("KERNEL_OK")
</pallas_src>

<mosaic_0001>
module attributes {stable_mosaic.version = 11 : i64} {
  func.func @_embed_kernel(%arg0: i32, %arg1: memref<32x4096xf32, #tpu.memory_space<vmem>>, %arg2: memref<4096x32xbf16, #tpu.memory_space<vmem>>, %arg3: memref<1x32xf32, #tpu.memory_space<vmem>>, %arg4: memref<32x32xf32, #tpu.memory_space<vmem>>) attributes {dimension_semantics = [#tpu.dimension_semantics<parallel>], iteration_bounds = array<i64: 1>, scalar_prefetch = 0 : i64, scratch_operands = 0 : i64, tpu.core_type = #tpu.core_type<tc>, window_params = [{transform_indices = @transform_0, window_bounds = array<i64: 32, 4096>}, {pipeline_mode = #tpu.pipeline_mode<synchronous>, transform_indices = @transform_1, window_bounds = array<i64: 4096, 32>}, {pipeline_mode = #tpu.pipeline_mode<synchronous>, transform_indices = @transform_2, window_bounds = array<i64: 1, 32>}, {transform_indices = @transform_3, window_bounds = array<i64: 32, 32>}]} {
    %c0 = arith.constant 0 : index
    %c0_0 = arith.constant 0 : index
    %0 = vector.load %arg1[%c0, %c0_0] : memref<32x4096xf32, #tpu.memory_space<vmem>>, vector<32x4096xf32>
    %1 = arith.truncf %0 : vector<32x4096xf32> to vector<32x4096xbf16>
    %c0_1 = arith.constant 0 : index
    %c0_2 = arith.constant 0 : index
    %2 = vector.load %arg2[%c0_1, %c0_2] : memref<4096x32xbf16, #tpu.memory_space<vmem>>, vector<4096x32xbf16>
    %cst = arith.constant dense<0.000000e+00> : vector<32x32xf32>
    %3 = tpu.matmul %1, %2, %cst {dimension_numbers = #tpu.dot_dimension_numbers<[1], [0], [0], [1], [0, 0, 1, 1], [], []>} : vector<32x4096xbf16>, vector<4096x32xbf16>, vector<32x32xf32> -> vector<32x32xf32>
    %c0_3 = arith.constant 0 : index
    %c0_4 = arith.constant 0 : index
    %4 = vector.load %arg3[%c0_3, %c0_4] : memref<1x32xf32, #tpu.memory_space<vmem>>, vector<1x32xf32>
    %5 = vector.broadcast %4 : vector<1x32xf32> to vector<32x32xf32>
    %6 = arith.addf %3, %5 : vector<32x32xf32>
    %c0_5 = arith.constant 0 : index
    %c0_6 = arith.constant 0 : index
    %7 = vector.load %arg4[%c0_5, %c0_6] : memref<32x32xf32, #tpu.memory_space<vmem>>, vector<32x32xf32>
    tpu.vector_store %arg4[%c0_5, %c0_6], %6 {strides = array<i32>} : memref<32x32xf32, #tpu.memory_space<vmem>>, vector<32x32xf32>,
    return
  }
  func.func @transform_0(%arg0: i32) -> (i32, i32) {
    %c0_i32 = arith.constant 0 : i32
    %c0_i32_0 = arith.constant 0 : i32
    return %arg0, %c0_i32 : i32, i32
  }
  func.func @transform_1(%arg0: i32) -> (i32, i32) {
    %c0_i32 = arith.constant 0 : i32
    %c0_i32_0 = arith.constant 0 : i32
    %c0_i32_1 = arith.constant 0 : i32
    return %c0_i32, %c0_i32_0 : i32, i32
  }
  func.func @transform_2(%arg0: i32) -> (i32, i32) {
    %c0_i32 = arith.constant 0 : i32
    %c0_i32_0 = arith.constant 0 : i32
    %c0_i32_1 = arith.constant 0 : i32
    return %c0_i32, %c0_i32_0 : i32, i32
  }
  func.func @transform_3(%arg0: i32) -> (i32, i32) {
    %c0_i32 = arith.constant 0 : i32
    %c0_i32_0 = arith.constant 0 : i32
    return %arg0, %c0_i32 : i32, i32
  }
}

module attributes {stable_mosaic.version = 11 : i64} {
  func.func @_pre_encode_kernel(%arg0: i32, %arg1: memref<1x8x32xf32, #tpu.memory_space<vmem>>, %arg2: memref<1x8x32xf32, #tpu.memory_space<vmem>>, %arg3: memref<1x1x8xf32, #tpu.memory_space<vmem>>, %arg4: memref<1x8x1xf32, #tpu.memory_space<vmem>>, %arg5: memref<1x1x8xf32, #tpu.memory_space<vmem>>, %arg6: memref<1x8x1xf32, #tpu.memory_space<vmem>>, %arg7: memref<128x32xf32, #tpu.memory_space<vmem>>, %arg8: memref<128x128xf32, #tpu.memory_space<vmem>>, %arg9: memref<4x32x32xbf16, #tpu.memory_space<vmem>>, %arg10: memref<4x32x32xbf16, #tpu.memory_space<vmem>>, %arg11: memref<4x32x32xbf16, #tpu.memory_space<vmem>>, %arg12: memref<4x32x32xbf16, #tpu.memory_space<vmem>>, %arg13: memref<4x32x128xbf16, #tpu.memory_space<vmem>>, %arg14: memref<4x1x128xf32, #tpu.memory_space<vmem>>, %arg15: memref<4x128x32xbf16, #tpu.memory_space<vmem>>, %arg16: memref<4x1x32xf32, #tpu.memory_space<vmem>>, %arg17: memref<4x1x32xf32, #tpu.memory_space<vmem>>, %arg18: memref<4x1x32xf32, #tpu.memory_space<vmem>>, %arg19: memref<4x1x32xf32, #tpu.memory_space<vmem>>, %arg20: memref<4x1x32xf32, #tpu.memory_space<vmem>>, %arg21: memref<1x8x32xf32, #tpu.memory_space<vmem>>, %arg22: memref<1x8x32xf32, #tpu.memory_space<vmem>>) attributes {dimension_semantics = [#tpu.dimension_semantics<parallel>], iteration_bounds = array<i64: 2>, scalar_prefetch = 0 : i64, scratch_operands = 0 : i64, tpu.core_type = #tpu.core_type<tc>, window_params = [{transform_indices = @transform_0, window_bounds = array<i64: 1, 8, 32>}, {transform_indices = @transform_1, window_bounds = array<i64: 1, 8, 32>}, {transform_indices = @transform_2, window_bounds = array<i64: 1, 1, 8>}, {transform_indices = @transform_3, window_bounds = array<i64: 1, 8, 1>}, {transform_indices = @transform_4, window_bounds = array<i64: 1, 1, 8>}, {transform_indices = @transform_5, window_bounds = array<i64: 1, 8, 1>}, {pipeline_mode = #tpu.pipeline_mode<synchronous>, transform_indices = @transform_6, window_bounds = array<i64: 128, 32>}, {pipeline_mode = #tpu.pipeline_mode<synchronous>, transform_indices = @transform_7, window_bounds = array<i64: 128, 128>}, {pipeline_mode = #tpu.pipeline_mode<synchronous>, transform_indices = @transform_8, window_bounds = array<i64: 4, 32, 32>}, {pipeline_mode = #tpu.pipeline_mode<synchronous>, transform_indices = @transform_9, window_bounds = array<i64: 4, 32, 32>}, {pipeline_mode = #tpu.pipeline_mode<synchronous>, transform_indices = @transform_10, window_bounds = array<i64: 4, 32, 32>}, {pipeline_mode = #tpu.pipeline_mode<synchronous>, transform_indices = @transform_11, window_bounds = array<i64: 4, 32, 32>}, {pipeline_mode = #tpu.pipeline_mode<synchronous>, transform_indices = @transform_12, window_bounds = array<i64: 4, 32, 128>}, {pipeline_mode = #tpu.pipeline_mode<synchronous>, transform_indices = @transform_13, window_bounds = array<i64: 4, 1, 128>}, {pipeline_mode = #tpu.pipeline_mode<synchronous>, transform_indices = @transform_14, window_bounds = array<i64: 4, 128, 32>}, {pipeline_mode = #tpu.pipeline_mode<synchronous>, transform_indices = @transform_15, window_bounds = array<i64: 4, 1, 32>}, {pipeline_mode = #tpu.pipeline_mode<synchronous>, transform_indices = @transform_16, window_bounds = array<i64: 4, 1, 32>}, {pipeline_mode = #tpu.pipeline_mode<synchronous>, transform_indices = @transform_17, window_bounds = array<i64: 4, 1, 32>}, {pipeline_mode = #tpu.pipeline_mode<synchronous>, transform_indices = @transform_18, window_bounds = array<i64: 4, 1, 32>}, {pipeline_mode = #tpu.pipeline_mode<synchronous>, transform_indices = @transform_19, window_bounds = array<i64: 4, 1, 32>}, {transform_indices = @transform_20, window_bounds = array<i64: 1, 8, 32>}, {transform_indices = @transform_21, window_bounds = array<i64: 1, 8, 32>}]} {
    %c0 = arith.constant 0 : index
    %c0_0 = arith.constant 0 : index
    %c0_1 = arith.constant 0 : index
    %0 = vector.load %arg1[%c0, %c0_0, %c0_1] : memref<1x8x32xf32, #tpu.memory_space<vmem>>, vector<1x8x32xf32>
    %1 = vector.shape_cast %0 : vector<1x8x32xf32> to vector<8x32xf32>
    %c0_2 = arith.constant 0 : index
    %c0_3 = arith.constant 0 : index
    %c0_4 = arith.constant 0 : index
    %2 = vector.load %arg2[%c0_2, %c0_3, %c0_4] : memref<1x8x32xf32, #tpu.memory_space<vmem>>, vector<1x8x32xf32>
    %3 = vector.shape_cast %2 : vector<1x8x32xf32> to vector<8x32xf32>
    %c0_5 = arith.constant 0 : index
    %c0_6 = arith.constant 0 : index
    %c0_7 = arith.constant 0 : index
    %4 = vector.load %arg3[%c0_5, %c0_6, %c0_7] : memref<1x1x8xf32, #tpu.memory_space<vmem>>, vector<1x1x8xf32>
    %5 = vector.shape_cast %4 : vector<1x1x8xf32> to vector<1x8xf32>
    %c0_8 = arith.constant 0 : index
    %c0_9 = arith.constant 0 : index
    %c0_10 = arith.constant 0 : index
    %6 = vector.load %arg4[%c0_8, %c0_9, %c0_10] : memref<1x8x1xf32, #tpu.memory_space<vmem>>, vector<1x8x1xf32>
    %7 = vector.shape_cast %6 : vector<1x8x1xf32> to vector<8x1xf32>
    %c0_11 = arith.constant 0 : index
    %c0_12 = arith.constant 0 : index
    %c0_13 = arith.constant 0 : index
    %8 = vector.load %arg5[%c0_11, %c0_12, %c0_13] : memref<1x1x8xf32, #tpu.memory_space<vmem>>, vector<1x1x8xf32>
    %9 = vector.shape_cast %8 : vector<1x1x8xf32> to vector<1x8xf32>
    %c0_14 = arith.constant 0 : index
    %c0_15 = arith.constant 0 : index
    %c0_16 = arith.constant 0 : index
    %10 = vector.load %arg6[%c0_14, %c0_15, %c0_16] : memref<1x8x1xf32, #tpu.memory_space<vmem>>, vector<1x8x1xf32>
    %11 = vector.shape_cast %10 : vector<1x8x1xf32> to vector<8x1xf32>
    %cst = arith.constant 0.000000e+00 : f32
    %12 = vector.broadcast %cst : f32 to vector<8x1xf32>
    %cst_17 = arith.constant 0.000000e+00 : f32
    %13 = vector.broadcast %cst_17 : f32 to vector<8x1xf32>
    %cst_18 = arith.constant 0.000000e+00 : f32
    %14 = vector.broadcast %cst_18 : f32 to vector<1x8xf32>
    %cst_19 = arith.constant 0.000000e+00 : f32
    %15 = vector.broadcast %cst_19 : f32 to vector<1x8xf32>
    %16 = tpu.concatenate %7, %13 in 0 : vector<8x1xf32>, vector<8x1xf32> -> vector<16x1xf32>
    %17 = tpu.concatenate %12, %11 in 0 : vector<8x1xf32>, vector<8x1xf32> -> vector<16x1xf32>
    %18 = tpu.concatenate %5, %15, %5, %15, %5, %15, %5, %15, %5, %15, %5, %15, %5, %15, %5, %15 in 1 : vector<1x8xf32>, vector<1x8xf32>, vector<1x8xf32>, vector<1x8xf32>, vector<1x8xf32>, vector<1x8xf32>, vector<1x8xf32>, vector<1x8xf32>, vector<1x8xf32>, vector<1x8xf32>, vector<1x8xf32>, vector<1x8xf32>, vector<1x8xf32>, vector<1x8xf32>, vector<1x8xf32>, vector<1x8xf32> -> vector<1x128xf32>
    %19 = tpu.concatenate %14, %9, %14, %9, %14, %9, %14, %9, %14, %9, %14, %9, %14, %9, %14, %9 in 1 : vector<1x8xf32>, vector<1x8xf32>, vector<1x8xf32>, vector<1x8xf32>, vector<1x8xf32>, vector<1x8xf32>, vector<1x8xf32>, vector<1x8xf32>, vector<1x8xf32>, vector<1x8xf32>, vector<1x8xf32>, vector<1x8xf32>, vector<1x8xf32>, vector<1x8xf32>, vector<1x8xf32>, vector<1x8xf32> -> vector<1x128xf32>
    %20 = vector.broadcast %16 : vector<16x1xf32> to vector<16x128xf32>
    %21 = vector.broadcast %18 : vector<1x128xf32> to vector<16x128xf32>
    %22 = arith.mulf %20, %21 : vector<16x128xf32>
    %23 = vector.broadcast %17 : vector<16x1xf32> to vector<16x128xf32>
    %24 = vector.broadcast %19 : vector<1x128xf32> to vector<16x128xf32>
    %25 = arith.mulf %23, %24 : vector<16x128xf32>
    %26 = arith.addf %22, %25 : vector<16x128xf32>
    %cst_20 = arith.constant 0.000000e+00 : f32
    %27 = vector.broadcast %cst_20 : f32 to vector<16x128xf32>
    %28 = arith.cmpf ogt, %26, %27 : vector<16x128xf32>
    %cst_21 = arith.constant 0.000000e+00 : f32
    %cst_22 = arith.constant -1.000000e+30 : f32
    %29 = vector.broadcast %cst_21 : f32 to vector<16x128xf32>
    %30 = vector.broadcast %cst_22 : f32 to vector<16x128xf32>
    %31 = arith.select %28, %29, %30 : vector<16x128xi1>, vector<16x128xf32>
    %c0_23 = arith.constant 0 : index
    %c0_24 = arith.constant 0 : index
    %c0_25 = arith.constant 0 : index
    %32 = vector.load %arg9[%c0_23, %c0_24, %c0_25] : memref<4x32x32xbf16, #tpu.memory_space<vmem>>, vector<1x32x32xbf16>
    %33 = vector.shape_cast %32 : vector<1x32x32xbf16> to vector<32x32xbf16>
    %c0_26 = arith.constant 0 : index
    %c0_27 = arith.constant 0 : index
    %c0_28 = arith.constant 0 : index
    %34 = vector.load %arg10[%c0_26, %c0_27, %c0_28] : memref<4x32x32xbf16, #tpu.memory_space<vmem>>, vector<1x32x32xbf16>
    %35 = vector.shape_cast %34 : vector<1x32x32xbf16> to vector<32x32xbf16>
    %c0_29 = arith.constant 0 : index
    %c0_30 = arith.constant 0 : index
    %c0_31 = arith.constant 0 : index
    %36 = vector.load %arg11[%c0_29, %c0_30, %c0_31] : memref<4x32x32xbf16, #tpu.memory_space<vmem>>, vector<1x32x32xbf16>
    %37 = vector.shape_cast %36 : vector<1x32x32xbf16> to vector<32x32xbf16>
    %c0_32 = arith.constant 0 : index
    %c0_33 = arith.constant 0 : index
    %c0_34 = arith.constant 0 : index
    %38 = vector.load %arg12[%c0_32, %c0_33, %c0_34] : memref<4x32x32xbf16, #tpu.memory_space<vmem>>, vector<1x32x32xbf16>
    %39 = vector.shape_cast %38 : vector<1x32x32xbf16> to vector<32x32xbf16>
    %c0_35 = arith.constant 0 : index
    %c0_36 = arith.constant 0 : index
    %c0_37 = arith.constant 0 : index
    %40 = vector.load %arg13[%c0_35, %c0_36, %c0_37] : memref<4x32x128xbf16, #tpu.memory_space<vmem>>, vector<1x32x128xbf16>
    %41 = vector.shape_cast %40 : vector<1x32x128xbf16> to vector<32x128xbf16>
    %c0_38 = arith.constant 0 : index
    %c0_39 = arith.constant 0 : index
    %c0_40 = arith.constant 0 : index
    %42 = vector.load %arg14[%c0_38, %c0_39, %c0_40] : memref<4x1x128xf32, #tpu.memory_space<vmem>>, vector<1x1x128xf32>
    %43 = vector.shape_cast %42 : vector<1x1x128xf32> to vector<1x128xf32>
    %c0_41 = arith.constant 0 : index
    %c0_42 = arith.constant 0 : index
    %c0_43 = arith.constant 0 : index
    %44 = vector.load %arg15[%c0_41, %c0_42, %c0_43] : memref<4x128x32xbf16, #tpu.memory_space<vmem>>, vector<1x128x32xbf16>
    %45 = vector.shape_cast %44 : vector<1x128x32xbf16> to vector<128x32xbf16>
    %c0_44 = arith.constant 0 : index
    %c0_45 = arith.constant 0 : index
    %c0_46 = arith.constant 0 : index
    %46 = vector.load %arg16[%c0_44, %c0_45, %c0_46] : memref<4x1x32xf32, #tpu.memory_space<vmem>>, vector<1x1x32xf32>
    %47 = vector.shape_cast %46 : vector<1x1x32xf32> to vector<1x32xf32>
    %c0_47 = arith.constant 0 : index
    %c0_48 = arith.constant 0 : index
    %c0_49 = arith.constant 0 : index
    %48 = vector.load %arg17[%c0_47, %c0_48, %c0_49] : memref<4x1x32xf32, #tpu.memory_space<vmem>>, vector<1x1x32xf32>
    %49 = vector.shape_cast %48 : vector<1x1x32xf32> to vector<1x32xf32>
    %c0_50 = arith.constant 0 : index
    %c0_51 = arith.constant 0 : index
    %c0_52 = arith.constant 0 : index
    %50 = vector.load %arg18[%c0_50, %c0_51, %c0_52] : memref<4x1x32xf32, #tpu.memory_space<vmem>>, vector<1x1x32xf32>
    %51 = vector.shape_cast %50 : vector<1x1x32xf32> to vector<1x32xf32>
    %c0_53 = arith.constant 0 : index
    %c0_54 = arith.constant 0 : index
    %c0_55 = arith.constant 0 : index
    %52 = vector.load %arg19[%c0_53, %c0_54, %c0_55] : memref<4x1x32xf32, #tpu.memory_space<vmem>>, vector<1x1x32xf32>
    %53 = vector.shape_cast %52 : vector<1x1x32xf32> to vector<1x32xf32>
    %c0_56 = arith.constant 0 : index
    %c0_57 = arith.constant 0 : index
    %c0_58 = arith.constant 0 : index
    %54 = vector.load %arg20[%c0_56, %c0_57, %c0_58] : memref<4x1x32xf32, #tpu.memory_space<vmem>>, vector<1x1x32xf32>
    %55 = vector.shape_cast %54 : vector<1x1x32xf32> to vector<1x32xf32>
    %56 = tpu.concatenate %1, %3 in 0 : vector<8x32xf32>, vector<8x32xf32> -> vector<16x32xf32>
    %c0_59 = arith.constant 0 : index
    %c0_60 = arith.constant 0 : index
    %57 = vector.load %arg7[%c0_59, %c0_60] : memref<128x32xf32, #tpu.memory_space<vmem>>, vector<128x32xf32>
    %c0_61 = arith.constant 0 : index
    %c0_62 = arith.constant 0 : index
    %58 = vector.load %arg8[%c0_61, %c0_62] : memref<128x128xf32, #tpu.memory_space<vmem>>, vector<128x128xf32>
    %59 = arith.truncf %56 : vector<16x32xf32> to vector<16x32xbf16>
    %cst_63 = arith.constant dense<0.000000e+00> : vector<16x32xf32>
    %60 = tpu.matmul %59, %33, %cst_63 {dimension_numbers = #tpu.dot_dimension_numbers<[1], [0], [0], [1], [0, 0, 1, 1], [], []>} : vector<16x32xbf16>, vector<32x32xbf16>, vector<16x32xf32> -> vector<16x32xf32>
    %61 = arith.truncf %56 : vector<16x32xf32> to vector<16x32xbf16>
    %cst_64 = arith.constant dense<0.000000e+00> : vector<16x32xf32>
    %62 = tpu.matmul %61, %35, %cst_64 {dimension_numbers = #tpu.dot_dimension_numbers<[1], [0], [0], [1], [0, 0, 1, 1], [], []>} : vector<16x32xbf16>, vector<32x32xbf16>, vector<16x32xf32> -> vector<16x32xf32>
    %63 = arith.truncf %56 : vector<16x32xf32> to vector<16x32xbf16>
    %cst_65 = arith.constant dense<0.000000e+00> : vector<16x32xf32>
    %64 = tpu.matmul %63, %37, %cst_65 {dimension_numbers = #tpu.dot_dimension_numbers<[1], [0], [0], [1], [0, 0, 1, 1], [], []>} : vector<16x32xbf16>, vector<32x32xbf16>, vector<16x32xf32> -> vector<16x32xf32>
    %65 = tpu.concatenate %62, %62, %62, %62, %62, %62, %62, %62 in 0 : vector<16x32xf32>, vector<16x32xf32>, vector<16x32xf32>, vector<16x32xf32>, vector<16x32xf32>, vector<16x32xf32>, vector<16x32xf32>, vector<16x32xf32> -> vector<128x32xf32>
    %66 = arith.mulf %65, %57 : vector<128x32xf32>
    %67 = arith.truncf %66 : vector<128x32xf32> to vector<128x32xbf16>
    %68 = tpu.concatenate %64, %64, %64, %64, %64, %64, %64, %64 in 0 : vector<16x32xf32>, vector<16x32xf32>, vector<16x32xf32>, vector<16x32xf32>, vector<16x32xf32>, vector<16x32xf32>, vector<16x32xf32>, vector<16x32xf32> -> vector<128x32xf32>
    %69 = arith.mulf %68, %57 : vector<128x32xf32>
    %70 = arith.truncf %69 : vector<128x32xf32> to vector<128x32xbf16>
    %71 = arith.truncf %60 : vector<16x32xf32> to vector<16x32xbf16>
    %cst_66 = arith.constant dense<0.000000e+00> : vector<16x128xf32>
    %72 = tpu.matmul %71, %67, %cst_66 {dimension_numbers = #tpu.dot_dimension_numbers<[1], [1], [0], [0], [0, 0, 1, 0], [], []>} : vector<16x32xbf16>, vector<128x32xbf16>, vector<16x128xf32> -> vector<16x128xf32>
    %cst_67 = arith.constant 5.000000e-01 : f32
    %73 = vector.broadcast %cst_67 : f32 to vector<16x128xf32>
    %74 = arith.mulf %72, %73 : vector<16x128xf32>
    %75 = arith.addf %74, %31 : vector<16x128xf32>
    %cst_68 = arith.constant dense<0xFF800000> : vector<16xf32>
    %76 = vector.multi_reduction <maximumf>, %75, %cst_68 [1] : vector<16x128xf32> to vector<16xf32>
    %77 = vector.shape_cast %76 : vector<16xf32> to vector<16x1xf32>
    %78 = vector.broadcast %77 : vector<16x1xf32> to vector<16x128xf32>
    %79 = arith.subf %75, %78 : vector<16x128xf32>
    %80 = math.exp %79 : vector<16x128xf32>
    %81 = arith.mulf %80, %26 : vector<16x128xf32>
    %cst_69 = arith.constant dense<0.000000e+00> : vector<16x128xf32>
    %82 = tpu.matmul %81, %58, %cst_69 {dimension_numbers = #tpu.dot_dimension_numbers<[1], [0], [0], [1], [0, 0, 1, 1], [], []>} : vector<16x128xf32>, vector<128x128xf32>, vector<16x128xf32> -> vector<16x128xf32>
    %cst_70 = arith.constant 1.000000e-30 : f32
    %83 = vector.broadcast %cst_70 : f32 to vector<16x128xf32>
    %84 = arith.maximumf %82, %83 : vector<16x128xf32>
    %85 = tpu.reciprocal %84 {approx = true} : vector<16x128xf32> -> vector<16x128xf32>
    %86 = arith.mulf %81, %85 : vector<16x128xf32>
    %87 = arith.truncf %86 : vector<16x128xf32> to vector<16x128xbf16>
    %cst_71 = arith.constant dense<0.000000e+00> : vector<16x32xf32>
    %88 = tpu.matmul %87, %70, %cst_71 {dimension_numbers = #tpu.dot_dimension_numbers<[1], [0], [0], [1], [0, 0, 1, 1], [], []>} : vector<16x128xbf16>, vector<128x32xbf16>, vector<16x32xf32> -> vector<16x32xf32>
    %89 = arith.truncf %88 : vector<16x32xf32> to vector<16x32xbf16>
    %cst_72 = arith.constant dense<0.000000e+00> : vector<16x32xf32>
    %90 = tpu.matmul %89, %39, %cst_72 {dimension_numbers = #tpu.dot_dimension_numbers<[1], [0], [0], [1], [0, 0, 1, 1], [], []>} : vector<16x32xbf16>, vector<32x32xbf16>, vector<16x32xf32> -> vector<16x32xf32>
    %91 = arith.addf %56, %90 : vector<16x32xf32>
    %cst_73 = arith.constant dense<0.000000e+00> : vector<16xf32>
    %92 = vector.multi_reduction <add>, %91, %cst_73 [1] : vector<16x32xf32> to vector<16xf32>
    %93 = vector.shape_cast %92 : vector<16xf32> to vector<16x1xf32>
    %cst_74 = arith.constant 3.200000e+01 : f32
    %94 = vector.broadcast %cst_74 : f32 to vector<16x1xf32>
    %95 = arith.divf %93, %94 : vector<16x1xf32>
    %96 = vector.broadcast %95 : vector<16x1xf32> to vector<16x32xf32>
    %97 = arith.subf %91, %96 : vector<16x32xf32>
    %98 = arith.mulf %97, %97 : vector<16x32xf32>
    %cst_75 = arith.constant dense<0.000000e+00> : vector<16xf32>
    %99 = vector.multi_reduction <add>, %98, %cst_75 [1] : vector<16x32xf32> to vector<16xf32>
    %100 = vector.shape_cast %99 : vector<16xf32> to vector<16x1xf32>
    %cst_76 = arith.constant 3.200000e+01 : f32
    %101 = vector.broadcast %cst_76 : f32 to vector<16x1xf32>
    %102 = arith.divf %100, %101 : vector<16x1xf32>
    %103 = vector.broadcast %95 : vector<16x1xf32> to vector<16x32xf32>
    %104 = arith.subf %91, %103 : vector<16x32xf32>
    %cst_77 = arith.constant 9.99999974E-6 : f32
    %105 = vector.broadcast %cst_77 : f32 to vector<16x1xf32>
    %106 = arith.addf %102, %105 : vector<16x1xf32>
    %107 = math.rsqrt %106 : vector<16x1xf32>
    %108 = vector.broadcast %107 : vector<16x1xf32> to vector<16x32xf32>
    %109 = arith.mulf %104, %108 : vector<16x32xf32>
    %110 = vector.broadcast %49 : vector<1x32xf32> to vector<16x32xf32>
    %111 = arith.mulf %109, %110 : vector<16x32xf32>
    %112 = vector.broadcast %51 : vector<1x32xf32> to vector<16x32xf32>
    %113 = arith.addf %111, %112 : vector<16x32xf32>
    %114 = arith.truncf %113 : vector<16x32xf32> to vector<16x32xbf16>
    %cst_78 = arith.constant dense<0.000000e+00> : vector<16x128xf32>
    %115 = tpu.matmul %114, %41, %cst_78 {dimension_numbers = #tpu.dot_dimension_numbers<[1], [0], [0], [1], [0, 0, 1, 1], [], []>} : vector<16x32xbf16>, vector<32x128xbf16>, vector<16x128xf32> -> vector<16x128xf32>
    %116 = vector.broadcast %43 : vector<1x128xf32> to vector<16x128xf32>
    %117 = arith.addf %115, %116 : vector<16x128xf32>
    %cst_79 = arith.constant 0.000000e+00 : f32
    %118 = vector.broadcast %cst_79 : f32 to vector<16x128xf32>
    %119 = arith.maximumf %117, %118 : vector<16x128xf32>
    %120 = arith.truncf %119 : vector<16x128xf32> to vector<16x128xbf16>
    %cst_80 = arith.constant dense<0.000000e+00> : vector<16x32xf32>
    %121 = tpu.matmul %120, %45, %cst_80 {dimension_numbers = #tpu.dot_dimension_numbers<[1], [0], [0], [1], [0, 0, 1, 1], [], []>} : vector<16x128xbf16>, vector<128x32xbf16>, vector<16x32xf32> -> vector<16x32xf32>
    %122 = vector.broadcast %47 : vector<1x32xf32> to vector<16x32xf32>
    %123 = arith.addf %121, %122 : vector<16x32xf32>
    %124 = arith.addf %113, %123 : vector<16x32xf32>
    %cst_81 = arith.constant dense<0.000000e+00> : vector<16xf32>
    %125 = vector.multi_reduction <add>, %124, %cst_81 [1] : vector<16x32xf32> to vector<16xf32>
    %126 = vector.shape_cast %125 : vector<16xf32> to vector<16x1xf32>
    %cst_82 = arith.constant 3.200000e+01 : f32
    %127 = vector.broadcast %cst_82 : f32 to vector<16x1xf32>
    %128 = arith.divf %126, %127 : vector<16x1xf32>
    %129 = vector.broadcast %128 : vector<16x1xf32> to vector<16x32xf32>
    %130 = arith.subf %124, %129 : vector<16x32xf32>
    %131 = arith.mulf %130, %130 : vector<16x32xf32>
    %cst_83 = arith.constant dense<0.000000e+00> : vector<16xf32>
    %132 = vector.multi_reduction <add>, %131, %cst_83 [1] : vector<16x32xf32> to vector<16xf32>
    %133 = vector.shape_cast %132 : vector<16xf32> to vector<16x1xf32>
    %cst_84 = arith.constant 3.200000e+01 : f32
    %134 = vector.broadcast %cst_84 : f32 to vector<16x1xf32>
    %135 = arith.divf %133, %134 : vector<16x1xf32>
    %136 = vector.broadcast %128 : vector<16x1xf32> to vector<16x32xf32>
    %137 = arith.subf %124, %136 : vector<16x32xf32>
    %cst_85 = arith.constant 9.99999974E-6 : f32
    %138 = vector.broadcast %cst_85 : f32 to vector<16x1xf32>
    %139 = arith.addf %135, %138 : vector<16x1xf32>
    %140 = math.rsqrt %139 : vector<16x1xf32>
    %141 = vector.broadcast %140 : vector<16x1xf32> to vector<16x32xf32>
    %142 = arith.mulf %137, %141 : vector<16x32xf32>
    %143 = vector.broadcast %53 : vector<1x32xf32> to vector<16x32xf32>
    %144 = arith.mulf %142, %143 : vector<16x32xf32>
    %145 = vector.broadcast %55 : vector<1x32xf32> to vector<16x32xf32>
    %146 = arith.addf %144, %145 : vector<16x32xf32>
    %147 = vector.extract_strided_slice %146 {offsets = [0, 0], sizes = [8, 32], strides = [1, 1]} : vector<16x32xf32> to vector<8x32xf32>
    %c0_86 = arith.constant 0 : index
    %c0_87 = arith.constant 0 : index
    %c0_88 = arith.constant 0 : index
    %148 = vector.load %arg21[%c0_86, %c0_87, %c0_88] : memref<1x8x32xf32, #tpu.memory_space<vmem>>, vector<1x8x32xf32>
    %149 = vector.shape_cast %148 : vector<1x8x32xf32> to vector<8x32xf32>
    %150 = vector.shape_cast %147 : vector<8x32xf32> to vector<1x8x32xf32>
    tpu.vector_store %arg21[%c0_86, %c0_87, %c0_88], %150 {strides = array<i32>} : memref<1x8x32xf32, #tpu.memory_space<vmem>>, vector<1x8x32xf32>,
    %151 = vector.extract_strided_slice %146 {offsets = [8, 0], sizes = [8, 32], strides = [1, 1]} : vector<16x32xf32> to vector<8x32xf32>
    %c0_89 = arith.constant 0 : index
    %c0_90 = arith.constant 0 : index
    %c0_91 = arith.constant 0 : index
    %152 = vector.load %arg22[%c0_89, %c0_90, %c0_91] : memref<1x8x32xf32, #tpu.memory_space<vmem>>, vector<1x8x32xf32>
    %153 = vector.shape_cast %152 : vector<1x8x32xf32> to vector<8x32xf32>
    %154 = vector.shape_cast %151 : vector<8x32xf32> to vector<1x8x32xf32>
    tpu.vector_store %arg22[%c0_89, %c0_90, %c0_91], %154 {strides = array<i32>} : memref<1x8x32xf32, #tpu.memory_space<vmem>>, vector<1x8x32xf32>,
    return
  }
  func.func @transform_0(%arg0: i32) -> (i32, i32, i32) {
    %c0_i32 = arith.constant 0 : i32
    %c0_i32_0 = arith.constant 0 : i32
    %c0_i32_1 = arith.constant 0 : i32
    return %arg0, %c0_i32, %c0_i32_0 : i32, i32, i32
  }
  func.func @transform_1(%arg0: i32) -> (i32, i32, i32) {
    %c0_i32 = arith.constant 0 : i32
    %c0_i32_0 = arith.constant 0 : i32
    %c0_i32_1 = arith.constant 0 : i32
    return %arg0, %c0_i32, %c0_i32_0 : i32, i32, i32
  }
  func.func @transform_2(%arg0: i32) -> (i32, i32, i32) {
    %c0_i32 = arith.constant 0 : i32
    %c0_i32_0 = arith.constant 0 : i32
    %c0_i32_1 = arith.constant 0 : i32
    return %arg0, %c0_i32, %c0_i32_0 : i32, i32, i32
  }
  func.func @transform_3(%arg0: i32) -> (i32, i32, i32) {
    %c0_i32 = arith.constant 0 : i32
    %c0_i32_0 = arith.constant 0 : i32
    %c0_i32_1 = arith.constant 0 : i32
    return %arg0, %c0_i32, %c0_i32_0 : i32, i32, i32
  }
  func.func @transform_4(%arg0: i32) -> (i32, i32, i32) {
    %c0_i32 = arith.constant 0 : i32
    %c0_i32_0 = arith.constant 0 : i32
    %c0_i32_1 = arith.constant 0 : i32
    return %arg0, %c0_i32, %c0_i32_0 : i32, i32, i32
  }
  func.func @transform_5(%arg0: i32) -> (i32, i32, i32) {
    %c0_i32 = arith.constant 0 : i32
    %c0_i32_0 = arith.constant 0 : i32
    %c0_i32_1 = arith.constant 0 : i32
    return %arg0, %c0_i32, %c0_i32_0 : i32, i32, i32
  }
  func.func @transform_6(%arg0: i32) -> (i32, i32) {
    %c0_i32 = arith.constant 0 : i32
    %c0_i32_0 = arith.constant 0 : i32
    %c0_i32_1 = arith.constant 0 : i32
    return %c0_i32, %c0_i32_0 : i32, i32
  }
  func.func @transform_7(%arg0: i32) -> (i32, i32) {
    %c0_i32 = arith.constant 0 : i32
    %c0_i32_0 = arith.constant 0 : i32
    %c0_i32_1 = arith.constant 0 : i32
    return %c0_i32, %c0_i32_0 : i32, i32
  }
  func.func @transform_8(%arg0: i32) -> (i32, i32, i32) {
    %c0_i32 = arith.constant 0 : i32
    %c0_i32_0 = arith.constant 0 : i32
    %c0_i32_1 = arith.constant 0 : i32
    %c0_i32_2 = arith.constant 0 : i32
    return %c0_i32, %c0_i32_0, %c0_i32_1 : i32, i32, i32
  }
  func.func @transform_9(%arg0: i32) -> (i32, i32, i32) {
    %c0_i32 = arith.constant 0 : i32
    %c0_i32_0 = arith.constant 0 : i32
    %c0_i32_1 = arith.constant 0 : i32
    %c0_i32_2 = arith.constant 0 : i32
    return %c0_i32, %c0_i32_0, %c0_i32_1 : i32, i32, i32
  }
  func.func @transform_10(%arg0: i32) -> (i32, i32, i32) {
    %c0_i32 = arith.constant 0 : i32
    %c0_i32_0 = arith.constant 0 : i32
    %c0_i32_1 = arith.constant 0 : i32
    %c0_i32_2 = arith.constant 0 : i32
    return %c0_i32, %c0_i32_0, %c0_i32_1 : i32, i32, i32
  }
  func.func @transform_11(%arg0: i32) -> (i32, i32, i32) {
    %c0_i32 = arith.constant 0 : i32
    %c0_i32_0 = arith.constant 0 : i32
    %c0_i32_1 = arith.constant 0 : i32
    %c0_i32_2 = arith.constant 0 : i32
    return %c0_i32, %c0_i32_0, %c0_i32_1 : i32, i32, i32
  }
  func.func @transform_12(%arg0: i32) -> (i32, i32, i32) {
    %c0_i32 = arith.constant 0 : i32
    %c0_i32_0 = arith.constant 0 : i32
    %c0_i32_1 = arith.constant 0 : i32
    %c0_i32_2 = arith.constant 0 : i32
    return %c0_i32, %c0_i32_0, %c0_i32_1 : i32, i32, i32
  }
  func.func @transform_13(%arg0: i32) -> (i32, i32, i32) {
    %c0_i32 = arith.constant 0 : i32
    %c0_i32_0 = arith.constant 0 : i32
    %c0_i32_1 = arith.constant 0 : i32
    %c0_i32_2 = arith.constant 0 : i32
    return %c0_i32, %c0_i32_0, %c0_i32_1 : i32, i32, i32
  }
  func.func @transform_14(%arg0: i32) -> (i32, i32, i32) {
    %c0_i32 = arith.constant 0 : i32
    %c0_i32_0 = arith.constant 0 : i32
    %c0_i32_1 = arith.constant 0 : i32
    %c0_i32_2 = arith.constant 0 : i32
    return %c0_i32, %c0_i32_0, %c0_i32_1 : i32, i32, i32
  }
  func.func @transform_15(%arg0: i32) -> (i32, i32, i32) {
    %c0_i32 = arith.constant 0 : i32
    %c0_i32_0 = arith.constant 0 : i32
    %c0_i32_1 = arith.constant 0 : i32
    %c0_i32_2 = arith.constant 0 : i32
    return %c0_i32, %c0_i32_0, %c0_i32_1 : i32, i32, i32
  }
  func.func @transform_16(%arg0: i32) -> (i32, i32, i32) {
    %c0_i32 = arith.constant 0 : i32
    %c0_i32_0 = arith.constant 0 : i32
    %c0_i32_1 = arith.constant 0 : i32
    %c0_i32_2 = arith.constant 0 : i32
    return %c0_i32, %c0_i32_0, %c0_i32_1 : i32, i32, i32
  }
  func.func @transform_17(%arg0: i32) -> (i32, i32, i32) {
    %c0_i32 = arith.constant 0 : i32
    %c0_i32_0 = arith.constant 0 : i32
    %c0_i32_1 = arith.constant 0 : i32
    %c0_i32_2 = arith.constant 0 : i32
    return %c0_i32, %c0_i32_0, %c0_i32_1 : i32, i32, i32
  }
  func.func @transform_18(%arg0: i32) -> (i32, i32, i32) {
    %c0_i32 = arith.constant 0 : i32
    %c0_i32_0 = arith.constant 0 : i32
    %c0_i32_1 = arith.constant 0 : i32
    %c0_i32_2 = arith.constant 0 : i32
    return %c0_i32, %c0_i32_0, %c0_i32_1 : i32, i32, i32
  }
  func.func @transform_19(%arg0: i32) -> (i32, i32, i32) {
    %c0_i32 = arith.constant 0 : i32
    %c0_i32_0 = arith.constant 0 : i32
    %c0_i32_1 = arith.constant 0 : i32
    %c0_i32_2 = arith.constant 0 : i32
    return %c0_i32, %c0_i32_0, %c0_i32_1 : i32, i32, i32
  }
  func.func @transform_20(%arg0: i32) -> (i32, i32, i32) {
    %c0_i32 = arith.constant 0 : i32
    %c0_i32_0 = arith.constant 0 : i32
    %c0_i32_1 = arith.constant 0 : i32
    return %arg0, %c0_i32, %c0_i32_0 : i32, i32, i32
  }
  func.func @transform_21(%arg0: i32) -> (i32, i32, i32) {
    %c0_i32 = arith.constant 0 : i32
    %c0_i32_0 = arith.constant 0 : i32
    %c0_i32_1 = arith.constant 0 : i32
    return %arg0, %c0_i32, %c0_i32_0 : i32, i32, i32
  }
}

module attributes {stable_mosaic.version = 11 : i64} {
  func.func @_pair_kernel(%arg0: i32, %arg1: i32, %arg2: memref<1x8x32xf32, #tpu.memory_space<vmem>>, %arg3: memref<1x8x32xf32, #tpu.memory_space<vmem>>, %arg4: memref<1x1x8xf32, #tpu.memory_space<vmem>>, %arg5: memref<1x8x1xf32, #tpu.memory_space<vmem>>, %arg6: memref<1x1x8xf32, #tpu.memory_space<vmem>>, %arg7: memref<1x8x1xf32, #tpu.memory_space<vmem>>, %arg8: memref<128x32xf32, #tpu.memory_space<vmem>>, %arg9: memref<128x128xf32, #tpu.memory_space<vmem>>, %arg10: memref<4x32x32xbf16, #tpu.memory_space<vmem>>, %arg11: memref<4x32x32xbf16, #tpu.memory_space<vmem>>, %arg12: memref<4x32x32xbf16, #tpu.memory_space<vmem>>, %arg13: memref<4x32x32xbf16, #tpu.memory_space<vmem>>, %arg14: memref<4x32x128xbf16, #tpu.memory_space<vmem>>, %arg15: memref<4x1x128xf32, #tpu.memory_space<vmem>>, %arg16: memref<4x128x32xbf16, #tpu.memory_space<vmem>>, %arg17: memref<4x1x32xf32, #tpu.memory_space<vmem>>, %arg18: memref<4x1x32xf32, #tpu.memory_space<vmem>>, %arg19: memref<4x1x32xf32, #tpu.memory_space<vmem>>, %arg20: memref<4x1x32xf32, #tpu.memory_space<vmem>>, %arg21: memref<4x1x32xf32, #tpu.memory_space<vmem>>, %arg22: memref<32x32xbf16, #tpu.memory_space<vmem>>, %arg23: memref<32x32xbf16, #tpu.memory_space<vmem>>, %arg24: memref<1x32xf32, #tpu.memory_space<vmem>>, %arg25: memref<1x1x2xf32, #tpu.memory_space<vmem>>) attributes {dimension_semantics = [#tpu.dimension_semantics<parallel>, #tpu.dimension_semantics<arbitrary>], iteration_bounds = array<i64: 2, 2>, scalar_prefetch = 0 : i64, scratch_operands = 0 : i64, tpu.core_type = #tpu.core_type<tc>, window_params = [{transform_indices = @transform_0, window_bounds = array<i64: 1, 8, 32>}, {transform_indices = @transform_1, window_bounds = array<i64: 1, 8, 32>}, {transform_indices = @transform_2, window_bounds = array<i64: 1, 1, 8>}, {transform_indices = @transform_3, window_bounds = array<i64: 1, 8, 1>}, {transform_indices = @transform_4, window_bounds = array<i64: 1, 1, 8>}, {transform_indices = @transform_5, window_bounds = array<i64: 1, 8, 1>}, {pipeline_mode = #tpu.pipeline_mode<synchronous>, transform_indices = @transform_6, window_bounds = array<i64: 128, 32>}, {pipeline_mode = #tpu.pipeline_mode<synchronous>, transform_indices = @transform_7, window_bounds = array<i64: 128, 128>}, {pipeline_mode = #tpu.pipeline_mode<synchronous>, transform_indices = @transform_8, window_bounds = array<i64: 4, 32, 32>}, {pipeline_mode = #tpu.pipeline_mode<synchronous>, transform_indices = @transform_9, window_bounds = array<i64: 4, 32, 32>}, {pipeline_mode = #tpu.pipeline_mode<synchronous>, transform_indices = @transform_10, window_bounds = array<i64: 4, 32, 32>}, {pipeline_mode = #tpu.pipeline_mode<synchronous>, transform_indices = @transform_11, window_bounds = array<i64: 4, 32, 32>}, {pipeline_mode = #tpu.pipeline_mode<synchronous>, transform_indices = @transform_12, window_bounds = array<i64: 4, 32, 128>}, {pipeline_mode = #tpu.pipeline_mode<synchronous>, transform_indices = @transform_13, window_bounds = array<i64: 4, 1, 128>}, {pipeline_mode = #tpu.pipeline_mode<synchronous>, transform_indices = @transform_14, window_bounds = array<i64: 4, 128, 32>}, {pipeline_mode = #tpu.pipeline_mode<synchronous>, transform_indices = @transform_15, window_bounds = array<i64: 4, 1, 32>}, {pipeline_mode = #tpu.pipeline_mode<synchronous>, transform_indices = @transform_16, window_bounds = array<i64: 4, 1, 32>}, {pipeline_mode = #tpu.pipeline_mode<synchronous>, transform_indices = @transform_17, window_bounds = array<i64: 4, 1, 32>}, {pipeline_mode = #tpu.pipeline_mode<synchronous>, transform_indices = @transform_18, window_bounds = array<i64: 4, 1, 32>}, {pipeline_mode = #tpu.pipeline_mode<synchronous>, transform_indices = @transform_19, window_bounds = array<i64: 4, 1, 32>}, {pipeline_mode = #tpu.pipeline_mode<synchronous>, transform_indices = @transform_20, window_bounds = array<i64: 32, 32>}, {pipeline_mode = #tpu.pipeline_mode<synchronous>, transform_indices = @transform_21, window_bounds = array<i64: 32, 32>}, {pipeline_mode = #tpu.pipeline_mode<synchronous>, transform_indices = @transform_22, window_bounds = array<i64: 1, 32>}, {transform_indices = @transform_23, window_bounds = array<i64: 1, 1, 2>}]} {
    %c0 = arith.constant 0 : index
    %c0_0 = arith.constant 0 : index
    %c0_1 = arith.constant 0 : index
    %0 = vector.load %arg2[%c0, %c0_0, %c0_1] : memref<1x8x32xf32, #tpu.memory_space<vmem>>, vector<1x8x32xf32>
    %1 = vector.shape_cast %0 : vector<1x8x32xf32> to vector<8x32xf32>
    %c0_2 = arith.constant 0 : index
    %c0_3 = arith.constant 0 : index
    %c0_4 = arith.constant 0 : index
    %2 = vector.load %arg3[%c0_2, %c0_3, %c0_4] : memref<1x8x32xf32, #tpu.memory_space<vmem>>, vector<1x8x32xf32>
    %3 = vector.shape_cast %2 : vector<1x8x32xf32> to vector<8x32xf32>
    %c0_5 = arith.constant 0 : index
    %c0_6 = arith.constant 0 : index
    %c0_7 = arith.constant 0 : index
    %4 = vector.load %arg4[%c0_5, %c0_6, %c0_7] : memref<1x1x8xf32, #tpu.memory_space<vmem>>, vector<1x1x8xf32>
    %5 = vector.shape_cast %4 : vector<1x1x8xf32> to vector<1x8xf32>
    %c0_8 = arith.constant 0 : index
    %c0_9 = arith.constant 0 : index
    %c0_10 = arith.constant 0 : index
    %6 = vector.load %arg5[%c0_8, %c0_9, %c0_10] : memref<1x8x1xf32, #tpu.memory_space<vmem>>, vector<1x8x1xf32>
    %7 = vector.shape_cast %6 : vector<1x8x1xf32> to vector<8x1xf32>
    %c0_11 = arith.constant 0 : index
    %c0_12 = arith.constant 0 : index
    %c0_13 = arith.constant 0 : index
    %8 = vector.load %arg6[%c0_11, %c0_12, %c0_13] : memref<1x1x8xf32, #tpu.memory_space<vmem>>, vector<1x1x8xf32>
    %9 = vector.shape_cast %8 : vector<1x1x8xf32> to vector<1x8xf32>
    %c0_14 = arith.constant 0 : index
    %c0_15 = arith.constant 0 : index
    %c0_16 = arith.constant 0 : index
    %10 = vector.load %arg7[%c0_14, %c0_15, %c0_16] : memref<1x8x1xf32, #tpu.memory_space<vmem>>, vector<1x8x1xf32>
    %11 = vector.shape_cast %10 : vector<1x8x1xf32> to vector<8x1xf32>
    %cst = arith.constant 0.000000e+00 : f32
    %12 = vector.broadcast %cst : f32 to vector<8x1xf32>
    %cst_17 = arith.constant 0.000000e+00 : f32
    %13 = vector.broadcast %cst_17 : f32 to vector<8x1xf32>
    %cst_18 = arith.constant 0.000000e+00 : f32
    %14 = vector.broadcast %cst_18 : f32 to vector<1x8xf32>
    %cst_19 = arith.constant 0.000000e+00 : f32
    %15 = vector.broadcast %cst_19 : f32 to vector<1x8xf32>
    %16 = tpu.concatenate %7, %13 in 0 : vector<8x1xf32>, vector<8x1xf32> -> vector<16x1xf32>
    %17 = tpu.concatenate %12, %11 in 0 : vector<8x1xf32>, vector<8x1xf32> -> vector<16x1xf32>
    %18 = tpu.concatenate %5, %15, %5, %15, %5, %15, %5, %15, %5, %15, %5, %15, %5, %15, %5, %15 in 1 : vector<1x8xf32>, vector<1x8xf32>, vector<1x8xf32>, vector<1x8xf32>, vector<1x8xf32>, vector<1x8xf32>, vector<1x8xf32>, vector<1x8xf32>, vector<1x8xf32>, vector<1x8xf32>, vector<1x8xf32>, vector<1x8xf32>, vector<1x8xf32>, vector<1x8xf32>, vector<1x8xf32>, vector<1x8xf32> -> vector<1x128xf32>
    %19 = vector.broadcast %16 : vector<16x1xf32> to vector<16x128xf32>
    %20 = vector.broadcast %18 : vector<1x128xf32> to vector<16x128xf32>
    %21 = arith.mulf %19, %20 : vector<16x128xf32>
    %22 = tpu.concatenate %14, %9, %14, %9, %14, %9, %14, %9, %14, %9, %14, %9, %14, %9, %14, %9 in 1 : vector<1x8xf32>, vector<1x8xf32>, vector<1x8xf32>, vector<1x8xf32>, vector<1x8xf32>, vector<1x8xf32>, vector<1x8xf32>, vector<1x8xf32>, vector<1x8xf32>, vector<1x8xf32>, vector<1x8xf32>, vector<1x8xf32>, vector<1x8xf32>, vector<1x8xf32>, vector<1x8xf32>, vector<1x8xf32> -> vector<1x128xf32>
    %23 = vector.broadcast %17 : vector<16x1xf32> to vector<16x128xf32>
    %24 = vector.broadcast %22 : vector<1x128xf32> to vector<16x128xf32>
    %25 = arith.mulf %23, %24 : vector<16x128xf32>
    %26 = arith.addf %21, %25 : vector<16x128xf32>
    %cst_20 = arith.constant 0.000000e+00 : f32
    %27 = vector.broadcast %cst_20 : f32 to vector<16x128xf32>
    %28 = arith.cmpf ogt, %26, %27 : vector<16x128xf32>
    %cst_21 = arith.constant 0.000000e+00 : f32
    %cst_22 = arith.constant -1.000000e+30 : f32
    %29 = vector.broadcast %cst_21 : f32 to vector<16x128xf32>
    %30 = vector.broadcast %cst_22 : f32 to vector<16x128xf32>
    %31 = arith.select %28, %29, %30 : vector<16x128xi1>, vector<16x128xf32>
    %32 = tpu.concatenate %9, %14, %9, %14, %9, %14, %9, %14, %9, %14, %9, %14, %9, %14, %9, %14 in 1 : vector<1x8xf32>, vector<1x8xf32>, vector<1x8xf32>, vector<1x8xf32>, vector<1x8xf32>, vector<1x8xf32>, vector<1x8xf32>, vector<1x8xf32>, vector<1x8xf32>, vector<1x8xf32>, vector<1x8xf32>, vector<1x8xf32>, vector<1x8xf32>, vector<1x8xf32>, vector<1x8xf32>, vector<1x8xf32> -> vector<1x128xf32>
    %33 = vector.broadcast %16 : vector<16x1xf32> to vector<16x128xf32>
    %34 = vector.broadcast %32 : vector<1x128xf32> to vector<16x128xf32>
    %35 = arith.mulf %33, %34 : vector<16x128xf32>
    %36 = tpu.concatenate %15, %5, %15, %5, %15, %5, %15, %5, %15, %5, %15, %5, %15, %5, %15, %5 in 1 : vector<1x8xf32>, vector<1x8xf32>, vector<1x8xf32>, vector<1x8xf32>, vector<1x8xf32>, vector<1x8xf32>, vector<1x8xf32>, vector<1x8xf32>, vector<1x8xf32>, vector<1x8xf32>, vector<1x8xf32>, vector<1x8xf32>, vector<1x8xf32>, vector<1x8xf32>, vector<1x8xf32>, vector<1x8xf32> -> vector<1x128xf32>
    %37 = vector.broadcast %17 : vector<16x1xf32> to vector<16x128xf32>
    %38 = vector.broadcast %36 : vector<1x128xf32> to vector<16x128xf32>
    %39 = arith.mulf %37, %38 : vector<16x128xf32>
    %40 = arith.addf %35, %39 : vector<16x128xf32>
    %cst_23 = arith.constant 0.000000e+00 : f32
    %41 = vector.broadcast %cst_23 : f32 to vector<16x128xf32>
    %42 = arith.cmpf ogt, %40, %41 : vector<16x128xf32>
    %cst_24 = arith.constant 0.000000e+00 : f32
    %cst_25 = arith.constant -1.000000e+30 : f32
    %43 = vector.broadcast %cst_24 : f32 to vector<16x128xf32>
    %44 = vector.broadcast %cst_25 : f32 to vector<16x128xf32>
    %45 = arith.select %42, %43, %44 : vector<16x128xi1>, vector<16x128xf32>
    %c0_26 = arith.constant 0 : index
    %c0_27 = arith.constant 0 : index
    %46 = vector.load %arg8[%c0_26, %c0_27] : memref<128x32xf32, #tpu.memory_space<vmem>>, vector<128x32xf32>
    %c0_28 = arith.constant 0 : index
    %c0_29 = arith.constant 0 : index
    %47 = vector.load %arg9[%c0_28, %c0_29] : memref<128x128xf32, #tpu.memory_space<vmem>>, vector<128x128xf32>
    %48 = tpu.concatenate %1, %3 in 0 : vector<8x32xf32>, vector<8x32xf32> -> vector<16x32xf32>
    %49 = tpu.concatenate %3, %1 in 0 : vector<8x32xf32>, vector<8x32xf32> -> vector<16x32xf32>
    %c1 = arith.constant 1 : index
    %c0_30 = arith.constant 0 : index
    %c0_31 = arith.constant 0 : index
    %50 = vector.load %arg10[%c1, %c0_30, %c0_31] : memref<4x32x32xbf16, #tpu.memory_space<vmem>>, vector<1x32x32xbf16>
    %51 = vector.shape_cast %50 : vector<1x32x32xbf16> to vector<32x32xbf16>
    %c1_32 = arith.constant 1 : index
    %c0_33 = arith.constant 0 : index
    %c0_34 = arith.constant 0 : index
    %52 = vector.load %arg11[%c1_32, %c0_33, %c0_34] : memref<4x32x32xbf16, #tpu.memory_space<vmem>>, vector<1x32x32xbf16>
    %53 = vector.shape_cast %52 : vector<1x32x32xbf16> to vector<32x32xbf16>
    %c1_35 = arith.constant 1 : index
    %c0_36 = arith.constant 0 : index
    %c0_37 = arith.constant 0 : index
    %54 = vector.load %arg12[%c1_35, %c0_36, %c0_37] : memref<4x32x32xbf16, #tpu.memory_space<vmem>>, vector<1x32x32xbf16>
    %55 = vector.shape_cast %54 : vector<1x32x32xbf16> to vector<32x32xbf16>
    %c1_38 = arith.constant 1 : index
    %c0_39 = arith.constant 0 : index
    %c0_40 = arith.constant 0 : index
    %56 = vector.load %arg13[%c1_38, %c0_39, %c0_40] : memref<4x32x32xbf16, #tpu.memory_space<vmem>>, vector<1x32x32xbf16>
    %57 = vector.shape_cast %56 : vector<1x32x32xbf16> to vector<32x32xbf16>
    %c1_41 = arith.constant 1 : index
    %c0_42 = arith.constant 0 : index
    %c0_43 = arith.constant 0 : index
    %58 = vector.load %arg14[%c1_41, %c0_42, %c0_43] : memref<4x32x128xbf16, #tpu.memory_space<vmem>>, vector<1x32x128xbf16>
    %59 = vector.shape_cast %58 : vector<1x32x128xbf16> to vector<32x128xbf16>
    %c1_44 = arith.constant 1 : index
    %c0_45 = arith.constant 0 : index
    %c0_46 = arith.constant 0 : index
    %60 = vector.load %arg15[%c1_44, %c0_45, %c0_46] : memref<4x1x128xf32, #tpu.memory_space<vmem>>, vector<1x1x128xf32>
    %61 = vector.shape_cast %60 : vector<1x1x128xf32> to vector<1x128xf32>
    %c1_47 = arith.constant 1 : index
    %c0_48 = arith.constant 0 : index
    %c0_49 = arith.constant 0 : index
    %62 = vector.load %arg16[%c1_47, %c0_48, %c0_49] : memref<4x128x32xbf16, #tpu.memory_space<vmem>>, vector<1x128x32xbf16>
    %63 = vector.shape_cast %62 : vector<1x128x32xbf16> to vector<128x32xbf16>
    %c1_50 = arith.constant 1 : index
    %c0_51 = arith.constant 0 : index
    %c0_52 = arith.constant 0 : index
    %64 = vector.load %arg17[%c1_50, %c0_51, %c0_52] : memref<4x1x32xf32, #tpu.memory_space<vmem>>, vector<1x1x32xf32>
    %65 = vector.shape_cast %64 : vector<1x1x32xf32> to vector<1x32xf32>
    %c1_53 = arith.constant 1 : index
    %c0_54 = arith.constant 0 : index
    %c0_55 = arith.constant 0 : index
    %66 = vector.load %arg18[%c1_53, %c0_54, %c0_55] : memref<4x1x32xf32, #tpu.memory_space<vmem>>, vector<1x1x32xf32>
    %67 = vector.shape_cast %66 : vector<1x1x32xf32> to vector<1x32xf32>
    %c1_56 = arith.constant 1 : index
    %c0_57 = arith.constant 0 : index
    %c0_58 = arith.constant 0 : index
    %68 = vector.load %arg19[%c1_56, %c0_57, %c0_58] : memref<4x1x32xf32, #tpu.memory_space<vmem>>, vector<1x1x32xf32>
    %69 = vector.shape_cast %68 : vector<1x1x32xf32> to vector<1x32xf32>
    %c1_59 = arith.constant 1 : index
    %c0_60 = arith.constant 0 : index
    %c0_61 = arith.constant 0 : index
    %70 = vector.load %arg20[%c1_59, %c0_60, %c0_61] : memref<4x1x32xf32, #tpu.memory_space<vmem>>, vector<1x1x32xf32>
    %71 = vector.shape_cast %70 : vector<1x1x32xf32> to vector<1x32xf32>
    %c1_62 = arith.constant 1 : index
    %c0_63 = arith.constant 0 : index
    %c0_64 = arith.constant 0 : index
    %72 = vector.load %arg21[%c1_62, %c0_63, %c0_64] : memref<4x1x32xf32, #tpu.memory_space<vmem>>, vector<1x1x32xf32>
    %73 = vector.shape_cast %72 : vector<1x1x32xf32> to vector<1x32xf32>
    %74 = arith.truncf %48 : vector<16x32xf32> to vector<16x32xbf16>
    %cst_65 = arith.constant dense<0.000000e+00> : vector<16x32xf32>
    %75 = tpu.matmul %74, %51, %cst_65 {dimension_numbers = #tpu.dot_dimension_numbers<[1], [0], [0], [1], [0, 0, 1, 1], [], []>} : vector<16x32xbf16>, vector<32x32xbf16>, vector<16x32xf32> -> vector<16x32xf32>
    %76 = arith.truncf %49 : vector<16x32xf32> to vector<16x32xbf16>
    %cst_66 = arith.constant dense<0.000000e+00> : vector<16x32xf32>
    %77 = tpu.matmul %76, %53, %cst_66 {dimension_numbers = #tpu.dot_dimension_numbers<[1], [0], [0], [1], [0, 0, 1, 1], [], []>} : vector<16x32xbf16>, vector<32x32xbf16>, vector<16x32xf32> -> vector<16x32xf32>
    %78 = arith.truncf %49 : vector<16x32xf32> to vector<16x32xbf16>
    %cst_67 = arith.constant dense<0.000000e+00> : vector<16x32xf32>
    %79 = tpu.matmul %78, %55, %cst_67 {dimension_numbers = #tpu.dot_dimension_numbers<[1], [0], [0], [1], [0, 0, 1, 1], [], []>} : vector<16x32xbf16>, vector<32x32xbf16>, vector<16x32xf32> -> vector<16x32xf32>
    %80 = tpu.concatenate %77, %77, %77, %77, %77, %77, %77, %77 in 0 : vector<16x32xf32>, vector<16x32xf32>, vector<16x32xf32>, vector<16x32xf32>, vector<16x32xf32>, vector<16x32xf32>, vector<16x32xf32>, vector<16x32xf32> -> vector<128x32xf32>
    %81 = arith.mulf %80, %46 : vector<128x32xf32>
    %82 = arith.truncf %81 : vector<128x32xf32> to vector<128x32xbf16>
    %83 = tpu.concatenate %79, %79, %79, %79, %79, %79, %79, %79 in 0 : vector<16x32xf32>, vector<16x32xf32>, vector<16x32xf32>, vector<16x32xf32>, vector<16x32xf32>, vector<16x32xf32>, vector<16x32xf32>, vector<16x32xf32> -> vector<128x32xf32>
    %84 = arith.mulf %83, %46 : vector<128x32xf32>
    %85 = arith.truncf %84 : vector<128x32xf32> to vector<128x32xbf16>
    %86 = arith.truncf %75 : vector<16x32xf32> to vector<16x32xbf16>
    %cst_68 = arith.constant dense<0.000000e+00> : vector<16x128xf32>
    %87 = tpu.matmul %86, %82, %cst_68 {dimension_numbers = #tpu.dot_dimension_numbers<[1], [1], [0], [0], [0, 0, 1, 0], [], []>} : vector<16x32xbf16>, vector<128x32xbf16>, vector<16x128xf32> -> vector<16x128xf32>
    %cst_69 = arith.constant 5.000000e-01 : f32
    %88 = vector.broadcast %cst_69 : f32 to vector<16x128xf32>
    %89 = arith.mulf %87, %88 : vector<16x128xf32>
    %90 = arith.addf %89, %45 : vector<16x128xf32>
    %cst_70 = arith.constant dense<0xFF800000> : vector<16xf32>
    %91 = vector.multi_reduction <maximumf>, %90, %cst_70 [1] : vector<16x128xf32> to vector<16xf32>
    %92 = vector.shape_cast %91 : vector<16xf32> to vector<16x1xf32>
    %93 = vector.broadcast %92 : vector<16x1xf32> to vector<16x128xf32>
    %94 = arith.subf %90, %93 : vector<16x128xf32>
    %95 = math.exp %94 : vector<16x128xf32>
    %96 = arith.mulf %95, %40 : vector<16x128xf32>
    %cst_71 = arith.constant dense<0.000000e+00> : vector<16x128xf32>
    %97 = tpu.matmul %96, %47, %cst_71 {dimension_numbers = #tpu.dot_dimension_numbers<[1], [0], [0], [1], [0, 0, 1, 1], [], []>} : vector<16x128xf32>, vector<128x128xf32>, vector<16x128xf32> -> vector<16x128xf32>
    %cst_72 = arith.constant 1.000000e-30 : f32
    %98 = vector.broadcast %cst_72 : f32 to vector<16x128xf32>
    %99 = arith.maximumf %97, %98 : vector<16x128xf32>
    %100 = tpu.reciprocal %99 {approx = true} : vector<16x128xf32> -> vector<16x128xf32>
    %101 = arith.mulf %96, %100 : vector<16x128xf32>
    %102 = arith.truncf %101 : vector<16x128xf32> to vector<16x128xbf16>
    %cst_73 = arith.constant dense<0.000000e+00> : vector<16x32xf32>
    %103 = tpu.matmul %102, %85, %cst_73 {dimension_numbers = #tpu.dot_dimension_numbers<[1], [0], [0], [1], [0, 0, 1, 1], [], []>} : vector<16x128xbf16>, vector<128x32xbf16>, vector<16x32xf32> -> vector<16x32xf32>
    %104 = arith.truncf %103 : vector<16x32xf32> to vector<16x32xbf16>
    %cst_74 = arith.constant dense<0.000000e+00> : vector<16x32xf32>
    %105 = tpu.matmul %104, %57, %cst_74 {dimension_numbers = #tpu.dot_dimension_numbers<[1], [0], [0], [1], [0, 0, 1, 1], [], []>} : vector<16x32xbf16>, vector<32x32xbf16>, vector<16x32xf32> -> vector<16x32xf32>
    %106 = arith.addf %48, %105 : vector<16x32xf32>
    %cst_75 = arith.constant dense<0.000000e+00> : vector<16xf32>
    %107 = vector.multi_reduction <add>, %106, %cst_75 [1] : vector<16x32xf32> to vector<16xf32>
    %108 = vector.shape_cast %107 : vector<16xf32> to vector<16x1xf32>
    %cst_76 = arith.constant 3.200000e+01 : f32
    %109 = vector.broadcast %cst_76 : f32 to vector<16x1xf32>
    %110 = arith.divf %108, %109 : vector<16x1xf32>
    %111 = vector.broadcast %110 : vector<16x1xf32> to vector<16x32xf32>
    %112 = arith.subf %106, %111 : vector<16x32xf32>
    %113 = arith.mulf %112, %112 : vector<16x32xf32>
    %cst_77 = arith.constant dense<0.000000e+00> : vector<16xf32>
    %114 = vector.multi_reduction <add>, %113, %cst_77 [1] : vector<16x32xf32> to vector<16xf32>
    %115 = vector.shape_cast %114 : vector<16xf32> to vector<16x1xf32>
    %cst_78 = arith.constant 3.200000e+01 : f32
    %116 = vector.broadcast %cst_78 : f32 to vector<16x1xf32>
    %117 = arith.divf %115, %116 : vector<16x1xf32>
    %118 = vector.broadcast %110 : vector<16x1xf32> to vector<16x32xf32>
    %119 = arith.subf %106, %118 : vector<16x32xf32>
    %cst_79 = arith.constant 9.99999974E-6 : f32
    %120 = vector.broadcast %cst_79 : f32 to vector<16x1xf32>
    %121 = arith.addf %117, %120 : vector<16x1xf32>
    %122 = math.rsqrt %121 : vector<16x1xf32>
    %123 = vector.broadcast %122 : vector<16x1xf32> to vector<16x32xf32>
    %124 = arith.mulf %119, %123 : vector<16x32xf32>
    %125 = vector.broadcast %67 : vector<1x32xf32> to vector<16x32xf32>
    %126 = arith.mulf %124, %125 : vector<16x32xf32>
    %127 = vector.broadcast %69 : vector<1x32xf32> to vector<16x32xf32>
    %128 = arith.addf %126, %127 : vector<16x32xf32>
    %129 = arith.truncf %128 : vector<16x32xf32> to vector<16x32xbf16>
    %cst_80 = arith.constant dense<0.000000e+00> : vector<16x128xf32>
    %130 = tpu.matmul %129, %59, %cst_80 {dimension_numbers = #tpu.dot_dimension_numbers<[1], [0], [0], [1], [0, 0, 1, 1], [], []>} : vector<16x32xbf16>, vector<32x128xbf16>, vector<16x128xf32> -> vector<16x128xf32>
    %131 = vector.broadcast %61 : vector<1x128xf32> to vector<16x128xf32>
    %132 = arith.addf %130, %131 : vector<16x128xf32>
    %cst_81 = arith.constant 0.000000e+00 : f32
    %133 = vector.broadcast %cst_81 : f32 to vector<16x128xf32>
    %134 = arith.maximumf %132, %133 : vector<16x128xf32>
    %135 = arith.truncf %134 : vector<16x128xf32> to vector<16x128xbf16>
    %cst_82 = arith.constant dense<0.000000e+00> : vector<16x32xf32>
    %136 = tpu.matmul %135, %63, %cst_82 {dimension_numbers = #tpu.dot_dimension_numbers<[1], [0], [0], [1], [0, 0, 1, 1], [], []>} : vector<16x128xbf16>, vector<128x32xbf16>, vector<16x32xf32> -> vector<16x32xf32>
    %137 = vector.broadcast %65 : vector<1x32xf32> to vector<16x32xf32>
    %138 = arith.addf %136, %137 : vector<16x32xf32>
    %139 = arith.addf %128, %138 : vector<16x32xf32>
    %cst_83 = arith.constant dense<0.000000e+00> : vector<16xf32>
    %140 = vector.multi_reduction <add>, %139, %cst_83 [1] : vector<16x32xf32> to vector<16xf32>
    %141 = vector.shape_cast %140 : vector<16xf32> to vector<16x1xf32>
    %cst_84 = arith.constant 3.200000e+01 : f32
    %142 = vector.broadcast %cst_84 : f32 to vector<16x1xf32>
    %143 = arith.divf %141, %142 : vector<16x1xf32>
    %144 = vector.broadcast %143 : vector<16x1xf32> to vector<16x32xf32>
    %145 = arith.subf %139, %144 : vector<16x32xf32>
    %146 = arith.mulf %145, %145 : vector<16x32xf32>
    %cst_85 = arith.constant dense<0.000000e+00> : vector<16xf32>
    %147 = vector.multi_reduction <add>, %146, %cst_85 [1] : vector<16x32xf32> to vector<16xf32>
    %148 = vector.shape_cast %147 : vector<16xf32> to vector<16x1xf32>
    %cst_86 = arith.constant 3.200000e+01 : f32
    %149 = vector.broadcast %cst_86 : f32 to vector<16x1xf32>
    %150 = arith.divf %148, %149 : vector<16x1xf32>
    %151 = vector.broadcast %143 : vector<16x1xf32> to vector<16x32xf32>
    %152 = arith.subf %139, %151 : vector<16x32xf32>
    %cst_87 = arith.constant 9.99999974E-6 : f32
    %153 = vector.broadcast %cst_87 : f32 to vector<16x1xf32>
    %154 = arith.addf %150, %153 : vector<16x1xf32>
    %155 = math.rsqrt %154 : vector<16x1xf32>
    %156 = vector.broadcast %155 : vector<16x1xf32> to vector<16x32xf32>
    %157 = arith.mulf %152, %156 : vector<16x32xf32>
    %158 = vector.broadcast %71 : vector<1x32xf32> to vector<16x32xf32>
    %159 = arith.mulf %157, %158 : vector<16x32xf32>
    %160 = vector.broadcast %73 : vector<1x32xf32> to vector<16x32xf32>
    %161 = arith.addf %159, %160 : vector<16x32xf32>
    %162 = vector.extract_strided_slice %161 {offsets = [0, 0], sizes = [8, 32], strides = [1, 1]} : vector<16x32xf32> to vector<8x32xf32>
    %163 = arith.addf %1, %162 : vector<8x32xf32>
    %164 = vector.extract_strided_slice %161 {offsets = [8, 0], sizes = [8, 32], strides = [1, 1]} : vector<16x32xf32> to vector<8x32xf32>
    %165 = arith.addf %3, %164 : vector<8x32xf32>
    %166 = tpu.concatenate %163, %165 in 0 : vector<8x32xf32>, vector<8x32xf32> -> vector<16x32xf32>
    %c2 = arith.constant 2 : index
    %c0_88 = arith.constant 0 : index
    %c0_89 = arith.constant 0 : index
    %167 = vector.load %arg10[%c2, %c0_88, %c0_89] : memref<4x32x32xbf16, #tpu.memory_space<vmem>>, vector<1x32x32xbf16>
    %168 = vector.shape_cast %167 : vector<1x32x32xbf16> to vector<32x32xbf16>
    %c2_90 = arith.constant 2 : index
    %c0_91 = arith.constant 0 : index
    %c0_92 = arith.constant 0 : index
    %169 = vector.load %arg11[%c2_90, %c0_91, %c0_92] : memref<4x32x32xbf16, #tpu.memory_space<vmem>>, vector<1x32x32xbf16>
    %170 = vector.shape_cast %169 : vector<1x32x32xbf16> to vector<32x32xbf16>
    %c2_93 = arith.constant 2 : index
    %c0_94 = arith.constant 0 : index
    %c0_95 = arith.constant 0 : index
    %171 = vector.load %arg12[%c2_93, %c0_94, %c0_95] : memref<4x32x32xbf16, #tpu.memory_space<vmem>>, vector<1x32x32xbf16>
    %172 = vector.shape_cast %171 : vector<1x32x32xbf16> to vector<32x32xbf16>
    %c2_96 = arith.constant 2 : index
    %c0_97 = arith.constant 0 : index
    %c0_98 = arith.constant 0 : index
    %173 = vector.load %arg13[%c2_96, %c0_97, %c0_98] : memref<4x32x32xbf16, #tpu.memory_space<vmem>>, vector<1x32x32xbf16>
    %174 = vector.shape_cast %173 : vector<1x32x32xbf16> to vector<32x32xbf16>
    %c2_99 = arith.constant 2 : index
    %c0_100 = arith.constant 0 : index
    %c0_101 = arith.constant 0 : index
    %175 = vector.load %arg14[%c2_99, %c0_100, %c0_101] : memref<4x32x128xbf16, #tpu.memory_space<vmem>>, vector<1x32x128xbf16>
    %176 = vector.shape_cast %175 : vector<1x32x128xbf16> to vector<32x128xbf16>
    %c2_102 = arith.constant 2 : index
    %c0_103 = arith.constant 0 : index
    %c0_104 = arith.constant 0 : index
    %177 = vector.load %arg15[%c2_102, %c0_103, %c0_104] : memref<4x1x128xf32, #tpu.memory_space<vmem>>, vector<1x1x128xf32>
    %178 = vector.shape_cast %177 : vector<1x1x128xf32> to vector<1x128xf32>
    %c2_105 = arith.constant 2 : index
    %c0_106 = arith.constant 0 : index
    %c0_107 = arith.constant 0 : index
    %179 = vector.load %arg16[%c2_105, %c0_106, %c0_107] : memref<4x128x32xbf16, #tpu.memory_space<vmem>>, vector<1x128x32xbf16>
    %180 = vector.shape_cast %179 : vector<1x128x32xbf16> to vector<128x32xbf16>
    %c2_108 = arith.constant 2 : index
    %c0_109 = arith.constant 0 : index
    %c0_110 = arith.constant 0 : index
    %181 = vector.load %arg17[%c2_108, %c0_109, %c0_110] : memref<4x1x32xf32, #tpu.memory_space<vmem>>, vector<1x1x32xf32>
    %182 = vector.shape_cast %181 : vector<1x1x32xf32> to vector<1x32xf32>
    %c2_111 = arith.constant 2 : index
    %c0_112 = arith.constant 0 : index
    %c0_113 = arith.constant 0 : index
    %183 = vector.load %arg18[%c2_111, %c0_112, %c0_113] : memref<4x1x32xf32, #tpu.memory_space<vmem>>, vector<1x1x32xf32>
    %184 = vector.shape_cast %183 : vector<1x1x32xf32> to vector<1x32xf32>
    %c2_114 = arith.constant 2 : index
    %c0_115 = arith.constant 0 : index
    %c0_116 = arith.constant 0 : index
    %185 = vector.load %arg19[%c2_114, %c0_115, %c0_116] : memref<4x1x32xf32, #tpu.memory_space<vmem>>, vector<1x1x32xf32>
    %186 = vector.shape_cast %185 : vector<1x1x32xf32> to vector<1x32xf32>
    %c2_117 = arith.constant 2 : index
    %c0_118 = arith.constant 0 : index
    %c0_119 = arith.constant 0 : index
    %187 = vector.load %arg20[%c2_117, %c0_118, %c0_119] : memref<4x1x32xf32, #tpu.memory_space<vmem>>, vector<1x1x32xf32>
    %188 = vector.shape_cast %187 : vector<1x1x32xf32> to vector<1x32xf32>
    %c2_120 = arith.constant 2 : index
    %c0_121 = arith.constant 0 : index
    %c0_122 = arith.constant 0 : index
    %189 = vector.load %arg21[%c2_120, %c0_121, %c0_122] : memref<4x1x32xf32, #tpu.memory_space<vmem>>, vector<1x1x32xf32>
    %190 = vector.shape_cast %189 : vector<1x1x32xf32> to vector<1x32xf32>
    %191 = arith.truncf %166 : vector<16x32xf32> to vector<16x32xbf16>
    %cst_123 = arith.constant dense<0.000000e+00> : vector<16x32xf32>
    %192 = tpu.matmul %191, %168, %cst_123 {dimension_numbers = #tpu.dot_dimension_numbers<[1], [0], [0], [1], [0, 0, 1, 1], [], []>} : vector<16x32xbf16>, vector<32x32xbf16>, vector<16x32xf32> -> vector<16x32xf32>
    %193 = arith.truncf %166 : vector<16x32xf32> to vector<16x32xbf16>
    %cst_124 = arith.constant dense<0.000000e+00> : vector<16x32xf32>
    %194 = tpu.matmul %193, %170, %cst_124 {dimension_numbers = #tpu.dot_dimension_numbers<[1], [0], [0], [1], [0, 0, 1, 1], [], []>} : vector<16x32xbf16>, vector<32x32xbf16>, vector<16x32xf32> -> vector<16x32xf32>
    %195 = arith.truncf %166 : vector<16x32xf32> to vector<16x32xbf16>
    %cst_125 = arith.constant dense<0.000000e+00> : vector<16x32xf32>
    %196 = tpu.matmul %195, %172, %cst_125 {dimension_numbers = #tpu.dot_dimension_numbers<[1], [0], [0], [1], [0, 0, 1, 1], [], []>} : vector<16x32xbf16>, vector<32x32xbf16>, vector<16x32xf32> -> vector<16x32xf32>
    %197 = tpu.concatenate %194, %194, %194, %194, %194, %194, %194, %194 in 0 : vector<16x32xf32>, vector<16x32xf32>, vector<16x32xf32>, vector<16x32xf32>, vector<16x32xf32>, vector<16x32xf32>, vector<16x32xf32>, vector<16x32xf32> -> vector<128x32xf32>
    %198 = arith.mulf %197, %46 : vector<128x32xf32>
    %199 = arith.truncf %198 : vector<128x32xf32> to vector<128x32xbf16>
    %200 = tpu.concatenate %196, %196, %196, %196, %196, %196, %196, %196 in 0 : vector<16x32xf32>, vector<16x32xf32>, vector<16x32xf32>, vector<16x32xf32>, vector<16x32xf32>, vector<16x32xf32>, vector<16x32xf32>, vector<16x32xf32> -> vector<128x32xf32>
    %201 = arith.mulf %200, %46 : vector<128x32xf32>
    %202 = arith.truncf %201 : vector<128x32xf32> to vector<128x32xbf16>
    %203 = arith.truncf %192 : vector<16x32xf32> to vector<16x32xbf16>
    %cst_126 = arith.constant dense<0.000000e+00> : vector<16x128xf32>
    %204 = tpu.matmul %203, %199, %cst_126 {dimension_numbers = #tpu.dot_dimension_numbers<[1], [1], [0], [0], [0, 0, 1, 0], [], []>} : vector<16x32xbf16>, vector<128x32xbf16>, vector<16x128xf32> -> vector<16x128xf32>
    %cst_127 = arith.constant 5.000000e-01 : f32
    %205 = vector.broadcast %cst_127 : f32 to vector<16x128xf32>
    %206 = arith.mulf %204, %205 : vector<16x128xf32>
    %207 = arith.addf %206, %31 : vector<16x128xf32>
    %cst_128 = arith.constant dense<0xFF800000> : vector<16xf32>
    %208 = vector.multi_reduction <maximumf>, %207, %cst_128 [1] : vector<16x128xf32> to vector<16xf32>
    %209 = vector.shape_cast %208 : vector<16xf32> to vector<16x1xf32>
    %210 = vector.broadcast %209 : vector<16x1xf32> to vector<16x128xf32>
    %211 = arith.subf %207, %210 : vector<16x128xf32>
    %212 = math.exp %211 : vector<16x128xf32>
    %213 = arith.mulf %212, %26 : vector<16x128xf32>
    %cst_129 = arith.constant dense<0.000000e+00> : vector<16x128xf32>
    %214 = tpu.matmul %213, %47, %cst_129 {dimension_numbers = #tpu.dot_dimension_numbers<[1], [0], [0], [1], [0, 0, 1, 1], [], []>} : vector<16x128xf32>, vector<128x128xf32>, vector<16x128xf32> -> vector<16x128xf32>
    %cst_130 = arith.constant 1.000000e-30 : f32
    %215 = vector.broadcast %cst_130 : f32 to vector<16x128xf32>
    %216 = arith.maximumf %214, %215 : vector<16x128xf32>
    %217 = tpu.reciprocal %216 {approx = true} : vector<16x128xf32> -> vector<16x128xf32>
    %218 = arith.mulf %213, %217 : vector<16x128xf32>
    %219 = arith.truncf %218 : vector<16x128xf32> to vector<16x128xbf16>
    %cst_131 = arith.constant dense<0.000000e+00> : vector<16x32xf32>
    %220 = tpu.matmul %219, %202, %cst_131 {dimension_numbers = #tpu.dot_dimension_numbers<[1], [0], [0], [1], [0, 0, 1, 1], [], []>} : vector<16x128xbf16>, vector<128x32xbf16>, vector<16x32xf32> -> vector<16x32xf32>
    %221 = arith.truncf %220 : vector<16x32xf32> to vector<16x32xbf16>
    %cst_132 = arith.constant dense<0.000000e+00> : vector<16x32xf32>
    %222 = tpu.matmul %221, %174, %cst_132 {dimension_numbers = #tpu.dot_dimension_numbers<[1], [0], [0], [1], [0, 0, 1, 1], [], []>} : vector<16x32xbf16>, vector<32x32xbf16>, vector<16x32xf32> -> vector<16x32xf32>
    %223 = arith.addf %166, %222 : vector<16x32xf32>
    %cst_133 = arith.constant dense<0.000000e+00> : vector<16xf32>
    %224 = vector.multi_reduction <add>, %223, %cst_133 [1] : vector<16x32xf32> to vector<16xf32>
    %225 = vector.shape_cast %224 : vector<16xf32> to vector<16x1xf32>
    %cst_134 = arith.constant 3.200000e+01 : f32
    %226 = vector.broadcast %cst_134 : f32 to vector<16x1xf32>
    %227 = arith.divf %225, %226 : vector<16x1xf32>
    %228 = vector.broadcast %227 : vector<16x1xf32> to vector<16x32xf32>
    %229 = arith.subf %223, %228 : vector<16x32xf32>
    %230 = arith.mulf %229, %229 : vector<16x32xf32>
    %cst_135 = arith.constant dense<0.000000e+00> : vector<16xf32>
    %231 = vector.multi_reduction <add>, %230, %cst_135 [1] : vector<16x32xf32> to vector<16xf32>
    %232 = vector.shape_cast %231 : vector<16xf32> to vector<16x1xf32>
    %cst_136 = arith.constant 3.200000e+01 : f32
    %233 = vector.broadcast %cst_136 : f32 to vector<16x1xf32>
    %234 = arith.divf %232, %233 : vector<16x1xf32>
    %235 = vector.broadcast %227 : vector<16x1xf32> to vector<16x32xf32>
    %236 = arith.subf %223, %235 : vector<16x32xf32>
    %cst_137 = arith.constant 9.99999974E-6 : f32
    %237 = vector.broadcast %cst_137 : f32 to vector<16x1xf32>
    %238 = arith.addf %234, %237 : vector<16x1xf32>
    %239 = math.rsqrt %238 : vector<16x1xf32>
    %240 = vector.broadcast %239 : vector<16x1xf32> to vector<16x32xf32>
    %241 = arith.mulf %236, %240 : vector<16x32xf32>
    %242 = vector.broadcast %184 : vector<1x32xf32> to vector<16x32xf32>
    %243 = arith.mulf %241, %242 : vector<16x32xf32>
    %244 = vector.broadcast %186 : vector<1x32xf32> to vector<16x32xf32>
    %245 = arith.addf %243, %244 : vector<16x32xf32>
    %246 = arith.truncf %245 : vector<16x32xf32> to vector<16x32xbf16>
    %cst_138 = arith.constant dense<0.000000e+00> : vector<16x128xf32>
    %247 = tpu.matmul %246, %176, %cst_138 {dimension_numbers = #tpu.dot_dimension_numbers<[1], [0], [0], [1], [0, 0, 1, 1], [], []>} : vector<16x32xbf16>, vector<32x128xbf16>, vector<16x128xf32> -> vector<16x128xf32>
    %248 = vector.broadcast %178 : vector<1x128xf32> to vector<16x128xf32>
    %249 = arith.addf %247, %248 : vector<16x128xf32>
    %cst_139 = arith.constant 0.000000e+00 : f32
    %250 = vector.broadcast %cst_139 : f32 to vector<16x128xf32>
    %251 = arith.maximumf %249, %250 : vector<16x128xf32>
    %252 = arith.truncf %251 : vector<16x128xf32> to vector<16x128xbf16>
    %cst_140 = arith.constant dense<0.000000e+00> : vector<16x32xf32>
    %253 = tpu.matmul %252, %180, %cst_140 {dimension_numbers = #tpu.dot_dimension_numbers<[1], [0], [0], [1], [0, 0, 1, 1], [], []>} : vector<16x128xbf16>, vector<128x32xbf16>, vector<16x32xf32> -> vector<16x32xf32>
    %254 = vector.broadcast %182 : vector<1x32xf32> to vector<16x32xf32>
    %255 = arith.addf %253, %254 : vector<16x32xf32>
    %256 = arith.addf %245, %255 : vector<16x32xf32>
    %cst_141 = arith.constant dense<0.000000e+00> : vector<16xf32>
    %257 = vector.multi_reduction <add>, %256, %cst_141 [1] : vector<16x32xf32> to vector<16xf32>
    %258 = vector.shape_cast %257 : vector<16xf32> to vector<16x1xf32>
    %cst_142 = arith.constant 3.200000e+01 : f32
    %259 = vector.broadcast %cst_142 : f32 to vector<16x1xf32>
    %260 = arith.divf %258, %259 : vector<16x1xf32>
    %261 = vector.broadcast %260 : vector<16x1xf32> to vector<16x32xf32>
    %262 = arith.subf %256, %261 : vector<16x32xf32>
    %263 = arith.mulf %262, %262 : vector<16x32xf32>
    %cst_143 = arith.constant dense<0.000000e+00> : vector<16xf32>
    %264 = vector.multi_reduction <add>, %263, %cst_143 [1] : vector<16x32xf32> to vector<16xf32>
    %265 = vector.shape_cast %264 : vector<16xf32> to vector<16x1xf32>
    %cst_144 = arith.constant 3.200000e+01 : f32
    %266 = vector.broadcast %cst_144 : f32 to vector<16x1xf32>
    %267 = arith.divf %265, %266 : vector<16x1xf32>
    %268 = vector.broadcast %260 : vector<16x1xf32> to vector<16x32xf32>
    %269 = arith.subf %256, %268 : vector<16x32xf32>
    %cst_145 = arith.constant 9.99999974E-6 : f32
    %270 = vector.broadcast %cst_145 : f32 to vector<16x1xf32>
    %271 = arith.addf %267, %270 : vector<16x1xf32>
    %272 = math.rsqrt %271 : vector<16x1xf32>
    %273 = vector.broadcast %272 : vector<16x1xf32> to vector<16x32xf32>
    %274 = arith.mulf %269, %273 : vector<16x32xf32>
    %275 = vector.broadcast %188 : vector<1x32xf32> to vector<16x32xf32>
    %276 = arith.mulf %274, %275 : vector<16x32xf32>
    %277 = vector.broadcast %190 : vector<1x32xf32> to vector<16x32xf32>
    %278 = arith.addf %276, %277 : vector<16x32xf32>
    %279 = vector.extract_strided_slice %278 {offsets = [0, 0], sizes = [8, 32], strides = [1, 1]} : vector<16x32xf32> to vector<8x32xf32>
    %280 = vector.extract_strided_slice %278 {offsets = [8, 0], sizes = [8, 32], strides = [1, 1]} : vector<16x32xf32> to vector<8x32xf32>
    %281 = tpu.concatenate %279, %280 in 0 : vector<8x32xf32>, vector<8x32xf32> -> vector<16x32xf32>
    %282 = tpu.concatenate %280, %279 in 0 : vector<8x32xf32>, vector<8x32xf32> -> vector<16x32xf32>
    %c3 = arith.constant 3 : index
    %c0_146 = arith.constant 0 : index
    %c0_147 = arith.constant 0 : index
    %283 = vector.load %arg10[%c3, %c0_146, %c0_147] : memref<4x32x32xbf16, #tpu.memory_space<vmem>>, vector<1x32x32xbf16>
    %284 = vector.shape_cast %283 : vector<1x32x32xbf16> to vector<32x32xbf16>
    %c3_148 = arith.constant 3 : index
    %c0_149 = arith.constant 0 : index
    %c0_150 = arith.constant 0 : index
    %285 = vector.load %arg11[%c3_148, %c0_149, %c0_150] : memref<4x32x32xbf16, #tpu.memory_space<vmem>>, vector<1x32x32xbf16>
    %286 = vector.shape_cast %285 : vector<1x32x32xbf16> to vector<32x32xbf16>
    %c3_151 = arith.constant 3 : index
    %c0_152 = arith.constant 0 : index
    %c0_153 = arith.constant 0 : index
    %287 = vector.load %arg12[%c3_151, %c0_152, %c0_153] : memref<4x32x32xbf16, #tpu.memory_space<vmem>>, vector<1x32x32xbf16>
    %288 = vector.shape_cast %287 : vector<1x32x32xbf16> to vector<32x32xbf16>
    %c3_154 = arith.constant 3 : index
    %c0_155 = arith.constant 0 : index
    %c0_156 = arith.constant 0 : index
    %289 = vector.load %arg13[%c3_154, %c0_155, %c0_156] : memref<4x32x32xbf16, #tpu.memory_space<vmem>>, vector<1x32x32xbf16>
    %290 = vector.shape_cast %289 : vector<1x32x32xbf16> to vector<32x32xbf16>
    %c3_157 = arith.constant 3 : index
    %c0_158 = arith.constant 0 : index
    %c0_159 = arith.constant 0 : index
    %291 = vector.load %arg14[%c3_157, %c0_158, %c0_159] : memref<4x32x128xbf16, #tpu.memory_space<vmem>>, vector<1x32x128xbf16>
    %292 = vector.shape_cast %291 : vector<1x32x128xbf16> to vector<32x128xbf16>
    %c3_160 = arith.constant 3 : index
    %c0_161 = arith.constant 0 : index
    %c0_162 = arith.constant 0 : index
    %293 = vector.load %arg15[%c3_160, %c0_161, %c0_162] : memref<4x1x128xf32, #tpu.memory_space<vmem>>, vector<1x1x128xf32>
    %294 = vector.shape_cast %293 : vector<1x1x128xf32> to vector<1x128xf32>
    %c3_163 = arith.constant 3 : index
    %c0_164 = arith.constant 0 : index
    %c0_165 = arith.constant 0 : index
    %295 = vector.load %arg16[%c3_163, %c0_164, %c0_165] : memref<4x128x32xbf16, #tpu.memory_space<vmem>>, vector<1x128x32xbf16>
    %296 = vector.shape_cast %295 : vector<1x128x32xbf16> to vector<128x32xbf16>
    %c3_166 = arith.constant 3 : index
    %c0_167 = arith.constant 0 : index
    %c0_168 = arith.constant 0 : index
    %297 = vector.load %arg17[%c3_166, %c0_167, %c0_168] : memref<4x1x32xf32, #tpu.memory_space<vmem>>, vector<1x1x32xf32>
    %298 = vector.shape_cast %297 : vector<1x1x32xf32> to vector<1x32xf32>
    %c3_169 = arith.constant 3 : index
    %c0_170 = arith.constant 0 : index
    %c0_171 = arith.constant 0 : index
    %299 = vector.load %arg18[%c3_169, %c0_170, %c0_171] : memref<4x1x32xf32, #tpu.memory_space<vmem>>, vector<1x1x32xf32>
    %300 = vector.shape_cast %299 : vector<1x1x32xf32> to vector<1x32xf32>
    %c3_172 = arith.constant 3 : index
    %c0_173 = arith.constant 0 : index
    %c0_174 = arith.constant 0 : index
    %301 = vector.load %arg19[%c3_172, %c0_173, %c0_174] : memref<4x1x32xf32, #tpu.memory_space<vmem>>, vector<1x1x32xf32>
    %302 = vector.shape_cast %301 : vector<1x1x32xf32> to vector<1x32xf32>
    %c3_175 = arith.constant 3 : index
    %c0_176 = arith.constant 0 : index
    %c0_177 = arith.constant 0 : index
    %303 = vector.load %arg20[%c3_175, %c0_176, %c0_177] : memref<4x1x32xf32, #tpu.memory_space<vmem>>, vector<1x1x32xf32>
    %304 = vector.shape_cast %303 : vector<1x1x32xf32> to vector<1x32xf32>
    %c3_178 = arith.constant 3 : index
    %c0_179 = arith.constant 0 : index
    %c0_180 = arith.constant 0 : index
    %305 = vector.load %arg21[%c3_178, %c0_179, %c0_180] : memref<4x1x32xf32, #tpu.memory_space<vmem>>, vector<1x1x32xf32>
    %306 = vector.shape_cast %305 : vector<1x1x32xf32> to vector<1x32xf32>
    %307 = arith.truncf %281 : vector<16x32xf32> to vector<16x32xbf16>
    %cst_181 = arith.constant dense<0.000000e+00> : vector<16x32xf32>
    %308 = tpu.matmul %307, %284, %cst_181 {dimension_numbers = #tpu.dot_dimension_numbers<[1], [0], [0], [1], [0, 0, 1, 1], [], []>} : vector<16x32xbf16>, vector<32x32xbf16>, vector<16x32xf32> -> vector<16x32xf32>
    %309 = arith.truncf %282 : vector<16x32xf32> to vector<16x32xbf16>
    %cst_182 = arith.constant dense<0.000000e+00> : vector<16x32xf32>
    %310 = tpu.matmul %309, %286, %cst_182 {dimension_numbers = #tpu.dot_dimension_numbers<[1], [0], [0], [1], [0, 0, 1, 1], [], []>} : vector<16x32xbf16>, vector<32x32xbf16>, vector<16x32xf32> -> vector<16x32xf32>
    %311 = arith.truncf %282 : vector<16x32xf32> to vector<16x32xbf16>
    %cst_183 = arith.constant dense<0.000000e+00> : vector<16x32xf32>
    %312 = tpu.matmul %311, %288, %cst_183 {dimension_numbers = #tpu.dot_dimension_numbers<[1], [0], [0], [1], [0, 0, 1, 1], [], []>} : vector<16x32xbf16>, vector<32x32xbf16>, vector<16x32xf32> -> vector<16x32xf32>
    %313 = tpu.concatenate %310, %310, %310, %310, %310, %310, %310, %310 in 0 : vector<16x32xf32>, vector<16x32xf32>, vector<16x32xf32>, vector<16x32xf32>, vector<16x32xf32>, vector<16x32xf32>, vector<16x32xf32>, vector<16x32xf32> -> vector<128x32xf32>
    %314 = arith.mulf %313, %46 : vector<128x32xf32>
    %315 = arith.truncf %314 : vector<128x32xf32> to vector<128x32xbf16>
    %316 = tpu.concatenate %312, %312, %312, %312, %312, %312, %312, %312 in 0 : vector<16x32xf32>, vector<16x32xf32>, vector<16x32xf32>, vector<16x32xf32>, vector<16x32xf32>, vector<16x32xf32>, vector<16x32xf32>, vector<16x32xf32> -> vector<128x32xf32>
    %317 = arith.mulf %316, %46 : vector<128x32xf32>
    %318 = arith.truncf %317 : vector<128x32xf32> to vector<128x32xbf16>
    %319 = arith.truncf %308 : vector<16x32xf32> to vector<16x32xbf16>
    %cst_184 = arith.constant dense<0.000000e+00> : vector<16x128xf32>
    %320 = tpu.matmul %319, %315, %cst_184 {dimension_numbers = #tpu.dot_dimension_numbers<[1], [1], [0], [0], [0, 0, 1, 0], [], []>} : vector<16x32xbf16>, vector<128x32xbf16>, vector<16x128xf32> -> vector<16x128xf32>
    %cst_185 = arith.constant 5.000000e-01 : f32
    %321 = vector.broadcast %cst_185 : f32 to vector<16x128xf32>
    %322 = arith.mulf %320, %321 : vector<16x128xf32>
    %323 = arith.addf %322, %45 : vector<16x128xf32>
    %cst_186 = arith.constant dense<0xFF800000> : vector<16xf32>
    %324 = vector.multi_reduction <maximumf>, %323, %cst_186 [1] : vector<16x128xf32> to vector<16xf32>
    %325 = vector.shape_cast %324 : vector<16xf32> to vector<16x1xf32>
    %326 = vector.broadcast %325 : vector<16x1xf32> to vector<16x128xf32>
    %327 = arith.subf %323, %326 : vector<16x128xf32>
    %328 = math.exp %327 : vector<16x128xf32>
    %329 = arith.mulf %328, %40 : vector<16x128xf32>
    %cst_187 = arith.constant dense<0.000000e+00> : vector<16x128xf32>
    %330 = tpu.matmul %329, %47, %cst_187 {dimension_numbers = #tpu.dot_dimension_numbers<[1], [0], [0], [1], [0, 0, 1, 1], [], []>} : vector<16x128xf32>, vector<128x128xf32>, vector<16x128xf32> -> vector<16x128xf32>
    %cst_188 = arith.constant 1.000000e-30 : f32
    %331 = vector.broadcast %cst_188 : f32 to vector<16x128xf32>
    %332 = arith.maximumf %330, %331 : vector<16x128xf32>
    %333 = tpu.reciprocal %332 {approx = true} : vector<16x128xf32> -> vector<16x128xf32>
    %334 = arith.mulf %329, %333 : vector<16x128xf32>
    %335 = arith.truncf %334 : vector<16x128xf32> to vector<16x128xbf16>
    %cst_189 = arith.constant dense<0.000000e+00> : vector<16x32xf32>
    %336 = tpu.matmul %335, %318, %cst_189 {dimension_numbers = #tpu.dot_dimension_numbers<[1], [0], [0], [1], [0, 0, 1, 1], [], []>} : vector<16x128xbf16>, vector<128x32xbf16>, vector<16x32xf32> -> vector<16x32xf32>
    %337 = arith.truncf %336 : vector<16x32xf32> to vector<16x32xbf16>
    %cst_190 = arith.constant dense<0.000000e+00> : vector<16x32xf32>
    %338 = tpu.matmul %337, %290, %cst_190 {dimension_numbers = #tpu.dot_dimension_numbers<[1], [0], [0], [1], [0, 0, 1, 1], [], []>} : vector<16x32xbf16>, vector<32x32xbf16>, vector<16x32xf32> -> vector<16x32xf32>
    %339 = arith.addf %281, %338 : vector<16x32xf32>
    %cst_191 = arith.constant dense<0.000000e+00> : vector<16xf32>
    %340 = vector.multi_reduction <add>, %339, %cst_191 [1] : vector<16x32xf32> to vector<16xf32>
    %341 = vector.shape_cast %340 : vector<16xf32> to vector<16x1xf32>
    %cst_192 = arith.constant 3.200000e+01 : f32
    %342 = vector.broadcast %cst_192 : f32 to vector<16x1xf32>
    %343 = arith.divf %341, %342 : vector<16x1xf32>
    %344 = vector.broadcast %343 : vector<16x1xf32> to vector<16x32xf32>
    %345 = arith.subf %339, %344 : vector<16x32xf32>
    %346 = arith.mulf %345, %345 : vector<16x32xf32>
    %cst_193 = arith.constant dense<0.000000e+00> : vector<16xf32>
    %347 = vector.multi_reduction <add>, %346, %cst_193 [1] : vector<16x32xf32> to vector<16xf32>
    %348 = vector.shape_cast %347 : vector<16xf32> to vector<16x1xf32>
    %cst_194 = arith.constant 3.200000e+01 : f32
    %349 = vector.broadcast %cst_194 : f32 to vector<16x1xf32>
    %350 = arith.divf %348, %349 : vector<16x1xf32>
    %351 = vector.broadcast %343 : vector<16x1xf32> to vector<16x32xf32>
    %352 = arith.subf %339, %351 : vector<16x32xf32>
    %cst_195 = arith.constant 9.99999974E-6 : f32
    %353 = vector.broadcast %cst_195 : f32 to vector<16x1xf32>
    %354 = arith.addf %350, %353 : vector<16x1xf32>
    %355 = math.rsqrt %354 : vector<16x1xf32>
    %356 = vector.broadcast %355 : vector<16x1xf32> to vector<16x32xf32>
    %357 = arith.mulf %352, %356 : vector<16x32xf32>
    %358 = vector.broadcast %300 : vector<1x32xf32> to vector<16x32xf32>
    %359 = arith.mulf %357, %358 : vector<16x32xf32>
    %360 = vector.broadcast %302 : vector<1x32xf32> to vector<16x32xf32>
    %361 = arith.addf %359, %360 : vector<16x32xf32>
    %362 = arith.truncf %361 : vector<16x32xf32> to vector<16x32xbf16>
    %cst_196 = arith.constant dense<0.000000e+00> : vector<16x128xf32>
    %363 = tpu.matmul %362, %292, %cst_196 {dimension_numbers = #tpu.dot_dimension_numbers<[1], [0], [0], [1], [0, 0, 1, 1], [], []>} : vector<16x32xbf16>, vector<32x128xbf16>, vector<16x128xf32> -> vector<16x128xf32>
    %364 = vector.broadcast %294 : vector<1x128xf32> to vector<16x128xf32>
    %365 = arith.addf %363, %364 : vector<16x128xf32>
    %cst_197 = arith.constant 0.000000e+00 : f32
    %366 = vector.broadcast %cst_197 : f32 to vector<16x128xf32>
    %367 = arith.maximumf %365, %366 : vector<16x128xf32>
    %368 = arith.truncf %367 : vector<16x128xf32> to vector<16x128xbf16>
    %cst_198 = arith.constant dense<0.000000e+00> : vector<16x32xf32>
    %369 = tpu.matmul %368, %296, %cst_198 {dimension_numbers = #tpu.dot_dimension_numbers<[1], [0], [0], [1], [0, 0, 1, 1], [], []>} : vector<16x128xbf16>, vector<128x32xbf16>, vector<16x32xf32> -> vector<16x32xf32>
    %370 = vector.broadcast %298 : vector<1x32xf32> to vector<16x32xf32>
    %371 = arith.addf %369, %370 : vector<16x32xf32>
    %372 = arith.addf %361, %371 : vector<16x32xf32>
    %cst_199 = arith.constant dense<0.000000e+00> : vector<16xf32>
    %373 = vector.multi_reduction <add>, %372, %cst_199 [1] : vector<16x32xf32> to vector<16xf32>
    %374 = vector.shape_cast %373 : vector<16xf32> to vector<16x1xf32>
    %cst_200 = arith.constant 3.200000e+01 : f32
    %375 = vector.broadcast %cst_200 : f32 to vector<16x1xf32>
    %376 = arith.divf %374, %375 : vector<16x1xf32>
    %377 = vector.broadcast %376 : vector<16x1xf32> to vector<16x32xf32>
    %378 = arith.subf %372, %377 : vector<16x32xf32>
    %379 = arith.mulf %378, %378 : vector<16x32xf32>
    %cst_201 = arith.constant dense<0.000000e+00> : vector<16xf32>
    %380 = vector.multi_reduction <add>, %379, %cst_201 [1] : vector<16x32xf32> to vector<16xf32>
    %381 = vector.shape_cast %380 : vector<16xf32> to vector<16x1xf32>
    %cst_202 = arith.constant 3.200000e+01 : f32
    %382 = vector.broadcast %cst_202 : f32 to vector<16x1xf32>
    %383 = arith.divf %381, %382 : vector<16x1xf32>
    %384 = vector.broadcast %376 : vector<16x1xf32> to vector<16x32xf32>
    %385 = arith.subf %372, %384 : vector<16x32xf32>
    %cst_203 = arith.constant 9.99999974E-6 : f32
    %386 = vector.broadcast %cst_203 : f32 to vector<16x1xf32>
    %387 = arith.addf %383, %386 : vector<16x1xf32>
    %388 = math.rsqrt %387 : vector<16x1xf32>
    %389 = vector.broadcast %388 : vector<16x1xf32> to vector<16x32xf32>
    %390 = arith.mulf %385, %389 : vector<16x32xf32>
    %391 = vector.broadcast %304 : vector<1x32xf32> to vector<16x32xf32>
    %392 = arith.mulf %390, %391 : vector<16x32xf32>
    %393 = vector.broadcast %306 : vector<1x32xf32> to vector<16x32xf32>
    %394 = arith.addf %392, %393 : vector<16x32xf32>
    %395 = vector.extract_strided_slice %394 {offsets = [0, 0], sizes = [8, 32], strides = [1, 1]} : vector<16x32xf32> to vector<8x32xf32>
    %396 = arith.addf %279, %395 : vector<8x32xf32>
    %397 = vector.extract_strided_slice %394 {offsets = [8, 0], sizes = [8, 32], strides = [1, 1]} : vector<16x32xf32> to vector<8x32xf32>
    %398 = arith.addf %280, %397 : vector<8x32xf32>
    %399 = arith.truncf %396 : vector<8x32xf32> to vector<8x32xbf16>
    %c0_204 = arith.constant 0 : index
    %c0_205 = arith.constant 0 : index
    %400 = vector.load %arg22[%c0_204, %c0_205] : memref<32x32xbf16, #tpu.memory_space<vmem>>, vector<32x32xbf16>
    %cst_206 = arith.constant dense<0.000000e+00> : vector<8x32xf32>
    %401 = tpu.matmul %399, %400, %cst_206 {dimension_numbers = #tpu.dot_dimension_numbers<[1], [0], [0], [1], [0, 0, 1, 1], [], []>} : vector<8x32xbf16>, vector<32x32xbf16>, vector<8x32xf32> -> vector<8x32xf32>
    %402 = arith.truncf %398 : vector<8x32xf32> to vector<8x32xbf16>
    %c0_207 = arith.constant 0 : index
    %c0_208 = arith.constant 0 : index
    %403 = vector.load %arg23[%c0_207, %c0_208] : memref<32x32xbf16, #tpu.memory_space<vmem>>, vector<32x32xbf16>
    %cst_209 = arith.constant dense<0.000000e+00> : vector<8x32xf32>
    %404 = tpu.matmul %402, %403, %cst_209 {dimension_numbers = #tpu.dot_dimension_numbers<[1], [0], [0], [1], [0, 0, 1, 1], [], []>} : vector<8x32xbf16>, vector<32x32xbf16>, vector<8x32xf32> -> vector<8x32xf32>
    %405 = vector.broadcast %7 : vector<8x1xf32> to vector<8x8xf32>
    %406 = vector.broadcast %9 : vector<1x8xf32> to vector<8x8xf32>
    %407 = arith.mulf %405, %406 : vector<8x8xf32>
    %cst_210 = arith.constant dense<0.000000e+00> : vector<8x32xf32>
    %408 = tpu.matmul %407, %404, %cst_210 {dimension_numbers = #tpu.dot_dimension_numbers<[1], [0], [0], [1], [0, 0, 1, 1], [], []>} : vector<8x8xf32>, vector<8x32xf32>, vector<8x32xf32> -> vector<8x32xf32>
    %409 = arith.mulf %401, %408 : vector<8x32xf32>
    %cst_211 = arith.constant dense<0.000000e+00> : vector<32xf32>
    %410 = vector.multi_reduction <add>, %409, %cst_211 [0] : vector<8x32xf32> to vector<32xf32>
    %411 = vector.shape_cast %410 : vector<32xf32> to vector<1x32xf32>
    %c0_212 = arith.constant 0 : index
    %c0_213 = arith.constant 0 : index
    %412 = vector.load %arg24[%c0_212, %c0_213] : memref<1x32xf32, #tpu.memory_space<vmem>>, vector<1x32xf32>
    %413 = arith.mulf %411, %412 : vector<1x32xf32>
    %cst_214 = arith.constant dense<0.000000e+00> : vector<1xf32>
    %414 = vector.multi_reduction <add>, %413, %cst_214 [1] : vector<1x32xf32> to vector<1xf32>
    %415 = vector.shape_cast %414 : vector<1xf32> to vector<1x1xf32>
    %cst_215 = arith.constant dense<0.000000e+00> : vector<8xf32>
    %416 = vector.multi_reduction <add>, %407, %cst_215 [0] : vector<8x8xf32> to vector<8xf32>
    %417 = vector.shape_cast %416 : vector<8xf32> to vector<1x8xf32>
    %cst_216 = arith.constant dense<0.000000e+00> : vector<1xf32>
    %418 = vector.multi_reduction <add>, %417, %cst_216 [1] : vector<1x8xf32> to vector<1xf32>
    %419 = vector.shape_cast %418 : vector<1xf32> to vector<1x1xf32>
    %cst_217 = arith.constant 1.000000e-30 : f32
    %420 = vector.broadcast %cst_217 : f32 to vector<1x1xf32>
    %421 = arith.maximumf %419, %420 : vector<1x1xf32>
    %422 = tpu.reciprocal %421 {approx = true} : vector<1x1xf32> -> vector<1x1xf32>
    %423 = arith.mulf %415, %422 : vector<1x1xf32>
    %c0_i32 = arith.constant 0 : i32
    %424 = arith.cmpi eq, %arg1, %c0_i32 : i32
    %425 = arith.extui %424 : i1 to i32
    %c0_i32_218 = arith.constant 0 : i32
    %426 = arith.cmpi ne, %425, %c0_i32_218 : i32
    scf.if %426 {
      %cst_226 = arith.constant 0.000000e+00 : f32
      %438 = vector.broadcast %cst_226 : f32 to vector<1x1x2xf32>
      %c0_227 = arith.constant 0 : index
      %c0_228 = arith.constant 0 : index
      %c0_229 = arith.constant 0 : index
      %439 = vector.load %arg25[%c0_227, %c0_228, %c0_229] : memref<1x1x2xf32, #tpu.memory_space<vmem>>, vector<1x1x2xf32>
      tpu.vector_store %arg25[%c0_227, %c0_228, %c0_229], %438 {strides = array<i32>} : memref<1x1x2xf32, #tpu.memory_space<vmem>>, vector<1x1x2xf32>,
    } else {
    }
    %427 = tpu.iota {dimensions = array<i32: 2>} : vector<1x1x2xi32>
    %c0_219 = arith.constant 0 : index
    %c0_220 = arith.constant 0 : index
    %c0_221 = arith.constant 0 : index
    %428 = vector.load %arg25[%c0_219, %c0_220, %c0_221] : memref<1x1x2xf32, #tpu.memory_space<vmem>>, vector<1x1x2xf32>
    %429 = vector.broadcast %arg1 : i32 to vector<1x1x2xi32>
    %430 = arith.cmpi eq, %427, %429 : vector<1x1x2xi32>
    %431 = vector.shape_cast %423 : vector<1x1xf32> to vector<1x1x1xf32>
    %cst_222 = arith.constant 0.000000e+00 : f32
    %432 = vector.shape_cast %431 : vector<1x1x1xf32> to vector<1x1x1xf32>
    %433 = vector.broadcast %432 : vector<1x1x1xf32> to vector<1x1x2xf32>
    %434 = vector.broadcast %cst_222 : f32 to vector<1x1x2xf32>
    %435 = arith.select %430, %433, %434 : vector<1x1x2xi1>, vector<1x1x2xf32>
    %436 = arith.addf %428, %435 : vector<1x1x2xf32>
    %c0_223 = arith.constant 0 : index
    %c0_224 = arith.constant 0 : index
    %c0_225 = arith.constant 0 : index
    %437 = vector.load %arg25[%c0_223, %c0_224, %c0_225] : memref<1x1x2xf32, #tpu.memory_space<vmem>>, vector<1x1x2xf32>
    tpu.vector_store %arg25[%c0_223, %c0_224, %c0_225], %436 {strides = array<i32>} : memref<1x1x2xf32, #tpu.memory_space<vmem>>, vector<1x1x2xf32>,
    return
  }
  func.func @transform_0(%arg0: i32, %arg1: i32) -> (i32, i32, i32) {
    %c0_i32 = arith.constant 0 : i32
    %c0_i32_0 = arith.constant 0 : i32
    %c0_i32_1 = arith.constant 0 : i32
    return %arg0, %c0_i32, %c0_i32_0 : i32, i32, i32
  }
  func.func @transform_1(%arg0: i32, %arg1: i32) -> (i32, i32, i32) {
    %c0_i32 = arith.constant 0 : i32
    %c0_i32_0 = arith.constant 0 : i32
    %c0_i32_1 = arith.constant 0 : i32
    return %arg1, %c0_i32, %c0_i32_0 : i32, i32, i32
  }
  func.func @transform_2(%arg0: i32, %arg1: i32) -> (i32, i32, i32) {
    %c0_i32 = arith.constant 0 : i32
    %c0_i32_0 = arith.constant 0 : i32
    %c0_i32_1 = arith.constant 0 : i32
    return %arg0, %c0_i32, %c0_i32_0 : i32, i32, i32
  }
  func.func @transform_3(%arg0: i32, %arg1: i32) -> (i32, i32, i32) {
    %c0_i32 = arith.constant 0 : i32
    %c0_i32_0 = arith.constant 0 : i32
    %c0_i32_1 = arith.constant 0 : i32
    return %arg0, %c0_i32, %c0_i32_0 : i32, i32, i32
  }
  func.func @transform_4(%arg0: i32, %arg1: i32) -> (i32, i32, i32) {
    %c0_i32 = arith.constant 0 : i32
    %c0_i32_0 = arith.constant 0 : i32
    %c0_i32_1 = arith.constant 0 : i32
    return %arg1, %c0_i32, %c0_i32_0 : i32, i32, i32
  }
  func.func @transform_5(%arg0: i32, %arg1: i32) -> (i32, i32, i32) {
    %c0_i32 = arith.constant 0 : i32
    %c0_i32_0 = arith.constant 0 : i32
    %c0_i32_1 = arith.constant 0 : i32
    return %arg1, %c0_i32, %c0_i32_0 : i32, i32, i32
  }
  func.func @transform_6(%arg0: i32, %arg1: i32) -> (i32, i32) {
    %c0_i32 = arith.constant 0 : i32
    %c0_i32_0 = arith.constant 0 : i32
    %c0_i32_1 = arith.constant 0 : i32
    return %c0_i32, %c0_i32_0 : i32, i32
  }
  func.func @transform_7(%arg0: i32, %arg1: i32) -> (i32, i32) {
    %c0_i32 = arith.constant 0 : i32
    %c0_i32_0 = arith.constant 0 : i32
    %c0_i32_1 = arith.constant 0 : i32
    return %c0_i32, %c0_i32_0 : i32, i32
  }
  func.func @transform_8(%arg0: i32, %arg1: i32) -> (i32, i32, i32) {
    %c0_i32 = arith.constant 0 : i32
    %c0_i32_0 = arith.constant 0 : i32
    %c0_i32_1 = arith.constant 0 : i32
    %c0_i32_2 = arith.constant 0 : i32
    return %c0_i32, %c0_i32_0, %c0_i32_1 : i32, i32, i32
  }
  func.func @transform_9(%arg0: i32, %arg1: i32) -> (i32, i32, i32) {
    %c0_i32 = arith.constant 0 : i32
    %c0_i32_0 = arith.constant 0 : i32
    %c0_i32_1 = arith.constant 0 : i32
    %c0_i32_2 = arith.constant 0 : i32
    return %c0_i32, %c0_i32_0, %c0_i32_1 : i32, i32, i32
  }
  func.func @transform_10(%arg0: i32, %arg1: i32) -> (i32, i32, i32) {
    %c0_i32 = arith.constant 0 : i32
    %c0_i32_0 = arith.constant 0 : i32
    %c0_i32_1 = arith.constant 0 : i32
    %c0_i32_2 = arith.constant 0 : i32
    return %c0_i32, %c0_i32_0, %c0_i32_1 : i32, i32, i32
  }
  func.func @transform_11(%arg0: i32, %arg1: i32) -> (i32, i32, i32) {
    %c0_i32 = arith.constant 0 : i32
    %c0_i32_0 = arith.constant 0 : i32
    %c0_i32_1 = arith.constant 0 : i32
    %c0_i32_2 = arith.constant 0 : i32
    return %c0_i32, %c0_i32_0, %c0_i32_1 : i32, i32, i32
  }
  func.func @transform_12(%arg0: i32, %arg1: i32) -> (i32, i32, i32) {
    %c0_i32 = arith.constant 0 : i32
    %c0_i32_0 = arith.constant 0 : i32
    %c0_i32_1 = arith.constant 0 : i32
    %c0_i32_2 = arith.constant 0 : i32
    return %c0_i32, %c0_i32_0, %c0_i32_1 : i32, i32, i32
  }
  func.func @transform_13(%arg0: i32, %arg1: i32) -> (i32, i32, i32) {
    %c0_i32 = arith.constant 0 : i32
    %c0_i32_0 = arith.constant 0 : i32
    %c0_i32_1 = arith.constant 0 : i32
    %c0_i32_2 = arith.constant 0 : i32
    return %c0_i32, %c0_i32_0, %c0_i32_1 : i32, i32, i32
  }
  func.func @transform_14(%arg0: i32, %arg1: i32) -> (i32, i32, i32) {
    %c0_i32 = arith.constant 0 : i32
    %c0_i32_0 = arith.constant 0 : i32
    %c0_i32_1 = arith.constant 0 : i32
    %c0_i32_2 = arith.constant 0 : i32
    return %c0_i32, %c0_i32_0, %c0_i32_1 : i32, i32, i32
  }
  func.func @transform_15(%arg0: i32, %arg1: i32) -> (i32, i32, i32) {
    %c0_i32 = arith.constant 0 : i32
    %c0_i32_0 = arith.constant 0 : i32
    %c0_i32_1 = arith.constant 0 : i32
    %c0_i32_2 = arith.constant 0 : i32
    return %c0_i32, %c0_i32_0, %c0_i32_1 : i32, i32, i32
  }
  func.func @transform_16(%arg0: i32, %arg1: i32) -> (i32, i32, i32) {
    %c0_i32 = arith.constant 0 : i32
    %c0_i32_0 = arith.constant 0 : i32
    %c0_i32_1 = arith.constant 0 : i32
    %c0_i32_2 = arith.constant 0 : i32
    return %c0_i32, %c0_i32_0, %c0_i32_1 : i32, i32, i32
  }
  func.func @transform_17(%arg0: i32, %arg1: i32) -> (i32, i32, i32) {
    %c0_i32 = arith.constant 0 : i32
    %c0_i32_0 = arith.constant 0 : i32
    %c0_i32_1 = arith.constant 0 : i32
    %c0_i32_2 = arith.constant 0 : i32
    return %c0_i32, %c0_i32_0, %c0_i32_1 : i32, i32, i32
  }
  func.func @transform_18(%arg0: i32, %arg1: i32) -> (i32, i32, i32) {
    %c0_i32 = arith.constant 0 : i32
    %c0_i32_0 = arith.constant 0 : i32
    %c0_i32_1 = arith.constant 0 : i32
    %c0_i32_2 = arith.constant 0 : i32
    return %c0_i32, %c0_i32_0, %c0_i32_1 : i32, i32, i32
  }
  func.func @transform_19(%arg0: i32, %arg1: i32) -> (i32, i32, i32) {
    %c0_i32 = arith.constant 0 : i32
    %c0_i32_0 = arith.constant 0 : i32
    %c0_i32_1 = arith.constant 0 : i32
    %c0_i32_2 = arith.constant 0 : i32
    return %c0_i32, %c0_i32_0, %c0_i32_1 : i32, i32, i32
  }
  func.func @transform_20(%arg0: i32, %arg1: i32) -> (i32, i32) {
    %c0_i32 = arith.constant 0 : i32
    %c0_i32_0 = arith.constant 0 : i32
    %c0_i32_1 = arith.constant 0 : i32
    return %c0_i32, %c0_i32_0 : i32, i32
  }
  func.func @transform_21(%arg0: i32, %arg1: i32) -> (i32, i32) {
    %c0_i32 = arith.constant 0 : i32
    %c0_i32_0 = arith.constant 0 : i32
    %c0_i32_1 = arith.constant 0 : i32
    return %c0_i32, %c0_i32_0 : i32, i32
  }
  func.func @transform_22(%arg0: i32, %arg1: i32) -> (i32, i32) {
    %c0_i32 = arith.constant 0 : i32
    %c0_i32_0 = arith.constant 0 : i32
    %c0_i32_1 = arith.constant 0 : i32
    return %c0_i32, %c0_i32_0 : i32, i32
  }
  func.func @transform_23(%arg0: i32, %arg1: i32) -> (i32, i32, i32) {
    %c0_i32 = arith.constant 0 : i32
    %c0_i32_0 = arith.constant 0 : i32
    %c0_i32_1 = arith.constant 0 : i32
    return %arg0, %c0_i32, %c0_i32_0 : i32, i32, i32
  }
}

</mosaic_0001>

<llo_original>
// kernel: set_matching_forward.4
$region0: #{set_matching_forward.4}
  #allocation0 [shape = 'u32[]', space=smem, size = 0x4, offset = 0x4, fixed_abs, tag = 'smem constant byte address 0x4 - core index']
  #allocation1 [shape = 'u32[72,128]{1,0:T(1,128)}', space=vmem, size = 0x9000, scoped, tag = 'internal scratch']
  %s0 = inlined_call_operand.vmem [shape: f32[2,8,32], index: 0, kind: input, shape index: {}]
  %s1 = inlined_call_operand.vmem [shape: f32[2,8,32], index: 1, kind: input, shape index: {}]
  %s2 = inlined_call_operand.vmem [shape: f32[2,1,8], index: 2, kind: input, shape index: {}]
  %s3 = inlined_call_operand.vmem [shape: f32[2,8,1], index: 3, kind: input, shape index: {}]
  %s4 = inlined_call_operand.vmem [shape: f32[2,1,8], index: 4, kind: input, shape index: {}]
  %s5 = inlined_call_operand.vmem [shape: f32[2,8,1], index: 5, kind: input, shape index: {}]
  %s6 = inlined_call_operand.vmem [shape: f32[128,32], index: 6, kind: input, shape index: {}]
  %s7 = inlined_call_operand.vmem [shape: f32[128,128], index: 7, kind: input, shape index: {}]
  %s8 = inlined_call_operand.vmem [shape: bf16[4,32,32], index: 8, kind: input, shape index: {}]
  %s9 = inlined_call_operand.vmem [shape: bf16[4,32,32], index: 9, kind: input, shape index: {}]
  %s10 = inlined_call_operand.vmem [shape: bf16[4,32,32], index: 10, kind: input, shape index: {}]
  %s11 = inlined_call_operand.vmem [shape: bf16[4,32,32], index: 11, kind: input, shape index: {}]
  %s12 = inlined_call_operand.vmem [shape: bf16[4,32,128], index: 12, kind: input, shape index: {}]
  %s13 = inlined_call_operand.vmem [shape: f32[4,1,128], index: 13, kind: input, shape index: {}]
  %s14 = inlined_call_operand.vmem [shape: bf16[4,128,32], index: 14, kind: input, shape index: {}]
  %s15 = inlined_call_operand.vmem [shape: f32[4,1,32], index: 15, kind: input, shape index: {}]
  %s16 = inlined_call_operand.vmem [shape: f32[4,1,32], index: 16, kind: input, shape index: {}]
  %s17 = inlined_call_operand.vmem [shape: f32[4,1,32], index: 17, kind: input, shape index: {}]
  %s18 = inlined_call_operand.vmem [shape: f32[4,1,32], index: 18, kind: input, shape index: {}]
  %s19 = inlined_call_operand.vmem [shape: f32[4,1,32], index: 19, kind: input, shape index: {}]
  %s20 = inlined_call_operand.vmem [shape: f32[2,8,32], index: 20, kind: output, shape index: {0}]
  %s21 = inlined_call_operand.vmem [shape: f32[2,8,32], index: 21, kind: output, shape index: {1}]
  %22 = xla_tuple %s20, %s21
  %s23 = sld [smem:[#allocation0]]
  $region121: #{set_matching_forward.4} parent=0
    _
  %s25 = ssub.s32 1, %s23
  %s26 = scalar_select 0, %s25, %s23
  loop: start=0, step=1, limit=4
  $region2: #{set_matching_forward.4} parent=0 // loop_pre_header
    _
  $region3: #{set_matching_forward.4} parent=0 // loop_header
    %s28 = sphi 0, %s32
    %p29 = scmp.ge.s32.totalorder %s28, 4
    %s38 = sphi 0, %s40
    %s41 = sphi 0, %s38
    %s42 = sphi 0, %s41
    %s58 = sphi 0, %s42
    %s64 = sphi 0, %s66
    %s67 = sphi 0, %s64
    %s68 = sphi 0, %s67
    %s84 = sphi 0, %s68
    %s90 = sphi 0, %s92
    %s93 = sphi 0, %s90
    %s94 = sphi 0, %s93
    %s110 = sphi 0, %s94
    %s116 = sphi 0, %s118
    %s119 = sphi 0, %s116
    %s120 = sphi 0, %s119
    %s136 = sphi 0, %s120
    %s142 = sphi 0, %s144
    %s145 = sphi 0, %s142
    %s146 = sphi 0, %s145
    %s162 = sphi 0, %s146
    %s168 = sphi 0, %s170
    %s171 = sphi 0, %s168
    %s172 = sphi 0, %s171
    %s188 = sphi 0, %s172
    %s192 = sphi 0, %s192
    %s194 = sphi 0, %s192
    %s195 = sphi 0, %s194
    %s209 = sphi 0, %s195
    %s213 = sphi 0, %s213
    %s215 = sphi 0, %s213
    %s216 = sphi 0, %s215
    %s230 = sphi 0, %s216
    %s234 = sphi 0, %s234
    %s236 = sphi 0, %s234
    %s237 = sphi 0, %s236
    %s251 = sphi 0, %s237
    %s255 = sphi 0, %s255
    %s257 = sphi 0, %s255
    %s258 = sphi 0, %s257
    %s272 = sphi 0, %s258
    %s276 = sphi 0, %s276
    %s278 = sphi 0, %s276
    %s279 = sphi 0, %s278
    %s293 = sphi 0, %s279
    %s297 = sphi 0, %s297
    %s299 = sphi 0, %s297
    %s300 = sphi 0, %s299
    %s314 = sphi 0, %s300
    %s318 = sphi 0, %s318
    %s320 = sphi 0, %s318
    %s321 = sphi 0, %s320
    %s335 = sphi 0, %s321
    %s339 = sphi 0, %s339
    %s341 = sphi 0, %s339
    %s342 = sphi 0, %s341
    %s356 = sphi 0, %s342
    %s360 = sphi 0, %s360
    %s362 = sphi 0, %s360
    %s363 = sphi 0, %s362
    %s377 = sphi 0, %s363
    %s381 = sphi 0, %s381
    %s383 = sphi 0, %s381
    %s384 = sphi 0, %s383
    %s398 = sphi 0, %s384
    %s402 = sphi 0, %s402
    %s404 = sphi 0, %s402
    %s405 = sphi 0, %s404
    %s419 = sphi 0, %s405
    %s423 = sphi 0, %s423
    %s425 = sphi 0, %s423
    %s426 = sphi 0, %s425
    %s440 = sphi 0, %s426
    %s444 = sphi 0, %s444
    %s446 = sphi 0, %s444
    %s447 = sphi 0, %s446
    %s461 = sphi 0, %s447
    %s465 = sphi 0, %s465
    %s467 = sphi 0, %s465
    %s468 = sphi 0, %s467
    %s482 = sphi 0, %s468
    %s488 = sphi 0, %s490
    %s491 = sphi 0, %s488
    %s492 = sphi 0, %s491
    %s508 = sphi 0, %s492
    %s514 = sphi 0, %s516
    %s517 = sphi 0, %s514
    %s518 = sphi 0, %s517
    %s534 = sphi 0, %s518
  $region4: #{set_matching_forward.4} parent=0 // loop_header_branch
    %31 = sbr.rel (%p29) target = $region8
  $region5: #{set_matching_forward.4} parent=0 // loop_body
    %s33 = ssub.s32 %s28, 1
    %s34 = ssub.s32 %s28, 2
    %s35 = sadd.s32 %s28, 1
    %s36 = ssub.s32 %s28, %s35
    %p37 = scmp.eq.s32.totalorder %s36, 0
    %s39 = sadd.s32 %s38, 1
    %s40 = scalar_select %p37, %s38, %s39
    %p43 = pneg %p37
    %p44 = scmp.eq.s32.totalorder %s28, 1
    %p45 = por %p43, %p44
    %p46 = scmp.ne.s32.totalorder %s38, %s41
    %p47 = scmp.eq.s32.totalorder %s28, 0
    %p48 = por %p46, %p47
    %p49 = scmp.ne.s32.totalorder %s38, %s41
    %p50 = scmp.eq.s32.totalorder %s33, 1
    %p51 = por %p49, %p50
    %p52 = scmp.ne.s32.totalorder %s41, %s42
    %p53 = scmp.eq.s32.totalorder %s33, 0
    %p54 = por %p52, %p53
    %p55 = scmp.ne.s32.totalorder %s41, %s42
    %p56 = scmp.eq.s32.totalorder %s34, 1
    %p57 = por %p55, %p56
    %p59 = scmp.ne.s32.totalorder %s42, %s58
    %p60 = scmp.eq.s32.totalorder %s34, 0
    %p61 = por %p59, %p60
    %s62 = ssub.s32 %s28, %s35
    %p63 = scmp.eq.s32.totalorder %s62, 0
    %s65 = sadd.s32 %s64, 1
    %s66 = scalar_select %p63, %s64, %s65
    %p69 = pneg %p63
    %p70 = scmp.eq.s32.totalorder %s28, 1
    %p71 = por %p69, %p70
    %p72 = scmp.ne.s32.totalorder %s64, %s67
    %p73 = scmp.eq.s32.totalorder %s28, 0
    %p74 = por %p72, %p73
    %p75 = scmp.ne.s32.totalorder %s64, %s67
    %p76 = scmp.eq.s32.totalorder %s33, 1
    %p77 = por %p75, %p76
    %p78 = scmp.ne.s32.totalorder %s67, %s68
    %p79 = scmp.eq.s32.totalorder %s33, 0
    %p80 = por %p78, %p79
    %p81 = scmp.ne.s32.totalorder %s67, %s68
    %p82 = scmp.eq.s32.totalorder %s34, 1
    %p83 = por %p81, %p82
    %p85 = scmp.ne.s32.totalorder %s68, %s84
    %p86 = scmp.eq.s32.totalorder %s34, 0
    %p87 = por %p85, %p86
    %s88 = ssub.s32 %s28, %s35
    %p89 = scmp.eq.s32.totalorder %s88, 0
    %s91 = sadd.s32 %s90, 1
    %s92 = scalar_select %p89, %s90, %s91
    %p95 = pneg %p89
    %p96 = scmp.eq.s32.totalorder %s28, 1
    %p97 = por %p95, %p96
    %p98 = scmp.ne.s32.totalorder %s90, %s93
    %p99 = scmp.eq.s32.totalorder %s28, 0
    %p100 = por %p98, %p99
    %p101 = scmp.ne.s32.totalorder %s90, %s93
    %p102 = scmp.eq.s32.totalorder %s33, 1
    %p103 = por %p101, %p102
    %p104 = scmp.ne.s32.totalorder %s93, %s94
    %p105 = scmp.eq.s32.totalorder %s33, 0
    %p106 = por %p104, %p105
    %p107 = scmp.ne.s32.totalorder %s93, %s94
    %p108 = scmp.eq.s32.totalorder %s34, 1
    %p109 = por %p107, %p108
    %p111 = scmp.ne.s32.totalorder %s94, %s110
    %p112 = scmp.eq.s32.totalorder %s34, 0
    %p113 = por %p111, %p112
    %s114 = ssub.s32 %s28, %s35
    %p115 = scmp.eq.s32.totalorder %s114, 0
    %s117 = sadd.s32 %s116, 1
    %s118 = scalar_select %p115, %s116, %s117
    %p121 = pneg %p115
    %p122 = scmp.eq.s32.totalorder %s28, 1
    %p123 = por %p121, %p122
    %p124 = scmp.ne.s32.totalorder %s116, %s119
    %p125 = scmp.eq.s32.totalorder %s28, 0
    %p126 = por %p124, %p125
    %p127 = scmp.ne.s32.totalorder %s116, %s119
    %p128 = scmp.eq.s32.totalorder %s33, 1
    %p129 = por %p127, %p128
    %p130 = scmp.ne.s32.totalorder %s119, %s120
    %p131 = scmp.eq.s32.totalorder %s33, 0
    %p132 = por %p130, %p131
    %p133 = scmp.ne.s32.totalorder %s119, %s120
    %p134 = scmp.eq.s32.totalorder %s34, 1
    %p135 = por %p133, %p134
    %p137 = scmp.ne.s32.totalorder %s120, %s136
    %p138 = scmp.eq.s32.totalorder %s34, 0
    %p139 = por %p137, %p138
    %s140 = ssub.s32 %s28, %s35
    %p141 = scmp.eq.s32.totalorder %s140, 0
    %s143 = sadd.s32 %s142, 1
    %s144 = scalar_select %p141, %s142, %s143
    %p147 = pneg %p141
    %p148 = scmp.eq.s32.totalorder %s28, 1
    %p149 = por %p147, %p148
    %p150 = scmp.ne.s32.totalorder %s142, %s145
    %p151 = scmp.eq.s32.totalorder %s28, 0
    %p152 = por %p150, %p151
    %p153 = scmp.ne.s32.totalorder %s142, %s145
    %p154 = scmp.eq.s32.totalorder %s33, 1
    %p155 = por %p153, %p154
    %p156 = scmp.ne.s32.totalorder %s145, %s146
    %p157 = scmp.eq.s32.totalorder %s33, 0
    %p158 = por %p156, %p157
    %p159 = scmp.ne.s32.totalorder %s145, %s146
    %p160 = scmp.eq.s32.totalorder %s34, 1
    %p161 = por %p159, %p160
    %p163 = scmp.ne.s32.totalorder %s146, %s162
    %p164 = scmp.eq.s32.totalorder %s34, 0
    %p165 = por %p163, %p164
    %s166 = ssub.s32 %s28, %s35
    %p167 = scmp.eq.s32.totalorder %s166, 0
    %s169 = sadd.s32 %s168, 1
    %s170 = scalar_select %p167, %s168, %s169
    %p173 = pneg %p167
    %p174 = scmp.eq.s32.totalorder %s28, 1
    %p175 = por %p173, %p174
    %p176 = scmp.ne.s32.totalorder %s168, %s171
    %p177 = scmp.eq.s32.totalorder %s28, 0
    %p178 = por %p176, %p177
    %p179 = scmp.ne.s32.totalorder %s168, %s171
    %p180 = scmp.eq.s32.totalorder %s33, 1
    %p181 = por %p179, %p180
    %p182 = scmp.ne.s32.totalorder %s171, %s172
    %p183 = scmp.eq.s32.totalorder %s33, 0
    %p184 = por %p182, %p183
    %p185 = scmp.ne.s32.totalorder %s171, %s172
    %p186 = scmp.eq.s32.totalorder %s34, 1
    %p187 = por %p185, %p186
    %p189 = scmp.ne.s32.totalorder %s172, %s188
    %p190 = scmp.eq.s32.totalorder %s34, 0
    %p191 = por %p189, %p190
    %s193 = sadd.s32 %s192, 1
    %p196 = scmp.eq.s32.totalorder %s28, 1
    %p197 = scmp.ne.s32.totalorder %s192, %s194
    %p198 = scmp.eq.s32.totalorder %s28, 0
    %p199 = por %p197, %p198
    %p200 = scmp.ne.s32.totalorder %s192, %s194
    %p201 = scmp.eq.s32.totalorder %s33, 1
    %p202 = por %p200, %p201
    %p203 = scmp.ne.s32.totalorder %s194, %s195
    %p204 = scmp.eq.s32.totalorder %s33, 0
    %p205 = por %p203, %p204
    %p206 = scmp.ne.s32.totalorder %s194, %s195
    %p207 = scmp.eq.s32.totalorder %s34, 1
    %p208 = por %p206, %p207
    %p210 = scmp.ne.s32.totalorder %s195, %s209
    %p211 = scmp.eq.s32.totalorder %s34, 0
    %p212 = por %p210, %p211
    %s214 = sadd.s32 %s213, 1
    %p217 = scmp.eq.s32.totalorder %s28, 1
    %p218 = scmp.ne.s32.totalorder %s213, %s215
    %p219 = scmp.eq.s32.totalorder %s28, 0
    %p220 = por %p218, %p219
    %p221 = scmp.ne.s32.totalorder %s213, %s215
    %p222 = scmp.eq.s32.totalorder %s33, 1
    %p223 = por %p221, %p222
    %p224 = scmp.ne.s32.totalorder %s215, %s216
    %p225 = scmp.eq.s32.totalorder %s33, 0
    %p226 = por %p224, %p225
    %p227 = scmp.ne.s32.totalorder %s215, %s216
    %p228 = scmp.eq.s32.totalorder %s34, 1
    %p229 = por %p227, %p228
    %p231 = scmp.ne.s32.totalorder %s216, %s230
    %p232 = scmp.eq.s32.totalorder %s34, 0
    %p233 = por %p231, %p232
    %s235 = sadd.s32 %s234, 1
    %p238 = scmp.eq.s32.totalorder %s28, 1
    %p239 = scmp.ne.s32.totalorder %s234, %s236
    %p240 = scmp.eq.s32.totalorder %s28, 0
    %p241 = por %p239, %p240
    %p242 = scmp.ne.s32.totalorder %s234, %s236
    %p243 = scmp.eq.s32.totalorder %s33, 1
    %p244 = por %p242, %p243
    %p245 = scmp.ne.s32.totalorder %s236, %s237
    %p246 = scmp.eq.s32.totalorder %s33, 0
    %p247 = por %p245, %p246
    %p248 = scmp.ne.s32.totalorder %s236, %s237
    %p249 = scmp.eq.s32.totalorder %s34, 1
    %p250 = por %p248, %p249
    %p252 = scmp.ne.s32.totalorder %s237, %s251
    %p253 = scmp.eq.s32.totalorder %s34, 0
    %p254 = por %p252, %p253
    %s256 = sadd.s32 %s255, 1
    %p259 = scmp.eq.s32.totalorder %s28, 1
    %p260 = scmp.ne.s32.totalorder %s255, %s257
    %p261 = scmp.eq.s32.totalorder %s28, 0
    %p262 = por %p260, %p261
    %p263 = scmp.ne.s32.totalorder %s255, %s257
    %p264 = scmp.eq.s32.totalorder %s33, 1
    %p265 = por %p263, %p264
    %p266 = scmp.ne.s32.totalorder %s257, %s258
    %p267 = scmp.eq.s32.totalorder %s33, 0
    %p268 = por %p266, %p267
    %p269 = scmp.ne.s32.totalorder %s257, %s258
    %p270 = scmp.eq.s32.totalorder %s34, 1
    %p271 = por %p269, %p270
    %p273 = scmp.ne.s32.totalorder %s258, %s272
    %p274 = scmp.eq.s32.totalorder %s34, 0
    %p275 = por %p273, %p274
    %s277 = sadd.s32 %s276, 1
    %p280 = scmp.eq.s32.totalorder %s28, 1
    %p281 = scmp.ne.s32.totalorder %s276, %s278
    %p282 = scmp.eq.s32.totalorder %s28, 0
    %p283 = por %p281, %p282
    %p284 = scmp.ne.s32.totalorder %s276, %s278
    %p285 = scmp.eq.s32.totalorder %s33, 1
    %p286 = por %p284, %p285
    %p287 = scmp.ne.s32.totalorder %s278, %s279
    %p288 = scmp.eq.s32.totalorder %s33, 0
    %p289 = por %p287, %p288
    %p290 = scmp.ne.s32.totalorder %s278, %s279
    %p291 = scmp.eq.s32.totalorder %s34, 1
    %p292 = por %p290, %p291
    %p294 = scmp.ne.s32.totalorder %s279, %s293
    %p295 = scmp.eq.s32.totalorder %s34, 0
    %p296 = por %p294, %p295
    %s298 = sadd.s32 %s297, 1
    %p301 = scmp.eq.s32.totalorder %s28, 1
    %p302 = scmp.ne.s32.totalorder %s297, %s299
    %p303 = scmp.eq.s32.totalorder %s28, 0
    %p304 = por %p302, %p303
    %p305 = scmp.ne.s32.totalorder %s297, %s299
    %p306 = scmp.eq.s32.totalorder %s33, 1
    %p307 = por %p305, %p306
    %p308 = scmp.ne.s32.totalorder %s299, %s300
    %p309 = scmp.eq.s32.totalorder %s33, 0
    %p310 = por %p308, %p309
    %p311 = scmp.ne.s32.totalorder %s299, %s300
    %p312 = scmp.eq.s32.totalorder %s34, 1
    %p313 = por %p311, %p312
    %p315 = scmp.ne.s32.totalorder %s300, %s314
    %p316 = scmp.eq.s32.totalorder %s34, 0
    %p317 = por %p315, %p316
    %s319 = sadd.s32 %s318, 1
    %p322 = scmp.eq.s32.totalorder %s28, 1
    %p323 = scmp.ne.s32.totalorder %s318, %s320
    %p324 = scmp.eq.s32.totalorder %s28, 0
    %p325 = por %p323, %p324
    %p326 = scmp.ne.s32.totalorder %s318, %s320
    %p327 = scmp.eq.s32.totalorder %s33, 1
    %p328 = por %p326, %p327
    %p329 = scmp.ne.s32.totalorder %s320, %s321
    %p330 = scmp.eq.s32.totalorder %s33, 0
    %p331 = por %p329, %p330
    %p332 = scmp.ne.s32.totalorder %s320, %s321
    %p333 = scmp.eq.s32.totalorder %s34, 1
    %p334 = por %p332, %p333
    %p336 = scmp.ne.s32.totalorder %s321, %s335
    %p337 = scmp.eq.s32.totalorder %s34, 0
    %p338 = por %p336, %p337
    %s340 = sadd.s32 %s339, 1
    %p343 = scmp.eq.s32.totalorder %s28, 1
    %p344 = scmp.ne.s32.totalorder %s339, %s341
    %p345 = scmp.eq.s32.totalorder %s28, 0
    %p346 = por %p344, %p345
    %p347 = scmp.ne.s32.totalorder %s339, %s341
    %p348 = scmp.eq.s32.totalorder %s33, 1
    %p349 = por %p347, %p348
    %p350 = scmp.ne.s32.totalorder %s341, %s342
    %p351 = scmp.eq.s32.totalorder %s33, 0
    %p352 = por %p350, %p351
    %p353 = scmp.ne.s32.totalorder %s341, %s342
    %p354 = scmp.eq.s32.totalorder %s34, 1
    %p355 = por %p353, %p354
    %p357 = scmp.ne.s32.totalorder %s342, %s356
    %p358 = scmp.eq.s32.totalorder %s34, 0
    %p359 = por %p357, %p358
    %s361 = sadd.s32 %s360, 1
    %p364 = scmp.eq.s32.totalorder %s28, 1
    %p365 = scmp.ne.s32.totalorder %s360, %s362
    %p366 = scmp.eq.s32.totalorder %s28, 0
    %p367 = por %p365, %p366
    %p368 = scmp.ne.s32.totalorder %s360, %s362
    %p369 = scmp.eq.s32.totalorder %s33, 1
    %p370 = por %p368, %p369
    %p371 = scmp.ne.s32.totalorder %s362, %s363
    %p372 = scmp.eq.s32.totalorder %s33, 0
    %p373 = por %p371, %p372
    %p374 = scmp.ne.s32.totalorder %s362, %s363
    %p375 = scmp.eq.s32.totalorder %s34, 1
    %p376 = por %p374, %p375
    %p378 = scmp.ne.s32.totalorder %s363, %s377
    %p379 = scmp.eq.s32.totalorder %s34, 0
    %p380 = por %p378, %p379
    %s382 = sadd.s32 %s381, 1
    %p385 = scmp.eq.s32.totalorder %s28, 1
    %p386 = scmp.ne.s32.totalorder %s381, %s383
    %p387 = scmp.eq.s32.totalorder %s28, 0
    %p388 = por %p386, %p387
    %p389 = scmp.ne.s32.totalorder %s381, %s383
    %p390 = scmp.eq.s32.totalorder %s33, 1
    %p391 = por %p389, %p390
    %p392 = scmp.ne.s32.totalorder %s383, %s384
    %p393 = scmp.eq.s32.totalorder %s33, 0
    %p394 = por %p392, %p393
    %p395 = scmp.ne.s32.totalorder %s383, %s384
    %p396 = scmp.eq.s32.totalorder %s34, 1
    %p397 = por %p395, %p396
    %p399 = scmp.ne.s32.totalorder %s384, %s398
    %p400 = scmp.eq.s32.totalorder %s34, 0
    %p401 = por %p399, %p400
    %s403 = sadd.s32 %s402, 1
    %p406 = scmp.eq.s32.totalorder %s28, 1
    %p407 = scmp.ne.s32.totalorder %s402, %s404
    %p408 = scmp.eq.s32.totalorder %s28, 0
    %p409 = por %p407, %p408
    %p410 = scmp.ne.s32.totalorder %s402, %s404
    %p411 = scmp.eq.s32.totalorder %s33, 1
    %p412 = por %p410, %p411
    %p413 = scmp.ne.s32.totalorder %s404, %s405
    %p414 = scmp.eq.s32.totalorder %s33, 0
    %p415 = por %p413, %p414
    %p416 = scmp.ne.s32.totalorder %s404, %s405
    %p417 = scmp.eq.s32.totalorder %s34, 1
    %p418 = por %p416, %p417
    %p420 = scmp.ne.s32.totalorder %s405, %s419
    %p421 = scmp.eq.s32.totalorder %s34, 0
    %p422 = por %p420, %p421
    %s424 = sadd.s32 %s423, 1
    %p427 = scmp.eq.s32.totalorder %s28, 1
    %p428 = scmp.ne.s32.totalorder %s423, %s425
    %p429 = scmp.eq.s32.totalorder %s28, 0
    %p430 = por %p428, %p429
    %p431 = scmp.ne.s32.totalorder %s423, %s425
    %p432 = scmp.eq.s32.totalorder %s33, 1
    %p433 = por %p431, %p432
    %p434 = scmp.ne.s32.totalorder %s425, %s426
    %p435 = scmp.eq.s32.totalorder %s33, 0
    %p436 = por %p434, %p435
    %p437 = scmp.ne.s32.totalorder %s425, %s426
    %p438 = scmp.eq.s32.totalorder %s34, 1
    %p439 = por %p437, %p438
    %p441 = scmp.ne.s32.totalorder %s426, %s440
    %p442 = scmp.eq.s32.totalorder %s34, 0
    %p443 = por %p441, %p442
    %s445 = sadd.s32 %s444, 1
    %p448 = scmp.eq.s32.totalorder %s28, 1
    %p449 = scmp.ne.s32.totalorder %s444, %s446
    %p450 = scmp.eq.s32.totalorder %s28, 0
    %p451 = por %p449, %p450
    %p452 = scmp.ne.s32.totalorder %s444, %s446
    %p453 = scmp.eq.s32.totalorder %s33, 1
    %p454 = por %p452, %p453
    %p455 = scmp.ne.s32.totalorder %s446, %s447
    %p456 = scmp.eq.s32.totalorder %s33, 0
    %p457 = por %p455, %p456
    %p458 = scmp.ne.s32.totalorder %s446, %s447
    %p459 = scmp.eq.s32.totalorder %s34, 1
    %p460 = por %p458, %p459
    %p462 = scmp.ne.s32.totalorder %s447, %s461
    %p463 = scmp.eq.s32.totalorder %s34, 0
    %p464 = por %p462, %p463
    %s466 = sadd.s32 %s465, 1
    %p469 = scmp.eq.s32.totalorder %s28, 1
    %p470 = scmp.ne.s32.totalorder %s465, %s467
    %p471 = scmp.eq.s32.totalorder %s28, 0
    %p472 = por %p470, %p471
    %p473 = scmp.ne.s32.totalorder %s465, %s467
    %p474 = scmp.eq.s32.totalorder %s33, 1
    %p475 = por %p473, %p474
    %p476 = scmp.ne.s32.totalorder %s467, %s468
    %p477 = scmp.eq.s32.totalorder %s33, 0
    %p478 = por %p476, %p477
    %p479 = scmp.ne.s32.totalorder %s467, %s468
    %p480 = scmp.eq.s32.totalorder %s34, 1
    %p481 = por %p479, %p480
    %p483 = scmp.ne.s32.totalorder %s468, %s482
    %p484 = scmp.eq.s32.totalorder %s34, 0
    %p485 = por %p483, %p484
    %s486 = ssub.s32 %s28, %s35
    %p487 = scmp.eq.s32.totalorder %s486, 0
    %s489 = sadd.s32 %s488, 1
    %s490 = scalar_select %p487, %s488, %s489
    %p493 = pneg %p487
    %p494 = scmp.eq.s32.totalorder %s28, 1
    %p495 = por %p493, %p494
    %p496 = scmp.ne.s32.totalorder %s488, %s491
    %p497 = scmp.eq.s32.totalorder %s28, 0
    %p498 = por %p496, %p497
    %p499 = scmp.ne.s32.totalorder %s488, %s491
    %p500 = scmp.eq.s32.totalorder %s33, 1
    %p501 = por %p499, %p500
    %p502 = scmp.ne.s32.totalorder %s491, %s492
    %p503 = scmp.eq.s32.totalorder %s33, 0
    %p504 = por %p502, %p503
    %p505 = scmp.ne.s32.totalorder %s491, %s492
    %p506 = scmp.eq.s32.totalorder %s34, 1
    %p507 = por %p505, %p506
    %p509 = scmp.ne.s32.totalorder %s492, %s508
    %p510 = scmp.eq.s32.totalorder %s34, 0
    %p511 = por %p509, %p510
    %s512 = ssub.s32 %s28, %s35
    %p513 = scmp.eq.s32.totalorder %s512, 0
    %s515 = sadd.s32 %s514, 1
    %s516 = scalar_select %p513, %s514, %s515
    %p519 = pneg %p513
    %p520 = scmp.eq.s32.totalorder %s28, 1
    %p521 = por %p519, %p520
    %p522 = scmp.ne.s32.totalorder %s514, %s517
    %p523 = scmp.eq.s32.totalorder %s28, 0
    %p524 = por %p522, %p523
    %p525 = scmp.ne.s32.totalorder %s514, %s517
    %p526 = scmp.eq.s32.totalorder %s33, 1
    %p527 = por %p525, %p526
    %p528 = scmp.ne.s32.totalorder %s517, %s518
    %p529 = scmp.eq.s32.totalorder %s33, 0
    %p530 = por %p528, %p529
    %p531 = scmp.ne.s32.totalorder %s517, %s518
    %p532 = scmp.eq.s32.totalorder %s34, 1
    %p533 = por %p531, %p532
    %p535 = scmp.ne.s32.totalorder %s518, %s534
    %p536 = scmp.eq.s32.totalorder %s34, 0
    %p537 = por %p535, %p536
    %p538 = scmp.le.s32.totalorder 1, %s28
    %p539 = scmp.lt.s32.totalorder %s28, 3
    %p540 = pnand %p538, %p539
    %p541 = pneg %p540
    // Predicated region
    $region9: #{set_matching_forward.4} parent=5 // pred_check
      _
    $region10: #{set_matching_forward.4} parent=5 // pred_check_branch
      %543 = sbr.rel (%p540) target = $region12
    $region11: #{set_matching_forward.4} parent=5 // pred_region
      %s544 = ssub.s32 %s28, 1
      // Predicated region
      $region13: #{set_matching_forward.4} parent=11 // pred_check
        %p545 = pneg %p205
      $region14: #{set_matching_forward.4} parent=11 // pred_check_branch
        %547 = sbr.rel (%p545) target = $region16
      $region15: #{set_matching_forward.4} parent=11 // pred_region
        _
      $region16: #{set_matching_forward.4} parent=11 // pred_fallthru
        _
      // Predicated region
      $region17: #{set_matching_forward.4} parent=11 // pred_check
        %p548 = pneg %p226
      $region18: #{set_matching_forward.4} parent=11 // pred_check_branch
        %550 = sbr.rel (%p548) target = $region20
      $region19: #{set_matching_forward.4} parent=11 // pred_region
        _
      $region20: #{set_matching_forward.4} parent=11 // pred_fallthru
        _
      // Predicated region
      $region21: #{set_matching_forward.4} parent=11 // pred_check
        %p551 = pneg %p247
      $region22: #{set_matching_forward.4} parent=11 // pred_check_branch
        %553 = sbr.rel (%p551) target = $region24
      $region23: #{set_matching_forward.4} parent=11 // pred_region
        _
      $region24: #{set_matching_forward.4} parent=11 // pred_fallthru
        _
      // Predicated region
      $region25: #{set_matching_forward.4} parent=11 // pred_check
        %p554 = pneg %p268
      $region26: #{set_matching_forward.4} parent=11 // pred_check_branch
        %556 = sbr.rel (%p554) target = $region28
      $region27: #{set_matching_forward.4} parent=11 // pred_region
        _
      $region28: #{set_matching_forward.4} parent=11 // pred_fallthru
        _
      // Predicated region
      $region29: #{set_matching_forward.4} parent=11 // pred_check
        %p557 = pneg %p289
      $region30: #{set_matching_forward.4} parent=11 // pred_check_branch
        %559 = sbr.rel (%p557) target = $region32
      $region31: #{set_matching_forward.4} parent=11 // pred_region
        _
      $region32: #{set_matching_forward.4} parent=11 // pred_fallthru
        _
      // Predicated region
      $region33: #{set_matching_forward.4} parent=11 // pred_check
        %p560 = pneg %p310
      $region34: #{set_matching_forward.4} parent=11 // pred_check_branch
        %562 = sbr.rel (%p560) target = $region36
      $region35: #{set_matching_forward.4} parent=11 // pred_region
        _
      $region36: #{set_matching_forward.4} parent=11 // pred_fallthru
        _
      // Predicated region
      $region37: #{set_matching_forward.4} parent=11 // pred_check
        %p563 = pneg %p331
      $region38: #{set_matching_forward.4} parent=11 // pred_check_branch
        %565 = sbr.rel (%p563) target = $region40
      $region39: #{set_matching_forward.4} parent=11 // pred_region
        _
      $region40: #{set_matching_forward.4} parent=11 // pred_fallthru
        _
      // Predicated region
      $region41: #{set_matching_forward.4} parent=11 // pred_check
        %p566 = pneg %p352
      $region42: #{set_matching_forward.4} parent=11 // pred_check_branch
        %568 = sbr.rel (%p566) target = $region44
      $region43: #{set_matching_forward.4} parent=11 // pred_region
        _
      $region44: #{set_matching_forward.4} parent=11 // pred_fallthru
        _
      // Predicated region
      $region45: #{set_matching_forward.4} parent=11 // pred_check
        %p569 = pneg %p373
      $region46: #{set_matching_forward.4} parent=11 // pred_check_branch
        %571 = sbr.rel (%p569) target = $region48
      $region47: #{set_matching_forward.4} parent=11 // pred_region
        _
      $region48: #{set_matching_forward.4} parent=11 // pred_fallthru
        _
      // Predicated region
      $region49: #{set_matching_forward.4} parent=11 // pred_check
        %p572 = pneg %p394
      $region50: #{set_matching_forward.4} parent=11 // pred_check_branch
        %574 = sbr.rel (%p572) target = $region52
      $region51: #{set_matching_forward.4} parent=11 // pred_region
        _
      $region52: #{set_matching_forward.4} parent=11 // pred_fallthru
        _
      // Predicated region
      $region53: #{set_matching_forward.4} parent=11 // pred_check
        %p575 = pneg %p415
      $region54: #{set_matching_forward.4} parent=11 // pred_check_branch
        %577 = sbr.rel (%p575) target = $region56
      $region55: #{set_matching_forward.4} parent=11 // pred_region
        _
      $region56: #{set_matching_forward.4} parent=11 // pred_fallthru
        _
      // Predicated region
      $region57: #{set_matching_forward.4} parent=11 // pred_check
        %p578 = pneg %p436
      $region58: #{set_matching_forward.4} parent=11 // pred_check_branch
        %580 = sbr.rel (%p578) target = $region60
      $region59: #{set_matching_forward.4} parent=11 // pred_region
        _
      $region60: #{set_matching_forward.4} parent=11 // pred_fallthru
        _
      // Predicated region
      $region61: #{set_matching_forward.4} parent=11 // pred_check
        %p581 = pneg %p457
      $region62: #{set_matching_forward.4} parent=11 // pred_check_branch
        %583 = sbr.rel (%p581) target = $region64
      $region63: #{set_matching_forward.4} parent=11 // pred_region
        _
      $region64: #{set_matching_forward.4} parent=11 // pred_fallthru
        _
      // Predicated region
      $region65: #{set_matching_forward.4} parent=11 // pred_check
        %p584 = pneg %p478
      $region66: #{set_matching_forward.4} parent=11 // pred_check_branch
        %586 = sbr.rel (%p584) target = $region68
      $region67: #{set_matching_forward.4} parent=11 // pred_region
        _
      $region68: #{set_matching_forward.4} parent=11 // pred_fallthru
        _
    $region12: #{set_matching_forward.4} parent=5 // pred_fallthru
      _
    %p587 = scmp.lt.s32.totalorder %s28, 2
    // Predicated region
    $region69: #{set_matching_forward.4} parent=5 // pred_check
      %p588 = pneg %p587
    $region70: #{set_matching_forward.4} parent=5 // pred_check_branch
      %590 = sbr.rel (%p588) target = $region72
    $region71: #{set_matching_forward.4} parent=5 // pred_region
      // Predicated region
      $region73: #{set_matching_forward.4} parent=71 // pred_check
        %p591 = pneg %p48
      $region74: #{set_matching_forward.4} parent=71 // pred_check_branch
        %593 = sbr.rel (%p591) target = $region76
      $region75: #{set_matching_forward.4} parent=71 // pred_region
        %p594 = scmp.lt.s32.totalorder %s28, 1
        %s595 = scalar_select %p594, %s28, 1
        %s596 = smul.addr %s595, 8
        %s597 = scalar_lea.vmem %s0, %s596
      $region76: #{set_matching_forward.4} parent=71 // pred_fallthru
        _
      // Predicated region
      $region77: #{set_matching_forward.4} parent=71 // pred_check
        %p598 = pneg %p74
      $region78: #{set_matching_forward.4} parent=71 // pred_check_branch
        %600 = sbr.rel (%p598) target = $region80
      $region79: #{set_matching_forward.4} parent=71 // pred_region
        %p601 = scmp.lt.s32.totalorder %s28, 1
        %s602 = scalar_select %p601, %s28, 1
        %s603 = smul.addr %s602, 8
        %s604 = scalar_lea.vmem %s1, %s603
      $region80: #{set_matching_forward.4} parent=71 // pred_fallthru
        _
      // Predicated region
      $region81: #{set_matching_forward.4} parent=71 // pred_check
        %p605 = pneg %p100
      $region82: #{set_matching_forward.4} parent=71 // pred_check_branch
        %607 = sbr.rel (%p605) target = $region84
      $region83: #{set_matching_forward.4} parent=71 // pred_region
        %p608 = scmp.lt.s32.totalorder %s28, 1
        %s609 = scalar_select %p608, %s28, 1
        %s610 = scalar_lea.vmem %s2, %s609
      $region84: #{set_matching_forward.4} parent=71 // pred_fallthru
        _
      // Predicated region
      $region85: #{set_matching_forward.4} parent=71 // pred_check
        %p611 = pneg %p126
      $region86: #{set_matching_forward.4} parent=71 // pred_check_branch
        %613 = sbr.rel (%p611) target = $region88
      $region87: #{set_matching_forward.4} parent=71 // pred_region
        %p614 = scmp.lt.s32.totalorder %s28, 1
        %s615 = scalar_select %p614, %s28, 1
        %s616 = smul.addr %s615, 8
        %s617 = scalar_lea.vmem %s3, %s616
      $region88: #{set_matching_forward.4} parent=71 // pred_fallthru
        _
      // Predicated region
      $region89: #{set_matching_forward.4} parent=71 // pred_check
        %p618 = pneg %p152
      $region90: #{set_matching_forward.4} parent=71 // pred_check_branch
        %620 = sbr.rel (%p618) target = $region92
      $region91: #{set_matching_forward.4} parent=71 // pred_region
        %p621 = scmp.lt.s32.totalorder %s28, 1
        %s622 = scalar_select %p621, %s28, 1
        %s623 = scalar_lea.vmem %s4, %s622
      $region92: #{set_matching_forward.4} parent=71 // pred_fallthru
        _
      // Predicated region
      $region93: #{set_matching_forward.4} parent=71 // pred_check
        %p624 = pneg %p178
      $region94: #{set_matching_forward.4} parent=71 // pred_check_branch
        %626 = sbr.rel (%p624) target = $region96
      $region95: #{set_matching_forward.4} parent=71 // pred_region
        %p627 = scmp.lt.s32.totalorder %s28, 1
        %s628 = scalar_select %p627, %s28, 1
        %s629 = smul.addr %s628, 8
        %s630 = scalar_lea.vmem %s5, %s629
      $region96: #{set_matching_forward.4} parent=71 // pred_fallthru
        _
    $region72: #{set_matching_forward.4} parent=5 // pred_fallthru
      _
    %p631 = scmp.le.s32.totalorder 1, %s28
    %p632 = scmp.lt.s32.totalorder %s28, 3
    %p633 = pnand %p631, %p632
    %p634 = pneg %p633
    // Predicated region
    $region97: #{set_matching_forward.4} parent=5 // pred_check
      _
    $region98: #{set_matching_forward.4} parent=5 // pred_check_branch
      %636 = sbr.rel (%p633) target = $region100
    $region99: #{set_matching_forward.4} parent=5 // pred_region
      %s637 = ssub.s32 %s28, 1
      %p638 = scmp.lt.s32.totalorder %s33, 1
      %s639 = scalar_select %p638, %s33, 1
      %s640 = smul.addr %s639, 8
      %s641 = scalar_lea.vmem %s0, %s640
      %p642 = pneg %p54
      %p643 = pneg %p51
      %p644 = scmp.lt.s32.totalorder %s33, 1
      %s645 = scalar_select %p644, %s33, 1
      %s646 = smul.addr %s645, 8
      %s647 = scalar_lea.vmem %s1, %s646
      %p648 = pneg %p80
      %p649 = pneg %p77
      %p650 = scmp.lt.s32.totalorder %s33, 1
      %s651 = scalar_select %p650, %s33, 1
      %s652 = scalar_lea.vmem %s2, %s651
      %p653 = pneg %p106
      %p654 = pneg %p103
      %p655 = scmp.lt.s32.totalorder %s33, 1
      %s656 = scalar_select %p655, %s33, 1
      %s657 = smul.addr %s656, 8
      %s658 = scalar_lea.vmem %s3, %s657
      %p659 = pneg %p132
      %p660 = pneg %p129
      %p661 = scmp.lt.s32.totalorder %s33, 1
      %s662 = scalar_select %p661, %s33, 1
      %s663 = scalar_lea.vmem %s4, %s662
      %p664 = pneg %p158
      %p665 = pneg %p155
      %p666 = scmp.lt.s32.totalorder %s33, 1
      %s667 = scalar_select %p666, %s33, 1
      %s668 = smul.addr %s667, 8
      %s669 = scalar_lea.vmem %s5, %s668
      %p670 = pneg %p184
      %p671 = pneg %p181
      %p672 = pneg %p205
      %p673 = pneg %p202
      %p674 = pneg %p226
      %p675 = pneg %p223
      %p676 = pneg %p247
      %p677 = pneg %p244
      %p678 = pneg %p268
      %p679 = pneg %p265
      %p680 = pneg %p289
      %p681 = pneg %p286
      %p682 = pneg %p310
      %p683 = pneg %p307
      %p684 = pneg %p331
      %p685 = pneg %p328
      %p686 = pneg %p352
      %p687 = pneg %p349
      %p688 = pneg %p373
      %p689 = pneg %p370
      %p690 = pneg %p394
      %p691 = pneg %p391
      %p692 = pneg %p415
      %p693 = pneg %p412
      %p694 = pneg %p436
      %p695 = pneg %p433
      %p696 = pneg %p457
      %p697 = pneg %p454
      %p698 = pneg %p478
      %p699 = pneg %p475
      %p700 = pneg %p504
      %p701 = pneg %p501
      %p702 = scmp.lt.s32.totalorder %s33, 1
      %s703 = scalar_select %p702, %s33, 1
      %s704 = smul.addr %s703, 8
      %s705 = scalar_lea.vmem %s20, %s704
      %p706 = pneg %p530
      %p707 = pneg %p527
      %p708 = scmp.lt.s32.totalorder %s33, 1
      %s709 = scalar_select %p708, %s33, 1
      %s710 = smul.addr %s709, 8
      %s711 = scalar_lea.vmem %s21, %s710
      %p712 = scmp.lt.s32.totalorder %s33, 1
      %s713 = scalar_select %p712, %s33, 1
      %s714 = smul.addr %s713, 8
      %s715 = scalar_lea.vmem %s0, %s714
      %p716 = scmp.lt.s32.totalorder %s33, 1
      %s717 = scalar_select %p716, %s33, 1
      %s718 = smul.addr %s717, 8
      %s719 = scalar_lea.vmem %s1, %s718
      %p720 = scmp.lt.s32.totalorder %s33, 1
      %s721 = scalar_select %p720, %s33, 1
      %s722 = scalar_lea.vmem %s2, %s721
      %p723 = scmp.lt.s32.totalorder %s33, 1
      %s724 = scalar_select %p723, %s33, 1
      %s725 = smul.addr %s724, 8
      %s726 = scalar_lea.vmem %s3, %s725
      %p727 = scmp.lt.s32.totalorder %s33, 1
      %s728 = scalar_select %p727, %s33, 1
      %s729 = scalar_lea.vmem %s4, %s728
      %p730 = scmp.lt.s32.totalorder %s33, 1
      %s731 = scalar_select %p730, %s33, 1
      %s732 = smul.addr %s731, 8
      %s733 = scalar_lea.vmem %s5, %s732
      %p734 = scmp.lt.s32.totalorder %s33, 1
      %s735 = scalar_select %p734, %s33, 1
      %s736 = smul.addr %s735, 8
      %s737 = scalar_lea.vmem %s20, %s736
      %p738 = scmp.lt.s32.totalorder %s33, 1
      %s739 = scalar_select %p738, %s33, 1
      %s740 = smul.addr %s739, 8
      %s741 = scalar_lea.vmem %s21, %s740
      %v743 = vld [vmem:[%s715] sm:$0xff]
      %v744 = vld [vmem:[%s719] sm:$0xff]
      %v745 = vld [vmem:[%s722] sm:$0x1]
      %v746 = vld [vmem:[%s726] sm:$0xff]
      %v747 = vld [vmem:[%s729] sm:$0x1]
      %v748 = vld [vmem:[%s733] sm:$0xff]
      %v750 = vperm.slane %v745, 0
      %751 = vrot.lane.b32.xlu0 %v750, 16
      %v752 = vpop.permute.xlu0 %751
      %754 = vrot.lane.b32.xlu0 %v750, 32
      %v755 = vpop.permute.xlu0 %754
      %757 = vrot.lane.b32.xlu0 %v750, 48
      %v758 = vpop.permute.xlu0 %757
      %760 = vrot.lane.b32.xlu0 %v750, 64
      %v761 = vpop.permute.xlu0 %760
      %763 = vrot.lane.b32.xlu0 %v750, 80
      %v764 = vpop.permute.xlu0 %763
      %766 = vrot.lane.b32.xlu0 %v750, 96
      %v767 = vpop.permute.xlu0 %766
      %769 = vrot.lane.b32.xlu0 %v750, 112
      %v770 = vpop.permute.xlu0 %769
      %vm772 = vcmask 64512
      %v773 = vsel %vm772, %v745, 0.0
      %vm774 = vcmask 130048
      %v775 = vsel %vm774, %v773, %v752
      %vm776 = vcmask 195584
      %v777 = vsel %vm776, %v775, 0.0
      %vm778 = vcmask 261120
      %v779 = vsel %vm778, %v777, %v755
      %vm780 = vcmask 326656
      %v781 = vsel %vm780, %v779, 0.0
      %vm782 = vcmask 392192
      %v783 = vsel %vm782, %v781, %v758
      %vm784 = vcmask 457728
      %v785 = vsel %vm784, %v783, 0.0
      %vm786 = vcmask 523264
      %v787 = vsel %vm786, %v785, %v761
      %vm788 = vcmask 588800
      %v789 = vsel %vm788, %v787, 0.0
      %vm790 = vcmask 654336
      %v791 = vsel %vm790, %v789, %v764
      %vm792 = vcmask 719872
      %v793 = vsel %vm792, %v791, 0.0
      %vm794 = vcmask 785408
      %v795 = vsel %vm794, %v793, %v767
      %vm796 = vcmask 850944
      %v797 = vsel %vm796, %v795, 0.0
      %vm798 = vcmask 916480
      %v799 = vsel %vm798, %v797, %v770
      %vm800 = vcmask 982016
      %v801 = vsel %vm800, %v799, 0.0
      %v803 = vperm.slane %v747, 0
      %804 = vrot.lane.b32.xlu0 %v803, 8
      %v805 = vpop.permute.xlu0 %804
      %807 = vrot.lane.b32.xlu0 %v803, 24
      %v808 = vpop.permute.xlu0 %807
      %810 = vrot.lane.b32.xlu0 %v803, 40
      %v811 = vpop.permute.xlu0 %810
      %813 = vrot.lane.b32.xlu0 %v803, 56
      %v814 = vpop.permute.xlu0 %813
      %816 = vrot.lane.b32.xlu0 %v803, 72
      %v817 = vpop.permute.xlu0 %816
      %819 = vrot.lane.b32.xlu0 %v803, 88
      %v820 = vpop.permute.xlu0 %819
      %822 = vrot.lane.b32.xlu0 %v803, 104
      %v823 = vpop.permute.xlu0 %822
      %825 = vrot.lane.b32.xlu0 %v803, 120
      %v826 = vpop.permute.xlu0 %825
      %v828 = vsel %vm772, 0.0, %v805
      %v829 = vsel %vm774, %v828, 0.0
      %v830 = vsel %vm776, %v829, %v808
      %v831 = vsel %vm778, %v830, 0.0
      %v832 = vsel %vm780, %v831, %v811
      %v833 = vsel %vm782, %v832, 0.0
      %v834 = vsel %vm784, %v833, %v814
      %v835 = vsel %vm786, %v834, 0.0
      %v836 = vsel %vm788, %v835, %v817
      %v837 = vsel %vm790, %v836, 0.0
      %v838 = vsel %vm792, %v837, %v820
      %v839 = vsel %vm794, %v838, 0.0
      %v840 = vsel %vm796, %v839, %v823
      %v841 = vsel %vm798, %v840, 0.0
      %v842 = vsel %vm800, %v841, %v826
      %844 = vset.pattern.permute.xlu0 0
      %845 = vperm.xlu0 %844, %v746
      %v846 = vpop.permute.xlu0 %845
      %849 = vset.pattern.permute.xlu0 0
      %850 = vperm.xlu0 %849, 0.0
      %v851 = vpop.permute.xlu0 %850
      %v853 = vperm.slane %v801, 0
      %v854 = vmul.f32 %v846, %v853
      %v855 = vmul.f32 %v851, %v853
      %857 = vset.pattern.permute.xlu0 0
      %858 = vperm.xlu0 %857, %v748
      %v859 = vpop.permute.xlu0 %858
      %v861 = vperm.slane %v842, 0
      %v862 = vmul.f32 %v851, %v861
      %v863 = vmul.f32 %v859, %v861
      %v864 = vadd.f32 %v854, %v862
      %v865 = vadd.f32 %v855, %v863
      %vm866 = vcmp.gt.f32.partialorder %v864, 0.0
      %vm867 = vcmp.gt.f32.partialorder %v865, 0.0
      %v868 = vsel %vm866, 0.0, -1e+30
      %v869 = vsel %vm867, 0.0, -1e+30
      %v870 = vld [vmem:[%s8] sm:$0xf]
      %v871 = vld [vmem:[%s8 + $0x4] sm:$0xf]
      %v872 = vld [vmem:[%s8 + $0x8] sm:$0xf]
      %v873 = vld [vmem:[%s8 + $0xc] sm:$0xf]
      %v874 = vld [vmem:[%s9] sm:$0xf]
      %v875 = vld [vmem:[%s9 + $0x4] sm:$0xf]
      %v876 = vld [vmem:[%s9 + $0x8] sm:$0xf]
      %v877 = vld [vmem:[%s9 + $0xc] sm:$0xf]
      %v878 = vld [vmem:[%s10] sm:$0xf]
      %v879 = vld [vmem:[%s10 + $0x4] sm:$0xf]
      %v880 = vld [vmem:[%s10 + $0x8] sm:$0xf]
      %v881 = vld [vmem:[%s10 + $0xc] sm:$0xf]
      %v882 = vld [vmem:[%s11] sm:$0xf]
      %v883 = vld [vmem:[%s11 + $0x4] sm:$0xf]
      %v884 = vld [vmem:[%s11 + $0x8] sm:$0xf]
      %v885 = vld [vmem:[%s11 + $0xc] sm:$0xf]
      %v886 = vld [vmem:[%s12] sm:$0xf]
      %v887 = vld [vmem:[%s12 + $0x4] sm:$0xf]
      %v888 = vld [vmem:[%s12 + $0x8] sm:$0xf]
      %v889 = vld [vmem:[%s12 + $0xc] sm:$0xf]
      %v890 = vld [vmem:[%s13] sm:$0x1]
      %v891 = vld [vmem:[%s14] sm:$0xf]
      %v892 = vld [vmem:[%s14 + $0x4] sm:$0xf]
      %v893 = vld [vmem:[%s14 + $0x8] sm:$0xf]
      %v894 = vld [vmem:[%s14 + $0xc] sm:$0xf]
      %v895 = vld [vmem:[%s14 + $0x10] sm:$0xf]
      %v896 = vld [vmem:[%s14 + $0x14] sm:$0xf]
      %v897 = vld [vmem:[%s14 + $0x18] sm:$0xf]
      %v898 = vld [vmem:[%s14 + $0x1c] sm:$0xf]
      %v899 = vld [vmem:[%s14 + $0x20] sm:$0xf]
      %v900 = vld [vmem:[%s14 + $0x24] sm:$0xf]
      %v901 = vld [vmem:[%s14 + $0x28] sm:$0xf]
      %v902 = vld [vmem:[%s14 + $0x2c] sm:$0xf]
      %v903 = vld [vmem:[%s14 + $0x30] sm:$0xf]
      %v904 = vld [vmem:[%s14 + $0x34] sm:$0xf]
      %v905 = vld [vmem:[%s14 + $0x38] sm:$0xf]
      %v906 = vld [vmem:[%s14 + $0x3c] sm:$0xf]
      %v907 = vld [vmem:[%s15] sm:$0x1]
      %v908 = vld [vmem:[%s16] sm:$0x1]
      %v909 = vld [vmem:[%s17] sm:$0x1]
      %v910 = vld [vmem:[%s18] sm:$0x1]
      %v911 = vld [vmem:[%s19] sm:$0x1]
      %v912 = vld [vmem:[%s6] sm:$0xff]
      %v913 = vld [vmem:[%s6 + $0x8] sm:$0xff]
      %v914 = vld [vmem:[%s6 + $0x10] sm:$0xff]
      %v915 = vld [vmem:[%s6 + $0x18] sm:$0xff]
      %v916 = vld [vmem:[%s6 + $0x20] sm:$0xff]
      %v917 = vld [vmem:[%s6 + $0x28] sm:$0xff]
      %v918 = vld [vmem:[%s6 + $0x30] sm:$0xff]
      %v919 = vld [vmem:[%s6 + $0x38] sm:$0xff]
      %v920 = vld [vmem:[%s6 + $0x40] sm:$0xff]
      %v921 = vld [vmem:[%s6 + $0x48] sm:$0xff]
      %v922 = vld [vmem:[%s6 + $0x50] sm:$0xff]
      %v923 = vld [vmem:[%s6 + $0x58] sm:$0xff]
      %v924 = vld [vmem:[%s6 + $0x60] sm:$0xff]
      %v925 = vld [vmem:[%s6 + $0x68] sm:$0xff]
      %v926 = vld [vmem:[%s6 + $0x70] sm:$0xff]
      %v927 = vld [vmem:[%s6 + $0x78] sm:$0xff]
      %v928 = vld [vmem:[%s7] sm:$0xff]
      %v929 = vld [vmem:[%s7 + $0x8] sm:$0xff]
      %v930 = vld [vmem:[%s7 + $0x10] sm:$0xff]
      %v931 = vld [vmem:[%s7 + $0x18] sm:$0xff]
      %v932 = vld [vmem:[%s7 + $0x20] sm:$0xff]
      %v933 = vld [vmem:[%s7 + $0x28] sm:$0xff]
      %v934 = vld [vmem:[%s7 + $0x30] sm:$0xff]
      %v935 = vld [vmem:[%s7 + $0x38] sm:$0xff]
      %v936 = vld [vmem:[%s7 + $0x40] sm:$0xff]
      %v937 = vld [vmem:[%s7 + $0x48] sm:$0xff]
      %v938 = vld [vmem:[%s7 + $0x50] sm:$0xff]
      %v939 = vld [vmem:[%s7 + $0x58] sm:$0xff]
      %v940 = vld [vmem:[%s7 + $0x60] sm:$0xff]
      %v941 = vld [vmem:[%s7 + $0x68] sm:$0xff]
      %v942 = vld [vmem:[%s7 + $0x70] sm:$0xff]
      %v943 = vld [vmem:[%s7 + $0x78] sm:$0xff]
      %v944 = vpack.c.bf16 %v744, %v743
      %v949 = vunpack.c.l.b16 %v870
      %v950 = vunpack.c.l.b16 %v871
      %v951 = vunpack.c.l.b16 %v872
      %v952 = vunpack.c.l.b16 %v873
      %v953 = vpack.c.b16 %v950, %v949
      %v954 = vpack.c.b16 %v952, %v951
      %v958 = vsel %vm778, %v944, 0
      %960 = vmatpush.bf16.msra.mxu0 0
      %961 = vmatpush.bf16.msra.mxu0 0
      %962 = vmatpush.bf16.msra.mxu0 0
      %963 = vmatpush.bf16.msra.mxu0 0
      %964 = vmatpush.bf16.msra.mxu0 0
      %965 = vmatpush.bf16.msra.mxu0 0
      %966 = vmatpush.bf16.msra.mxu0 %v954
      %967 = vmatpush.bf16.msra.mxu0 %v953
      %968 = vmatmul.bf16.gmra.mxu0 %v958
      %v969 = vpop.f32.mrf.mxu0
      %v970 = vadd.f32 0.0, %v969
      %v971 = vpop.f32.mrf.mxu0
      %v972 = vadd.f32 0.0, %v971
      %973 = vdwg.mxu0
      %v978 = vunpack.c.l.b16 %v874
      %v979 = vunpack.c.l.b16 %v875
      %v980 = vunpack.c.l.b16 %v876
      %v981 = vunpack.c.l.b16 %v877
      %v982 = vpack.c.b16 %v979, %v978
      %v983 = vpack.c.b16 %v981, %v980
      %986 = vmatpush.bf16.msra.mxu0 0
      %987 = vmatpush.bf16.msra.mxu0 0
      %988 = vmatpush.bf16.msra.mxu0 0
      %989 = vmatpush.bf16.msra.mxu0 0
      %990 = vmatpush.bf16.msra.mxu0 0
      %991 = vmatpush.bf16.msra.mxu0 0
      %992 = vmatpush.bf16.msra.mxu0 %v983
      %993 = vmatpush.bf16.msra.mxu0 %v982
      %994 = vmatmul.bf16.gmra.mxu0 %v958
      %v995 = vpop.f32.mrf.mxu0
      %v996 = vadd.f32 0.0, %v995
      %v997 = vpop.f32.mrf.mxu0
      %v998 = vadd.f32 0.0, %v997
      %999 = vdwg.mxu0
      %v1004 = vunpack.c.l.b16 %v878
      %v1005 = vunpack.c.l.b16 %v879
      %v1006 = vunpack.c.l.b16 %v880
      %v1007 = vunpack.c.l.b16 %v881
      %v1008 = vpack.c.b16 %v1005, %v1004
      %v1009 = vpack.c.b16 %v1007, %v1006
      %1012 = vmatpush.bf16.msra.mxu0 0
      %1013 = vmatpush.bf16.msra.mxu0 0
      %1014 = vmatpush.bf16.msra.mxu0 0
      %1015 = vmatpush.bf16.msra.mxu0 0
      %1016 = vmatpush.bf16.msra.mxu0 0
      %1017 = vmatpush.bf16.msra.mxu0 0
      %1018 = vmatpush.bf16.msra.mxu0 %v1009
      %1019 = vmatpush.bf16.msra.mxu0 %v1008
      %1020 = vmatmul.bf16.gmra.mxu0 %v958
      %v1021 = vpop.f32.mrf.mxu0
      %v1022 = vadd.f32 0.0, %v1021
      %v1023 = vpop.f32.mrf.mxu0
      %v1024 = vadd.f32 0.0, %v1023
      %1025 = vdwg.mxu0
      %v1026 = vmul.f32 %v996, %v912
      %v1027 = vmul.f32 %v998, %v913
      %v1028 = vmul.f32 %v996, %v914
      %v1029 = vmul.f32 %v998, %v915
      %v1030 = vmul.f32 %v996, %v916
      %v1031 = vmul.f32 %v998, %v917
      %v1032 = vmul.f32 %v996, %v918
      %v1033 = vmul.f32 %v998, %v919
      %v1034 = vmul.f32 %v996, %v920
      %v1035 = vmul.f32 %v998, %v921
      %v1036 = vmul.f32 %v996, %v922
      %v1037 = vmul.f32 %v998, %v923
      %v1038 = vmul.f32 %v996, %v924
      %v1039 = vmul.f32 %v998, %v925
      %v1040 = vmul.f32 %v996, %v926
      %v1041 = vmul.f32 %v998, %v927
      %v1042 = vpack.c.bf16 %v1027, %v1026
      %v1043 = vpack.c.bf16 %v1029, %v1028
      %v1044 = vpack.c.bf16 %v1031, %v1030
      %v1045 = vpack.c.bf16 %v1033, %v1032
      %v1046 = vpack.c.bf16 %v1035, %v1034
      %v1047 = vpack.c.bf16 %v1037, %v1036
      %v1048 = vpack.c.bf16 %v1039, %v1038
      %v1049 = vpack.c.bf16 %v1041, %v1040
      %v1050 = vmul.f32 %v1022, %v912
      %v1051 = vmul.f32 %v1024, %v913
      %v1052 = vmul.f32 %v1022, %v914
      %v1053 = vmul.f32 %v1024, %v915
      %v1054 = vmul.f32 %v1022, %v916
      %v1055 = vmul.f32 %v1024, %v917
      %v1056 = vmul.f32 %v1022, %v918
      %v1057 = vmul.f32 %v1024, %v919
      %v1058 = vmul.f32 %v1022, %v920
      %v1059 = vmul.f32 %v1024, %v921
      %v1060 = vmul.f32 %v1022, %v922
      %v1061 = vmul.f32 %v1024, %v923
      %v1062 = vmul.f32 %v1022, %v924
      %v1063 = vmul.f32 %v1024, %v925
      %v1064 = vmul.f32 %v1022, %v926
      %v1065 = vmul.f32 %v1024, %v927
      %v1066 = vpack.c.bf16 %v1051, %v1050
      %v1067 = vpack.c.bf16 %v1053, %v1052
      %v1068 = vpack.c.bf16 %v1055, %v1054
      %v1069 = vpack.c.bf16 %v1057, %v1056
      %v1070 = vpack.c.bf16 %v1059, %v1058
      %v1071 = vpack.c.bf16 %v1061, %v1060
      %v1072 = vpack.c.bf16 %v1063, %v1062
      %v1073 = vpack.c.bf16 %v1065, %v1064
      %v1074 = vpack.c.bf16 %v972, %v970
      %v1076 = vsel %vm778, %v1074, 0
      %v1079 = vsel %vm778, %v1042, 0
      %v1082 = vsel %vm778, %v1043, 0
      %v1085 = vsel %vm778, %v1044, 0
      %v1088 = vsel %vm778, %v1045, 0
      %v1091 = vsel %vm778, %v1046, 0
      %v1094 = vsel %vm778, %v1047, 0
      %v1097 = vsel %vm778, %v1048, 0
      %v1100 = vsel %vm778, %v1049, 0
      %1102 = vmatpush.bf16.xpose.msra.mxu0 %v1100
      %1103 = vmatpush.bf16.xpose.msra.mxu0 %v1097
      %1104 = vmatpush.bf16.xpose.msra.mxu0 %v1094
      %1105 = vmatpush.bf16.xpose.msra.mxu0 %v1091
      %1106 = vmatpush.bf16.xpose.msra.mxu0 %v1088
      %1107 = vmatpush.bf16.xpose.msra.mxu0 %v1085
      %1108 = vmatpush.bf16.xpose.msra.mxu0 %v1082
      %1109 = vmatpush.bf16.xpose.msra.mxu0 %v1079
      %1110 = vmatmul.bf16.gmra.mxu0 %v1076
      %v1111 = vpop.f32.mrf.mxu0
      %v1112 = vadd.f32 0.0, %v1111
      %v1113 = vpop.f32.mrf.mxu0
      %v1114 = vadd.f32 0.0, %v1113
      %1115 = vdwg.mxu0
      %v1116 = vmul.f32 %v1112, 0.5
      %v1117 = vmul.f32 %v1114, 0.5
      %v1118 = vadd.f32 %v1116, %v868
      %v1119 = vadd.f32 %v1117, %v869
      %1120 = vmax.xlane.f32.xlu0 %v1118
      %v1121 = vpop.xlane.xlu0 %1120
      %1122 = vmax.xlane.f32.xlu0 %v1119
      %v1123 = vpop.xlane.xlu0 %1122
      %v1124 = vsub.f32 %v1118, %v1121
      %v1125 = vsub.f32 %v1119, %v1123
      %v1126 = vmul.f32 %v1124, 1.442695
      %v1127 = vpow.pop %v1126
      %v1128 = vmul.f32 %v1125, 1.442695
      %v1129 = vpow.pop %v1128
      %v1130 = vmul.f32 %v1127, %v864
      %v1131 = vmul.f32 %v1129, %v865
      %1132 = vmatpush.msra.mxu0 %v943
      %1133 = vmatpush.msra.mxu0 %v942
      %1134 = vmatpush.msra.mxu0 %v941
      %1135 = vmatpush.msra.mxu0 %v940
      %1136 = vmatpush.msra.mxu0 %v939
      %1137 = vmatpush.msra.mxu0 %v938
      %1138 = vmatpush.msra.mxu0 %v937
      %1139 = vmatpush.msra.mxu0 %v936
      %1140 = vmatpush.msra.mxu0 %v935
      %1141 = vmatpush.msra.mxu0 %v934
      %1142 = vmatpush.msra.mxu0 %v933
      %1143 = vmatpush.msra.mxu0 %v932
      %1144 = vmatpush.msra.mxu0 %v931
      %1145 = vmatpush.msra.mxu0 %v930
      %1146 = vmatpush.msra.mxu0 %v929
      %1147 = vmatpush.msra.mxu0 %v928
      %1148 = vmatmul.f32.gmra.mxu0 %v1130
      %v1149 = vpop.f32.mrf.mxu0
      %v1150 = vadd.f32 0.0, %v1149
      %1151 = vmatmul.f32.gmra.mxu0 %v1131
      %v1152 = vpop.f32.mrf.mxu0
      %v1153 = vadd.f32 0.0, %v1152
      %1154 = vdwg.mxu0
      %v1155 = vmax.f32 %v1150, 1e-30
      %v1156 = vmax.f32 %v1153, 1e-30
      %v1157 = vrcp.pop %v1155
      %v1158 = vrcp.pop %v1156
      %v1159 = vmul.f32 %v1130, %v1157
      %v1160 = vmul.f32 %v1131, %v1158
      %v1161 = vpack.c.bf16 %v1160, %v1159
      %1162 = vmatpush.bf16.msra.mxu0 %v1073
      %1163 = vmatpush.bf16.msra.mxu0 %v1072
      %1164 = vmatpush.bf16.msra.mxu0 %v1071
      %1165 = vmatpush.bf16.msra.mxu0 %v1070
      %1166 = vmatpush.bf16.msra.mxu0 %v1069
      %1167 = vmatpush.bf16.msra.mxu0 %v1068
      %1168 = vmatpush.bf16.msra.mxu0 %v1067
      %1169 = vmatpush.bf16.msra.mxu0 %v1066
      %1170 = vmatmul.bf16.gmra.mxu0 %v1161
      %v1171 = vpop.f32.mrf.mxu0
      %v1172 = vadd.f32 0.0, %v1171
      %v1173 = vpop.f32.mrf.mxu0
      %v1174 = vadd.f32 0.0, %v1173
      %1175 = vdwg.mxu0
      %v1176 = vpack.c.bf16 %v1174, %v1172
      %v1181 = vunpack.c.l.b16 %v882
      %v1182 = vunpack.c.l.b16 %v883
      %v1183 = vunpack.c.l.b16 %v884
      %v1184 = vunpack.c.l.b16 %v885
      %v1185 = vpack.c.b16 %v1182, %v1181
      %v1186 = vpack.c.b16 %v1184, %v1183
      %v1190 = vsel %vm778, %v1176, 0
      %1192 = vmatpush.bf16.msra.mxu0 0
      %1193 = vmatpush.bf16.msra.mxu0 0
      %1194 = vmatpush.bf16.msra.mxu0 0
      %1195 = vmatpush.bf16.msra.mxu0 0
      %1196 = vmatpush.bf16.msra.mxu0 0
      %1197 = vmatpush.bf16.msra.mxu0 0
      %1198 = vmatpush.bf16.msra.mxu0 %v1186
      %1199 = vmatpush.bf16.msra.mxu0 %v1185
      %1200 = vmatmul.bf16.gmra.mxu0 %v1190
      %v1201 = vpop.f32.mrf.mxu0
      %v1202 = vadd.f32 0.0, %v1201
      %v1203 = vpop.f32.mrf.mxu0
      %v1204 = vadd.f32 0.0, %v1203
      %1205 = vdwg.mxu0
      %v1206 = vadd.f32 %v743, %v1202
      %v1207 = vadd.f32 %v744, %v1204
      %v1208 = vsel %vm778, %v1206, 0.0
      %1209 = vadd.xlane.f32.xlu0 %v1208
      %v1210 = vpop.xlane.xlu0 %1209
      %v1211 = vsel %vm778, %v1207, 0.0
      %1212 = vadd.xlane.f32.xlu0 %v1211
      %v1213 = vpop.xlane.xlu0 %1212
      %v1214 = vrcp.pop 32.0
      %v1215 = vmul.f32 32.0, %v1214
      %v1216 = vsub.f32 1.0, %v1215
      %v1217 = vmul.f32 %v1214, %v1216
      %v1218 = vadd.f32 %v1214, %v1217
      %vm1219 = vweird.f32 %v1214
      %v1220 = vsel %vm1219, %v1214, %v1218
      %v1221 = vmul.f32 %v1210, %v1220
      %v1222 = vmul.f32 %v1213, %v1220
      %v1223 = vsub.f32 %v1206, %v1221
      %v1224 = vsub.f32 %v1207, %v1222
      %v1225 = vmul.f32 %v1223, %v1223
      %v1226 = vmul.f32 %v1224, %v1224
      %v1227 = vsel %vm778, %v1225, 0.0
      %1228 = vadd.xlane.f32.xlu0 %v1227
      %v1229 = vpop.xlane.xlu0 %1228
      %v1230 = vsel %vm778, %v1226, 0.0
      %1231 = vadd.xlane.f32.xlu0 %v1230
      %v1232 = vpop.xlane.xlu0 %1231
      %v1233 = vmul.f32 %v1229, %v1220
      %v1234 = vmul.f32 %v1232, %v1220
      %v1235 = vadd.f32 %v1233, 1e-05
      %v1236 = vadd.f32 %v1234, 1e-05
      %v1237 = vrsqrt.pop %v1235
      %v1238 = vmul.f32 %v1237, %v1235
      %v1239 = vmul.f32 %v1238, %v1237
      %v1240 = vmul.f32 0.5, %v1239
      %v1241 = vsub.f32 1.5, %v1240
      %v1242 = vmul.f32 %v1237, %v1241
      %vm1243 = vweird.f32 %v1235
      %vm1244 = vweird.f32 %v1237
      %vm1245 = vmor %vm1243, %vm1244
      %v1246 = vsel %vm1245, %v1237, %v1242
      %v1247 = vrsqrt.pop %v1236
      %v1248 = vmul.f32 %v1247, %v1236
      %v1249 = vmul.f32 %v1248, %v1247
      %v1250 = vmul.f32 0.5, %v1249
      %v1251 = vsub.f32 1.5, %v1250
      %v1252 = vmul.f32 %v1247, %v1251
      %vm1253 = vweird.f32 %v1236
      %vm1254 = vweird.f32 %v1247
      %vm1255 = vmor %vm1253, %vm1254
      %v1256 = vsel %vm1255, %v1247, %v1252
      %v1257 = vmul.f32 %v1223, %v1246
      %v1258 = vmul.f32 %v1224, %v1256
      %v1260 = vperm.slane %v908, 0
      %v1262 = vmul.f32 %v1257, %v1260
      %v1263 = vmul.f32 %v1258, %v1260
      %v1265 = vperm.slane %v909, 0
      %v1267 = vadd.f32 %v1262, %v1265
      %v1268 = vadd.f32 %v1263, %v1265
      %v1269 = vpack.c.bf16 %v1268, %v1267
      %v1271 = vperm.slane %v890, 0
      %v1277 = vunpack.c.l.b16 %v886
      %v1278 = vunpack.c.l.b16 %v887
      %v1279 = vunpack.c.l.b16 %v888
      %v1280 = vunpack.c.l.b16 %v889
      %v1281 = vpack.c.b16 %v1278, %v1277
      %v1282 = vpack.c.b16 %v1280, %v1279
      %v1286 = vsel %vm778, %v1269, 0
      %1288 = vmatpush.bf16.msra.mxu0 0
      %1289 = vmatpush.bf16.msra.mxu0 0
      %1290 = vmatpush.bf16.msra.mxu0 0
      %1291 = vmatpush.bf16.msra.mxu0 0
      %1292 = vmatpush.bf16.msra.mxu0 0
      %1293 = vmatpush.bf16.msra.mxu0 0
      %1294 = vmatpush.bf16.msra.mxu0 %v1282
      %1295 = vmatpush.bf16.msra.mxu0 %v1281
      %1296 = vmatmul.bf16.gmra.mxu0 %v1286
      %v1297 = vpop.f32.mrf.mxu0
      %v1298 = vadd.f32 %v1271, %v1297
      %v1299 = vpop.f32.mrf.mxu0
      %v1300 = vadd.f32 %v1271, %v1299
      %1301 = vdwg.mxu0
      %v1302 = vmax.f32 %v1298, 0.0
      %v1303 = vmax.f32 %v1300, 0.0
      %v1304 = vpack.c.bf16 %v1303, %v1302
      %v1306 = vperm.slane %v907, 0
      %v1324 = vunpack.c.l.b16 %v891
      %v1325 = vunpack.c.l.b16 %v892
      %v1326 = vunpack.c.l.b16 %v893
      %v1327 = vunpack.c.l.b16 %v894
      %v1328 = vunpack.c.l.b16 %v895
      %v1329 = vunpack.c.l.b16 %v896
      %v1330 = vunpack.c.l.b16 %v897
      %v1331 = vunpack.c.l.b16 %v898
      %v1332 = vunpack.c.l.b16 %v899
      %v1333 = vunpack.c.l.b16 %v900
      %v1334 = vunpack.c.l.b16 %v901
      %v1335 = vunpack.c.l.b16 %v902
      %v1336 = vunpack.c.l.b16 %v903
      %v1337 = vunpack.c.l.b16 %v904
      %v1338 = vunpack.c.l.b16 %v905
      %v1339 = vunpack.c.l.b16 %v906
      %v1340 = vpack.c.b16 %v1325, %v1324
      %v1341 = vpack.c.b16 %v1327, %v1326
      %v1342 = vpack.c.b16 %v1329, %v1328
      %v1343 = vpack.c.b16 %v1331, %v1330
      %v1344 = vpack.c.b16 %v1333, %v1332
      %v1345 = vpack.c.b16 %v1335, %v1334
      %v1346 = vpack.c.b16 %v1337, %v1336
      %v1347 = vpack.c.b16 %v1339, %v1338
      %1356 = vmatpush.bf16.msra.mxu0 %v1347
      %1357 = vmatpush.bf16.msra.mxu0 %v1346
      %1358 = vmatpush.bf16.msra.mxu0 %v1345
      %1359 = vmatpush.bf16.msra.mxu0 %v1344
      %1360 = vmatpush.bf16.msra.mxu0 %v1343
      %1361 = vmatpush.bf16.msra.mxu0 %v1342
      %1362 = vmatpush.bf16.msra.mxu0 %v1341
      %1363 = vmatpush.bf16.msra.mxu0 %v1340
      %1364 = vmatmul.bf16.gmra.mxu0 %v1304
      %v1365 = vpop.f32.mrf.mxu0
      %v1366 = vadd.f32 %v1306, %v1365
      %v1367 = vpop.f32.mrf.mxu0
      %v1368 = vadd.f32 %v1306, %v1367
      %1369 = vdwg.mxu0
      %v1370 = vadd.f32 %v1267, %v1366
      %v1371 = vadd.f32 %v1268, %v1368
      %v1372 = vsel %vm778, %v1370, 0.0
      %1373 = vadd.xlane.f32.xlu0 %v1372
      %v1374 = vpop.xlane.xlu0 %1373
      %v1375 = vsel %vm778, %v1371, 0.0
      %1376 = vadd.xlane.f32.xlu0 %v1375
      %v1377 = vpop.xlane.xlu0 %1376
      %v1378 = vmul.f32 %v1374, %v1220
      %v1379 = vmul.f32 %v1377, %v1220
      %v1380 = vsub.f32 %v1370, %v1378
      %v1381 = vsub.f32 %v1371, %v1379
      %v1382 = vmul.f32 %v1380, %v1380
      %v1383 = vmul.f32 %v1381, %v1381
      %v1384 = vsel %vm778, %v1382, 0.0
      %1385 = vadd.xlane.f32.xlu0 %v1384
      %v1386 = vpop.xlane.xlu0 %1385
      %v1387 = vsel %vm778, %v1383, 0.0
      %1388 = vadd.xlane.f32.xlu0 %v1387
      %v1389 = vpop.xlane.xlu0 %1388
      %v1390 = vmul.f32 %v1386, %v1220
      %v1391 = vmul.f32 %v1389, %v1220
      %v1392 = vadd.f32 %v1390, 1e-05
      %v1393 = vadd.f32 %v1391, 1e-05
      %v1394 = vrsqrt.pop %v1392
      %v1395 = vmul.f32 %v1394, %v1392
      %v1396 = vmul.f32 %v1395, %v1394
      %v1397 = vmul.f32 0.5, %v1396
      %v1398 = vsub.f32 1.5, %v1397
      %v1399 = vmul.f32 %v1394, %v1398
      %vm1400 = vweird.f32 %v1392
      %vm1401 = vweird.f32 %v1394
      %vm1402 = vmor %vm1400, %vm1401
      %v1403 = vsel %vm1402, %v1394, %v1399
      %v1404 = vrsqrt.pop %v1393
      %v1405 = vmul.f32 %v1404, %v1393
      %v1406 = vmul.f32 %v1405, %v1404
      %v1407 = vmul.f32 0.5, %v1406
      %v1408 = vsub.f32 1.5, %v1407
      %v1409 = vmul.f32 %v1404, %v1408
      %vm1410 = vweird.f32 %v1393
      %vm1411 = vweird.f32 %v1404
      %vm1412 = vmor %vm1410, %vm1411
      %v1413 = vsel %vm1412, %v1404, %v1409
      %v1414 = vmul.f32 %v1380, %v1403
      %v1415 = vmul.f32 %v1381, %v1413
      %v1417 = vperm.slane %v910, 0
      %v1419 = vmul.f32 %v1414, %v1417
      %v1420 = vmul.f32 %v1415, %v1417
      %v1422 = vperm.slane %v911, 0
      %v1424 = vadd.f32 %v1419, %v1422
      %v1425 = vadd.f32 %v1420, %v1422
      %1426 = vst.msk [vmem:[%s737] sm:$0xff] %vm778, %v1424
      %1427 = vst.msk [vmem:[%s741] sm:$0xff] %vm778, %v1425
      %p1428 = scmp.lt.s32.totalorder %s33, 1
      %s1429 = scalar_select %p1428, %s33, 1
      %s1430 = smul.addr %s1429, 8
      %s1431 = scalar_lea.vmem %s20, %s1430
      %p1432 = scmp.lt.s32.totalorder %s33, 1
      %s1433 = scalar_select %p1432, %s33, 1
      %s1434 = smul.addr %s1433, 8
      %s1435 = scalar_lea.vmem %s21, %s1434
      // Predicated region
      $region101: #{set_matching_forward.4} parent=99 // pred_check
        %p1436 = pneg %p501
      $region102: #{set_matching_forward.4} parent=99 // pred_check_branch
        %1438 = sbr.rel (%p1436) target = $region104
      $region103: #{set_matching_forward.4} parent=99 // pred_region
        _
      $region104: #{set_matching_forward.4} parent=99 // pred_fallthru
        _
      // Predicated region
      $region105: #{set_matching_forward.4} parent=99 // pred_check
        %p1439 = pneg %p527
      $region106: #{set_matching_forward.4} parent=99 // pred_check_branch
        %1441 = sbr.rel (%p1439) target = $region108
      $region107: #{set_matching_forward.4} parent=99 // pred_region
        _
      $region108: #{set_matching_forward.4} parent=99 // pred_fallthru
        _
    $region100: #{set_matching_forward.4} parent=5 // pred_fallthru
      _
    %p1442 = scmp.le.s32.totalorder 2, %s28
    // Predicated region
    $region109: #{set_matching_forward.4} parent=5 // pred_check
      %p1443 = pneg %p1442
    $region110: #{set_matching_forward.4} parent=5 // pred_check_branch
      %1445 = sbr.rel (%p1443) target = $region112
    $region111: #{set_matching_forward.4} parent=5 // pred_region
      %s1446 = ssub.s32 %s28, 2
      // Predicated region
      $region113: #{set_matching_forward.4} parent=111 // pred_check
        %p1447 = pneg %p507
      $region114: #{set_matching_forward.4} parent=111 // pred_check_branch
        %1449 = sbr.rel (%p1447) target = $region116
      $region115: #{set_matching_forward.4} parent=111 // pred_region
        %p1450 = scmp.lt.s32.totalorder %s34, 1
        %s1451 = scalar_select %p1450, %s34, 1
        %s1452 = smul.addr %s1451, 8
        %s1453 = scalar_lea.vmem %s20, %s1452
      $region116: #{set_matching_forward.4} parent=111 // pred_fallthru
        _
      // Predicated region
      $region117: #{set_matching_forward.4} parent=111 // pred_check
        %p1454 = pneg %p533
      $region118: #{set_matching_forward.4} parent=111 // pred_check_branch
        %1456 = sbr.rel (%p1454) target = $region120
      $region119: #{set_matching_forward.4} parent=111 // pred_region
        %p1457 = scmp.lt.s32.totalorder %s34, 1
        %s1458 = scalar_select %p1457, %s34, 1
        %s1459 = smul.addr %s1458, 8
        %s1460 = scalar_lea.vmem %s21, %s1459
      $region120: #{set_matching_forward.4} parent=111 // pred_fallthru
        _
    $region112: #{set_matching_forward.4} parent=5 // pred_fallthru
      _
  $region6: #{set_matching_forward.4} parent=0 // loop_footer
    %s32 = sadd.s32 1, %s28
  $region7: #{set_matching_forward.4} parent=0 // loop_footer_branch
    %27 = sbr.rel target = $region3
  $region8: #{set_matching_forward.4} parent=0 // loop_exit
    _

// kernel: set_matching_forward.3
$region0: #{set_matching_forward.3}
  #allocation0 [shape = 'u32[]', space=smem, size = 0x4, offset = 0x4, fixed_abs, tag = 'smem constant byte address 0x4 - core index']
  #allocation1 [shape = 'u32[72,128]{1,0:T(1,128)}', space=vmem, size = 0x9000, scoped, tag = 'internal scratch']
  %s0 = inlined_call_operand.vmem [shape: f32[32,4096], index: 0, kind: input, shape index: {}]
  %s1 = inlined_call_operand.vmem [shape: bf16[4096,32], index: 1, kind: input, shape index: {}]
  %s2 = inlined_call_operand.vmem [shape: f32[1,32], index: 2, kind: input, shape index: {}]
  %s3 = inlined_call_operand.vmem [shape: f32[32,32], index: 3, kind: output, shape index: {}]
  %s4 = sld [smem:[#allocation0]]
  $region22: #{set_matching_forward.3} parent=0
    _
  %s6 = ssub.s32 1, %s4
  %s7 = scalar_select 0, %s6, %s4
  // Predicated region
  $region2: #{set_matching_forward.3} parent=0 // pred_check
    _
  $region3: #{set_matching_forward.3} parent=0 // pred_check_branch
    %9 = sbr.rel (0) target = $region5
  $region4: #{set_matching_forward.3} parent=0 // pred_region
    _
  $region5: #{set_matching_forward.3} parent=0 // pred_fallthru
    _
  // Predicated region
  $region6: #{set_matching_forward.3} parent=0 // pred_check
    _
  $region7: #{set_matching_forward.3} parent=0 // pred_check_branch
    %11 = sbr.rel (0) target = $region9
  $region8: #{set_matching_forward.3} parent=0 // pred_region
    _
  $region9: #{set_matching_forward.3} parent=0 // pred_fallthru
    _
  // Predicated region
  $region10: #{set_matching_forward.3} parent=0 // pred_check
    _
  $region11: #{set_matching_forward.3} parent=0 // pred_check_branch
    %13 = sbr.rel (0) target = $region13
  $region12: #{set_matching_forward.3} parent=0 // pred_region
    _
  $region13: #{set_matching_forward.3} parent=0 // pred_fallthru
    _
  %v14 = vld [vmem:[%s0] sm:$0xff]
  %v15 = vld [vmem:[%s0 + $0x8] sm:$0xff]
  %v16 = vld [vmem:[%s0 + $0x10] sm:$0xff]
  %v17 = vld [vmem:[%s0 + $0x18] sm:$0xff]
  %v18 = vld [vmem:[%s0 + $0x20] sm:$0xff]
  %v19 = vld [vmem:[%s0 + $0x28] sm:$0xff]
  %v20 = vld [vmem:[%s0 + $0x30] sm:$0xff]
  %v21 = vld [vmem:[%s0 + $0x38] sm:$0xff]
  %v22 = vld [vmem:[%s0 + $0x40] sm:$0xff]
  %v23 = vld [vmem:[%s0 + $0x48] sm:$0xff]
  %v24 = vld [vmem:[%s0 + $0x50] sm:$0xff]
  %v25 = vld [vmem:[%s0 + $0x58] sm:$0xff]
  %v26 = vld [vmem:[%s0 + $0x60] sm:$0xff]
  %v27 = vld [vmem:[%s0 + $0x68] sm:$0xff]
  %v28 = vld [vmem:[%s0 + $0x70] sm:$0xff]
  %v29 = vld [vmem:[%s0 + $0x78] sm:$0xff]
  %v30 = vld [vmem:[%s0 + $0x80] sm:$0xff]
  %v31 = vld [vmem:[%s0 + $0x88] sm:$0xff]
  %v32 = vld [vmem:[%s0 + $0x90] sm:$0xff]
  %v33 = vld [vmem:[%s0 + $0x98] sm:$0xff]
  %v34 = vld [vmem:[%s0 + $0xa0] sm:$0xff]
  %v35 = vld [vmem:[%s0 + $0xa8] sm:$0xff]
  %v36 = vld [vmem:[%s0 + $0xb0] sm:$0xff]
  %v37 = vld [vmem:[%s0 + $0xb8] sm:$0xff]
  %v38 = vld [vmem:[%s0 + $0xc0] sm:$0xff]
  %v39 = vld [vmem:[%s0 + $0xc8] sm:$0xff]
  %v40 = vld [vmem:[%s0 + $0xd0] sm:$0xff]
  %v41 = vld [vmem:[%s0 + $0xd8] sm:$0xff]
  %v42 = vld [vmem:[%s0 + $0xe0] sm:$0xff]
  %v43 = vld [vmem:[%s0 + $0xe8] sm:$0xff]
  %v44 = vld [vmem:[%s0 + $0xf0] sm:$0xff]
  %v45 = vld [vmem:[%s0 + $0xf8] sm:$0xff]
  %v46 = vld [vmem:[%s0 + $0x100] sm:$0xff]
  %v47 = vld [vmem:[%s0 + $0x108] sm:$0xff]
  %v48 = vld [vmem:[%s0 + $0x110] sm:$0xff]
  %v49 = vld [vmem:[%s0 + $0x118] sm:$0xff]
  %v50 = vld [vmem:[%s0 + $0x120] sm:$0xff]
  %v51 = vld [vmem:[%s0 + $0x128] sm:$0xff]
  %v52 = vld [vmem:[%s0 + $0x130] sm:$0xff]
  %v53 = vld [vmem:[%s0 + $0x138] sm:$0xff]
  %v54 = vld [vmem:[%s0 + $0x140] sm:$0xff]
  %v55 = vld [vmem:[%s0 + $0x148] sm:$0xff]
  %v56 = vld [vmem:[%s0 + $0x150] sm:$0xff]
  %v57 = vld [vmem:[%s0 + $0x158] sm:$0xff]
  %v58 = vld [vmem:[%s0 + $0x160] sm:$0xff]
  %v59 = vld [vmem:[%s0 + $0x168] sm:$0xff]
  %v60 = vld [vmem:[%s0 + $0x170] sm:$0xff]
  %v61 = vld [vmem:[%s0 + $0x178] sm:$0xff]
  %v62 = vld [vmem:[%s0 + $0x180] sm:$0xff]
  %v63 = vld [vmem:[%s0 + $0x188] sm:$0xff]
  %v64 = vld [vmem:[%s0 + $0x190] sm:$0xff]
  %v65 = vld [vmem:[%s0 + $0x198] sm:$0xff]
  %v66 = vld [vmem:[%s0 + $0x1a0] sm:$0xff]
  %v67 = vld [vmem:[%s0 + $0x1a8] sm:$0xff]
  %v68 = vld [vmem:[%s0 + $0x1b0] sm:$0xff]
  %v69 = vld [vmem:[%s0 + $0x1b8] sm:$0xff]
  %v70 = vld [vmem:[%s0 + $0x1c0] sm:$0xff]
  %v71 = vld [vmem:[%s0 + $0x1c8] sm:$0xff]
  %v72 = vld [vmem:[%s0 + $0x1d0] sm:$0xff]
  %v73 = vld [vmem:[%s0 + $0x1d8] sm:$0xff]
  %v74 = vld [vmem:[%s0 + $0x1e0] sm:$0xff]
  %v75 = vld [vmem:[%s0 + $0x1e8] sm:$0xff]
  %v76 = vld [vmem:[%s0 + $0x1f0] sm:$0xff]
  %v77 = vld [vmem:[%s0 + $0x1f8] sm:$0xff]
  %v78 = vld [vmem:[%s0 + $0x200] sm:$0xff]
  %v79 = vld [vmem:[%s0 + $0x208] sm:$0xff]
  %v80 = vld [vmem:[%s0 + $0x210] sm:$0xff]
  %v81 = vld [vmem:[%s0 + $0x218] sm:$0xff]
  %v82 = vld [vmem:[%s0 + $0x220] sm:$0xff]
  %v83 = vld [vmem:[%s0 + $0x228] sm:$0xff]
  %v84 = vld [vmem:[%s0 + $0x230] sm:$0xff]
  %v85 = vld [vmem:[%s0 + $0x238] sm:$0xff]
  %v86 = vld [vmem:[%s0 + $0x240] sm:$0xff]
  %v87 = vld [vmem:[%s0 + $0x248] sm:$0xff]
  %v88 = vld [vmem:[%s0 + $0x250] sm:$0xff]
  %v89 = vld [vmem:[%s0 + $0x258] sm:$0xff]
  %v90 = vld [vmem:[%s0 + $0x260] sm:$0xff]
  %v91 = vld [vmem:[%s0 + $0x268] sm:$0xff]
  %v92 = vld [vmem:[%s0 + $0x270] sm:$0xff]
  %v93 = vld [vmem:[%s0 + $0x278] sm:$0xff]
  %v94 = vld [vmem:[%s0 + $0x280] sm:$0xff]
  %v95 = vld [vmem:[%s0 + $0x288] sm:$0xff]
  %v96 = vld [vmem:[%s0 + $0x290] sm:$0xff]
  %v97 = vld [vmem:[%s0 + $0x298] sm:$0xff]
  %v98 = vld [vmem:[%s0 + $0x2a0] sm:$0xff]
  %v99 = vld [vmem:[%s0 + $0x2a8] sm:$0xff]
  %v100 = vld [vmem:[%s0 + $0x2b0] sm:$0xff]
  %v101 = vld [vmem:[%s0 + $0x2b8] sm:$0xff]
  %v102 = vld [vmem:[%s0 + $0x2c0] sm:$0xff]
  %v103 = vld [vmem:[%s0 + $0x2c8] sm:$0xff]
  %v104 = vld [vmem:[%s0 + $0x2d0] sm:$0xff]
  %v105 = vld [vmem:[%s0 + $0x2d8] sm:$0xff]
  %v106 = vld [vmem:[%s0 + $0x2e0] sm:$0xff]
  %v107 = vld [vmem:[%s0 + $0x2e8] sm:$0xff]
  %v108 = vld [vmem:[%s0 + $0x2f0] sm:$0xff]
  %v109 = vld [vmem:[%s0 + $0x2f8] sm:$0xff]
  %v110 = vld [vmem:[%s0 + $0x300] sm:$0xff]
  %v111 = vld [vmem:[%s0 + $0x308] sm:$0xff]
  %v112 = vld [vmem:[%s0 + $0x310] sm:$0xff]
  %v113 = vld [vmem:[%s0 + $0x318] sm:$0xff]
  %v114 = vld [vmem:[%s0 + $0x320] sm:$0xff]
  %v115 = vld [vmem:[%s0 + $0x328] sm:$0xff]
  %v116 = vld [vmem:[%s0 + $0x330] sm:$0xff]
  %v117 = vld [vmem:[%s0 + $0x338] sm:$0xff]
  %v118 = vld [vmem:[%s0 + $0x340] sm:$0xff]
  %v119 = vld [vmem:[%s0 + $0x348] sm:$0xff]
  %v120 = vld [vmem:[%s0 + $0x350] sm:$0xff]
  %v121 = vld [vmem:[%s0 + $0x358] sm:$0xff]
  %v122 = vld [vmem:[%s0 + $0x360] sm:$0xff]
  %v123 = vld [vmem:[%s0 + $0x368] sm:$0xff]
  %v124 = vld [vmem:[%s0 + $0x370] sm:$0xff]
  %v125 = vld [vmem:[%s0 + $0x378] sm:$0xff]
  %v126 = vld [vmem:[%s0 + $0x380] sm:$0xff]
  %v127 = vld [vmem:[%s0 + $0x388] sm:$0xff]
  %v128 = vld [vmem:[%s0 + $0x390] sm:$0xff]
  %v129 = vld [vmem:[%s0 + $0x398] sm:$0xff]
  %v130 = vld [vmem:[%s0 + $0x3a0] sm:$0xff]
  %v131 = vld [vmem:[%s0 + $0x3a8] sm:$0xff]
  %v132 = vld [vmem:[%s0 + $0x3b0] sm:$0xff]
  %v133 = vld [vmem:[%s0 + $0x3b8] sm:$0xff]
  %v134 = vld [vmem:[%s0 + $0x3c0] sm:$0xff]
  %v135 = vld [vmem:[%s0 + $0x3c8] sm:$0xff]
  %v136 = vld [vmem:[%s0 + $0x3d0] sm:$0xff]
  %v137 = vld [vmem:[%s0 + $0x3d8] sm:$0xff]
  %v138 = vld [vmem:[%s0 + $0x3e0] sm:$0xff]
  %v139 = vld [vmem:[%s0 + $0x3e8] sm:$0xff]
  %v140 = vld [vmem:[%s0 + $0x3f0] sm:$0xff]
  %v141 = vld [vmem:[%s0 + $0x3f8] sm:$0xff]
  %v142 = vpack.c.bf16 %v46, %v14
  %v143 = vpack.c.bf16 %v47, %v15
  %v144 = vpack.c.bf16 %v48, %v16
  %v145 = vpack.c.bf16 %v49, %v17
  %v146 = vpack.c.bf16 %v50, %v18
  %v147 = vpack.c.bf16 %v51, %v19
  %v148 = vpack.c.bf16 %v52, %v20
  %v149 = vpack.c.bf16 %v53, %v21
  %v150 = vpack.c.bf16 %v54, %v22
  %v151 = vpack.c.bf16 %v55, %v23
  %v152 = vpack.c.bf16 %v56, %v24
  %v153 = vpack.c.bf16 %v57, %v25
  %v154 = vpack.c.bf16 %v58, %v26
  %v155 = vpack.c.bf16 %v59, %v27
  %v156 = vpack.c.bf16 %v60, %v28
  %v157 = vpack.c.bf16 %v61, %v29
  %v158 = vpack.c.bf16 %v62, %v30
  %v159 = vpack.c.bf16 %v63, %v31
  %v160 = vpack.c.bf16 %v64, %v32
  %v161 = vpack.c.bf16 %v65, %v33
  %v162 = vpack.c.bf16 %v66, %v34
  %v163 = vpack.c.bf16 %v67, %v35
  %v164 = vpack.c.bf16 %v68, %v36
  %v165 = vpack.c.bf16 %v69, %v37
  %v166 = vpack.c.bf16 %v70, %v38
  %v167 = vpack.c.bf16 %v71, %v39
  %v168 = vpack.c.bf16 %v72, %v40
  %v169 = vpack.c.bf16 %v73, %v41
  %v170 = vpack.c.bf16 %v74, %v42
  %v171 = vpack.c.bf16 %v75, %v43
  %v172 = vpack.c.bf16 %v76, %v44
  %v173 = vpack.c.bf16 %v77, %v45
  %v174 = vpack.c.bf16 %v110, %v78
  %v175 = vpack.c.bf16 %v111, %v79
  %v176 = vpack.c.bf16 %v112, %v80
  %v177 = vpack.c.bf16 %v113, %v81
  %v178 = vpack.c.bf16 %v114, %v82
  %v179 = vpack.c.bf16 %v115, %v83
  %v180 = vpack.c.bf16 %v116, %v84
  %v181 = vpack.c.bf16 %v117, %v85
  %v182 = vpack.c.bf16 %v118, %v86
  %v183 = vpack.c.bf16 %v119, %v87
  %v184 = vpack.c.bf16 %v120, %v88
  %v185 = vpack.c.bf16 %v121, %v89
  %v186 = vpack.c.bf16 %v122, %v90
  %v187 = vpack.c.bf16 %v123, %v91
  %v188 = vpack.c.bf16 %v124, %v92
  %v189 = vpack.c.bf16 %v125, %v93
  %v190 = vpack.c.bf16 %v126, %v94
  %v191 = vpack.c.bf16 %v127, %v95
  %v192 = vpack.c.bf16 %v128, %v96
  %v193 = vpack.c.bf16 %v129, %v97
  %v194 = vpack.c.bf16 %v130, %v98
  %v195 = vpack.c.bf16 %v131, %v99
  %v196 = vpack.c.bf16 %v132, %v100
  %v197 = vpack.c.bf16 %v133, %v101
  %v198 = vpack.c.bf16 %v134, %v102
  %v199 = vpack.c.bf16 %v135, %v103
  %v200 = vpack.c.bf16 %v136, %v104
  %v201 = vpack.c.bf16 %v137, %v105
  %v202 = vpack.c.bf16 %v138, %v106
  %v203 = vpack.c.bf16 %v139, %v107
  %v204 = vpack.c.bf16 %v140, %v108
  %v205 = vpack.c.bf16 %v141, %v109
  %v206 = vld [vmem:[%s1] sm:$0xf]
  %v207 = vld [vmem:[%s1 + $0x4] sm:$0xf]
  %v208 = vld [vmem:[%s1 + $0x8] sm:$0xf]
  %v209 = vld [vmem:[%s1 + $0xc] sm:$0xf]
  %v210 = vld [vmem:[%s1 + $0x10] sm:$0xf]
  %v211 = vld [vmem:[%s1 + $0x14] sm:$0xf]
  %v212 = vld [vmem:[%s1 + $0x18] sm:$0xf]
  %v213 = vld [vmem:[%s1 + $0x1c] sm:$0xf]
  %v214 = vld [vmem:[%s1 + $0x20] sm:$0xf]
  %v215 = vld [vmem:[%s1 + $0x24] sm:$0xf]
  %v216 = vld [vmem:[%s1 + $0x28] sm:$0xf]
  %v217 = vld [vmem:[%s1 + $0x2c] sm:$0xf]
  %v218 = vld [vmem:[%s1 + $0x30] sm:$0xf]
  %v219 = vld [vmem:[%s1 + $0x34] sm:$0xf]
  %v220 = vld [vmem:[%s1 + $0x38] sm:$0xf]
  %v221 = vld [vmem:[%s1 + $0x3c] sm:$0xf]
  %v222 = vld [vmem:[%s1 + $0x40] sm:$0xf]
  %v223 = vld [vmem:[%s1 + $0x44] sm:$0xf]
  %v224 = vld [vmem:[%s1 + $0x48] sm:$0xf]
  %v225 = vld [vmem:[%s1 + $0x4c] sm:$0xf]
  %v226 = vld [vmem:[%s1 + $0x50] sm:$0xf]
  %v227 = vld [vmem:[%s1 + $0x54] sm:$0xf]
  %v228 = vld [vmem:[%s1 + $0x58] sm:$0xf]
  %v229 = vld [vmem:[%s1 + $0x5c] sm:$0xf]
  %v230 = vld [vmem:[%s1 + $0x60] sm:$0xf]
  %v231 = vld [vmem:[%s1 + $0x64] sm:$0xf]
  %v232 = vld [vmem:[%s1 + $0x68] sm:$0xf]
  %v233 = vld [vmem:[%s1 + $0x6c] sm:$0xf]
  %v234 = vld [vmem:[%s1 + $0x70] sm:$0xf]
  %v235 = vld [vmem:[%s1 + $0x74] sm:$0xf]
  %v236 = vld [vmem:[%s1 + $0x78] sm:$0xf]
  %v237 = vld [vmem:[%s1 + $0x7c] sm:$0xf]
  %v238 = vld [vmem:[%s1 + $0x80] sm:$0xf]
  %v239 = vld [vmem:[%s1 + $0x84] sm:$0xf]
  %v240 = vld [vmem:[%s1 + $0x88] sm:$0xf]
  %v241 = vld [vmem:[%s1 + $0x8c] sm:$0xf]
  %v242 = vld [vmem:[%s1 + $0x90] sm:$0xf]
  %v243 = vld [vmem:[%s1 + $0x94] sm:$0xf]
  %v244 = vld [vmem:[%s1 + $0x98] sm:$0xf]
  %v245 = vld [vmem:[%s1 + $0x9c] sm:$0xf]
  %v246 = vld [vmem:[%s1 + $0xa0] sm:$0xf]
  %v247 = vld [vmem:[%s1 + $0xa4] sm:$0xf]
  %v248 = vld [vmem:[%s1 + $0xa8] sm:$0xf]
  %v249 = vld [vmem:[%s1 + $0xac] sm:$0xf]
  %v250 = vld [vmem:[%s1 + $0xb0] sm:$0xf]
  %v251 = vld [vmem:[%s1 + $0xb4] sm:$0xf]
  %v252 = vld [vmem:[%s1 + $0xb8] sm:$0xf]
  %v253 = vld [vmem:[%s1 + $0xbc] sm:$0xf]
  %v254 = vld [vmem:[%s1 + $0xc0] sm:$0xf]
  %v255 = vld [vmem:[%s1 + $0xc4] sm:$0xf]
  %v256 = vld [vmem:[%s1 + $0xc8] sm:$0xf]
  %v257 = vld [vmem:[%s1 + $0xcc] sm:$0xf]
  %v258 = vld [vmem:[%s1 + $0xd0] sm:$0xf]
  %v259 = vld [vmem:[%s1 + $0xd4] sm:$0xf]
  %v260 = vld [vmem:[%s1 + $0xd8] sm:$0xf]
  %v261 = vld [vmem:[%s1 + $0xdc] sm:$0xf]
  %v262 = vld [vmem:[%s1 + $0xe0] sm:$0xf]
  %v263 = vld [vmem:[%s1 + $0xe4] sm:$0xf]
  %v264 = vld [vmem:[%s1 + $0xe8] sm:$0xf]
  %v265 = vld [vmem:[%s1 + $0xec] sm:$0xf]
  %v266 = vld [vmem:[%s1 + $0xf0] sm:$0xf]
  %v267 = vld [vmem:[%s1 + $0xf4] sm:$0xf]
  %v268 = vld [vmem:[%s1 + $0xf8] sm:$0xf]
  %v269 = vld [vmem:[%s1 + $0xfc] sm:$0xf]
  %v270 = vld [vmem:[%s1 + $0x100] sm:$0xf]
  %v271 = vld [vmem:[%s1 + $0x104] sm:$0xf]
  %v272 = vld [vmem:[%s1 + $0x108] sm:$0xf]
  %v273 = vld [vmem:[%s1 + $0x10c] sm:$0xf]
  %v274 = vld [vmem:[%s1 + $0x110] sm:$0xf]
  %v275 = vld [vmem:[%s1 + $0x114] sm:$0xf]
  %v276 = vld [vmem:[%s1 + $0x118] sm:$0xf]
  %v277 = vld [vmem:[%s1 + $0x11c] sm:$0xf]
  %v278 = vld [vmem:[%s1 + $0x120] sm:$0xf]
  %v279 = vld [vmem:[%s1 + $0x124] sm:$0xf]
  %v280 = vld [vmem:[%s1 + $0x128] sm:$0xf]
  %v281 = vld [vmem:[%s1 + $0x12c] sm:$0xf]
  %v282 = vld [vmem:[%s1 + $0x130] sm:$0xf]
  %v283 = vld [vmem:[%s1 + $0x134] sm:$0xf]
  %v284 = vld [vmem:[%s1 + $0x138] sm:$0xf]
  %v285 = vld [vmem:[%s1 + $0x13c] sm:$0xf]
  %v286 = vld [vmem:[%s1 + $0x140] sm:$0xf]
  %v287 = vld [vmem:[%s1 + $0x144] sm:$0xf]
  %v288 = vld [vmem:[%s1 + $0x148] sm:$0xf]
  %v289 = vld [vmem:[%s1 + $0x14c] sm:$0xf]
  %v290 = vld [vmem:[%s1 + $0x150] sm:$0xf]
  %v291 = vld [vmem:[%s1 + $0x154] sm:$0xf]
  %v292 = vld [vmem:[%s1 + $0x158] sm:$0xf]
  %v293 = vld [vmem:[%s1 + $0x15c] sm:$0xf]
  %v294 = vld [vmem:[%s1 + $0x160] sm:$0xf]
  %v295 = vld [vmem:[%s1 + $0x164] sm:$0xf]
  %v296 = vld [vmem:[%s1 + $0x168] sm:$0xf]
  %v297 = vld [vmem:[%s1 + $0x16c] sm:$0xf]
  %v298 = vld [vmem:[%s1 + $0x170] sm:$0xf]
  %v299 = vld [vmem:[%s1 + $0x174] sm:$0xf]
  %v300 = vld [vmem:[%s1 + $0x178] sm:$0xf]
  %v301 = vld [vmem:[%s1 + $0x17c] sm:$0xf]
  %v302 = vld [vmem:[%s1 + $0x180] sm:$0xf]
  %v303 = vld [vmem:[%s1 + $0x184] sm:$0xf]
  %v304 = vld [vmem:[%s1 + $0x188] sm:$0xf]
  %v305 = vld [vmem:[%s1 + $0x18c] sm:$0xf]
  %v306 = vld [vmem:[%s1 + $0x190] sm:$0xf]
  %v307 = vld [vmem:[%s1 + $0x194] sm:$0xf]
  %v308 = vld [vmem:[%s1 + $0x198] sm:$0xf]
  %v309 = vld [vmem:[%s1 + $0x19c] sm:$0xf]
  %v310 = vld [vmem:[%s1 + $0x1a0] sm:$0xf]
  %v311 = vld [vmem:[%s1 + $0x1a4] sm:$0xf]
  %v312 = vld [vmem:[%s1 + $0x1a8] sm:$0xf]
  %v313 = vld [vmem:[%s1 + $0x1ac] sm:$0xf]
  %v314 = vld [vmem:[%s1 + $0x1b0] sm:$0xf]
  %v315 = vld [vmem:[%s1 + $0x1b4] sm:$0xf]
  %v316 = vld [vmem:[%s1 + $0x1b8] sm:$0xf]
  %v317 = vld [vmem:[%s1 + $0x1bc] sm:$0xf]
  %v318 = vld [vmem:[%s1 + $0x1c0] sm:$0xf]
  %v319 = vld [vmem:[%s1 + $0x1c4] sm:$0xf]
  %v320 = vld [vmem:[%s1 + $0x1c8] sm:$0xf]
  %v321 = vld [vmem:[%s1 + $0x1cc] sm:$0xf]
  %v322 = vld [vmem:[%s1 + $0x1d0] sm:$0xf]
  %v323 = vld [vmem:[%s1 + $0x1d4] sm:$0xf]
  %v324 = vld [vmem:[%s1 + $0x1d8] sm:$0xf]
  %v325 = vld [vmem:[%s1 + $0x1dc] sm:$0xf]
  %v326 = vld [vmem:[%s1 + $0x1e0] sm:$0xf]
  %v327 = vld [vmem:[%s1 + $0x1e4] sm:$0xf]
  %v328 = vld [vmem:[%s1 + $0x1e8] sm:$0xf]
  %v329 = vld [vmem:[%s1 + $0x1ec] sm:$0xf]
  %v330 = vld [vmem:[%s1 + $0x1f0] sm:$0xf]
  %v331 = vld [vmem:[%s1 + $0x1f4] sm:$0xf]
  %v332 = vld [vmem:[%s1 + $0x1f8] sm:$0xf]
  %v333 = vld [vmem:[%s1 + $0x1fc] sm:$0xf]
  %v334 = vld [vmem:[%s1 + $0x200] sm:$0xf]
  %v335 = vld [vmem:[%s1 + $0x204] sm:$0xf]
  %v336 = vld [vmem:[%s1 + $0x208] sm:$0xf]
  %v337 = vld [vmem:[%s1 + $0x20c] sm:$0xf]
  %v338 = vld [vmem:[%s1 + $0x210] sm:$0xf]
  %v339 = vld [vmem:[%s1 + $0x214] sm:$0xf]
  %v340 = vld [vmem:[%s1 + $0x218] sm:$0xf]
  %v341 = vld [vmem:[%s1 + $0x21c] sm:$0xf]
  %v342 = vld [vmem:[%s1 + $0x220] sm:$0xf]
  %v343 = vld [vmem:[%s1 + $0x224] sm:$0xf]
  %v344 = vld [vmem:[%s1 + $0x228] sm:$0xf]
  %v345 = vld [vmem:[%s1 + $0x22c] sm:$0xf]
  %v346 = vld [vmem:[%s1 + $0x230] sm:$0xf]
  %v347 = vld [vmem:[%s1 + $0x234] sm:$0xf]
  %v348 = vld [vmem:[%s1 + $0x238] sm:$0xf]
  %v349 = vld [vmem:[%s1 + $0x23c] sm:$0xf]
  %v350 = vld [vmem:[%s1 + $0x240] sm:$0xf]
  %v351 = vld [vmem:[%s1 + $0x244] sm:$0xf]
  %v352 = vld [vmem:[%s1 + $0x248] sm:$0xf]
  %v353 = vld [vmem:[%s1 + $0x24c] sm:$0xf]
  %v354 = vld [vmem:[%s1 + $0x250] sm:$0xf]
  %v355 = vld [vmem:[%s1 + $0x254] sm:$0xf]
  %v356 = vld [vmem:[%s1 + $0x258] sm:$0xf]
  %v357 = vld [vmem:[%s1 + $0x25c] sm:$0xf]
  %v358 = vld [vmem:[%s1 + $0x260] sm:$0xf]
  %v359 = vld [vmem:[%s1 + $0x264] sm:$0xf]
  %v360 = vld [vmem:[%s1 + $0x268] sm:$0xf]
  %v361 = vld [vmem:[%s1 + $0x26c] sm:$0xf]
  %v362 = vld [vmem:[%s1 + $0x270] sm:$0xf]
  %v363 = vld [vmem:[%s1 + $0x274] sm:$0xf]
  %v364 = vld [vmem:[%s1 + $0x278] sm:$0xf]
  %v365 = vld [vmem:[%s1 + $0x27c] sm:$0xf]
  %v366 = vld [vmem:[%s1 + $0x280] sm:$0xf]
  %v367 = vld [vmem:[%s1 + $0x284] sm:$0xf]
  %v368 = vld [vmem:[%s1 + $0x288] sm:$0xf]
  %v369 = vld [vmem:[%s1 + $0x28c] sm:$0xf]
  %v370 = vld [vmem:[%s1 + $0x290] sm:$0xf]
  %v371 = vld [vmem:[%s1 + $0x294] sm:$0xf]
  %v372 = vld [vmem:[%s1 + $0x298] sm:$0xf]
  %v373 = vld [vmem:[%s1 + $0x29c] sm:$0xf]
  %v374 = vld [vmem:[%s1 + $0x2a0] sm:$0xf]
  %v375 = vld [vmem:[%s1 + $0x2a4] sm:$0xf]
  %v376 = vld [vmem:[%s1 + $0x2a8] sm:$0xf]
  %v377 = vld [vmem:[%s1 + $0x2ac] sm:$0xf]
  %v378 = vld [vmem:[%s1 + $0x2b0] sm:$0xf]
  %v379 = vld [vmem:[%s1 + $0x2b4] sm:$0xf]
  %v380 = vld [vmem:[%s1 + $0x2b8] sm:$0xf]
  %v381 = vld [vmem:[%s1 + $0x2bc] sm:$0xf]
  %v382 = vld [vmem:[%s1 + $0x2c0] sm:$0xf]
  %v383 = vld [vmem:[%s1 + $0x2c4] sm:$0xf]
  %v384 = vld [vmem:[%s1 + $0x2c8] sm:$0xf]
  %v385 = vld [vmem:[%s1 + $0x2cc] sm:$0xf]
  %v386 = vld [vmem:[%s1 + $0x2d0] sm:$0xf]
  %v387 = vld [vmem:[%s1 + $0x2d4] sm:$0xf]
  %v388 = vld [vmem:[%s1 + $0x2d8] sm:$0xf]
  %v389 = vld [vmem:[%s1 + $0x2dc] sm:$0xf]
  %v390 = vld [vmem:[%s1 + $0x2e0] sm:$0xf]
  %v391 = vld [vmem:[%s1 + $0x2e4] sm:$0xf]
  %v392 = vld [vmem:[%s1 + $0x2e8] sm:$0xf]
  %v393 = vld [vmem:[%s1 + $0x2ec] sm:$0xf]
  %v394 = vld [vmem:[%s1 + $0x2f0] sm:$0xf]
  %v395 = vld [vmem:[%s1 + $0x2f4] sm:$0xf]
  %v396 = vld [vmem:[%s1 + $0x2f8] sm:$0xf]
  %v397 = vld [vmem:[%s1 + $0x2fc] sm:$0xf]
  %v398 = vld [vmem:[%s1 + $0x300] sm:$0xf]
  %v399 = vld [vmem:[%s1 + $0x304] sm:$0xf]
  %v400 = vld [vmem:[%s1 + $0x308] sm:$0xf]
  %v401 = vld [vmem:[%s1 + $0x30c] sm:$0xf]
  %v402 = vld [vmem:[%s1 + $0x310] sm:$0xf]
  %v403 = vld [vmem:[%s1 + $0x314] sm:$0xf]
  %v404 = vld [vmem:[%s1 + $0x318] sm:$0xf]
  %v405 = vld [vmem:[%s1 + $0x31c] sm:$0xf]
  %v406 = vld [vmem:[%s1 + $0x320] sm:$0xf]
  %v407 = vld [vmem:[%s1 + $0x324] sm:$0xf]
  %v408 = vld [vmem:[%s1 + $0x328] sm:$0xf]
  %v409 = vld [vmem:[%s1 + $0x32c] sm:$0xf]
  %v410 = vld [vmem:[%s1 + $0x330] sm:$0xf]
  %v411 = vld [vmem:[%s1 + $0x334] sm:$0xf]
  %v412 = vld [vmem:[%s1 + $0x338] sm:$0xf]
  %v413 = vld [vmem:[%s1 + $0x33c] sm:$0xf]
  %v414 = vld [vmem:[%s1 + $0x340] sm:$0xf]
  %v415 = vld [vmem:[%s1 + $0x344] sm:$0xf]
  %v416 = vld [vmem:[%s1 + $0x348] sm:$0xf]
  %v417 = vld [vmem:[%s1 + $0x34c] sm:$0xf]
  %v418 = vld [vmem:[%s1 + $0x350] sm:$0xf]
  %v419 = vld [vmem:[%s1 + $0x354] sm:$0xf]
  %v420 = vld [vmem:[%s1 + $0x358] sm:$0xf]
  %v421 = vld [vmem:[%s1 + $0x35c] sm:$0xf]
  %v422 = vld [vmem:[%s1 + $0x360] sm:$0xf]
  %v423 = vld [vmem:[%s1 + $0x364] sm:$0xf]
  %v424 = vld [vmem:[%s1 + $0x368] sm:$0xf]
  %v425 = vld [vmem:[%s1 + $0x36c] sm:$0xf]
  %v426 = vld [vmem:[%s1 + $0x370] sm:$0xf]
  %v427 = vld [vmem:[%s1 + $0x374] sm:$0xf]
  %v428 = vld [vmem:[%s1 + $0x378] sm:$0xf]
  %v429 = vld [vmem:[%s1 + $0x37c] sm:$0xf]
  %v430 = vld [vmem:[%s1 + $0x380] sm:$0xf]
  %v431 = vld [vmem:[%s1 + $0x384] sm:$0xf]
  %v432 = vld [vmem:[%s1 + $0x388] sm:$0xf]
  %v433 = vld [vmem:[%s1 + $0x38c] sm:$0xf]
  %v434 = vld [vmem:[%s1 + $0x390] sm:$0xf]
  %v435 = vld [vmem:[%s1 + $0x394] sm:$0xf]
  %v436 = vld [vmem:[%s1 + $0x398] sm:$0xf]
  %v437 = vld [vmem:[%s1 + $0x39c] sm:$0xf]
  %v438 = vld [vmem:[%s1 + $0x3a0] sm:$0xf]
  %v439 = vld [vmem:[%s1 + $0x3a4] sm:$0xf]
  %v440 = vld [vmem:[%s1 + $0x3a8] sm:$0xf]
  %v441 = vld [vmem:[%s1 + $0x3ac] sm:$0xf]
  %v442 = vld [vmem:[%s1 + $0x3b0] sm:$0xf]
  %v443 = vld [vmem:[%s1 + $0x3b4] sm:$0xf]
  %v444 = vld [vmem:[%s1 + $0x3b8] sm:$0xf]
  %v445 = vld [vmem:[%s1 + $0x3bc] sm:$0xf]
  %v446 = vld [vmem:[%s1 + $0x3c0] sm:$0xf]
  %v447 = vld [vmem:[%s1 + $0x3c4] sm:$0xf]
  %v448 = vld [vmem:[%s1 + $0x3c8] sm:$0xf]
  %v449 = vld [vmem:[%s1 + $0x3cc] sm:$0xf]
  %v450 = vld [vmem:[%s1 + $0x3d0] sm:$0xf]
  %v451 = vld [vmem:[%s1 + $0x3d4] sm:$0xf]
  %v452 = vld [vmem:[%s1 + $0x3d8] sm:$0xf]
  %v453 = vld [vmem:[%s1 + $0x3dc] sm:$0xf]
  %v454 = vld [vmem:[%s1 + $0x3e0] sm:$0xf]
  %v455 = vld [vmem:[%s1 + $0x3e4] sm:$0xf]
  %v456 = vld [vmem:[%s1 + $0x3e8] sm:$0xf]
  %v457 = vld [vmem:[%s1 + $0x3ec] sm:$0xf]
  %v458 = vld [vmem:[%s1 + $0x3f0] sm:$0xf]
  %v459 = vld [vmem:[%s1 + $0x3f4] sm:$0xf]
  %v460 = vld [vmem:[%s1 + $0x3f8] sm:$0xf]
  %v461 = vld [vmem:[%s1 + $0x3fc] sm:$0xf]
  %v462 = vld [vmem:[%s1 + $0x400] sm:$0xf]
  %v463 = vld [vmem:[%s1 + $0x404] sm:$0xf]
  %v464 = vld [vmem:[%s1 + $0x408] sm:$0xf]
  %v465 = vld [vmem:[%s1 + $0x40c] sm:$0xf]
  %v466 = vld [vmem:[%s1 + $0x410] sm:$0xf]
  %v467 = vld [vmem:[%s1 + $0x414] sm:$0xf]
  %v468 = vld [vmem:[%s1 + $0x418] sm:$0xf]
  %v469 = vld [vmem:[%s1 + $0x41c] sm:$0xf]
  %v470 = vld [vmem:[%s1 + $0x420] sm:$0xf]
  %v471 = vld [vmem:[%s1 + $0x424] sm:$0xf]
  %v472 = vld [vmem:[%s1 + $0x428] sm:$0xf]
  %v473 = vld [vmem:[%s1 + $0x42c] sm:$0xf]
  %v474 = vld [vmem:[%s1 + $0x430] sm:$0xf]
  %v475 = vld [vmem:[%s1 + $0x434] sm:$0xf]
  %v476 = vld [vmem:[%s1 + $0x438] sm:$0xf]
  %v477 = vld [vmem:[%s1 + $0x43c] sm:$0xf]
  %v478 = vld [vmem:[%s1 + $0x440] sm:$0xf]
  %v479 = vld [vmem:[%s1 + $0x444] sm:$0xf]
  %v480 = vld [vmem:[%s1 + $0x448] sm:$0xf]
  %v481 = vld [vmem:[%s1 + $0x44c] sm:$0xf]
  %v482 = vld [vmem:[%s1 + $0x450] sm:$0xf]
  %v483 = vld [vmem:[%s1 + $0x454] sm:$0xf]
  %v484 = vld [vmem:[%s1 + $0x458] sm:$0xf]
  %v485 = vld [vmem:[%s1 + $0x45c] sm:$0xf]
  %v486 = vld [vmem:[%s1 + $0x460] sm:$0xf]
  %v487 = vld [vmem:[%s1 + $0x464] sm:$0xf]
  %v488 = vld [vmem:[%s1 + $0x468] sm:$0xf]
  %v489 = vld [vmem:[%s1 + $0x46c] sm:$0xf]
  %v490 = vld [vmem:[%s1 + $0x470] sm:$0xf]
  %v491 = vld [vmem:[%s1 + $0x474] sm:$0xf]
  %v492 = vld [vmem:[%s1 + $0x478] sm:$0xf]
  %v493 = vld [vmem:[%s1 + $0x47c] sm:$0xf]
  %v494 = vld [vmem:[%s1 + $0x480] sm:$0xf]
  %v495 = vld [vmem:[%s1 + $0x484] sm:$0xf]
  %v496 = vld [vmem:[%s1 + $0x488] sm:$0xf]
  %v497 = vld [vmem:[%s1 + $0x48c] sm:$0xf]
  %v498 = vld [vmem:[%s1 + $0x490] sm:$0xf]
  %v499 = vld [vmem:[%s1 + $0x494] sm:$0xf]
  %v500 = vld [vmem:[%s1 + $0x498] sm:$0xf]
  %v501 = vld [vmem:[%s1 + $0x49c] sm:$0xf]
  %v502 = vld [vmem:[%s1 + $0x4a0] sm:$0xf]
  %v503 = vld [vmem:[%s1 + $0x4a4] sm:$0xf]
  %v504 = vld [vmem:[%s1 + $0x4a8] sm:$0xf]
  %v505 = vld [vmem:[%s1 + $0x4ac] sm:$0xf]
  %v506 = vld [vmem:[%s1 + $0x4b0] sm:$0xf]
  %v507 = vld [vmem:[%s1 + $0x4b4] sm:$0xf]
  %v508 = vld [vmem:[%s1 + $0x4b8] sm:$0xf]
  %v509 = vld [vmem:[%s1 + $0x4bc] sm:$0xf]
  %v510 = vld [vmem:[%s1 + $0x4c0] sm:$0xf]
  %v511 = vld [vmem:[%s1 + $0x4c4] sm:$0xf]
  %v512 = vld [vmem:[%s1 + $0x4c8] sm:$0xf]
  %v513 = vld [vmem:[%s1 + $0x4cc] sm:$0xf]
  %v514 = vld [vmem:[%s1 + $0x4d0] sm:$0xf]
  %v515 = vld [vmem:[%s1 + $0x4d4] sm:$0xf]
  %v516 = vld [vmem:[%s1 + $0x4d8] sm:$0xf]
  %v517 = vld [vmem:[%s1 + $0x4dc] sm:$0xf]
  %v518 = vld [vmem:[%s1 + $0x4e0] sm:$0xf]
  %v519 = vld [vmem:[%s1 + $0x4e4] sm:$0xf]
  %v520 = vld [vmem:[%s1 + $0x4e8] sm:$0xf]
  %v521 = vld [vmem:[%s1 + $0x4ec] sm:$0xf]
  %v522 = vld [vmem:[%s1 + $0x4f0] sm:$0xf]
  %v523 = vld [vmem:[%s1 + $0x4f4] sm:$0xf]
  %v524 = vld [vmem:[%s1 + $0x4f8] sm:$0xf]
  %v525 = vld [vmem:[%s1 + $0x4fc] sm:$0xf]
  %v526 = vld [vmem:[%s1 + $0x500] sm:$0xf]
  %v527 = vld [vmem:[%s1 + $0x504] sm:$0xf]
  %v528 = vld [vmem:[%s1 + $0x508] sm:$0xf]
  %v529 = vld [vmem:[%s1 + $0x50c] sm:$0xf]
  %v530 = vld [vmem:[%s1 + $0x510] sm:$0xf]
  %v531 = vld [vmem:[%s1 + $0x514] sm:$0xf]
  %v532 = vld [vmem:[%s1 + $0x518] sm:$0xf]
  %v533 = vld [vmem:[%s1 + $0x51c] sm:$0xf]
  %v534 = vld [vmem:[%s1 + $0x520] sm:$0xf]
  %v535 = vld [vmem:[%s1 + $0x524] sm:$0xf]
  %v536 = vld [vmem:[%s1 + $0x528] sm:$0xf]
  %v537 = vld [vmem:[%s1 + $0x52c] sm:$0xf]
  %v538 = vld [vmem:[%s1 + $0x530] sm:$0xf]
  %v539 = vld [vmem:[%s1 + $0x534] sm:$0xf]
  %v540 = vld [vmem:[%s1 + $0x538] sm:$0xf]
  %v541 = vld [vmem:[%s1 + $0x53c] sm:$0xf]
  %v542 = vld [vmem:[%s1 + $0x540] sm:$0xf]
  %v543 = vld [vmem:[%s1 + $0x544] sm:$0xf]
  %v544 = vld [vmem:[%s1 + $0x548] sm:$0xf]
  %v545 = vld [vmem:[%s1 + $0x54c] sm:$0xf]
  %v546 = vld [vmem:[%s1 + $0x550] sm:$0xf]
  %v547 = vld [vmem:[%s1 + $0x554] sm:$0xf]
  %v548 = vld [vmem:[%s1 + $0x558] sm:$0xf]
  %v549 = vld [vmem:[%s1 + $0x55c] sm:$0xf]
  %v550 = vld [vmem:[%s1 + $0x560] sm:$0xf]
  %v551 = vld [vmem:[%s1 + $0x564] sm:$0xf]
  %v552 = vld [vmem:[%s1 + $0x568] sm:$0xf]
  %v553 = vld [vmem:[%s1 + $0x56c] sm:$0xf]
  %v554 = vld [vmem:[%s1 + $0x570] sm:$0xf]
  %v555 = vld [vmem:[%s1 + $0x574] sm:$0xf]
  %v556 = vld [vmem:[%s1 + $0x578] sm:$0xf]
  %v557 = vld [vmem:[%s1 + $0x57c] sm:$0xf]
  %v558 = vld [vmem:[%s1 + $0x580] sm:$0xf]
  %v559 = vld [vmem:[%s1 + $0x584] sm:$0xf]
  %v560 = vld [vmem:[%s1 + $0x588] sm:$0xf]
  %v561 = vld [vmem:[%s1 + $0x58c] sm:$0xf]
  %v562 = vld [vmem:[%s1 + $0x590] sm:$0xf]
  %v563 = vld [vmem:[%s1 + $0x594] sm:$0xf]
  %v564 = vld [vmem:[%s1 + $0x598] sm:$0xf]
  %v565 = vld [vmem:[%s1 + $0x59c] sm:$0xf]
  %v566 = vld [vmem:[%s1 + $0x5a0] sm:$0xf]
  %v567 = vld [vmem:[%s1 + $0x5a4] sm:$0xf]
  %v568 = vld [vmem:[%s1 + $0x5a8] sm:$0xf]
  %v569 = vld [vmem:[%s1 + $0x5ac] sm:$0xf]
  %v570 = vld [vmem:[%s1 + $0x5b0] sm:$0xf]
  %v571 = vld [vmem:[%s1 + $0x5b4] sm:$0xf]
  %v572 = vld [vmem:[%s1 + $0x5b8] sm:$0xf]
  %v573 = vld [vmem:[%s1 + $0x5bc] sm:$0xf]
  %v574 = vld [vmem:[%s1 + $0x5c0] sm:$0xf]
  %v575 = vld [vmem:[%s1 + $0x5c4] sm:$0xf]
  %v576 = vld [vmem:[%s1 + $0x5c8] sm:$0xf]
  %v577 = vld [vmem:[%s1 + $0x5cc] sm:$0xf]
  %v578 = vld [vmem:[%s1 + $0x5d0] sm:$0xf]
  %v579 = vld [vmem:[%s1 + $0x5d4] sm:$0xf]
  %v580 = vld [vmem:[%s1 + $0x5d8] sm:$0xf]
  %v581 = vld [vmem:[%s1 + $0x5dc] sm:$0xf]
  %v582 = vld [vmem:[%s1 + $0x5e0] sm:$0xf]
  %v583 = vld [vmem:[%s1 + $0x5e4] sm:$0xf]
  %v584 = vld [vmem:[%s1 + $0x5e8] sm:$0xf]
  %v585 = vld [vmem:[%s1 + $0x5ec] sm:$0xf]
  %v586 = vld [vmem:[%s1 + $0x5f0] sm:$0xf]
  %v587 = vld [vmem:[%s1 + $0x5f4] sm:$0xf]
  %v588 = vld [vmem:[%s1 + $0x5f8] sm:$0xf]
  %v589 = vld [vmem:[%s1 + $0x5fc] sm:$0xf]
  %v590 = vld [vmem:[%s1 + $0x600] sm:$0xf]
  %v591 = vld [vmem:[%s1 + $0x604] sm:$0xf]
  %v592 = vld [vmem:[%s1 + $0x608] sm:$0xf]
  %v593 = vld [vmem:[%s1 + $0x60c] sm:$0xf]
  %v594 = vld [vmem:[%s1 + $0x610] sm:$0xf]
  %v595 = vld [vmem:[%s1 + $0x614] sm:$0xf]
  %v596 = vld [vmem:[%s1 + $0x618] sm:$0xf]
  %v597 = vld [vmem:[%s1 + $0x61c] sm:$0xf]
  %v598 = vld [vmem:[%s1 + $0x620] sm:$0xf]
  %v599 = vld [vmem:[%s1 + $0x624] sm:$0xf]
  %v600 = vld [vmem:[%s1 + $0x628] sm:$0xf]
  %v601 = vld [vmem:[%s1 + $0x62c] sm:$0xf]
  %v602 = vld [vmem:[%s1 + $0x630] sm:$0xf]
  %v603 = vld [vmem:[%s1 + $0x634] sm:$0xf]
  %v604 = vld [vmem:[%s1 + $0x638] sm:$0xf]
  %v605 = vld [vmem:[%s1 + $0x63c] sm:$0xf]
  %v606 = vld [vmem:[%s1 + $0x640] sm:$0xf]
  %v607 = vld [vmem:[%s1 + $0x644] sm:$0xf]
  %v608 = vld [vmem:[%s1 + $0x648] sm:$0xf]
  %v609 = vld [vmem:[%s1 + $0x64c] sm:$0xf]
  %v610 = vld [vmem:[%s1 + $0x650] sm:$0xf]
  %v611 = vld [vmem:[%s1 + $0x654] sm:$0xf]
  %v612 = vld [vmem:[%s1 + $0x658] sm:$0xf]
  %v613 = vld [vmem:[%s1 + $0x65c] sm:$0xf]
  %v614 = vld [vmem:[%s1 + $0x660] sm:$0xf]
  %v615 = vld [vmem:[%s1 + $0x664] sm:$0xf]
  %v616 = vld [vmem:[%s1 + $0x668] sm:$0xf]
  %v617 = vld [vmem:[%s1 + $0x66c] sm:$0xf]
  %v618 = vld [vmem:[%s1 + $0x670] sm:$0xf]
  %v619 = vld [vmem:[%s1 + $0x674] sm:$0xf]
  %v620 = vld [vmem:[%s1 + $0x678] sm:$0xf]
  %v621 = vld [vmem:[%s1 + $0x67c] sm:$0xf]
  %v622 = vld [vmem:[%s1 + $0x680] sm:$0xf]
  %v623 = vld [vmem:[%s1 + $0x684] sm:$0xf]
  %v624 = vld [vmem:[%s1 + $0x688] sm:$0xf]
  %v625 = vld [vmem:[%s1 + $0x68c] sm:$0xf]
  %v626 = vld [vmem:[%s1 + $0x690] sm:$0xf]
  %v627 = vld [vmem:[%s1 + $0x694] sm:$0xf]
  %v628 = vld [vmem:[%s1 + $0x698] sm:$0xf]
  %v629 = vld [vmem:[%s1 + $0x69c] sm:$0xf]
  %v630 = vld [vmem:[%s1 + $0x6a0] sm:$0xf]
  %v631 = vld [vmem:[%s1 + $0x6a4] sm:$0xf]
  %v632 = vld [vmem:[%s1 + $0x6a8] sm:$0xf]
  %v633 = vld [vmem:[%s1 + $0x6ac] sm:$0xf]
  %v634 = vld [vmem:[%s1 + $0x6b0] sm:$0xf]
  %v635 = vld [vmem:[%s1 + $0x6b4] sm:$0xf]
  %v636 = vld [vmem:[%s1 + $0x6b8] sm:$0xf]
  %v637 = vld [vmem:[%s1 + $0x6bc] sm:$0xf]
  %v638 = vld [vmem:[%s1 + $0x6c0] sm:$0xf]
  %v639 = vld [vmem:[%s1 + $0x6c4] sm:$0xf]
  %v640 = vld [vmem:[%s1 + $0x6c8] sm:$0xf]
  %v641 = vld [vmem:[%s1 + $0x6cc] sm:$0xf]
  %v642 = vld [vmem:[%s1 + $0x6d0] sm:$0xf]
  %v643 = vld [vmem:[%s1 + $0x6d4] sm:$0xf]
  %v644 = vld [vmem:[%s1 + $0x6d8] sm:$0xf]
  %v645 = vld [vmem:[%s1 + $0x6dc] sm:$0xf]
  %v646 = vld [vmem:[%s1 + $0x6e0] sm:$0xf]
  %v647 = vld [vmem:[%s1 + $0x6e4] sm:$0xf]
  %v648 = vld [vmem:[%s1 + $0x6e8] sm:$0xf]
  %v649 = vld [vmem:[%s1 + $0x6ec] sm:$0xf]
  %v650 = vld [vmem:[%s1 + $0x6f0] sm:$0xf]
  %v651 = vld [vmem:[%s1 + $0x6f4] sm:$0xf]
  %v652 = vld [vmem:[%s1 + $0x6f8] sm:$0xf]
  %v653 = vld [vmem:[%s1 + $0x6fc] sm:$0xf]
  %v654 = vld [vmem:[%s1 + $0x700] sm:$0xf]
  %v655 = vld [vmem:[%s1 + $0x704] sm:$0xf]
  %v656 = vld [vmem:[%s1 + $0x708] sm:$0xf]
  %v657 = vld [vmem:[%s1 + $0x70c] sm:$0xf]
  %v658 = vld [vmem:[%s1 + $0x710] sm:$0xf]
  %v659 = vld [vmem:[%s1 + $0x714] sm:$0xf]
  %v660 = vld [vmem:[%s1 + $0x718] sm:$0xf]
  %v661 = vld [vmem:[%s1 + $0x71c] sm:$0xf]
  %v662 = vld [vmem:[%s1 + $0x720] sm:$0xf]
  %v663 = vld [vmem:[%s1 + $0x724] sm:$0xf]
  %v664 = vld [vmem:[%s1 + $0x728] sm:$0xf]
  %v665 = vld [vmem:[%s1 + $0x72c] sm:$0xf]
  %v666 = vld [vmem:[%s1 + $0x730] sm:$0xf]
  %v667 = vld [vmem:[%s1 + $0x734] sm:$0xf]
  %v668 = vld [vmem:[%s1 + $0x738] sm:$0xf]
  %v669 = vld [vmem:[%s1 + $0x73c] sm:$0xf]
  %v670 = vld [vmem:[%s1 + $0x740] sm:$0xf]
  %v671 = vld [vmem:[%s1 + $0x744] sm:$0xf]
  %v672 = vld [vmem:[%s1 + $0x748] sm:$0xf]
  %v673 = vld [vmem:[%s1 + $0x74c] sm:$0xf]
  %v674 = vld [vmem:[%s1 + $0x750] sm:$0xf]
  %v675 = vld [vmem:[%s1 + $0x754] sm:$0xf]
  %v676 = vld [vmem:[%s1 + $0x758] sm:$0xf]
  %v677 = vld [vmem:[%s1 + $0x75c] sm:$0xf]
  %v678 = vld [vmem:[%s1 + $0x760] sm:$0xf]
  %v679 = vld [vmem:[%s1 + $0x764] sm:$0xf]
  %v680 = vld [vmem:[%s1 + $0x768] sm:$0xf]
  %v681 = vld [vmem:[%s1 + $0x76c] sm:$0xf]
  %v682 = vld [vmem:[%s1 + $0x770] sm:$0xf]
  %v683 = vld [vmem:[%s1 + $0x774] sm:$0xf]
  %v684 = vld [vmem:[%s1 + $0x778] sm:$0xf]
  %v685 = vld [vmem:[%s1 + $0x77c] sm:$0xf]
  %v686 = vld [vmem:[%s1 + $0x780] sm:$0xf]
  %v687 = vld [vmem:[%s1 + $0x784] sm:$0xf]
  %v688 = vld [vmem:[%s1 + $0x788] sm:$0xf]
  %v689 = vld [vmem:[%s1 + $0x78c] sm:$0xf]
  %v690 = vld [vmem:[%s1 + $0x790] sm:$0xf]
  %v691 = vld [vmem:[%s1 + $0x794] sm:$0xf]
  %v692 = vld [vmem:[%s1 + $0x798] sm:$0xf]
  %v693 = vld [vmem:[%s1 + $0x79c] sm:$0xf]
  %v694 = vld [vmem:[%s1 + $0x7a0] sm:$0xf]
  %v695 = vld [vmem:[%s1 + $0x7a4] sm:$0xf]
  %v696 = vld [vmem:[%s1 + $0x7a8] sm:$0xf]
  %v697 = vld [vmem:[%s1 + $0x7ac] sm:$0xf]
  %v698 = vld [vmem:[%s1 + $0x7b0] sm:$0xf]
  %v699 = vld [vmem:[%s1 + $0x7b4] sm:$0xf]
  %v700 = vld [vmem:[%s1 + $0x7b8] sm:$0xf]
  %v701 = vld [vmem:[%s1 + $0x7bc] sm:$0xf]
  %v702 = vld [vmem:[%s1 + $0x7c0] sm:$0xf]
  %v703 = vld [vmem:[%s1 + $0x7c4] sm:$0xf]
  %v704 = vld [vmem:[%s1 + $0x7c8] sm:$0xf]
  %v705 = vld [vmem:[%s1 + $0x7cc] sm:$0xf]
  %v706 = vld [vmem:[%s1 + $0x7d0] sm:$0xf]
  %v707 = vld [vmem:[%s1 + $0x7d4] sm:$0xf]
  %v708 = vld [vmem:[%s1 + $0x7d8] sm:$0xf]
  %v709 = vld [vmem:[%s1 + $0x7dc] sm:$0xf]
  %v710 = vld [vmem:[%s1 + $0x7e0] sm:$0xf]
  %v711 = vld [vmem:[%s1 + $0x7e4] sm:$0xf]
  %v712 = vld [vmem:[%s1 + $0x7e8] sm:$0xf]
  %v713 = vld [vmem:[%s1 + $0x7ec] sm:$0xf]
  %v714 = vld [vmem:[%s1 + $0x7f0] sm:$0xf]
  %v715 = vld [vmem:[%s1 + $0x7f4] sm:$0xf]
  %v716 = vld [vmem:[%s1 + $0x7f8] sm:$0xf]
  %v717 = vld [vmem:[%s1 + $0x7fc] sm:$0xf]
  %v718 = vld [vmem:[%s2] sm:$0x1]
  %v720 = vperm.slane %v718, 0
  %v1234 = vunpack.c.l.b16 %v206
  %v1235 = vunpack.c.l.b16 %v207
  %v1236 = vunpack.c.l.b16 %v208
  %v1237 = vunpack.c.l.b16 %v209
  %v1238 = vunpack.c.l.b16 %v210
  %v1239 = vunpack.c.l.b16 %v211
  %v1240 = vunpack.c.l.b16 %v212
  %v1241 = vunpack.c.l.b16 %v213
  %v1242 = vunpack.c.l.b16 %v214
  %v1243 = vunpack.c.l.b16 %v215
  %v1244 = vunpack.c.l.b16 %v216
  %v1245 = vunpack.c.l.b16 %v217
  %v1246 = vunpack.c.l.b16 %v218
  %v1247 = vunpack.c.l.b16 %v219
  %v1248 = vunpack.c.l.b16 %v220
  %v1249 = vunpack.c.l.b16 %v221
  %v1250 = vunpack.c.l.b16 %v222
  %v1251 = vunpack.c.l.b16 %v223
  %v1252 = vunpack.c.l.b16 %v224
  %v1253 = vunpack.c.l.b16 %v225
  %v1254 = vunpack.c.l.b16 %v226
  %v1255 = vunpack.c.l.b16 %v227
  %v1256 = vunpack.c.l.b16 %v228
  %v1257 = vunpack.c.l.b16 %v229
  %v1258 = vunpack.c.l.b16 %v230
  %v1259 = vunpack.c.l.b16 %v231
  %v1260 = vunpack.c.l.b16 %v232
  %v1261 = vunpack.c.l.b16 %v233
  %v1262 = vunpack.c.l.b16 %v234
  %v1263 = vunpack.c.l.b16 %v235
  %v1264 = vunpack.c.l.b16 %v236
  %v1265 = vunpack.c.l.b16 %v237
  %v1266 = vunpack.c.l.b16 %v238
  %v1267 = vunpack.c.l.b16 %v239
  %v1268 = vunpack.c.l.b16 %v240
  %v1269 = vunpack.c.l.b16 %v241
  %v1270 = vunpack.c.l.b16 %v242
  %v1271 = vunpack.c.l.b16 %v243
  %v1272 = vunpack.c.l.b16 %v244
  %v1273 = vunpack.c.l.b16 %v245
  %v1274 = vunpack.c.l.b16 %v246
  %v1275 = vunpack.c.l.b16 %v247
  %v1276 = vunpack.c.l.b16 %v248
  %v1277 = vunpack.c.l.b16 %v249
  %v1278 = vunpack.c.l.b16 %v250
  %v1279 = vunpack.c.l.b16 %v251
  %v1280 = vunpack.c.l.b16 %v252
  %v1281 = vunpack.c.l.b16 %v253
  %v1282 = vunpack.c.l.b16 %v254
  %v1283 = vunpack.c.l.b16 %v255
  %v1284 = vunpack.c.l.b16 %v256
  %v1285 = vunpack.c.l.b16 %v257
  %v1286 = vunpack.c.l.b16 %v258
  %v1287 = vunpack.c.l.b16 %v259
  %v1288 = vunpack.c.l.b16 %v260
  %v1289 = vunpack.c.l.b16 %v261
  %v1290 = vunpack.c.l.b16 %v262
  %v1291 = vunpack.c.l.b16 %v263
  %v1292 = vunpack.c.l.b16 %v264
  %v1293 = vunpack.c.l.b16 %v265
  %v1294 = vunpack.c.l.b16 %v266
  %v1295 = vunpack.c.l.b16 %v267
  %v1296 = vunpack.c.l.b16 %v268
  %v1297 = vunpack.c.l.b16 %v269
  %v1298 = vunpack.c.l.b16 %v270
  %v1299 = vunpack.c.l.b16 %v271
  %v1300 = vunpack.c.l.b16 %v272
  %v1301 = vunpack.c.l.b16 %v273
  %v1302 = vunpack.c.l.b16 %v274
  %v1303 = vunpack.c.l.b16 %v275
  %v1304 = vunpack.c.l.b16 %v276
  %v1305 = vunpack.c.l.b16 %v277
  %v1306 = vunpack.c.l.b16 %v278
  %v1307 = vunpack.c.l.b16 %v279
  %v1308 = vunpack.c.l.b16 %v280
  %v1309 = vunpack.c.l.b16 %v281
  %v1310 = vunpack.c.l.b16 %v282
  %v1311 = vunpack.c.l.b16 %v283
  %v1312 = vunpack.c.l.b16 %v284
  %v1313 = vunpack.c.l.b16 %v285
  %v1314 = vunpack.c.l.b16 %v286
  %v1315 = vunpack.c.l.b16 %v287
  %v1316 = vunpack.c.l.b16 %v288
  %v1317 = vunpack.c.l.b16 %v289
  %v1318 = vunpack.c.l.b16 %v290
  %v1319 = vunpack.c.l.b16 %v291
  %v1320 = vunpack.c.l.b16 %v292
  %v1321 = vunpack.c.l.b16 %v293
  %v1322 = vunpack.c.l.b16 %v294
  %v1323 = vunpack.c.l.b16 %v295
  %v1324 = vunpack.c.l.b16 %v296
  %v1325 = vunpack.c.l.b16 %v297
  %v1326 = vunpack.c.l.b16 %v298
  %v1327 = vunpack.c.l.b16 %v299
  %v1328 = vunpack.c.l.b16 %v300
  %v1329 = vunpack.c.l.b16 %v301
  %v1330 = vunpack.c.l.b16 %v302
  %v1331 = vunpack.c.l.b16 %v303
  %v1332 = vunpack.c.l.b16 %v304
  %v1333 = vunpack.c.l.b16 %v305
  %v1334 = vunpack.c.l.b16 %v306
  %v1335 = vunpack.c.l.b16 %v307
  %v1336 = vunpack.c.l.b16 %v308
  %v1337 = vunpack.c.l.b16 %v309
  %v1338 = vunpack.c.l.b16 %v310
  %v1339 = vunpack.c.l.b16 %v311
  %v1340 = vunpack.c.l.b16 %v312
  %v1341 = vunpack.c.l.b16 %v313
  %v1342 = vunpack.c.l.b16 %v314
  %v1343 = vunpack.c.l.b16 %v315
  %v1344 = vunpack.c.l.b16 %v316
  %v1345 = vunpack.c.l.b16 %v317
  %v1346 = vunpack.c.l.b16 %v318
  %v1347 = vunpack.c.l.b16 %v319
  %v1348 = vunpack.c.l.b16 %v320
  %v1349 = vunpack.c.l.b16 %v321
  %v1350 = vunpack.c.l.b16 %v322
  %v1351 = vunpack.c.l.b16 %v323
  %v1352 = vunpack.c.l.b16 %v324
  %v1353 = vunpack.c.l.b16 %v325
  %v1354 = vunpack.c.l.b16 %v326
  %v1355 = vunpack.c.l.b16 %v327
  %v1356 = vunpack.c.l.b16 %v328
  %v1357 = vunpack.c.l.b16 %v329
  %v1358 = vunpack.c.l.b16 %v330
  %v1359 = vunpack.c.l.b16 %v331
  %v1360 = vunpack.c.l.b16 %v332
  %v1361 = vunpack.c.l.b16 %v333
  %v1362 = vunpack.c.l.b16 %v334
  %v1363 = vunpack.c.l.b16 %v335
  %v1364 = vunpack.c.l.b16 %v336
  %v1365 = vunpack.c.l.b16 %v337
  %v1366 = vunpack.c.l.b16 %v338
  %v1367 = vunpack.c.l.b16 %v339
  %v1368 = vunpack.c.l.b16 %v340
  %v1369 = vunpack.c.l.b16 %v341
  %v1370 = vunpack.c.l.b16 %v342
  %v1371 = vunpack.c.l.b16 %v343
  %v1372 = vunpack.c.l.b16 %v344
  %v1373 = vunpack.c.l.b16 %v345
  %v1374 = vunpack.c.l.b16 %v346
  %v1375 = vunpack.c.l.b16 %v347
  %v1376 = vunpack.c.l.b16 %v348
  %v1377 = vunpack.c.l.b16 %v349
  %v1378 = vunpack.c.l.b16 %v350
  %v1379 = vunpack.c.l.b16 %v351
  %v1380 = vunpack.c.l.b16 %v352
  %v1381 = vunpack.c.l.b16 %v353
  %v1382 = vunpack.c.l.b16 %v354
  %v1383 = vunpack.c.l.b16 %v355
  %v1384 = vunpack.c.l.b16 %v356
  %v1385 = vunpack.c.l.b16 %v357
  %v1386 = vunpack.c.l.b16 %v358
  %v1387 = vunpack.c.l.b16 %v359
  %v1388 = vunpack.c.l.b16 %v360
  %v1389 = vunpack.c.l.b16 %v361
  %v1390 = vunpack.c.l.b16 %v362
  %v1391 = vunpack.c.l.b16 %v363
  %v1392 = vunpack.c.l.b16 %v364
  %v1393 = vunpack.c.l.b16 %v365
  %v1394 = vunpack.c.l.b16 %v366
  %v1395 = vunpack.c.l.b16 %v367
  %v1396 = vunpack.c.l.b16 %v368
  %v1397 = vunpack.c.l.b16 %v369
  %v1398 = vunpack.c.l.b16 %v370
  %v1399 = vunpack.c.l.b16 %v371
  %v1400 = vunpack.c.l.b16 %v372
  %v1401 = vunpack.c.l.b16 %v373
  %v1402 = vunpack.c.l.b16 %v374
  %v1403 = vunpack.c.l.b16 %v375
  %v1404 = vunpack.c.l.b16 %v376
  %v1405 = vunpack.c.l.b16 %v377
  %v1406 = vunpack.c.l.b16 %v378
  %v1407 = vunpack.c.l.b16 %v379
  %v1408 = vunpack.c.l.b16 %v380
  %v1409 = vunpack.c.l.b16 %v381
  %v1410 = vunpack.c.l.b16 %v382
  %v1411 = vunpack.c.l.b16 %v383
  %v1412 = vunpack.c.l.b16 %v384
  %v1413 = vunpack.c.l.b16 %v385
  %v1414 = vunpack.c.l.b16 %v386
  %v1415 = vunpack.c.l.b16 %v387
  %v1416 = vunpack.c.l.b16 %v388
  %v1417 = vunpack.c.l.b16 %v389
  %v1418 = vunpack.c.l.b16 %v390
  %v1419 = vunpack.c.l.b16 %v391
  %v1420 = vunpack.c.l.b16 %v392
  %v1421 = vunpack.c.l.b16 %v393
  %v1422 = vunpack.c.l.b16 %v394
  %v1423 = vunpack.c.l.b16 %v395
  %v1424 = vunpack.c.l.b16 %v396
  %v1425 = vunpack.c.l.b16 %v397
  %v1426 = vunpack.c.l.b16 %v398
  %v1427 = vunpack.c.l.b16 %v399
  %v1428 = vunpack.c.l.b16 %v400
  %v1429 = vunpack.c.l.b16 %v401
  %v1430 = vunpack.c.l.b16 %v402
  %v1431 = vunpack.c.l.b16 %v403
  %v1432 = vunpack.c.l.b16 %v404
  %v1433 = vunpack.c.l.b16 %v405
  %v1434 = vunpack.c.l.b16 %v406
  %v1435 = vunpack.c.l.b16 %v407
  %v1436 = vunpack.c.l.b16 %v408
  %v1437 = vunpack.c.l.b16 %v409
  %v1438 = vunpack.c.l.b16 %v410
  %v1439 = vunpack.c.l.b16 %v411
  %v1440 = vunpack.c.l.b16 %v412
  %v1441 = vunpack.c.l.b16 %v413
  %v1442 = vunpack.c.l.b16 %v414
  %v1443 = vunpack.c.l.b16 %v415
  %v1444 = vunpack.c.l.b16 %v416
  %v1445 = vunpack.c.l.b16 %v417
  %v1446 = vunpack.c.l.b16 %v418
  %v1447 = vunpack.c.l.b16 %v419
  %v1448 = vunpack.c.l.b16 %v420
  %v1449 = vunpack.c.l.b16 %v421
  %v1450 = vunpack.c.l.b16 %v422
  %v1451 = vunpack.c.l.b16 %v423
  %v1452 = vunpack.c.l.b16 %v424
  %v1453 = vunpack.c.l.b16 %v425
  %v1454 = vunpack.c.l.b16 %v426
  %v1455 = vunpack.c.l.b16 %v427
  %v1456 = vunpack.c.l.b16 %v428
  %v1457 = vunpack.c.l.b16 %v429
  %v1458 = vunpack.c.l.b16 %v430
  %v1459 = vunpack.c.l.b16 %v431
  %v1460 = vunpack.c.l.b16 %v432
  %v1461 = vunpack.c.l.b16 %v433
  %v1462 = vunpack.c.l.b16 %v434
  %v1463 = vunpack.c.l.b16 %v435
  %v1464 = vunpack.c.l.b16 %v436
  %v1465 = vunpack.c.l.b16 %v437
  %v1466 = vunpack.c.l.b16 %v438
  %v1467 = vunpack.c.l.b16 %v439
  %v1468 = vunpack.c.l.b16 %v440
  %v1469 = vunpack.c.l.b16 %v441
  %v1470 = vunpack.c.l.b16 %v442
  %v1471 = vunpack.c.l.b16 %v443
  %v1472 = vunpack.c.l.b16 %v444
  %v1473 = vunpack.c.l.b16 %v445
  %v1474 = vunpack.c.l.b16 %v446
  %v1475 = vunpack.c.l.b16 %v447
  %v1476 = vunpack.c.l.b16 %v448
  %v1477 = vunpack.c.l.b16 %v449
  %v1478 = vunpack.c.l.b16 %v450
  %v1479 = vunpack.c.l.b16 %v451
  %v1480 = vunpack.c.l.b16 %v452
  %v1481 = vunpack.c.l.b16 %v453
  %v1482 = vunpack.c.l.b16 %v454
  %v1483 = vunpack.c.l.b16 %v455
  %v1484 = vunpack.c.l.b16 %v456
  %v1485 = vunpack.c.l.b16 %v457
  %v1486 = vunpack.c.l.b16 %v458
  %v1487 = vunpack.c.l.b16 %v459
  %v1488 = vunpack.c.l.b16 %v460
  %v1489 = vunpack.c.l.b16 %v461
  %v1490 = vunpack.c.l.b16 %v462
  %v1491 = vunpack.c.l.b16 %v463
  %v1492 = vunpack.c.l.b16 %v464
  %v1493 = vunpack.c.l.b16 %v465
  %v1494 = vunpack.c.l.b16 %v466
  %v1495 = vunpack.c.l.b16 %v467
  %v1496 = vunpack.c.l.b16 %v468
  %v1497 = vunpack.c.l.b16 %v469
  %v1498 = vunpack.c.l.b16 %v470
  %v1499 = vunpack.c.l.b16 %v471
  %v1500 = vunpack.c.l.b16 %v472
  %v1501 = vunpack.c.l.b16 %v473
  %v1502 = vunpack.c.l.b16 %v474
  %v1503 = vunpack.c.l.b16 %v475
  %v1504 = vunpack.c.l.b16 %v476
  %v1505 = vunpack.c.l.b16 %v477
  %v1506 = vunpack.c.l.b16 %v478
  %v1507 = vunpack.c.l.b16 %v479
  %v1508 = vunpack.c.l.b16 %v480
  %v1509 = vunpack.c.l.b16 %v481
  %v1510 = vunpack.c.l.b16 %v482
  %v1511 = vunpack.c.l.b16 %v483
  %v1512 = vunpack.c.l.b16 %v484
  %v1513 = vunpack.c.l.b16 %v485
  %v1514 = vunpack.c.l.b16 %v486
  %v1515 = vunpack.c.l.b16 %v487
  %v1516 = vunpack.c.l.b16 %v488
  %v1517 = vunpack.c.l.b16 %v489
  %v1518 = vunpack.c.l.b16 %v490
  %v1519 = vunpack.c.l.b16 %v491
  %v1520 = vunpack.c.l.b16 %v492
  %v1521 = vunpack.c.l.b16 %v493
  %v1522 = vunpack.c.l.b16 %v494
  %v1523 = vunpack.c.l.b16 %v495
  %v1524 = vunpack.c.l.b16 %v496
  %v1525 = vunpack.c.l.b16 %v497
  %v1526 = vunpack.c.l.b16 %v498
  %v1527 = vunpack.c.l.b16 %v499
  %v1528 = vunpack.c.l.b16 %v500
  %v1529 = vunpack.c.l.b16 %v501
  %v1530 = vunpack.c.l.b16 %v502
  %v1531 = vunpack.c.l.b16 %v503
  %v1532 = vunpack.c.l.b16 %v504
  %v1533 = vunpack.c.l.b16 %v505
  %v1534 = vunpack.c.l.b16 %v506
  %v1535 = vunpack.c.l.b16 %v507
  %v1536 = vunpack.c.l.b16 %v508
  %v1537 = vunpack.c.l.b16 %v509
  %v1538 = vunpack.c.l.b16 %v510
  %v1539 = vunpack.c.l.b16 %v511
  %v1540 = vunpack.c.l.b16 %v512
  %v1541 = vunpack.c.l.b16 %v513
  %v1542 = vunpack.c.l.b16 %v514
  %v1543 = vunpack.c.l.b16 %v515
  %v1544 = vunpack.c.l.b16 %v516
  %v1545 = vunpack.c.l.b16 %v517
  %v1546 = vunpack.c.l.b16 %v518
  %v1547 = vunpack.c.l.b16 %v519
  %v1548 = vunpack.c.l.b16 %v520
  %v1549 = vunpack.c.l.b16 %v521
  %v1550 = vunpack.c.l.b16 %v522
  %v1551 = vunpack.c.l.b16 %v523
  %v1552 = vunpack.c.l.b16 %v524
  %v1553 = vunpack.c.l.b16 %v525
  %v1554 = vunpack.c.l.b16 %v526
  %v1555 = vunpack.c.l.b16 %v527
  %v1556 = vunpack.c.l.b16 %v528
  %v1557 = vunpack.c.l.b16 %v529
  %v1558 = vunpack.c.l.b16 %v530
  %v1559 = vunpack.c.l.b16 %v531
  %v1560 = vunpack.c.l.b16 %v532
  %v1561 = vunpack.c.l.b16 %v533
  %v1562 = vunpack.c.l.b16 %v534
  %v1563 = vunpack.c.l.b16 %v535
  %v1564 = vunpack.c.l.b16 %v536
  %v1565 = vunpack.c.l.b16 %v537
  %v1566 = vunpack.c.l.b16 %v538
  %v1567 = vunpack.c.l.b16 %v539
  %v1568 = vunpack.c.l.b16 %v540
  %v1569 = vunpack.c.l.b16 %v541
  %v1570 = vunpack.c.l.b16 %v542
  %v1571 = vunpack.c.l.b16 %v543
  %v1572 = vunpack.c.l.b16 %v544
  %v1573 = vunpack.c.l.b16 %v545
  %v1574 = vunpack.c.l.b16 %v546
  %v1575 = vunpack.c.l.b16 %v547
  %v1576 = vunpack.c.l.b16 %v548
  %v1577 = vunpack.c.l.b16 %v549
  %v1578 = vunpack.c.l.b16 %v550
  %v1579 = vunpack.c.l.b16 %v551
  %v1580 = vunpack.c.l.b16 %v552
  %v1581 = vunpack.c.l.b16 %v553
  %v1582 = vunpack.c.l.b16 %v554
  %v1583 = vunpack.c.l.b16 %v555
  %v1584 = vunpack.c.l.b16 %v556
  %v1585 = vunpack.c.l.b16 %v557
  %v1586 = vunpack.c.l.b16 %v558
  %v1587 = vunpack.c.l.b16 %v559
  %v1588 = vunpack.c.l.b16 %v560
  %v1589 = vunpack.c.l.b16 %v561
  %v1590 = vunpack.c.l.b16 %v562
  %v1591 = vunpack.c.l.b16 %v563
  %v1592 = vunpack.c.l.b16 %v564
  %v1593 = vunpack.c.l.b16 %v565
  %v1594 = vunpack.c.l.b16 %v566
  %v1595 = vunpack.c.l.b16 %v567
  %v1596 = vunpack.c.l.b16 %v568
  %v1597 = vunpack.c.l.b16 %v569
  %v1598 = vunpack.c.l.b16 %v570
  %v1599 = vunpack.c.l.b16 %v571
  %v1600 = vunpack.c.l.b16 %v572
  %v1601 = vunpack.c.l.b16 %v573
  %v1602 = vunpack.c.l.b16 %v574
  %v1603 = vunpack.c.l.b16 %v575
  %v1604 = vunpack.c.l.b16 %v576
  %v1605 = vunpack.c.l.b16 %v577
  %v1606 = vunpack.c.l.b16 %v578
  %v1607 = vunpack.c.l.b16 %v579
  %v1608 = vunpack.c.l.b16 %v580
  %v1609 = vunpack.c.l.b16 %v581
  %v1610 = vunpack.c.l.b16 %v582
  %v1611 = vunpack.c.l.b16 %v583
  %v1612 = vunpack.c.l.b16 %v584
  %v1613 = vunpack.c.l.b16 %v585
  %v1614 = vunpack.c.l.b16 %v586
  %v1615 = vunpack.c.l.b16 %v587
  %v1616 = vunpack.c.l.b16 %v588
  %v1617 = vunpack.c.l.b16 %v589
  %v1618 = vunpack.c.l.b16 %v590
  %v1619 = vunpack.c.l.b16 %v591
  %v1620 = vunpack.c.l.b16 %v592
  %v1621 = vunpack.c.l.b16 %v593
  %v1622 = vunpack.c.l.b16 %v594
  %v1623 = vunpack.c.l.b16 %v595
  %v1624 = vunpack.c.l.b16 %v596
  %v1625 = vunpack.c.l.b16 %v597
  %v1626 = vunpack.c.l.b16 %v598
  %v1627 = vunpack.c.l.b16 %v599
  %v1628 = vunpack.c.l.b16 %v600
  %v1629 = vunpack.c.l.b16 %v601
  %v1630 = vunpack.c.l.b16 %v602
  %v1631 = vunpack.c.l.b16 %v603
  %v1632 = vunpack.c.l.b16 %v604
  %v1633 = vunpack.c.l.b16 %v605
  %v1634 = vunpack.c.l.b16 %v606
  %v1635 = vunpack.c.l.b16 %v607
  %v1636 = vunpack.c.l.b16 %v608
  %v1637 = vunpack.c.l.b16 %v609
  %v1638 = vunpack.c.l.b16 %v610
  %v1639 = vunpack.c.l.b16 %v611
  %v1640 = vunpack.c.l.b16 %v612
  %v1641 = vunpack.c.l.b16 %v613
  %v1642 = vunpack.c.l.b16 %v614
  %v1643 = vunpack.c.l.b16 %v615
  %v1644 = vunpack.c.l.b16 %v616
  %v1645 = vunpack.c.l.b16 %v617
  %v1646 = vunpack.c.l.b16 %v618
  %v1647 = vunpack.c.l.b16 %v619
  %v1648 = vunpack.c.l.b16 %v620
  %v1649 = vunpack.c.l.b16 %v621
  %v1650 = vunpack.c.l.b16 %v622
  %v1651 = vunpack.c.l.b16 %v623
  %v1652 = vunpack.c.l.b16 %v624
  %v1653 = vunpack.c.l.b16 %v625
  %v1654 = vunpack.c.l.b16 %v626
  %v1655 = vunpack.c.l.b16 %v627
  %v1656 = vunpack.c.l.b16 %v628
  %v1657 = vunpack.c.l.b16 %v629
  %v1658 = vunpack.c.l.b16 %v630
  %v1659 = vunpack.c.l.b16 %v631
  %v1660 = vunpack.c.l.b16 %v632
  %v1661 = vunpack.c.l.b16 %v633
  %v1662 = vunpack.c.l.b16 %v634
  %v1663 = vunpack.c.l.b16 %v635
  %v1664 = vunpack.c.l.b16 %v636
  %v1665 = vunpack.c.l.b16 %v637
  %v1666 = vunpack.c.l.b16 %v638
  %v1667 = vunpack.c.l.b16 %v639
  %v1668 = vunpack.c.l.b16 %v640
  %v1669 = vunpack.c.l.b16 %v641
  %v1670 = vunpack.c.l.b16 %v642
  %v1671 = vunpack.c.l.b16 %v643
  %v1672 = vunpack.c.l.b16 %v644
  %v1673 = vunpack.c.l.b16 %v645
  %v1674 = vunpack.c.l.b16 %v646
  %v1675 = vunpack.c.l.b16 %v647
  %v1676 = vunpack.c.l.b16 %v648
  %v1677 = vunpack.c.l.b16 %v649
  %v1678 = vunpack.c.l.b16 %v650
  %v1679 = vunpack.c.l.b16 %v651
  %v1680 = vunpack.c.l.b16 %v652
  %v1681 = vunpack.c.l.b16 %v653
  %v1682 = vunpack.c.l.b16 %v654
  %v1683 = vunpack.c.l.b16 %v655
  %v1684 = vunpack.c.l.b16 %v656
  %v1685 = vunpack.c.l.b16 %v657
  %v1686 = vunpack.c.l.b16 %v658
  %v1687 = vunpack.c.l.b16 %v659
  %v1688 = vunpack.c.l.b16 %v660
  %v1689 = vunpack.c.l.b16 %v661
  %v1690 = vunpack.c.l.b16 %v662
  %v1691 = vunpack.c.l.b16 %v663
  %v1692 = vunpack.c.l.b16 %v664
  %v1693 = vunpack.c.l.b16 %v665
  %v1694 = vunpack.c.l.b16 %v666
  %v1695 = vunpack.c.l.b16 %v667
  %v1696 = vunpack.c.l.b16 %v668
  %v1697 = vunpack.c.l.b16 %v669
  %v1698 = vunpack.c.l.b16 %v670
  %v1699 = vunpack.c.l.b16 %v671
  %v1700 = vunpack.c.l.b16 %v672
  %v1701 = vunpack.c.l.b16 %v673
  %v1702 = vunpack.c.l.b16 %v674
  %v1703 = vunpack.c.l.b16 %v675
  %v1704 = vunpack.c.l.b16 %v676
  %v1705 = vunpack.c.l.b16 %v677
  %v1706 = vunpack.c.l.b16 %v678
  %v1707 = vunpack.c.l.b16 %v679
  %v1708 = vunpack.c.l.b16 %v680
  %v1709 = vunpack.c.l.b16 %v681
  %v1710 = vunpack.c.l.b16 %v682
  %v1711 = vunpack.c.l.b16 %v683
  %v1712 = vunpack.c.l.b16 %v684
  %v1713 = vunpack.c.l.b16 %v685
  %v1714 = vunpack.c.l.b16 %v686
  %v1715 = vunpack.c.l.b16 %v687
  %v1716 = vunpack.c.l.b16 %v688
  %v1717 = vunpack.c.l.b16 %v689
  %v1718 = vunpack.c.l.b16 %v690
  %v1719 = vunpack.c.l.b16 %v691
  %v1720 = vunpack.c.l.b16 %v692
  %v1721 = vunpack.c.l.b16 %v693
  %v1722 = vunpack.c.l.b16 %v694
  %v1723 = vunpack.c.l.b16 %v695
  %v1724 = vunpack.c.l.b16 %v696
  %v1725 = vunpack.c.l.b16 %v697
  %v1726 = vunpack.c.l.b16 %v698
  %v1727 = vunpack.c.l.b16 %v699
  %v1728 = vunpack.c.l.b16 %v700
  %v1729 = vunpack.c.l.b16 %v701
  %v1730 = vunpack.c.l.b16 %v702
  %v1731 = vunpack.c.l.b16 %v703
  %v1732 = vunpack.c.l.b16 %v704
  %v1733 = vunpack.c.l.b16 %v705
  %v1734 = vunpack.c.l.b16 %v706
  %v1735 = vunpack.c.l.b16 %v707
  %v1736 = vunpack.c.l.b16 %v708
  %v1737 = vunpack.c.l.b16 %v709
  %v1738 = vunpack.c.l.b16 %v710
  %v1739 = vunpack.c.l.b16 %v711
  %v1740 = vunpack.c.l.b16 %v712
  %v1741 = vunpack.c.l.b16 %v713
  %v1742 = vunpack.c.l.b16 %v714
  %v1743 = vunpack.c.l.b16 %v715
  %v1744 = vunpack.c.l.b16 %v716
  %v1745 = vunpack.c.l.b16 %v717
  %v1746 = vpack.c.b16 %v1235, %v1234
  %v1747 = vpack.c.b16 %v1237, %v1236
  %v1748 = vpack.c.b16 %v1239, %v1238
  %v1749 = vpack.c.b16 %v1241, %v1240
  %v1750 = vpack.c.b16 %v1243, %v1242
  %v1751 = vpack.c.b16 %v1245, %v1244
  %v1752 = vpack.c.b16 %v1247, %v1246
  %v1753 = vpack.c.b16 %v1249, %v1248
  %v1754 = vpack.c.b16 %v1251, %v1250
  %v1755 = vpack.c.b16 %v1253, %v1252
  %v1756 = vpack.c.b16 %v1255, %v1254
  %v1757 = vpack.c.b16 %v1257, %v1256
  %v1758 = vpack.c.b16 %v1259, %v1258
  %v1759 = vpack.c.b16 %v1261, %v1260
  %v1760 = vpack.c.b16 %v1263, %v1262
  %v1761 = vpack.c.b16 %v1265, %v1264
  %v1762 = vpack.c.b16 %v1267, %v1266
  %v1763 = vpack.c.b16 %v1269, %v1268
  %v1764 = vpack.c.b16 %v1271, %v1270
  %v1765 = vpack.c.b16 %v1273, %v1272
  %v1766 = vpack.c.b16 %v1275, %v1274
  %v1767 = vpack.c.b16 %v1277, %v1276
  %v1768 = vpack.c.b16 %v1279, %v1278
  %v1769 = vpack.c.b16 %v1281, %v1280
  %v1770 = vpack.c.b16 %v1283, %v1282
  %v1771 = vpack.c.b16 %v1285, %v1284
  %v1772 = vpack.c.b16 %v1287, %v1286
  %v1773 = vpack.c.b16 %v1289, %v1288
  %v1774 = vpack.c.b16 %v1291, %v1290
  %v1775 = vpack.c.b16 %v1293, %v1292
  %v1776 = vpack.c.b16 %v1295, %v1294
  %v1777 = vpack.c.b16 %v1297, %v1296
  %v1778 = vpack.c.b16 %v1299, %v1298
  %v1779 = vpack.c.b16 %v1301, %v1300
  %v1780 = vpack.c.b16 %v1303, %v1302
  %v1781 = vpack.c.b16 %v1305, %v1304
  %v1782 = vpack.c.b16 %v1307, %v1306
  %v1783 = vpack.c.b16 %v1309, %v1308
  %v1784 = vpack.c.b16 %v1311, %v1310
  %v1785 = vpack.c.b16 %v1313, %v1312
  %v1786 = vpack.c.b16 %v1315, %v1314
  %v1787 = vpack.c.b16 %v1317, %v1316
  %v1788 = vpack.c.b16 %v1319, %v1318
  %v1789 = vpack.c.b16 %v1321, %v1320
  %v1790 = vpack.c.b16 %v1323, %v1322
  %v1791 = vpack.c.b16 %v1325, %v1324
  %v1792 = vpack.c.b16 %v1327, %v1326
  %v1793 = vpack.c.b16 %v1329, %v1328
  %v1794 = vpack.c.b16 %v1331, %v1330
  %v1795 = vpack.c.b16 %v1333, %v1332
  %v1796 = vpack.c.b16 %v1335, %v1334
  %v1797 = vpack.c.b16 %v1337, %v1336
  %v1798 = vpack.c.b16 %v1339, %v1338
  %v1799 = vpack.c.b16 %v1341, %v1340
  %v1800 = vpack.c.b16 %v1343, %v1342
  %v1801 = vpack.c.b16 %v1345, %v1344
  %v1802 = vpack.c.b16 %v1347, %v1346
  %v1803 = vpack.c.b16 %v1349, %v1348
  %v1804 = vpack.c.b16 %v1351, %v1350
  %v1805 = vpack.c.b16 %v1353, %v1352
  %v1806 = vpack.c.b16 %v1355, %v1354
  %v1807 = vpack.c.b16 %v1357, %v1356
  %v1808 = vpack.c.b16 %v1359, %v1358
  %v1809 = vpack.c.b16 %v1361, %v1360
  %v1810 = vpack.c.b16 %v1363, %v1362
  %v1811 = vpack.c.b16 %v1365, %v1364
  %v1812 = vpack.c.b16 %v1367, %v1366
  %v1813 = vpack.c.b16 %v1369, %v1368
  %v1814 = vpack.c.b16 %v1371, %v1370
  %v1815 = vpack.c.b16 %v1373, %v1372
  %v1816 = vpack.c.b16 %v1375, %v1374
  %v1817 = vpack.c.b16 %v1377, %v1376
  %v1818 = vpack.c.b16 %v1379, %v1378
  %v1819 = vpack.c.b16 %v1381, %v1380
  %v1820 = vpack.c.b16 %v1383, %v1382
  %v1821 = vpack.c.b16 %v1385, %v1384
  %v1822 = vpack.c.b16 %v1387, %v1386
  %v1823 = vpack.c.b16 %v1389, %v1388
  %v1824 = vpack.c.b16 %v1391, %v1390
  %v1825 = vpack.c.b16 %v1393, %v1392
  %v1826 = vpack.c.b16 %v1395, %v1394
  %v1827 = vpack.c.b16 %v1397, %v1396
  %v1828 = vpack.c.b16 %v1399, %v1398
  %v1829 = vpack.c.b16 %v1401, %v1400
  %v1830 = vpack.c.b16 %v1403, %v1402
  %v1831 = vpack.c.b16 %v1405, %v1404
  %v1832 = vpack.c.b16 %v1407, %v1406
  %v1833 = vpack.c.b16 %v1409, %v1408
  %v1834 = vpack.c.b16 %v1411, %v1410
  %v1835 = vpack.c.b16 %v1413, %v1412
  %v1836 = vpack.c.b16 %v1415, %v1414
  %v1837 = vpack.c.b16 %v1417, %v1416
  %v1838 = vpack.c.b16 %v1419, %v1418
  %v1839 = vpack.c.b16 %v1421, %v1420
  %v1840 = vpack.c.b16 %v1423, %v1422
  %v1841 = vpack.c.b16 %v1425, %v1424
  %v1842 = vpack.c.b16 %v1427, %v1426
  %v1843 = vpack.c.b16 %v1429, %v1428
  %v1844 = vpack.c.b16 %v1431, %v1430
  %v1845 = vpack.c.b16 %v1433, %v1432
  %v1846 = vpack.c.b16 %v1435, %v1434
  %v1847 = vpack.c.b16 %v1437, %v1436
  %v1848 = vpack.c.b16 %v1439, %v1438
  %v1849 = vpack.c.b16 %v1441, %v1440
  %v1850 = vpack.c.b16 %v1443, %v1442
  %v1851 = vpack.c.b16 %v1445, %v1444
  %v1852 = vpack.c.b16 %v1447, %v1446
  %v1853 = vpack.c.b16 %v1449, %v1448
  %v1854 = vpack.c.b16 %v1451, %v1450
  %v1855 = vpack.c.b16 %v1453, %v1452
  %v1856 = vpack.c.b16 %v1455, %v1454
  %v1857 = vpack.c.b16 %v1457, %v1456
  %v1858 = vpack.c.b16 %v1459, %v1458
  %v1859 = vpack.c.b16 %v1461, %v1460
  %v1860 = vpack.c.b16 %v1463, %v1462
  %v1861 = vpack.c.b16 %v1465, %v1464
  %v1862 = vpack.c.b16 %v1467, %v1466
  %v1863 = vpack.c.b16 %v1469, %v1468
  %v1864 = vpack.c.b16 %v1471, %v1470
  %v1865 = vpack.c.b16 %v1473, %v1472
  %v1866 = vpack.c.b16 %v1475, %v1474
  %v1867 = vpack.c.b16 %v1477, %v1476
  %v1868 = vpack.c.b16 %v1479, %v1478
  %v1869 = vpack.c.b16 %v1481, %v1480
  %v1870 = vpack.c.b16 %v1483, %v1482
  %v1871 = vpack.c.b16 %v1485, %v1484
  %v1872 = vpack.c.b16 %v1487, %v1486
  %v1873 = vpack.c.b16 %v1489, %v1488
  %v1874 = vpack.c.b16 %v1491, %v1490
  %v1875 = vpack.c.b16 %v1493, %v1492
  %v1876 = vpack.c.b16 %v1495, %v1494
  %v1877 = vpack.c.b16 %v1497, %v1496
  %v1878 = vpack.c.b16 %v1499, %v1498
  %v1879 = vpack.c.b16 %v1501, %v1500
  %v1880 = vpack.c.b16 %v1503, %v1502
  %v1881 = vpack.c.b16 %v1505, %v1504
  %v1882 = vpack.c.b16 %v1507, %v1506
  %v1883 = vpack.c.b16 %v1509, %v1508
  %v1884 = vpack.c.b16 %v1511, %v1510
  %v1885 = vpack.c.b16 %v1513, %v1512
  %v1886 = vpack.c.b16 %v1515, %v1514
  %v1887 = vpack.c.b16 %v1517, %v1516
  %v1888 = vpack.c.b16 %v1519, %v1518
  %v1889 = vpack.c.b16 %v1521, %v1520
  %v1890 = vpack.c.b16 %v1523, %v1522
  %v1891 = vpack.c.b16 %v1525, %v1524
  %v1892 = vpack.c.b16 %v1527, %v1526
  %v1893 = vpack.c.b16 %v1529, %v1528
  %v1894 = vpack.c.b16 %v1531, %v1530
  %v1895 = vpack.c.b16 %v1533, %v1532
  %v1896 = vpack.c.b16 %v1535, %v1534
  %v1897 = vpack.c.b16 %v1537, %v1536
  %v1898 = vpack.c.b16 %v1539, %v1538
  %v1899 = vpack.c.b16 %v1541, %v1540
  %v1900 = vpack.c.b16 %v1543, %v1542
  %v1901 = vpack.c.b16 %v1545, %v1544
  %v1902 = vpack.c.b16 %v1547, %v1546
  %v1903 = vpack.c.b16 %v1549, %v1548
  %v1904 = vpack.c.b16 %v1551, %v1550
  %v1905 = vpack.c.b16 %v1553, %v1552
  %v1906 = vpack.c.b16 %v1555, %v1554
  %v1907 = vpack.c.b16 %v1557, %v1556
  %v1908 = vpack.c.b16 %v1559, %v1558
  %v1909 = vpack.c.b16 %v1561, %v1560
  %v1910 = vpack.c.b16 %v1563, %v1562
  %v1911 = vpack.c.b16 %v1565, %v1564
  %v1912 = vpack.c.b16 %v1567, %v1566
  %v1913 = vpack.c.b16 %v1569, %v1568
  %v1914 = vpack.c.b16 %v1571, %v1570
  %v1915 = vpack.c.b16 %v1573, %v1572
  %v1916 = vpack.c.b16 %v1575, %v1574
  %v1917 = vpack.c.b16 %v1577, %v1576
  %v1918 = vpack.c.b16 %v1579, %v1578
  %v1919 = vpack.c.b16 %v1581, %v1580
  %v1920 = vpack.c.b16 %v1583, %v1582
  %v1921 = vpack.c.b16 %v1585, %v1584
  %v1922 = vpack.c.b16 %v1587, %v1586
  %v1923 = vpack.c.b16 %v1589, %v1588
  %v1924 = vpack.c.b16 %v1591, %v1590
  %v1925 = vpack.c.b16 %v1593, %v1592
  %v1926 = vpack.c.b16 %v1595, %v1594
  %v1927 = vpack.c.b16 %v1597, %v1596
  %v1928 = vpack.c.b16 %v1599, %v1598
  %v1929 = vpack.c.b16 %v1601, %v1600
  %v1930 = vpack.c.b16 %v1603, %v1602
  %v1931 = vpack.c.b16 %v1605, %v1604
  %v1932 = vpack.c.b16 %v1607, %v1606
  %v1933 = vpack.c.b16 %v1609, %v1608
  %v1934 = vpack.c.b16 %v1611, %v1610
  %v1935 = vpack.c.b16 %v1613, %v1612
  %v1936 = vpack.c.b16 %v1615, %v1614
  %v1937 = vpack.c.b16 %v1617, %v1616
  %v1938 = vpack.c.b16 %v1619, %v1618
  %v1939 = vpack.c.b16 %v1621, %v1620
  %v1940 = vpack.c.b16 %v1623, %v1622
  %v1941 = vpack.c.b16 %v1625, %v1624
  %v1942 = vpack.c.b16 %v1627, %v1626
  %v1943 = vpack.c.b16 %v1629, %v1628
  %v1944 = vpack.c.b16 %v1631, %v1630
  %v1945 = vpack.c.b16 %v1633, %v1632
  %v1946 = vpack.c.b16 %v1635, %v1634
  %v1947 = vpack.c.b16 %v1637, %v1636
  %v1948 = vpack.c.b16 %v1639, %v1638
  %v1949 = vpack.c.b16 %v1641, %v1640
  %v1950 = vpack.c.b16 %v1643, %v1642
  %v1951 = vpack.c.b16 %v1645, %v1644
  %v1952 = vpack.c.b16 %v1647, %v1646
  %v1953 = vpack.c.b16 %v1649, %v1648
  %v1954 = vpack.c.b16 %v1651, %v1650
  %v1955 = vpack.c.b16 %v1653, %v1652
  %v1956 = vpack.c.b16 %v1655, %v1654
  %v1957 = vpack.c.b16 %v1657, %v1656
  %v1958 = vpack.c.b16 %v1659, %v1658
  %v1959 = vpack.c.b16 %v1661, %v1660
  %v1960 = vpack.c.b16 %v1663, %v1662
  %v1961 = vpack.c.b16 %v1665, %v1664
  %v1962 = vpack.c.b16 %v1667, %v1666
  %v1963 = vpack.c.b16 %v1669, %v1668
  %v1964 = vpack.c.b16 %v1671, %v1670
  %v1965 = vpack.c.b16 %v1673, %v1672
  %v1966 = vpack.c.b16 %v1675, %v1674
  %v1967 = vpack.c.b16 %v1677, %v1676
  %v1968 = vpack.c.b16 %v1679, %v1678
  %v1969 = vpack.c.b16 %v1681, %v1680
  %v1970 = vpack.c.b16 %v1683, %v1682
  %v1971 = vpack.c.b16 %v1685, %v1684
  %v1972 = vpack.c.b16 %v1687, %v1686
  %v1973 = vpack.c.b16 %v1689, %v1688
  %v1974 = vpack.c.b16 %v1691, %v1690
  %v1975 = vpack.c.b16 %v1693, %v1692
  %v1976 = vpack.c.b16 %v1695, %v1694
  %v1977 = vpack.c.b16 %v1697, %v1696
  %v1978 = vpack.c.b16 %v1699, %v1698
  %v1979 = vpack.c.b16 %v1701, %v1700
  %v1980 = vpack.c.b16 %v1703, %v1702
  %v1981 = vpack.c.b16 %v1705, %v1704
  %v1982 = vpack.c.b16 %v1707, %v1706
  %v1983 = vpack.c.b16 %v1709, %v1708
  %v1984 = vpack.c.b16 %v1711, %v1710
  %v1985 = vpack.c.b16 %v1713, %v1712
  %v1986 = vpack.c.b16 %v1715, %v1714
  %v1987 = vpack.c.b16 %v1717, %v1716
  %v1988 = vpack.c.b16 %v1719, %v1718
  %v1989 = vpack.c.b16 %v1721, %v1720
  %v1990 = vpack.c.b16 %v1723, %v1722
  %v1991 = vpack.c.b16 %v1725, %v1724
  %v1992 = vpack.c.b16 %v1727, %v1726
  %v1993 = vpack.c.b16 %v1729, %v1728
  %v1994 = vpack.c.b16 %v1731, %v1730
  %v1995 = vpack.c.b16 %v1733, %v1732
  %v1996 = vpack.c.b16 %v1735, %v1734
  %v1997 = vpack.c.b16 %v1737, %v1736
  %v1998 = vpack.c.b16 %v1739, %v1738
  %v1999 = vpack.c.b16 %v1741, %v1740
  %v2000 = vpack.c.b16 %v1743, %v1742
  %v2001 = vpack.c.b16 %v1745, %v1744
  %2258 = vmatpush.bf16.msra.mxu0 %v1753
  %2259 = vmatpush.bf16.msra.mxu0 %v1752
  %2260 = vmatpush.bf16.msra.mxu0 %v1751
  %2261 = vmatpush.bf16.msra.mxu0 %v1750
  %2262 = vmatpush.bf16.msra.mxu0 %v1749
  %2263 = vmatpush.bf16.msra.mxu0 %v1748
  %2264 = vmatpush.bf16.msra.mxu0 %v1747
  %2265 = vmatpush.bf16.msra.mxu0 %v1746
  %2266 = vmatmul.bf16.gmra.mxu0 %v142
  %v2267 = vpop.f32.mrf.mxu0
  %v2268 = vadd.f32 %v720, %v2267
  %v2269 = vpop.f32.mrf.mxu0
  %v2270 = vadd.f32 %v720, %v2269
  %2271 = vmatmul.bf16.gmra.mxu0 %v174
  %v2272 = vpop.f32.mrf.mxu0
  %v2273 = vadd.f32 %v720, %v2272
  %v2274 = vpop.f32.mrf.mxu0
  %v2275 = vadd.f32 %v720, %v2274
  %2276 = vdwg.mxu0
  %2277 = vmatpush.bf16.msra.mxu0 %v1761
  %2278 = vmatpush.bf16.msra.mxu0 %v1760
  %2279 = vmatpush.bf16.msra.mxu0 %v1759
  %2280 = vmatpush.bf16.msra.mxu0 %v1758
  %2281 = vmatpush.bf16.msra.mxu0 %v1757
  %2282 = vmatpush.bf16.msra.mxu0 %v1756
  %2283 = vmatpush.bf16.msra.mxu0 %v1755
  %2284 = vmatpush.bf16.msra.mxu0 %v1754
  %2285 = vmatmul.bf16.gmra.mxu0 %v143
  %v2286 = vpop.f32.mrf.mxu0
  %v2287 = vadd.f32 %v2268, %v2286
  %v2288 = vpop.f32.mrf.mxu0
  %v2289 = vadd.f32 %v2270, %v2288
  %2290 = vmatmul.bf16.gmra.mxu0 %v175
  %v2291 = vpop.f32.mrf.mxu0
  %v2292 = vadd.f32 %v2273, %v2291
  %v2293 = vpop.f32.mrf.mxu0
  %v2294 = vadd.f32 %v2275, %v2293
  %2295 = vdwg.mxu0
  %2296 = vmatpush.bf16.msra.mxu0 %v1769
  %2297 = vmatpush.bf16.msra.mxu0 %v1768
  %2298 = vmatpush.bf16.msra.mxu0 %v1767
  %2299 = vmatpush.bf16.msra.mxu0 %v1766
  %2300 = vmatpush.bf16.msra.mxu0 %v1765
  %2301 = vmatpush.bf16.msra.mxu0 %v1764
  %2302 = vmatpush.bf16.msra.mxu0 %v1763
  %2303 = vmatpush.bf16.msra.mxu0 %v1762
  %2304 = vmatmul.bf16.gmra.mxu0 %v144
  %v2305 = vpop.f32.mrf.mxu0
  %v2306 = vadd.f32 %v2287, %v2305
  %v2307 = vpop.f32.mrf.mxu0
  %v2308 = vadd.f32 %v2289, %v2307
  %2309 = vmatmul.bf16.gmra.mxu0 %v176
  %v2310 = vpop.f32.mrf.mxu0
  %v2311 = vadd.f32 %v2292, %v2310
  %v2312 = vpop.f32.mrf.mxu0
  %v2313 = vadd.f32 %v2294, %v2312
  %2314 = vdwg.mxu0
  %2315 = vmatpush.bf16.msra.mxu0 %v1777
  %2316 = vmatpush.bf16.msra.mxu0 %v1776
  %2317 = vmatpush.bf16.msra.mxu0 %v1775
  %2318 = vmatpush.bf16.msra.mxu0 %v1774
  %2319 = vmatpush.bf16.msra.mxu0 %v1773
  %2320 = vmatpush.bf16.msra.mxu0 %v1772
  %2321 = vmatpush.bf16.msra.mxu0 %v1771
  %2322 = vmatpush.bf16.msra.mxu0 %v1770
  %2323 = vmatmul.bf16.gmra.mxu0 %v145
  %v2324 = vpop.f32.mrf.mxu0
  %v2325 = vadd.f32 %v2306, %v2324
  %v2326 = vpop.f32.mrf.mxu0
  %v2327 = vadd.f32 %v2308, %v2326
  %2328 = vmatmul.bf16.gmra.mxu0 %v177
  %v2329 = vpop.f32.mrf.mxu0
  %v2330 = vadd.f32 %v2311, %v2329
  %v2331 = vpop.f32.mrf.mxu0
  %v2332 = vadd.f32 %v2313, %v2331
  %2333 = vdwg.mxu0
  %2334 = vmatpush.bf16.msra.mxu0 %v1785
  %2335 = vmatpush.bf16.msra.mxu0 %v1784
  %2336 = vmatpush.bf16.msra.mxu0 %v1783
  %2337 = vmatpush.bf16.msra.mxu0 %v1782
  %2338 = vmatpush.bf16.msra.mxu0 %v1781
  %2339 = vmatpush.bf16.msra.mxu0 %v1780
  %2340 = vmatpush.bf16.msra.mxu0 %v1779
  %2341 = vmatpush.bf16.msra.mxu0 %v1778
  %2342 = vmatmul.bf16.gmra.mxu0 %v146
  %v2343 = vpop.f32.mrf.mxu0
  %v2344 = vadd.f32 %v2325, %v2343
  %v2345 = vpop.f32.mrf.mxu0
  %v2346 = vadd.f32 %v2327, %v2345
  %2347 = vmatmul.bf16.gmra.mxu0 %v178
  %v2348 = vpop.f32.mrf.mxu0
  %v2349 = vadd.f32 %v2330, %v2348
  %v2350 = vpop.f32.mrf.mxu0
  %v2351 = vadd.f32 %v2332, %v2350
  %2352 = vdwg.mxu0
  %2353 = vmatpush.bf16.msra.mxu0 %v1793
  %2354 = vmatpush.bf16.msra.mxu0 %v1792
  %2355 = vmatpush.bf16.msra.mxu0 %v1791
  %2356 = vmatpush.bf16.msra.mxu0 %v1790
  %2357 = vmatpush.bf16.msra.mxu0 %v1789
  %2358 = vmatpush.bf16.msra.mxu0 %v1788
  %2359 = vmatpush.bf16.msra.mxu0 %v1787
  %2360 = vmatpush.bf16.msra.mxu0 %v1786
  %2361 = vmatmul.bf16.gmra.mxu0 %v147
  %v2362 = vpop.f32.mrf.mxu0
  %v2363 = vadd.f32 %v2344, %v2362
  %v2364 = vpop.f32.mrf.mxu0
  %v2365 = vadd.f32 %v2346, %v2364
  %2366 = vmatmul.bf16.gmra.mxu0 %v179
  %v2367 = vpop.f32.mrf.mxu0
  %v2368 = vadd.f32 %v2349, %v2367
  %v2369 = vpop.f32.mrf.mxu0
  %v2370 = vadd.f32 %v2351, %v2369
  %2371 = vdwg.mxu0
  %2372 = vmatpush.bf16.msra.mxu0 %v1801
  %2373 = vmatpush.bf16.msra.mxu0 %v1800
  %2374 = vmatpush.bf16.msra.mxu0 %v1799
  %2375 = vmatpush.bf16.msra.mxu0 %v1798
  %2376 = vmatpush.bf16.msra.mxu0 %v1797
  %2377 = vmatpush.bf16.msra.mxu0 %v1796
  %2378 = vmatpush.bf16.msra.mxu0 %v1795
  %2379 = vmatpush.bf16.msra.mxu0 %v1794
  %2380 = vmatmul.bf16.gmra.mxu0 %v148
  %v2381 = vpop.f32.mrf.mxu0
  %v2382 = vadd.f32 %v2363, %v2381
  %v2383 = vpop.f32.mrf.mxu0
  %v2384 = vadd.f32 %v2365, %v2383
  %2385 = vmatmul.bf16.gmra.mxu0 %v180
  %v2386 = vpop.f32.mrf.mxu0
  %v2387 = vadd.f32 %v2368, %v2386
  %v2388 = vpop.f32.mrf.mxu0
  %v2389 = vadd.f32 %v2370, %v2388
  %2390 = vdwg.mxu0
  %2391 = vmatpush.bf16.msra.mxu0 %v1809
  %2392 = vmatpush.bf16.msra.mxu0 %v1808
  %2393 = vmatpush.bf16.msra.mxu0 %v1807
  %2394 = vmatpush.bf16.msra.mxu0 %v1806
  %2395 = vmatpush.bf16.msra.mxu0 %v1805
  %2396 = vmatpush.bf16.msra.mxu0 %v1804
  %2397 = vmatpush.bf16.msra.mxu0 %v1803
  %2398 = vmatpush.bf16.msra.mxu0 %v1802
  %2399 = vmatmul.bf16.gmra.mxu0 %v149
  %v2400 = vpop.f32.mrf.mxu0
  %v2401 = vadd.f32 %v2382, %v2400
  %v2402 = vpop.f32.mrf.mxu0
  %v2403 = vadd.f32 %v2384, %v2402
  %2404 = vmatmul.bf16.gmra.mxu0 %v181
  %v2405 = vpop.f32.mrf.mxu0
  %v2406 = vadd.f32 %v2387, %v2405
  %v2407 = vpop.f32.mrf.mxu0
  %v2408 = vadd.f32 %v2389, %v2407
  %2409 = vdwg.mxu0
  %2410 = vmatpush.bf16.msra.mxu0 %v1817
  %2411 = vmatpush.bf16.msra.mxu0 %v1816
  %2412 = vmatpush.bf16.msra.mxu0 %v1815
  %2413 = vmatpush.bf16.msra.mxu0 %v1814
  %2414 = vmatpush.bf16.msra.mxu0 %v1813
  %2415 = vmatpush.bf16.msra.mxu0 %v1812
  %2416 = vmatpush.bf16.msra.mxu0 %v1811
  %2417 = vmatpush.bf16.msra.mxu0 %v1810
  %2418 = vmatmul.bf16.gmra.mxu0 %v150
  %v2419 = vpop.f32.mrf.mxu0
  %v2420 = vadd.f32 %v2401, %v2419
  %v2421 = vpop.f32.mrf.mxu0
  %v2422 = vadd.f32 %v2403, %v2421
  %2423 = vmatmul.bf16.gmra.mxu0 %v182
  %v2424 = vpop.f32.mrf.mxu0
  %v2425 = vadd.f32 %v2406, %v2424
  %v2426 = vpop.f32.mrf.mxu0
  %v2427 = vadd.f32 %v2408, %v2426
  %2428 = vdwg.mxu0
  %2429 = vmatpush.bf16.msra.mxu0 %v1825
  %2430 = vmatpush.bf16.msra.mxu0 %v1824
  %2431 = vmatpush.bf16.msra.mxu0 %v1823
  %2432 = vmatpush.bf16.msra.mxu0 %v1822
  %2433 = vmatpush.bf16.msra.mxu0 %v1821
  %2434 = vmatpush.bf16.msra.mxu0 %v1820
  %2435 = vmatpush.bf16.msra.mxu0 %v1819
  %2436 = vmatpush.bf16.msra.mxu0 %v1818
  %2437 = vmatmul.bf16.gmra.mxu0 %v151
  %v2438 = vpop.f32.mrf.mxu0
  %v2439 = vadd.f32 %v2420, %v2438
  %v2440 = vpop.f32.mrf.mxu0
  %v2441 = vadd.f32 %v2422, %v2440
  %2442 = vmatmul.bf16.gmra.mxu0 %v183
  %v2443 = vpop.f32.mrf.mxu0
  %v2444 = vadd.f32 %v2425, %v2443
  %v2445 = vpop.f32.mrf.mxu0
  %v2446 = vadd.f32 %v2427, %v2445
  %2447 = vdwg.mxu0
  %2448 = vmatpush.bf16.msra.mxu0 %v1833
  %2449 = vmatpush.bf16.msra.mxu0 %v1832
  %2450 = vmatpush.bf16.msra.mxu0 %v1831
  %2451 = vmatpush.bf16.msra.mxu0 %v1830
  %2452 = vmatpush.bf16.msra.mxu0 %v1829
  %2453 = vmatpush.bf16.msra.mxu0 %v1828
  %2454 = vmatpush.bf16.msra.mxu0 %v1827
  %2455 = vmatpush.bf16.msra.mxu0 %v1826
  %2456 = vmatmul.bf16.gmra.mxu0 %v152
  %v2457 = vpop.f32.mrf.mxu0
  %v2458 = vadd.f32 %v2439, %v2457
  %v2459 = vpop.f32.mrf.mxu0
  %v2460 = vadd.f32 %v2441, %v2459
  %2461 = vmatmul.bf16.gmra.mxu0 %v184
  %v2462 = vpop.f32.mrf.mxu0
  %v2463 = vadd.f32 %v2444, %v2462
  %v2464 = vpop.f32.mrf.mxu0
  %v2465 = vadd.f32 %v2446, %v2464
  %2466 = vdwg.mxu0
  %2467 = vmatpush.bf16.msra.mxu0 %v1841
  %2468 = vmatpush.bf16.msra.mxu0 %v1840
  %2469 = vmatpush.bf16.msra.mxu0 %v1839
  %2470 = vmatpush.bf16.msra.mxu0 %v1838
  %2471 = vmatpush.bf16.msra.mxu0 %v1837
  %2472 = vmatpush.bf16.msra.mxu0 %v1836
  %2473 = vmatpush.bf16.msra.mxu0 %v1835
  %2474 = vmatpush.bf16.msra.mxu0 %v1834
  %2475 = vmatmul.bf16.gmra.mxu0 %v153
  %v2476 = vpop.f32.mrf.mxu0
  %v2477 = vadd.f32 %v2458, %v2476
  %v2478 = vpop.f32.mrf.mxu0
  %v2479 = vadd.f32 %v2460, %v2478
  %2480 = vmatmul.bf16.gmra.mxu0 %v185
  %v2481 = vpop.f32.mrf.mxu0
  %v2482 = vadd.f32 %v2463, %v2481
  %v2483 = vpop.f32.mrf.mxu0
  %v2484 = vadd.f32 %v2465, %v2483
  %2485 = vdwg.mxu0
  %2486 = vmatpush.bf16.msra.mxu0 %v1849
  %2487 = vmatpush.bf16.msra.mxu0 %v1848
  %2488 = vmatpush.bf16.msra.mxu0 %v1847
  %2489 = vmatpush.bf16.msra.mxu0 %v1846
  %2490 = vmatpush.bf16.msra.mxu0 %v1845
  %2491 = vmatpush.bf16.msra.mxu0 %v1844
  %2492 = vmatpush.bf16.msra.mxu0 %v1843
  %2493 = vmatpush.bf16.msra.mxu0 %v1842
  %2494 = vmatmul.bf16.gmra.mxu0 %v154
  %v2495 = vpop.f32.mrf.mxu0
  %v2496 = vadd.f32 %v2477, %v2495
  %v2497 = vpop.f32.mrf.mxu0
  %v2498 = vadd.f32 %v2479, %v2497
  %2499 = vmatmul.bf16.gmra.mxu0 %v186
  %v2500 = vpop.f32.mrf.mxu0
  %v2501 = vadd.f32 %v2482, %v2500
  %v2502 = vpop.f32.mrf.mxu0
  %v2503 = vadd.f32 %v2484, %v2502
  %2504 = vdwg.mxu0
  %2505 = vmatpush.bf16.msra.mxu0 %v1857
  %2506 = vmatpush.bf16.msra.mxu0 %v1856
  %2507 = vmatpush.bf16.msra.mxu0 %v1855
  %2508 = vmatpush.bf16.msra.mxu0 %v1854
  %2509 = vmatpush.bf16.msra.mxu0 %v1853
  %2510 = vmatpush.bf16.msra.mxu0 %v1852
  %2511 = vmatpush.bf16.msra.mxu0 %v1851
  %2512 = vmatpush.bf16.msra.mxu0 %v1850
  %2513 = vmatmul.bf16.gmra.mxu0 %v155
  %v2514 = vpop.f32.mrf.mxu0
  %v2515 = vadd.f32 %v2496, %v2514
  %v2516 = vpop.f32.mrf.mxu0
  %v2517 = vadd.f32 %v2498, %v2516
  %2518 = vmatmul.bf16.gmra.mxu0 %v187
  %v2519 = vpop.f32.mrf.mxu0
  %v2520 = vadd.f32 %v2501, %v2519
  %v2521 = vpop.f32.mrf.mxu0
  %v2522 = vadd.f32 %v2503, %v2521
  %2523 = vdwg.mxu0
  %2524 = vmatpush.bf16.msra.mxu0 %v1865
  %2525 = vmatpush.bf16.msra.mxu0 %v1864
  %2526 = vmatpush.bf16.msra.mxu0 %v1863
  %2527 = vmatpush.bf16.msra.mxu0 %v1862
  %2528 = vmatpush.bf16.msra.mxu0 %v1861
  %2529 = vmatpush.bf16.msra.mxu0 %v1860
  %2530 = vmatpush.bf16.msra.mxu0 %v1859
  %2531 = vmatpush.bf16.msra.mxu0 %v1858
  %2532 = vmatmul.bf16.gmra.mxu0 %v156
  %v2533 = vpop.f32.mrf.mxu0
  %v2534 = vadd.f32 %v2515, %v2533
  %v2535 = vpop.f32.mrf.mxu0
  %v2536 = vadd.f32 %v2517, %v2535
  %2537 = vmatmul.bf16.gmra.mxu0 %v188
  %v2538 = vpop.f32.mrf.mxu0
  %v2539 = vadd.f32 %v2520, %v2538
  %v2540 = vpop.f32.mrf.mxu0
  %v2541 = vadd.f32 %v2522, %v2540
  %2542 = vdwg.mxu0
  %2543 = vmatpush.bf16.msra.mxu0 %v1873
  %2544 = vmatpush.bf16.msra.mxu0 %v1872
  %2545 = vmatpush.bf16.msra.mxu0 %v1871
  %2546 = vmatpush.bf16.msra.mxu0 %v1870
  %2547 = vmatpush.bf16.msra.mxu0 %v1869
  %2548 = vmatpush.bf16.msra.mxu0 %v1868
  %2549 = vmatpush.bf16.msra.mxu0 %v1867
  %2550 = vmatpush.bf16.msra.mxu0 %v1866
  %2551 = vmatmul.bf16.gmra.mxu0 %v157
  %v2552 = vpop.f32.mrf.mxu0
  %v2553 = vadd.f32 %v2534, %v2552
  %v2554 = vpop.f32.mrf.mxu0
  %v2555 = vadd.f32 %v2536, %v2554
  %2556 = vmatmul.bf16.gmra.mxu0 %v189
  %v2557 = vpop.f32.mrf.mxu0
  %v2558 = vadd.f32 %v2539, %v2557
  %v2559 = vpop.f32.mrf.mxu0
  %v2560 = vadd.f32 %v2541, %v2559
  %2561 = vdwg.mxu0
  %2562 = vmatpush.bf16.msra.mxu0 %v1881
  %2563 = vmatpush.bf16.msra.mxu0 %v1880
  %2564 = vmatpush.bf16.msra.mxu0 %v1879
  %2565 = vmatpush.bf16.msra.mxu0 %v1878
  %2566 = vmatpush.bf16.msra.mxu0 %v1877
  %2567 = vmatpush.bf16.msra.mxu0 %v1876
  %2568 = vmatpush.bf16.msra.mxu0 %v1875
  %2569 = vmatpush.bf16.msra.mxu0 %v1874
  %2570 = vmatmul.bf16.gmra.mxu0 %v158
  %v2571 = vpop.f32.mrf.mxu0
  %v2572 = vadd.f32 %v2553, %v2571
  %v2573 = vpop.f32.mrf.mxu0
  %v2574 = vadd.f32 %v2555, %v2573
  %2575 = vmatmul.bf16.gmra.mxu0 %v190
  %v2576 = vpop.f32.mrf.mxu0
  %v2577 = vadd.f32 %v2558, %v2576
  %v2578 = vpop.f32.mrf.mxu0
  %v2579 = vadd.f32 %v2560, %v2578
  %2580 = vdwg.mxu0
  %2581 = vmatpush.bf16.msra.mxu0 %v1889
  %2582 = vmatpush.bf16.msra.mxu0 %v1888
  %2583 = vmatpush.bf16.msra.mxu0 %v1887
  %2584 = vmatpush.bf16.msra.mxu0 %v1886
  %2585 = vmatpush.bf16.msra.mxu0 %v1885
  %2586 = vmatpush.bf16.msra.mxu0 %v1884
  %2587 = vmatpush.bf16.msra.mxu0 %v1883
  %2588 = vmatpush.bf16.msra.mxu0 %v1882
  %2589 = vmatmul.bf16.gmra.mxu0 %v159
  %v2590 = vpop.f32.mrf.mxu0
  %v2591 = vadd.f32 %v2572, %v2590
  %v2592 = vpop.f32.mrf.mxu0
  %v2593 = vadd.f32 %v2574, %v2592
  %2594 = vmatmul.bf16.gmra.mxu0 %v191
  %v2595 = vpop.f32.mrf.mxu0
  %v2596 = vadd.f32 %v2577, %v2595
  %v2597 = vpop.f32.mrf.mxu0
  %v2598 = vadd.f32 %v2579, %v2597
  %2599 = vdwg.mxu0
  %2600 = vmatpush.bf16.msra.mxu0 %v1897
  %2601 = vmatpush.bf16.msra.mxu0 %v1896
  %2602 = vmatpush.bf16.msra.mxu0 %v1895
  %2603 = vmatpush.bf16.msra.mxu0 %v1894
  %2604 = vmatpush.bf16.msra.mxu0 %v1893
  %2605 = vmatpush.bf16.msra.mxu0 %v1892
  %2606 = vmatpush.bf16.msra.mxu0 %v1891
  %2607 = vmatpush.bf16.msra.mxu0 %v1890
  %2608 = vmatmul.bf16.gmra.mxu0 %v160
  %v2609 = vpop.f32.mrf.mxu0
  %v2610 = vadd.f32 %v2591, %v2609
  %v2611 = vpop.f32.mrf.mxu0
  %v2612 = vadd.f32 %v2593, %v2611
  %2613 = vmatmul.bf16.gmra.mxu0 %v192
  %v2614 = vpop.f32.mrf.mxu0
  %v2615 = vadd.f32 %v2596, %v2614
  %v2616 = vpop.f32.mrf.mxu0
  %v2617 = vadd.f32 %v2598, %v2616
  %2618 = vdwg.mxu0
  %2619 = vmatpush.bf16.msra.mxu0 %v1905
  %2620 = vmatpush.bf16.msra.mxu0 %v1904
  %2621 = vmatpush.bf16.msra.mxu0 %v1903
  %2622 = vmatpush.bf16.msra.mxu0 %v1902
  %2623 = vmatpush.bf16.msra.mxu0 %v1901
  %2624 = vmatpush.bf16.msra.mxu0 %v1900
  %2625 = vmatpush.bf16.msra.mxu0 %v1899
  %2626 = vmatpush.bf16.msra.mxu0 %v1898
  %2627 = vmatmul.bf16.gmra.mxu0 %v161
  %v2628 = vpop.f32.mrf.mxu0
  %v2629 = vadd.f32 %v2610, %v2628
  %v2630 = vpop.f32.mrf.mxu0
  %v2631 = vadd.f32 %v2612, %v2630
  %2632 = vmatmul.bf16.gmra.mxu0 %v193
  %v2633 = vpop.f32.mrf.mxu0
  %v2634 = vadd.f32 %v2615, %v2633
  %v2635 = vpop.f32.mrf.mxu0
  %v2636 = vadd.f32 %v2617, %v2635
  %2637 = vdwg.mxu0
  %2638 = vmatpush.bf16.msra.mxu0 %v1913
  %2639 = vmatpush.bf16.msra.mxu0 %v1912
  %2640 = vmatpush.bf16.msra.mxu0 %v1911
  %2641 = vmatpush.bf16.msra.mxu0 %v1910
  %2642 = vmatpush.bf16.msra.mxu0 %v1909
  %2643 = vmatpush.bf16.msra.mxu0 %v1908
  %2644 = vmatpush.bf16.msra.mxu0 %v1907
  %2645 = vmatpush.bf16.msra.mxu0 %v1906
  %2646 = vmatmul.bf16.gmra.mxu0 %v162
  %v2647 = vpop.f32.mrf.mxu0
  %v2648 = vadd.f32 %v2629, %v2647
  %v2649 = vpop.f32.mrf.mxu0
  %v2650 = vadd.f32 %v2631, %v2649
  %2651 = vmatmul.bf16.gmra.mxu0 %v194
  %v2652 = vpop.f32.mrf.mxu0
  %v2653 = vadd.f32 %v2634, %v2652
  %v2654 = vpop.f32.mrf.mxu0
  %v2655 = vadd.f32 %v2636, %v2654
  %2656 = vdwg.mxu0
  %2657 = vmatpush.bf16.msra.mxu0 %v1921
  %2658 = vmatpush.bf16.msra.mxu0 %v1920
  %2659 = vmatpush.bf16.msra.mxu0 %v1919
  %2660 = vmatpush.bf16.msra.mxu0 %v1918
  %2661 = vmatpush.bf16.msra.mxu0 %v1917
  %2662 = vmatpush.bf16.msra.mxu0 %v1916
  %2663 = vmatpush.bf16.msra.mxu0 %v1915
  %2664 = vmatpush.bf16.msra.mxu0 %v1914
  %2665 = vmatmul.bf16.gmra.mxu0 %v163
  %v2666 = vpop.f32.mrf.mxu0
  %v2667 = vadd.f32 %v2648, %v2666
  %v2668 = vpop.f32.mrf.mxu0
  %v2669 = vadd.f32 %v2650, %v2668
  %2670 = vmatmul.bf16.gmra.mxu0 %v195
  %v2671 = vpop.f32.mrf.mxu0
  %v2672 = vadd.f32 %v2653, %v2671
  %v2673 = vpop.f32.mrf.mxu0
  %v2674 = vadd.f32 %v2655, %v2673
  %2675 = vdwg.mxu0
  %2676 = vmatpush.bf16.msra.mxu0 %v1929
  %2677 = vmatpush.bf16.msra.mxu0 %v1928
  %2678 = vmatpush.bf16.msra.mxu0 %v1927
  %2679 = vmatpush.bf16.msra.mxu0 %v1926
  %2680 = vmatpush.bf16.msra.mxu0 %v1925
  %2681 = vmatpush.bf16.msra.mxu0 %v1924
  %2682 = vmatpush.bf16.msra.mxu0 %v1923
  %2683 = vmatpush.bf16.msra.mxu0 %v1922
  %2684 = vmatmul.bf16.gmra.mxu0 %v164
  %v2685 = vpop.f32.mrf.mxu0
  %v2686 = vadd.f32 %v2667, %v2685
  %v2687 = vpop.f32.mrf.mxu0
  %v2688 = vadd.f32 %v2669, %v2687
  %2689 = vmatmul.bf16.gmra.mxu0 %v196
  %v2690 = vpop.f32.mrf.mxu0
  %v2691 = vadd.f32 %v2672, %v2690
  %v2692 = vpop.f32.mrf.mxu0
  %v2693 = vadd.f32 %v2674, %v2692
  %2694 = vdwg.mxu0
  %2695 = vmatpush.bf16.msra.mxu0 %v1937
  %2696 = vmatpush.bf16.msra.mxu0 %v1936
  %2697 = vmatpush.bf16.msra.mxu0 %v1935
  %2698 = vmatpush.bf16.msra.mxu0 %v1934
  %2699 = vmatpush.bf16.msra.mxu0 %v1933
  %2700 = vmatpush.bf16.msra.mxu0 %v1932
  %2701 = vmatpush.bf16.msra.mxu0 %v1931
  %2702 = vmatpush.bf16.msra.mxu0 %v1930
  %2703 = vmatmul.bf16.gmra.mxu0 %v165
  %v2704 = vpop.f32.mrf.mxu0
  %v2705 = vadd.f32 %v2686, %v2704
  %v2706 = vpop.f32.mrf.mxu0
  %v2707 = vadd.f32 %v2688, %v2706
  %2708 = vmatmul.bf16.gmra.mxu0 %v197
  %v2709 = vpop.f32.mrf.mxu0
  %v2710 = vadd.f32 %v2691, %v2709
  %v2711 = vpop.f32.mrf.mxu0
  %v2712 = vadd.f32 %v2693, %v2711
  %2713 = vdwg.mxu0
  %2714 = vmatpush.bf16.msra.mxu0 %v1945
  %2715 = vmatpush.bf16.msra.mxu0 %v1944
  %2716 = vmatpush.bf16.msra.mxu0 %v1943
  %2717 = vmatpush.bf16.msra.mxu0 %v1942
  %2718 = vmatpush.bf16.msra.mxu0 %v1941
  %2719 = vmatpush.bf16.msra.mxu0 %v1940
  %2720 = vmatpush.bf16.msra.mxu0 %v1939
  %2721 = vmatpush.bf16.msra.mxu0 %v1938
  %2722 = vmatmul.bf16.gmra.mxu0 %v166
  %v2723 = vpop.f32.mrf.mxu0
  %v2724 = vadd.f32 %v2705, %v2723
  %v2725 = vpop.f32.mrf.mxu0
  %v2726 = vadd.f32 %v2707, %v2725
  %2727 = vmatmul.bf16.gmra.mxu0 %v198
  %v2728 = vpop.f32.mrf.mxu0
  %v2729 = vadd.f32 %v2710, %v2728
  %v2730 = vpop.f32.mrf.mxu0
  %v2731 = vadd.f32 %v2712, %v2730
  %2732 = vdwg.mxu0
  %2733 = vmatpush.bf16.msra.mxu0 %v1953
  %2734 = vmatpush.bf16.msra.mxu0 %v1952
  %2735 = vmatpush.bf16.msra.mxu0 %v1951
  %2736 = vmatpush.bf16.msra.mxu0 %v1950
  %2737 = vmatpush.bf16.msra.mxu0 %v1949
  %2738 = vmatpush.bf16.msra.mxu0 %v1948
  %2739 = vmatpush.bf16.msra.mxu0 %v1947
  %2740 = vmatpush.bf16.msra.mxu0 %v1946
  %2741 = vmatmul.bf16.gmra.mxu0 %v167
  %v2742 = vpop.f32.mrf.mxu0
  %v2743 = vadd.f32 %v2724, %v2742
  %v2744 = vpop.f32.mrf.mxu0
  %v2745 = vadd.f32 %v2726, %v2744
  %2746 = vmatmul.bf16.gmra.mxu0 %v199
  %v2747 = vpop.f32.mrf.mxu0
  %v2748 = vadd.f32 %v2729, %v2747
  %v2749 = vpop.f32.mrf.mxu0
  %v2750 = vadd.f32 %v2731, %v2749
  %2751 = vdwg.mxu0
  %2752 = vmatpush.bf16.msra.mxu0 %v1961
  %2753 = vmatpush.bf16.msra.mxu0 %v1960
  %2754 = vmatpush.bf16.msra.mxu0 %v1959
  %2755 = vmatpush.bf16.msra.mxu0 %v1958
  %2756 = vmatpush.bf16.msra.mxu0 %v1957
  %2757 = vmatpush.bf16.msra.mxu0 %v1956
  %2758 = vmatpush.bf16.msra.mxu0 %v1955
  %2759 = vmatpush.bf16.msra.mxu0 %v1954
  %2760 = vmatmul.bf16.gmra.mxu0 %v168
  %v2761 = vpop.f32.mrf.mxu0
  %v2762 = vadd.f32 %v2743, %v2761
  %v2763 = vpop.f32.mrf.mxu0
  %v2764 = vadd.f32 %v2745, %v2763
  %2765 = vmatmul.bf16.gmra.mxu0 %v200
  %v2766 = vpop.f32.mrf.mxu0
  %v2767 = vadd.f32 %v2748, %v2766
  %v2768 = vpop.f32.mrf.mxu0
  %v2769 = vadd.f32 %v2750, %v2768
  %2770 = vdwg.mxu0
  %2771 = vmatpush.bf16.msra.mxu0 %v1969
  %2772 = vmatpush.bf16.msra.mxu0 %v1968
  %2773 = vmatpush.bf16.msra.mxu0 %v1967
  %2774 = vmatpush.bf16.msra.mxu0 %v1966
  %2775 = vmatpush.bf16.msra.mxu0 %v1965
  %2776 = vmatpush.bf16.msra.mxu0 %v1964
  %2777 = vmatpush.bf16.msra.mxu0 %v1963
  %2778 = vmatpush.bf16.msra.mxu0 %v1962
  %2779 = vmatmul.bf16.gmra.mxu0 %v169
  %v2780 = vpop.f32.mrf.mxu0
  %v2781 = vadd.f32 %v2762, %v2780
  %v2782 = vpop.f32.mrf.mxu0
  %v2783 = vadd.f32 %v2764, %v2782
  %2784 = vmatmul.bf16.gmra.mxu0 %v201
  %v2785 = vpop.f32.mrf.mxu0
  %v2786 = vadd.f32 %v2767, %v2785
  %v2787 = vpop.f32.mrf.mxu0
  %v2788 = vadd.f32 %v2769, %v2787
  %2789 = vdwg.mxu0
  %2790 = vmatpush.bf16.msra.mxu0 %v1977
  %2791 = vmatpush.bf16.msra.mxu0 %v1976
  %2792 = vmatpush.bf16.msra.mxu0 %v1975
  %2793 = vmatpush.bf16.msra.mxu0 %v1974
  %2794 = vmatpush.bf16.msra.mxu0 %v1973
  %2795 = vmatpush.bf16.msra.mxu0 %v1972
  %2796 = vmatpush.bf16.msra.mxu0 %v1971
  %2797 = vmatpush.bf16.msra.mxu0 %v1970
  %2798 = vmatmul.bf16.gmra.mxu0 %v170
  %v2799 = vpop.f32.mrf.mxu0
  %v2800 = vadd.f32 %v2781, %v2799
  %v2801 = vpop.f32.mrf.mxu0
  %v2802 = vadd.f32 %v2783, %v2801
  %2803 = vmatmul.bf16.gmra.mxu0 %v202
  %v2804 = vpop.f32.mrf.mxu0
  %v2805 = vadd.f32 %v2786, %v2804
  %v2806 = vpop.f32.mrf.mxu0
  %v2807 = vadd.f32 %v2788, %v2806
  %2808 = vdwg.mxu0
  %2809 = vmatpush.bf16.msra.mxu0 %v1985
  %2810 = vmatpush.bf16.msra.mxu0 %v1984
  %2811 = vmatpush.bf16.msra.mxu0 %v1983
  %2812 = vmatpush.bf16.msra.mxu0 %v1982
  %2813 = vmatpush.bf16.msra.mxu0 %v1981
  %2814 = vmatpush.bf16.msra.mxu0 %v1980
  %2815 = vmatpush.bf16.msra.mxu0 %v1979
  %2816 = vmatpush.bf16.msra.mxu0 %v1978
  %2817 = vmatmul.bf16.gmra.mxu0 %v171
  %v2818 = vpop.f32.mrf.mxu0
  %v2819 = vadd.f32 %v2800, %v2818
  %v2820 = vpop.f32.mrf.mxu0
  %v2821 = vadd.f32 %v2802, %v2820
  %2822 = vmatmul.bf16.gmra.mxu0 %v203
  %v2823 = vpop.f32.mrf.mxu0
  %v2824 = vadd.f32 %v2805, %v2823
  %v2825 = vpop.f32.mrf.mxu0
  %v2826 = vadd.f32 %v2807, %v2825
  %2827 = vdwg.mxu0
  %2828 = vmatpush.bf16.msra.mxu0 %v1993
  %2829 = vmatpush.bf16.msra.mxu0 %v1992
  %2830 = vmatpush.bf16.msra.mxu0 %v1991
  %2831 = vmatpush.bf16.msra.mxu0 %v1990
  %2832 = vmatpush.bf16.msra.mxu0 %v1989
  %2833 = vmatpush.bf16.msra.mxu0 %v1988
  %2834 = vmatpush.bf16.msra.mxu0 %v1987
  %2835 = vmatpush.bf16.msra.mxu0 %v1986
  %2836 = vmatmul.bf16.gmra.mxu0 %v172
  %v2837 = vpop.f32.mrf.mxu0
  %v2838 = vadd.f32 %v2819, %v2837
  %v2839 = vpop.f32.mrf.mxu0
  %v2840 = vadd.f32 %v2821, %v2839
  %2841 = vmatmul.bf16.gmra.mxu0 %v204
  %v2842 = vpop.f32.mrf.mxu0
  %v2843 = vadd.f32 %v2824, %v2842
  %v2844 = vpop.f32.mrf.mxu0
  %v2845 = vadd.f32 %v2826, %v2844
  %2846 = vdwg.mxu0
  %2847 = vmatpush.bf16.msra.mxu0 %v2001
  %2848 = vmatpush.bf16.msra.mxu0 %v2000
  %2849 = vmatpush.bf16.msra.mxu0 %v1999
  %2850 = vmatpush.bf16.msra.mxu0 %v1998
  %2851 = vmatpush.bf16.msra.mxu0 %v1997
  %2852 = vmatpush.bf16.msra.mxu0 %v1996
  %2853 = vmatpush.bf16.msra.mxu0 %v1995
  %2854 = vmatpush.bf16.msra.mxu0 %v1994
  %2855 = vmatmul.bf16.gmra.mxu0 %v173
  %v2856 = vpop.f32.mrf.mxu0
  %v2857 = vadd.f32 %v2838, %v2856
  %v2858 = vpop.f32.mrf.mxu0
  %v2859 = vadd.f32 %v2840, %v2858
  %2860 = vmatmul.bf16.gmra.mxu0 %v205
  %v2861 = vpop.f32.mrf.mxu0
  %v2862 = vadd.f32 %v2843, %v2861
  %v2863 = vpop.f32.mrf.mxu0
  %v2864 = vadd.f32 %v2845, %v2863
  %2865 = vdwg.mxu0
  %vm2866 = vcmask 261120
  %2867 = vst.msk [vmem:[%s3] sm:$0xff] %vm2866, %v2857
  %2868 = vst.msk [vmem:[%s3 + $0x8] sm:$0xff] %vm2866, %v2859
  %2869 = vst.msk [vmem:[%s3 + $0x10] sm:$0xff] %vm2866, %v2862
  %2870 = vst.msk [vmem:[%s3 + $0x18] sm:$0xff] %vm2866, %v2864
  // Predicated region
  $region14: #{set_matching_forward.3} parent=0 // pred_check
    _
  $region15: #{set_matching_forward.3} parent=0 // pred_check_branch
    %2872 = sbr.rel (0) target = $region17
  $region16: #{set_matching_forward.3} parent=0 // pred_region
    _
  $region17: #{set_matching_forward.3} parent=0 // pred_fallthru
    _
  // Predicated region
  $region18: #{set_matching_forward.3} parent=0 // pred_check
    _
  $region19: #{set_matching_forward.3} parent=0 // pred_check_branch
    %2874 = sbr.rel (0) target = $region21
  $region20: #{set_matching_forward.3} parent=0 // pred_region
    _
  $region21: #{set_matching_forward.3} parent=0 // pred_fallthru
    _

// kernel: set_matching_forward.5
$region0: #{set_matching_forward.5}
  #allocation0 [shape = 'u32[]', space=smem, size = 0x4, offset = 0x4, fixed_abs, tag = 'smem constant byte address 0x4 - core index']
  #allocation1 [shape = 'u32[72,128]{1,0:T(1,128)}', space=vmem, size = 0x9000, scoped, tag = 'internal scratch']
  %s0 = inlined_call_operand.vmem [shape: f32[2,8,32], index: 0, kind: input, shape index: {}]
  %s1 = inlined_call_operand.vmem [shape: f32[2,8,32], index: 1, kind: input, shape index: {}]
  %s2 = inlined_call_operand.vmem [shape: f32[2,1,8], index: 2, kind: input, shape index: {}]
  %s3 = inlined_call_operand.vmem [shape: f32[2,8,1], index: 3, kind: input, shape index: {}]
  %s4 = inlined_call_operand.vmem [shape: f32[2,1,8], index: 4, kind: input, shape index: {}]
  %s5 = inlined_call_operand.vmem [shape: f32[2,8,1], index: 5, kind: input, shape index: {}]
  %s6 = inlined_call_operand.vmem [shape: f32[128,32], index: 6, kind: input, shape index: {}]
  %s7 = inlined_call_operand.vmem [shape: f32[128,128], index: 7, kind: input, shape index: {}]
  %s8 = inlined_call_operand.vmem [shape: bf16[4,32,32], index: 8, kind: input, shape index: {}]
  %s9 = inlined_call_operand.vmem [shape: bf16[4,32,32], index: 9, kind: input, shape index: {}]
  %s10 = inlined_call_operand.vmem [shape: bf16[4,32,32], index: 10, kind: input, shape index: {}]
  %s11 = inlined_call_operand.vmem [shape: bf16[4,32,32], index: 11, kind: input, shape index: {}]
  %s12 = inlined_call_operand.vmem [shape: bf16[4,32,128], index: 12, kind: input, shape index: {}]
  %s13 = inlined_call_operand.vmem [shape: f32[4,1,128], index: 13, kind: input, shape index: {}]
  %s14 = inlined_call_operand.vmem [shape: bf16[4,128,32], index: 14, kind: input, shape index: {}]
  %s15 = inlined_call_operand.vmem [shape: f32[4,1,32], index: 15, kind: input, shape index: {}]
  %s16 = inlined_call_operand.vmem [shape: f32[4,1,32], index: 16, kind: input, shape index: {}]
  %s17 = inlined_call_operand.vmem [shape: f32[4,1,32], index: 17, kind: input, shape index: {}]
  %s18 = inlined_call_operand.vmem [shape: f32[4,1,32], index: 18, kind: input, shape index: {}]
  %s19 = inlined_call_operand.vmem [shape: f32[4,1,32], index: 19, kind: input, shape index: {}]
  %s20 = inlined_call_operand.vmem [shape: bf16[32,32], index: 20, kind: input, shape index: {}]
  %s21 = inlined_call_operand.vmem [shape: bf16[32,32], index: 21, kind: input, shape index: {}]
  %s22 = inlined_call_operand.vmem [shape: f32[1,32], index: 22, kind: input, shape index: {}]
  %s23 = inlined_call_operand.vmem [shape: f32[2,1,2], index: 23, kind: output, shape index: {}]
  %s24 = sld [smem:[#allocation0]]
  $region129: #{set_matching_forward.5} parent=0
    _
  %s26 = ssub.s32 1, %s24
  %s27 = scalar_select 0, %s26, %s24
  loop: start=0, step=1, limit=6
  $region2: #{set_matching_forward.5} parent=0 // loop_pre_header
    _
  $region3: #{set_matching_forward.5} parent=0 // loop_header
    %s29 = sphi 0, %s33
    %p30 = scmp.ge.s32.totalorder %s29, 6
    %s36 = sphi 0, %s48
    %s37 = sphi 0, %s44
    %s38 = sphi 0, %s36
    %s39 = sphi 0, %s37
    %s40 = sphi 0, %s38
    %s41 = sphi 0, %s39
    %s51 = sphi 0, %s53
    %s54 = sphi 0, %s51
    %s55 = sphi 0, %s54
    %s71 = sphi 0, %s55
    %s77 = sphi 0, %s79
    %s80 = sphi 0, %s77
    %s81 = sphi 0, %s80
    %s97 = sphi 0, %s81
    %s103 = sphi 0, %s105
    %s106 = sphi 0, %s103
    %s107 = sphi 0, %s106
    %s123 = sphi 0, %s107
    %s129 = sphi 0, %s131
    %s132 = sphi 0, %s129
    %s133 = sphi 0, %s132
    %s149 = sphi 0, %s133
    %s155 = sphi 0, %s157
    %s158 = sphi 0, %s155
    %s159 = sphi 0, %s158
    %s175 = sphi 0, %s159
    %s181 = sphi 0, %s183
    %s184 = sphi 0, %s181
    %s185 = sphi 0, %s184
    %s201 = sphi 0, %s185
    %s205 = sphi 0, %s205
    %s207 = sphi 0, %s205
    %s208 = sphi 0, %s207
    %s222 = sphi 0, %s208
    %s226 = sphi 0, %s226
    %s228 = sphi 0, %s226
    %s229 = sphi 0, %s228
    %s243 = sphi 0, %s229
    %s247 = sphi 0, %s247
    %s249 = sphi 0, %s247
    %s250 = sphi 0, %s249
    %s264 = sphi 0, %s250
    %s268 = sphi 0, %s268
    %s270 = sphi 0, %s268
    %s271 = sphi 0, %s270
    %s285 = sphi 0, %s271
    %s289 = sphi 0, %s289
    %s291 = sphi 0, %s289
    %s292 = sphi 0, %s291
    %s306 = sphi 0, %s292
    %s310 = sphi 0, %s310
    %s312 = sphi 0, %s310
    %s313 = sphi 0, %s312
    %s327 = sphi 0, %s313
    %s331 = sphi 0, %s331
    %s333 = sphi 0, %s331
    %s334 = sphi 0, %s333
    %s348 = sphi 0, %s334
    %s352 = sphi 0, %s352
    %s354 = sphi 0, %s352
    %s355 = sphi 0, %s354
    %s369 = sphi 0, %s355
    %s373 = sphi 0, %s373
    %s375 = sphi 0, %s373
    %s376 = sphi 0, %s375
    %s390 = sphi 0, %s376
    %s394 = sphi 0, %s394
    %s396 = sphi 0, %s394
    %s397 = sphi 0, %s396
    %s411 = sphi 0, %s397
    %s415 = sphi 0, %s415
    %s417 = sphi 0, %s415
    %s418 = sphi 0, %s417
    %s432 = sphi 0, %s418
    %s436 = sphi 0, %s436
    %s438 = sphi 0, %s436
    %s439 = sphi 0, %s438
    %s453 = sphi 0, %s439
    %s457 = sphi 0, %s457
    %s459 = sphi 0, %s457
    %s460 = sphi 0, %s459
    %s474 = sphi 0, %s460
    %s478 = sphi 0, %s478
    %s480 = sphi 0, %s478
    %s481 = sphi 0, %s480
    %s495 = sphi 0, %s481
    %s499 = sphi 0, %s499
    %s501 = sphi 0, %s499
    %s502 = sphi 0, %s501
    %s516 = sphi 0, %s502
    %s520 = sphi 0, %s520
    %s522 = sphi 0, %s520
    %s523 = sphi 0, %s522
    %s537 = sphi 0, %s523
    %s541 = sphi 0, %s541
    %s543 = sphi 0, %s541
    %s544 = sphi 0, %s543
    %s558 = sphi 0, %s544
    %s564 = sphi 0, %s566
    %s567 = sphi 0, %s564
    %s568 = sphi 0, %s567
    %s584 = sphi 0, %s568
  $region4: #{set_matching_forward.5} parent=0 // loop_header_branch
    %32 = sbr.rel (%p30) target = $region8
  $region5: #{set_matching_forward.5} parent=0 // loop_body
    %s34 = ssub.s32 %s29, 1
    %s35 = ssub.s32 %s29, 2
    %s42 = sadd.s32 1, %s37
    %p43 = scmp.ge.s32.totalorder %s42, 2
    %s44 = scalar_select %p43, 0, %s42
    %s45 = sadd.s32 1, %s36
    %s46 = scalar_select %p43, %s45, %s36
    %p47 = scmp.ge.s32.totalorder %s46, 2
    %s48 = scalar_select %p47, 0, %s46
    %s49 = ssub.s32 %s36, %s48
    %p50 = scmp.eq.s32.totalorder %s49, 0
    %s52 = sadd.s32 %s51, 1
    %s53 = scalar_select %p50, %s51, %s52
    %p56 = pneg %p50
    %p57 = scmp.eq.s32.totalorder %s29, 3
    %p58 = por %p56, %p57
    %p59 = scmp.ne.s32.totalorder %s51, %s54
    %p60 = scmp.eq.s32.totalorder %s29, 0
    %p61 = por %p59, %p60
    %p62 = scmp.ne.s32.totalorder %s51, %s54
    %p63 = scmp.eq.s32.totalorder %s34, 3
    %p64 = por %p62, %p63
    %p65 = scmp.ne.s32.totalorder %s54, %s55
    %p66 = scmp.eq.s32.totalorder %s34, 0
    %p67 = por %p65, %p66
    %p68 = scmp.ne.s32.totalorder %s54, %s55
    %p69 = scmp.eq.s32.totalorder %s35, 3
    %p70 = por %p68, %p69
    %p72 = scmp.ne.s32.totalorder %s55, %s71
    %p73 = scmp.eq.s32.totalorder %s35, 0
    %p74 = por %p72, %p73
    %s75 = ssub.s32 %s37, %s44
    %p76 = scmp.eq.s32.totalorder %s75, 0
    %s78 = sadd.s32 %s77, 1
    %s79 = scalar_select %p76, %s77, %s78
    %p82 = pneg %p76
    %p83 = scmp.eq.s32.totalorder %s29, 3
    %p84 = por %p82, %p83
    %p85 = scmp.ne.s32.totalorder %s77, %s80
    %p86 = scmp.eq.s32.totalorder %s29, 0
    %p87 = por %p85, %p86
    %p88 = scmp.ne.s32.totalorder %s77, %s80
    %p89 = scmp.eq.s32.totalorder %s34, 3
    %p90 = por %p88, %p89
    %p91 = scmp.ne.s32.totalorder %s80, %s81
    %p92 = scmp.eq.s32.totalorder %s34, 0
    %p93 = por %p91, %p92
    %p94 = scmp.ne.s32.totalorder %s80, %s81
    %p95 = scmp.eq.s32.totalorder %s35, 3
    %p96 = por %p94, %p95
    %p98 = scmp.ne.s32.totalorder %s81, %s97
    %p99 = scmp.eq.s32.totalorder %s35, 0
    %p100 = por %p98, %p99
    %s101 = ssub.s32 %s36, %s48
    %p102 = scmp.eq.s32.totalorder %s101, 0
    %s104 = sadd.s32 %s103, 1
    %s105 = scalar_select %p102, %s103, %s104
    %p108 = pneg %p102
    %p109 = scmp.eq.s32.totalorder %s29, 3
    %p110 = por %p108, %p109
    %p111 = scmp.ne.s32.totalorder %s103, %s106
    %p112 = scmp.eq.s32.totalorder %s29, 0
    %p113 = por %p111, %p112
    %p114 = scmp.ne.s32.totalorder %s103, %s106
    %p115 = scmp.eq.s32.totalorder %s34, 3
    %p116 = por %p114, %p115
    %p117 = scmp.ne.s32.totalorder %s106, %s107
    %p118 = scmp.eq.s32.totalorder %s34, 0
    %p119 = por %p117, %p118
    %p120 = scmp.ne.s32.totalorder %s106, %s107
    %p121 = scmp.eq.s32.totalorder %s35, 3
    %p122 = por %p120, %p121
    %p124 = scmp.ne.s32.totalorder %s107, %s123
    %p125 = scmp.eq.s32.totalorder %s35, 0
    %p126 = por %p124, %p125
    %s127 = ssub.s32 %s36, %s48
    %p128 = scmp.eq.s32.totalorder %s127, 0
    %s130 = sadd.s32 %s129, 1
    %s131 = scalar_select %p128, %s129, %s130
    %p134 = pneg %p128
    %p135 = scmp.eq.s32.totalorder %s29, 3
    %p136 = por %p134, %p135
    %p137 = scmp.ne.s32.totalorder %s129, %s132
    %p138 = scmp.eq.s32.totalorder %s29, 0
    %p139 = por %p137, %p138
    %p140 = scmp.ne.s32.totalorder %s129, %s132
    %p141 = scmp.eq.s32.totalorder %s34, 3
    %p142 = por %p140, %p141
    %p143 = scmp.ne.s32.totalorder %s132, %s133
    %p144 = scmp.eq.s32.totalorder %s34, 0
    %p145 = por %p143, %p144
    %p146 = scmp.ne.s32.totalorder %s132, %s133
    %p147 = scmp.eq.s32.totalorder %s35, 3
    %p148 = por %p146, %p147
    %p150 = scmp.ne.s32.totalorder %s133, %s149
    %p151 = scmp.eq.s32.totalorder %s35, 0
    %p152 = por %p150, %p151
    %s153 = ssub.s32 %s37, %s44
    %p154 = scmp.eq.s32.totalorder %s153, 0
    %s156 = sadd.s32 %s155, 1
    %s157 = scalar_select %p154, %s155, %s156
    %p160 = pneg %p154
    %p161 = scmp.eq.s32.totalorder %s29, 3
    %p162 = por %p160, %p161
    %p163 = scmp.ne.s32.totalorder %s155, %s158
    %p164 = scmp.eq.s32.totalorder %s29, 0
    %p165 = por %p163, %p164
    %p166 = scmp.ne.s32.totalorder %s155, %s158
    %p167 = scmp.eq.s32.totalorder %s34, 3
    %p168 = por %p166, %p167
    %p169 = scmp.ne.s32.totalorder %s158, %s159
    %p170 = scmp.eq.s32.totalorder %s34, 0
    %p171 = por %p169, %p170
    %p172 = scmp.ne.s32.totalorder %s158, %s159
    %p173 = scmp.eq.s32.totalorder %s35, 3
    %p174 = por %p172, %p173
    %p176 = scmp.ne.s32.totalorder %s159, %s175
    %p177 = scmp.eq.s32.totalorder %s35, 0
    %p178 = por %p176, %p177
    %s179 = ssub.s32 %s37, %s44
    %p180 = scmp.eq.s32.totalorder %s179, 0
    %s182 = sadd.s32 %s181, 1
    %s183 = scalar_select %p180, %s181, %s182
    %p186 = pneg %p180
    %p187 = scmp.eq.s32.totalorder %s29, 3
    %p188 = por %p186, %p187
    %p189 = scmp.ne.s32.totalorder %s181, %s184
    %p190 = scmp.eq.s32.totalorder %s29, 0
    %p191 = por %p189, %p190
    %p192 = scmp.ne.s32.totalorder %s181, %s184
    %p193 = scmp.eq.s32.totalorder %s34, 3
    %p194 = por %p192, %p193
    %p195 = scmp.ne.s32.totalorder %s184, %s185
    %p196 = scmp.eq.s32.totalorder %s34, 0
    %p197 = por %p195, %p196
    %p198 = scmp.ne.s32.totalorder %s184, %s185
    %p199 = scmp.eq.s32.totalorder %s35, 3
    %p200 = por %p198, %p199
    %p202 = scmp.ne.s32.totalorder %s185, %s201
    %p203 = scmp.eq.s32.totalorder %s35, 0
    %p204 = por %p202, %p203
    %s206 = sadd.s32 %s205, 1
    %p209 = scmp.eq.s32.totalorder %s29, 3
    %p210 = scmp.ne.s32.totalorder %s205, %s207
    %p211 = scmp.eq.s32.totalorder %s29, 0
    %p212 = por %p210, %p211
    %p213 = scmp.ne.s32.totalorder %s205, %s207
    %p214 = scmp.eq.s32.totalorder %s34, 3
    %p215 = por %p213, %p214
    %p216 = scmp.ne.s32.totalorder %s207, %s208
    %p217 = scmp.eq.s32.totalorder %s34, 0
    %p218 = por %p216, %p217
    %p219 = scmp.ne.s32.totalorder %s207, %s208
    %p220 = scmp.eq.s32.totalorder %s35, 3
    %p221 = por %p219, %p220
    %p223 = scmp.ne.s32.totalorder %s208, %s222
    %p224 = scmp.eq.s32.totalorder %s35, 0
    %p225 = por %p223, %p224
    %s227 = sadd.s32 %s226, 1
    %p230 = scmp.eq.s32.totalorder %s29, 3
    %p231 = scmp.ne.s32.totalorder %s226, %s228
    %p232 = scmp.eq.s32.totalorder %s29, 0
    %p233 = por %p231, %p232
    %p234 = scmp.ne.s32.totalorder %s226, %s228
    %p235 = scmp.eq.s32.totalorder %s34, 3
    %p236 = por %p234, %p235
    %p237 = scmp.ne.s32.totalorder %s228, %s229
    %p238 = scmp.eq.s32.totalorder %s34, 0
    %p239 = por %p237, %p238
    %p240 = scmp.ne.s32.totalorder %s228, %s229
    %p241 = scmp.eq.s32.totalorder %s35, 3
    %p242 = por %p240, %p241
    %p244 = scmp.ne.s32.totalorder %s229, %s243
    %p245 = scmp.eq.s32.totalorder %s35, 0
    %p246 = por %p244, %p245
    %s248 = sadd.s32 %s247, 1
    %p251 = scmp.eq.s32.totalorder %s29, 3
    %p252 = scmp.ne.s32.totalorder %s247, %s249
    %p253 = scmp.eq.s32.totalorder %s29, 0
    %p254 = por %p252, %p253
    %p255 = scmp.ne.s32.totalorder %s247, %s249
    %p256 = scmp.eq.s32.totalorder %s34, 3
    %p257 = por %p255, %p256
    %p258 = scmp.ne.s32.totalorder %s249, %s250
    %p259 = scmp.eq.s32.totalorder %s34, 0
    %p260 = por %p258, %p259
    %p261 = scmp.ne.s32.totalorder %s249, %s250
    %p262 = scmp.eq.s32.totalorder %s35, 3
    %p263 = por %p261, %p262
    %p265 = scmp.ne.s32.totalorder %s250, %s264
    %p266 = scmp.eq.s32.totalorder %s35, 0
    %p267 = por %p265, %p266
    %s269 = sadd.s32 %s268, 1
    %p272 = scmp.eq.s32.totalorder %s29, 3
    %p273 = scmp.ne.s32.totalorder %s268, %s270
    %p274 = scmp.eq.s32.totalorder %s29, 0
    %p275 = por %p273, %p274
    %p276 = scmp.ne.s32.totalorder %s268, %s270
    %p277 = scmp.eq.s32.totalorder %s34, 3
    %p278 = por %p276, %p277
    %p279 = scmp.ne.s32.totalorder %s270, %s271
    %p280 = scmp.eq.s32.totalorder %s34, 0
    %p281 = por %p279, %p280
    %p282 = scmp.ne.s32.totalorder %s270, %s271
    %p283 = scmp.eq.s32.totalorder %s35, 3
    %p284 = por %p282, %p283
    %p286 = scmp.ne.s32.totalorder %s271, %s285
    %p287 = scmp.eq.s32.totalorder %s35, 0
    %p288 = por %p286, %p287
    %s290 = sadd.s32 %s289, 1
    %p293 = scmp.eq.s32.totalorder %s29, 3
    %p294 = scmp.ne.s32.totalorder %s289, %s291
    %p295 = scmp.eq.s32.totalorder %s29, 0
    %p296 = por %p294, %p295
    %p297 = scmp.ne.s32.totalorder %s289, %s291
    %p298 = scmp.eq.s32.totalorder %s34, 3
    %p299 = por %p297, %p298
    %p300 = scmp.ne.s32.totalorder %s291, %s292
    %p301 = scmp.eq.s32.totalorder %s34, 0
    %p302 = por %p300, %p301
    %p303 = scmp.ne.s32.totalorder %s291, %s292
    %p304 = scmp.eq.s32.totalorder %s35, 3
    %p305 = por %p303, %p304
    %p307 = scmp.ne.s32.totalorder %s292, %s306
    %p308 = scmp.eq.s32.totalorder %s35, 0
    %p309 = por %p307, %p308
    %s311 = sadd.s32 %s310, 1
    %p314 = scmp.eq.s32.totalorder %s29, 3
    %p315 = scmp.ne.s32.totalorder %s310, %s312
    %p316 = scmp.eq.s32.totalorder %s29, 0
    %p317 = por %p315, %p316
    %p318 = scmp.ne.s32.totalorder %s310, %s312
    %p319 = scmp.eq.s32.totalorder %s34, 3
    %p320 = por %p318, %p319
    %p321 = scmp.ne.s32.totalorder %s312, %s313
    %p322 = scmp.eq.s32.totalorder %s34, 0
    %p323 = por %p321, %p322
    %p324 = scmp.ne.s32.totalorder %s312, %s313
    %p325 = scmp.eq.s32.totalorder %s35, 3
    %p326 = por %p324, %p325
    %p328 = scmp.ne.s32.totalorder %s313, %s327
    %p329 = scmp.eq.s32.totalorder %s35, 0
    %p330 = por %p328, %p329
    %s332 = sadd.s32 %s331, 1
    %p335 = scmp.eq.s32.totalorder %s29, 3
    %p336 = scmp.ne.s32.totalorder %s331, %s333
    %p337 = scmp.eq.s32.totalorder %s29, 0
    %p338 = por %p336, %p337
    %p339 = scmp.ne.s32.totalorder %s331, %s333
    %p340 = scmp.eq.s32.totalorder %s34, 3
    %p341 = por %p339, %p340
    %p342 = scmp.ne.s32.totalorder %s333, %s334
    %p343 = scmp.eq.s32.totalorder %s34, 0
    %p344 = por %p342, %p343
    %p345 = scmp.ne.s32.totalorder %s333, %s334
    %p346 = scmp.eq.s32.totalorder %s35, 3
    %p347 = por %p345, %p346
    %p349 = scmp.ne.s32.totalorder %s334, %s348
    %p350 = scmp.eq.s32.totalorder %s35, 0
    %p351 = por %p349, %p350
    %s353 = sadd.s32 %s352, 1
    %p356 = scmp.eq.s32.totalorder %s29, 3
    %p357 = scmp.ne.s32.totalorder %s352, %s354
    %p358 = scmp.eq.s32.totalorder %s29, 0
    %p359 = por %p357, %p358
    %p360 = scmp.ne.s32.totalorder %s352, %s354
    %p361 = scmp.eq.s32.totalorder %s34, 3
    %p362 = por %p360, %p361
    %p363 = scmp.ne.s32.totalorder %s354, %s355
    %p364 = scmp.eq.s32.totalorder %s34, 0
    %p365 = por %p363, %p364
    %p366 = scmp.ne.s32.totalorder %s354, %s355
    %p367 = scmp.eq.s32.totalorder %s35, 3
    %p368 = por %p366, %p367
    %p370 = scmp.ne.s32.totalorder %s355, %s369
    %p371 = scmp.eq.s32.totalorder %s35, 0
    %p372 = por %p370, %p371
    %s374 = sadd.s32 %s373, 1
    %p377 = scmp.eq.s32.totalorder %s29, 3
    %p378 = scmp.ne.s32.totalorder %s373, %s375
    %p379 = scmp.eq.s32.totalorder %s29, 0
    %p380 = por %p378, %p379
    %p381 = scmp.ne.s32.totalorder %s373, %s375
    %p382 = scmp.eq.s32.totalorder %s34, 3
    %p383 = por %p381, %p382
    %p384 = scmp.ne.s32.totalorder %s375, %s376
    %p385 = scmp.eq.s32.totalorder %s34, 0
    %p386 = por %p384, %p385
    %p387 = scmp.ne.s32.totalorder %s375, %s376
    %p388 = scmp.eq.s32.totalorder %s35, 3
    %p389 = por %p387, %p388
    %p391 = scmp.ne.s32.totalorder %s376, %s390
    %p392 = scmp.eq.s32.totalorder %s35, 0
    %p393 = por %p391, %p392
    %s395 = sadd.s32 %s394, 1
    %p398 = scmp.eq.s32.totalorder %s29, 3
    %p399 = scmp.ne.s32.totalorder %s394, %s396
    %p400 = scmp.eq.s32.totalorder %s29, 0
    %p401 = por %p399, %p400
    %p402 = scmp.ne.s32.totalorder %s394, %s396
    %p403 = scmp.eq.s32.totalorder %s34, 3
    %p404 = por %p402, %p403
    %p405 = scmp.ne.s32.totalorder %s396, %s397
    %p406 = scmp.eq.s32.totalorder %s34, 0
    %p407 = por %p405, %p406
    %p408 = scmp.ne.s32.totalorder %s396, %s397
    %p409 = scmp.eq.s32.totalorder %s35, 3
    %p410 = por %p408, %p409
    %p412 = scmp.ne.s32.totalorder %s397, %s411
    %p413 = scmp.eq.s32.totalorder %s35, 0
    %p414 = por %p412, %p413
    %s416 = sadd.s32 %s415, 1
    %p419 = scmp.eq.s32.totalorder %s29, 3
    %p420 = scmp.ne.s32.totalorder %s415, %s417
    %p421 = scmp.eq.s32.totalorder %s29, 0
    %p422 = por %p420, %p421
    %p423 = scmp.ne.s32.totalorder %s415, %s417
    %p424 = scmp.eq.s32.totalorder %s34, 3
    %p425 = por %p423, %p424
    %p426 = scmp.ne.s32.totalorder %s417, %s418
    %p427 = scmp.eq.s32.totalorder %s34, 0
    %p428 = por %p426, %p427
    %p429 = scmp.ne.s32.totalorder %s417, %s418
    %p430 = scmp.eq.s32.totalorder %s35, 3
    %p431 = por %p429, %p430
    %p433 = scmp.ne.s32.totalorder %s418, %s432
    %p434 = scmp.eq.s32.totalorder %s35, 0
    %p435 = por %p433, %p434
    %s437 = sadd.s32 %s436, 1
    %p440 = scmp.eq.s32.totalorder %s29, 3
    %p441 = scmp.ne.s32.totalorder %s436, %s438
    %p442 = scmp.eq.s32.totalorder %s29, 0
    %p443 = por %p441, %p442
    %p444 = scmp.ne.s32.totalorder %s436, %s438
    %p445 = scmp.eq.s32.totalorder %s34, 3
    %p446 = por %p444, %p445
    %p447 = scmp.ne.s32.totalorder %s438, %s439
    %p448 = scmp.eq.s32.totalorder %s34, 0
    %p449 = por %p447, %p448
    %p450 = scmp.ne.s32.totalorder %s438, %s439
    %p451 = scmp.eq.s32.totalorder %s35, 3
    %p452 = por %p450, %p451
    %p454 = scmp.ne.s32.totalorder %s439, %s453
    %p455 = scmp.eq.s32.totalorder %s35, 0
    %p456 = por %p454, %p455
    %s458 = sadd.s32 %s457, 1
    %p461 = scmp.eq.s32.totalorder %s29, 3
    %p462 = scmp.ne.s32.totalorder %s457, %s459
    %p463 = scmp.eq.s32.totalorder %s29, 0
    %p464 = por %p462, %p463
    %p465 = scmp.ne.s32.totalorder %s457, %s459
    %p466 = scmp.eq.s32.totalorder %s34, 3
    %p467 = por %p465, %p466
    %p468 = scmp.ne.s32.totalorder %s459, %s460
    %p469 = scmp.eq.s32.totalorder %s34, 0
    %p470 = por %p468, %p469
    %p471 = scmp.ne.s32.totalorder %s459, %s460
    %p472 = scmp.eq.s32.totalorder %s35, 3
    %p473 = por %p471, %p472
    %p475 = scmp.ne.s32.totalorder %s460, %s474
    %p476 = scmp.eq.s32.totalorder %s35, 0
    %p477 = por %p475, %p476
    %s479 = sadd.s32 %s478, 1
    %p482 = scmp.eq.s32.totalorder %s29, 3
    %p483 = scmp.ne.s32.totalorder %s478, %s480
    %p484 = scmp.eq.s32.totalorder %s29, 0
    %p485 = por %p483, %p484
    %p486 = scmp.ne.s32.totalorder %s478, %s480
    %p487 = scmp.eq.s32.totalorder %s34, 3
    %p488 = por %p486, %p487
    %p489 = scmp.ne.s32.totalorder %s480, %s481
    %p490 = scmp.eq.s32.totalorder %s34, 0
    %p491 = por %p489, %p490
    %p492 = scmp.ne.s32.totalorder %s480, %s481
    %p493 = scmp.eq.s32.totalorder %s35, 3
    %p494 = por %p492, %p493
    %p496 = scmp.ne.s32.totalorder %s481, %s495
    %p497 = scmp.eq.s32.totalorder %s35, 0
    %p498 = por %p496, %p497
    %s500 = sadd.s32 %s499, 1
    %p503 = scmp.eq.s32.totalorder %s29, 3
    %p504 = scmp.ne.s32.totalorder %s499, %s501
    %p505 = scmp.eq.s32.totalorder %s29, 0
    %p506 = por %p504, %p505
    %p507 = scmp.ne.s32.totalorder %s499, %s501
    %p508 = scmp.eq.s32.totalorder %s34, 3
    %p509 = por %p507, %p508
    %p510 = scmp.ne.s32.totalorder %s501, %s502
    %p511 = scmp.eq.s32.totalorder %s34, 0
    %p512 = por %p510, %p511
    %p513 = scmp.ne.s32.totalorder %s501, %s502
    %p514 = scmp.eq.s32.totalorder %s35, 3
    %p515 = por %p513, %p514
    %p517 = scmp.ne.s32.totalorder %s502, %s516
    %p518 = scmp.eq.s32.totalorder %s35, 0
    %p519 = por %p517, %p518
    %s521 = sadd.s32 %s520, 1
    %p524 = scmp.eq.s32.totalorder %s29, 3
    %p525 = scmp.ne.s32.totalorder %s520, %s522
    %p526 = scmp.eq.s32.totalorder %s29, 0
    %p527 = por %p525, %p526
    %p528 = scmp.ne.s32.totalorder %s520, %s522
    %p529 = scmp.eq.s32.totalorder %s34, 3
    %p530 = por %p528, %p529
    %p531 = scmp.ne.s32.totalorder %s522, %s523
    %p532 = scmp.eq.s32.totalorder %s34, 0
    %p533 = por %p531, %p532
    %p534 = scmp.ne.s32.totalorder %s522, %s523
    %p535 = scmp.eq.s32.totalorder %s35, 3
    %p536 = por %p534, %p535
    %p538 = scmp.ne.s32.totalorder %s523, %s537
    %p539 = scmp.eq.s32.totalorder %s35, 0
    %p540 = por %p538, %p539
    %s542 = sadd.s32 %s541, 1
    %p545 = scmp.eq.s32.totalorder %s29, 3
    %p546 = scmp.ne.s32.totalorder %s541, %s543
    %p547 = scmp.eq.s32.totalorder %s29, 0
    %p548 = por %p546, %p547
    %p549 = scmp.ne.s32.totalorder %s541, %s543
    %p550 = scmp.eq.s32.totalorder %s34, 3
    %p551 = por %p549, %p550
    %p552 = scmp.ne.s32.totalorder %s543, %s544
    %p553 = scmp.eq.s32.totalorder %s34, 0
    %p554 = por %p552, %p553
    %p555 = scmp.ne.s32.totalorder %s543, %s544
    %p556 = scmp.eq.s32.totalorder %s35, 3
    %p557 = por %p555, %p556
    %p559 = scmp.ne.s32.totalorder %s544, %s558
    %p560 = scmp.eq.s32.totalorder %s35, 0
    %p561 = por %p559, %p560
    %s562 = ssub.s32 %s36, %s48
    %p563 = scmp.eq.s32.totalorder %s562, 0
    %s565 = sadd.s32 %s564, 1
    %s566 = scalar_select %p563, %s564, %s565
    %p569 = pneg %p563
    %p570 = scmp.eq.s32.totalorder %s29, 3
    %p571 = por %p569, %p570
    %p572 = scmp.ne.s32.totalorder %s564, %s567
    %p573 = scmp.eq.s32.totalorder %s29, 0
    %p574 = por %p572, %p573
    %p575 = scmp.ne.s32.totalorder %s564, %s567
    %p576 = scmp.eq.s32.totalorder %s34, 3
    %p577 = por %p575, %p576
    %p578 = scmp.ne.s32.totalorder %s567, %s568
    %p579 = scmp.eq.s32.totalorder %s34, 0
    %p580 = por %p578, %p579
    %p581 = scmp.ne.s32.totalorder %s567, %s568
    %p582 = scmp.eq.s32.totalorder %s35, 3
    %p583 = por %p581, %p582
    %p585 = scmp.ne.s32.totalorder %s568, %s584
    %p586 = scmp.eq.s32.totalorder %s35, 0
    %p587 = por %p585, %p586
    %p588 = scmp.le.s32.totalorder 1, %s29
    %p589 = scmp.lt.s32.totalorder %s29, 5
    %p590 = pnand %p588, %p589
    %p591 = pneg %p590
    // Predicated region
    $region9: #{set_matching_forward.5} parent=5 // pred_check
      _
    $region10: #{set_matching_forward.5} parent=5 // pred_check_branch
      %593 = sbr.rel (%p590) target = $region12
    $region11: #{set_matching_forward.5} parent=5 // pred_region
      %s594 = ssub.s32 %s29, 1
      // Predicated region
      $region13: #{set_matching_forward.5} parent=11 // pred_check
        %p595 = pneg %p218
      $region14: #{set_matching_forward.5} parent=11 // pred_check_branch
        %597 = sbr.rel (%p595) target = $region16
      $region15: #{set_matching_forward.5} parent=11 // pred_region
        _
      $region16: #{set_matching_forward.5} parent=11 // pred_fallthru
        _
      // Predicated region
      $region17: #{set_matching_forward.5} parent=11 // pred_check
        %p598 = pneg %p239
      $region18: #{set_matching_forward.5} parent=11 // pred_check_branch
        %600 = sbr.rel (%p598) target = $region20
      $region19: #{set_matching_forward.5} parent=11 // pred_region
        _
      $region20: #{set_matching_forward.5} parent=11 // pred_fallthru
        _
      // Predicated region
      $region21: #{set_matching_forward.5} parent=11 // pred_check
        %p601 = pneg %p260
      $region22: #{set_matching_forward.5} parent=11 // pred_check_branch
        %603 = sbr.rel (%p601) target = $region24
      $region23: #{set_matching_forward.5} parent=11 // pred_region
        _
      $region24: #{set_matching_forward.5} parent=11 // pred_fallthru
        _
      // Predicated region
      $region25: #{set_matching_forward.5} parent=11 // pred_check
        %p604 = pneg %p281
      $region26: #{set_matching_forward.5} parent=11 // pred_check_branch
        %606 = sbr.rel (%p604) target = $region28
      $region27: #{set_matching_forward.5} parent=11 // pred_region
        _
      $region28: #{set_matching_forward.5} parent=11 // pred_fallthru
        _
      // Predicated region
      $region29: #{set_matching_forward.5} parent=11 // pred_check
        %p607 = pneg %p302
      $region30: #{set_matching_forward.5} parent=11 // pred_check_branch
        %609 = sbr.rel (%p607) target = $region32
      $region31: #{set_matching_forward.5} parent=11 // pred_region
        _
      $region32: #{set_matching_forward.5} parent=11 // pred_fallthru
        _
      // Predicated region
      $region33: #{set_matching_forward.5} parent=11 // pred_check
        %p610 = pneg %p323
      $region34: #{set_matching_forward.5} parent=11 // pred_check_branch
        %612 = sbr.rel (%p610) target = $region36
      $region35: #{set_matching_forward.5} parent=11 // pred_region
        _
      $region36: #{set_matching_forward.5} parent=11 // pred_fallthru
        _
      // Predicated region
      $region37: #{set_matching_forward.5} parent=11 // pred_check
        %p613 = pneg %p344
      $region38: #{set_matching_forward.5} parent=11 // pred_check_branch
        %615 = sbr.rel (%p613) target = $region40
      $region39: #{set_matching_forward.5} parent=11 // pred_region
        _
      $region40: #{set_matching_forward.5} parent=11 // pred_fallthru
        _
      // Predicated region
      $region41: #{set_matching_forward.5} parent=11 // pred_check
        %p616 = pneg %p365
      $region42: #{set_matching_forward.5} parent=11 // pred_check_branch
        %618 = sbr.rel (%p616) target = $region44
      $region43: #{set_matching_forward.5} parent=11 // pred_region
        _
      $region44: #{set_matching_forward.5} parent=11 // pred_fallthru
        _
      // Predicated region
      $region45: #{set_matching_forward.5} parent=11 // pred_check
        %p619 = pneg %p386
      $region46: #{set_matching_forward.5} parent=11 // pred_check_branch
        %621 = sbr.rel (%p619) target = $region48
      $region47: #{set_matching_forward.5} parent=11 // pred_region
        _
      $region48: #{set_matching_forward.5} parent=11 // pred_fallthru
        _
      // Predicated region
      $region49: #{set_matching_forward.5} parent=11 // pred_check
        %p622 = pneg %p407
      $region50: #{set_matching_forward.5} parent=11 // pred_check_branch
        %624 = sbr.rel (%p622) target = $region52
      $region51: #{set_matching_forward.5} parent=11 // pred_region
        _
      $region52: #{set_matching_forward.5} parent=11 // pred_fallthru
        _
      // Predicated region
      $region53: #{set_matching_forward.5} parent=11 // pred_check
        %p625 = pneg %p428
      $region54: #{set_matching_forward.5} parent=11 // pred_check_branch
        %627 = sbr.rel (%p625) target = $region56
      $region55: #{set_matching_forward.5} parent=11 // pred_region
        _
      $region56: #{set_matching_forward.5} parent=11 // pred_fallthru
        _
      // Predicated region
      $region57: #{set_matching_forward.5} parent=11 // pred_check
        %p628 = pneg %p449
      $region58: #{set_matching_forward.5} parent=11 // pred_check_branch
        %630 = sbr.rel (%p628) target = $region60
      $region59: #{set_matching_forward.5} parent=11 // pred_region
        _
      $region60: #{set_matching_forward.5} parent=11 // pred_fallthru
        _
      // Predicated region
      $region61: #{set_matching_forward.5} parent=11 // pred_check
        %p631 = pneg %p470
      $region62: #{set_matching_forward.5} parent=11 // pred_check_branch
        %633 = sbr.rel (%p631) target = $region64
      $region63: #{set_matching_forward.5} parent=11 // pred_region
        _
      $region64: #{set_matching_forward.5} parent=11 // pred_fallthru
        _
      // Predicated region
      $region65: #{set_matching_forward.5} parent=11 // pred_check
        %p634 = pneg %p491
      $region66: #{set_matching_forward.5} parent=11 // pred_check_branch
        %636 = sbr.rel (%p634) target = $region68
      $region67: #{set_matching_forward.5} parent=11 // pred_region
        _
      $region68: #{set_matching_forward.5} parent=11 // pred_fallthru
        _
      // Predicated region
      $region69: #{set_matching_forward.5} parent=11 // pred_check
        %p637 = pneg %p512
      $region70: #{set_matching_forward.5} parent=11 // pred_check_branch
        %639 = sbr.rel (%p637) target = $region72
      $region71: #{set_matching_forward.5} parent=11 // pred_region
        _
      $region72: #{set_matching_forward.5} parent=11 // pred_fallthru
        _
      // Predicated region
      $region73: #{set_matching_forward.5} parent=11 // pred_check
        %p640 = pneg %p533
      $region74: #{set_matching_forward.5} parent=11 // pred_check_branch
        %642 = sbr.rel (%p640) target = $region76
      $region75: #{set_matching_forward.5} parent=11 // pred_region
        _
      $region76: #{set_matching_forward.5} parent=11 // pred_fallthru
        _
      // Predicated region
      $region77: #{set_matching_forward.5} parent=11 // pred_check
        %p643 = pneg %p554
      $region78: #{set_matching_forward.5} parent=11 // pred_check_branch
        %645 = sbr.rel (%p643) target = $region80
      $region79: #{set_matching_forward.5} parent=11 // pred_region
        _
      $region80: #{set_matching_forward.5} parent=11 // pred_fallthru
        _
    $region12: #{set_matching_forward.5} parent=5 // pred_fallthru
      _
    %p646 = scmp.lt.s32.totalorder %s29, 4
    // Predicated region
    $region81: #{set_matching_forward.5} parent=5 // pred_check
      %p647 = pneg %p646
    $region82: #{set_matching_forward.5} parent=5 // pred_check_branch
      %649 = sbr.rel (%p647) target = $region84
    $region83: #{set_matching_forward.5} parent=5 // pred_region
      // Predicated region
      $region85: #{set_matching_forward.5} parent=83 // pred_check
        %p650 = pneg %p61
      $region86: #{set_matching_forward.5} parent=83 // pred_check_branch
        %652 = sbr.rel (%p650) target = $region88
      $region87: #{set_matching_forward.5} parent=83 // pred_region
        %p653 = scmp.lt.s32.totalorder %s36, 1
        %s654 = scalar_select %p653, %s36, 1
        %s655 = smul.addr %s654, 8
        %s656 = scalar_lea.vmem %s0, %s655
      $region88: #{set_matching_forward.5} parent=83 // pred_fallthru
        _
      // Predicated region
      $region89: #{set_matching_forward.5} parent=83 // pred_check
        %p657 = pneg %p87
      $region90: #{set_matching_forward.5} parent=83 // pred_check_branch
        %659 = sbr.rel (%p657) target = $region92
      $region91: #{set_matching_forward.5} parent=83 // pred_region
        %p660 = scmp.lt.s32.totalorder %s37, 1
        %s661 = scalar_select %p660, %s37, 1
        %s662 = smul.addr %s661, 8
        %s663 = scalar_lea.vmem %s1, %s662
      $region92: #{set_matching_forward.5} parent=83 // pred_fallthru
        _
      // Predicated region
      $region93: #{set_matching_forward.5} parent=83 // pred_check
        %p664 = pneg %p113
      $region94: #{set_matching_forward.5} parent=83 // pred_check_branch
        %666 = sbr.rel (%p664) target = $region96
      $region95: #{set_matching_forward.5} parent=83 // pred_region
        %p667 = scmp.lt.s32.totalorder %s36, 1
        %s668 = scalar_select %p667, %s36, 1
        %s669 = scalar_lea.vmem %s2, %s668
      $region96: #{set_matching_forward.5} parent=83 // pred_fallthru
        _
      // Predicated region
      $region97: #{set_matching_forward.5} parent=83 // pred_check
        %p670 = pneg %p139
      $region98: #{set_matching_forward.5} parent=83 // pred_check_branch
        %672 = sbr.rel (%p670) target = $region100
      $region99: #{set_matching_forward.5} parent=83 // pred_region
        %p673 = scmp.lt.s32.totalorder %s36, 1
        %s674 = scalar_select %p673, %s36, 1
        %s675 = smul.addr %s674, 8
        %s676 = scalar_lea.vmem %s3, %s675
      $region100: #{set_matching_forward.5} parent=83 // pred_fallthru
        _
      // Predicated region
      $region101: #{set_matching_forward.5} parent=83 // pred_check
        %p677 = pneg %p165
      $region102: #{set_matching_forward.5} parent=83 // pred_check_branch
        %679 = sbr.rel (%p677) target = $region104
      $region103: #{set_matching_forward.5} parent=83 // pred_region
        %p680 = scmp.lt.s32.totalorder %s37, 1
        %s681 = scalar_select %p680, %s37, 1
        %s682 = scalar_lea.vmem %s4, %s681
      $region104: #{set_matching_forward.5} parent=83 // pred_fallthru
        _
      // Predicated region
      $region105: #{set_matching_forward.5} parent=83 // pred_check
        %p683 = pneg %p191
      $region106: #{set_matching_forward.5} parent=83 // pred_check_branch
        %685 = sbr.rel (%p683) target = $region108
      $region107: #{set_matching_forward.5} parent=83 // pred_region
        %p686 = scmp.lt.s32.totalorder %s37, 1
        %s687 = scalar_select %p686, %s37, 1
        %s688 = smul.addr %s687, 8
        %s689 = scalar_lea.vmem %s5, %s688
      $region108: #{set_matching_forward.5} parent=83 // pred_fallthru
        _
    $region84: #{set_matching_forward.5} parent=5 // pred_fallthru
      _
    %p690 = scmp.le.s32.totalorder 1, %s29
    %p691 = scmp.lt.s32.totalorder %s29, 5
    %p692 = pnand %p690, %p691
    %p693 = pneg %p692
    // Predicated region
    $region109: #{set_matching_forward.5} parent=5 // pred_check
      _
    $region110: #{set_matching_forward.5} parent=5 // pred_check_branch
      %695 = sbr.rel (%p692) target = $region112
    $region111: #{set_matching_forward.5} parent=5 // pred_region
      %s696 = ssub.s32 %s29, 1
      %p697 = scmp.lt.s32.totalorder %s38, 1
      %s698 = scalar_select %p697, %s38, 1
      %s699 = smul.addr %s698, 8
      %s700 = scalar_lea.vmem %s0, %s699
      %p701 = pneg %p67
      %p702 = pneg %p64
      %p703 = scmp.lt.s32.totalorder %s39, 1
      %s704 = scalar_select %p703, %s39, 1
      %s705 = smul.addr %s704, 8
      %s706 = scalar_lea.vmem %s1, %s705
      %p707 = pneg %p93
      %p708 = pneg %p90
      %p709 = scmp.lt.s32.totalorder %s38, 1
      %s710 = scalar_select %p709, %s38, 1
      %s711 = scalar_lea.vmem %s2, %s710
      %p712 = pneg %p119
      %p713 = pneg %p116
      %p714 = scmp.lt.s32.totalorder %s38, 1
      %s715 = scalar_select %p714, %s38, 1
      %s716 = smul.addr %s715, 8
      %s717 = scalar_lea.vmem %s3, %s716
      %p718 = pneg %p145
      %p719 = pneg %p142
      %p720 = scmp.lt.s32.totalorder %s39, 1
      %s721 = scalar_select %p720, %s39, 1
      %s722 = scalar_lea.vmem %s4, %s721
      %p723 = pneg %p171
      %p724 = pneg %p168
      %p725 = scmp.lt.s32.totalorder %s39, 1
      %s726 = scalar_select %p725, %s39, 1
      %s727 = smul.addr %s726, 8
      %s728 = scalar_lea.vmem %s5, %s727
      %p729 = pneg %p197
      %p730 = pneg %p194
      %p731 = pneg %p218
      %p732 = pneg %p215
      %p733 = pneg %p239
      %p734 = pneg %p236
      %p735 = pneg %p260
      %p736 = pneg %p257
      %p737 = pneg %p281
      %p738 = pneg %p278
      %p739 = pneg %p302
      %p740 = pneg %p299
      %p741 = pneg %p323
      %p742 = pneg %p320
      %p743 = pneg %p344
      %p744 = pneg %p341
      %p745 = pneg %p365
      %p746 = pneg %p362
      %p747 = pneg %p386
      %p748 = pneg %p383
      %p749 = pneg %p407
      %p750 = pneg %p404
      %p751 = pneg %p428
      %p752 = pneg %p425
      %p753 = pneg %p449
      %p754 = pneg %p446
      %p755 = pneg %p470
      %p756 = pneg %p467
      %p757 = pneg %p491
      %p758 = pneg %p488
      %p759 = pneg %p512
      %p760 = pneg %p509
      %p761 = pneg %p533
      %p762 = pneg %p530
      %p763 = pneg %p554
      %p764 = pneg %p551
      %p765 = pneg %p580
      %p766 = pneg %p577
      %p767 = scmp.lt.s32.totalorder %s38, 1
      %s768 = scalar_select %p767, %s38, 1
      %s769 = scalar_lea.vmem %s23, %s768
      %p770 = scmp.lt.s32.totalorder %s38, 1
      %s771 = scalar_select %p770, %s38, 1
      %s772 = smul.addr %s771, 8
      %s773 = scalar_lea.vmem %s0, %s772
      %p774 = scmp.lt.s32.totalorder %s39, 1
      %s775 = scalar_select %p774, %s39, 1
      %s776 = smul.addr %s775, 8
      %s777 = scalar_lea.vmem %s1, %s776
      %p778 = scmp.lt.s32.totalorder %s38, 1
      %s779 = scalar_select %p778, %s38, 1
      %s780 = scalar_lea.vmem %s2, %s779
      %p781 = scmp.lt.s32.totalorder %s38, 1
      %s782 = scalar_select %p781, %s38, 1
      %s783 = smul.addr %s782, 8
      %s784 = scalar_lea.vmem %s3, %s783
      %p785 = scmp.lt.s32.totalorder %s39, 1
      %s786 = scalar_select %p785, %s39, 1
      %s787 = scalar_lea.vmem %s4, %s786
      %p788 = scmp.lt.s32.totalorder %s39, 1
      %s789 = scalar_select %p788, %s39, 1
      %s790 = smul.addr %s789, 8
      %s791 = scalar_lea.vmem %s5, %s790
      %p792 = scmp.lt.s32.totalorder %s38, 1
      %s793 = scalar_select %p792, %s38, 1
      %s794 = scalar_lea.vmem %s23, %s793
      %v796 = vld [vmem:[%s773] sm:$0xff]
      %v797 = vld [vmem:[%s777] sm:$0xff]
      %v798 = vld [vmem:[%s780] sm:$0x1]
      %v799 = vld [vmem:[%s784] sm:$0xff]
      %v800 = vld [vmem:[%s787] sm:$0x1]
      %v801 = vld [vmem:[%s791] sm:$0xff]
      %v803 = vperm.slane %v798, 0
      %804 = vrot.lane.b32.xlu0 %v803, 16
      %v805 = vpop.permute.xlu0 %804
      %807 = vrot.lane.b32.xlu0 %v803, 32
      %v808 = vpop.permute.xlu0 %807
      %810 = vrot.lane.b32.xlu0 %v803, 48
      %v811 = vpop.permute.xlu0 %810
      %813 = vrot.lane.b32.xlu0 %v803, 64
      %v814 = vpop.permute.xlu0 %813
      %816 = vrot.lane.b32.xlu0 %v803, 80
      %v817 = vpop.permute.xlu0 %816
      %819 = vrot.lane.b32.xlu0 %v803, 96
      %v820 = vpop.permute.xlu0 %819
      %822 = vrot.lane.b32.xlu0 %v803, 112
      %v823 = vpop.permute.xlu0 %822
      %vm825 = vcmask 64512
      %v826 = vsel %vm825, %v798, 0.0
      %vm827 = vcmask 130048
      %v828 = vsel %vm827, %v826, %v805
      %vm829 = vcmask 195584
      %v830 = vsel %vm829, %v828, 0.0
      %vm831 = vcmask 261120
      %v832 = vsel %vm831, %v830, %v808
      %vm833 = vcmask 326656
      %v834 = vsel %vm833, %v832, 0.0
      %vm835 = vcmask 392192
      %v836 = vsel %vm835, %v834, %v811
      %vm837 = vcmask 457728
      %v838 = vsel %vm837, %v836, 0.0
      %vm839 = vcmask 523264
      %v840 = vsel %vm839, %v838, %v814
      %vm841 = vcmask 588800
      %v842 = vsel %vm841, %v840, 0.0
      %vm843 = vcmask 654336
      %v844 = vsel %vm843, %v842, %v817
      %vm845 = vcmask 719872
      %v846 = vsel %vm845, %v844, 0.0
      %vm847 = vcmask 785408
      %v848 = vsel %vm847, %v846, %v820
      %vm849 = vcmask 850944
      %v850 = vsel %vm849, %v848, 0.0
      %vm851 = vcmask 916480
      %v852 = vsel %vm851, %v850, %v823
      %vm853 = vcmask 982016
      %v854 = vsel %vm853, %v852, 0.0
      %856 = vset.pattern.permute.xlu0 0
      %857 = vperm.xlu0 %856, %v799
      %v858 = vpop.permute.xlu0 %857
      %861 = vset.pattern.permute.xlu0 0
      %862 = vperm.xlu0 %861, 0.0
      %v863 = vpop.permute.xlu0 %862
      %v865 = vperm.slane %v854, 0
      %v866 = vmul.f32 %v858, %v865
      %v867 = vmul.f32 %v863, %v865
      %v869 = vperm.slane %v800, 0
      %870 = vrot.lane.b32.xlu0 %v869, 8
      %v871 = vpop.permute.xlu0 %870
      %873 = vrot.lane.b32.xlu0 %v869, 24
      %v874 = vpop.permute.xlu0 %873
      %876 = vrot.lane.b32.xlu0 %v869, 40
      %v877 = vpop.permute.xlu0 %876
      %879 = vrot.lane.b32.xlu0 %v869, 56
      %v880 = vpop.permute.xlu0 %879
      %882 = vrot.lane.b32.xlu0 %v869, 72
      %v883 = vpop.permute.xlu0 %882
      %885 = vrot.lane.b32.xlu0 %v869, 88
      %v886 = vpop.permute.xlu0 %885
      %888 = vrot.lane.b32.xlu0 %v869, 104
      %v889 = vpop.permute.xlu0 %888
      %891 = vrot.lane.b32.xlu0 %v869, 120
      %v892 = vpop.permute.xlu0 %891
      %v894 = vsel %vm825, 0.0, %v871
      %v895 = vsel %vm827, %v894, 0.0
      %v896 = vsel %vm829, %v895, %v874
      %v897 = vsel %vm831, %v896, 0.0
      %v898 = vsel %vm833, %v897, %v877
      %v899 = vsel %vm835, %v898, 0.0
      %v900 = vsel %vm837, %v899, %v880
      %v901 = vsel %vm839, %v900, 0.0
      %v902 = vsel %vm841, %v901, %v883
      %v903 = vsel %vm843, %v902, 0.0
      %v904 = vsel %vm845, %v903, %v886
      %v905 = vsel %vm847, %v904, 0.0
      %v906 = vsel %vm849, %v905, %v889
      %v907 = vsel %vm851, %v906, 0.0
      %v908 = vsel %vm853, %v907, %v892
      %910 = vset.pattern.permute.xlu0 0
      %911 = vperm.xlu0 %910, %v801
      %v912 = vpop.permute.xlu0 %911
      %v914 = vperm.slane %v908, 0
      %v915 = vmul.f32 %v863, %v914
      %v916 = vmul.f32 %v912, %v914
      %v917 = vadd.f32 %v866, %v915
      %v918 = vadd.f32 %v867, %v916
      %vm919 = vcmp.gt.f32.partialorder %v917, 0.0
      %vm920 = vcmp.gt.f32.partialorder %v918, 0.0
      %v921 = vsel %vm919, 0.0, -1e+30
      %v922 = vsel %vm920, 0.0, -1e+30
      %923 = vrot.lane.b32.xlu0 %v869, 16
      %v924 = vpop.permute.xlu0 %923
      %926 = vrot.lane.b32.xlu0 %v869, 32
      %v927 = vpop.permute.xlu0 %926
      %929 = vrot.lane.b32.xlu0 %v869, 48
      %v930 = vpop.permute.xlu0 %929
      %932 = vrot.lane.b32.xlu0 %v869, 64
      %v933 = vpop.permute.xlu0 %932
      %935 = vrot.lane.b32.xlu0 %v869, 80
      %v936 = vpop.permute.xlu0 %935
      %938 = vrot.lane.b32.xlu0 %v869, 96
      %v939 = vpop.permute.xlu0 %938
      %941 = vrot.lane.b32.xlu0 %v869, 112
      %v942 = vpop.permute.xlu0 %941
      %v944 = vsel %vm825, %v800, 0.0
      %v945 = vsel %vm827, %v944, %v924
      %v946 = vsel %vm829, %v945, 0.0
      %v947 = vsel %vm831, %v946, %v927
      %v948 = vsel %vm833, %v947, 0.0
      %v949 = vsel %vm835, %v948, %v930
      %v950 = vsel %vm837, %v949, 0.0
      %v951 = vsel %vm839, %v950, %v933
      %v952 = vsel %vm841, %v951, 0.0
      %v953 = vsel %vm843, %v952, %v936
      %v954 = vsel %vm845, %v953, 0.0
      %v955 = vsel %vm847, %v954, %v939
      %v956 = vsel %vm849, %v955, 0.0
      %v957 = vsel %vm851, %v956, %v942
      %v958 = vsel %vm853, %v957, 0.0
      %v959 = vperm.slane %v958, 0
      %v960 = vmul.f32 %v858, %v959
      %v961 = vmul.f32 %v863, %v959
      %962 = vrot.lane.b32.xlu0 %v803, 8
      %v963 = vpop.permute.xlu0 %962
      %965 = vrot.lane.b32.xlu0 %v803, 24
      %v966 = vpop.permute.xlu0 %965
      %968 = vrot.lane.b32.xlu0 %v803, 40
      %v969 = vpop.permute.xlu0 %968
      %971 = vrot.lane.b32.xlu0 %v803, 56
      %v972 = vpop.permute.xlu0 %971
      %974 = vrot.lane.b32.xlu0 %v803, 72
      %v975 = vpop.permute.xlu0 %974
      %977 = vrot.lane.b32.xlu0 %v803, 88
      %v978 = vpop.permute.xlu0 %977
      %980 = vrot.lane.b32.xlu0 %v803, 104
      %v981 = vpop.permute.xlu0 %980
      %983 = vrot.lane.b32.xlu0 %v803, 120
      %v984 = vpop.permute.xlu0 %983
      %v986 = vsel %vm825, 0.0, %v963
      %v987 = vsel %vm827, %v986, 0.0
      %v988 = vsel %vm829, %v987, %v966
      %v989 = vsel %vm831, %v988, 0.0
      %v990 = vsel %vm833, %v989, %v969
      %v991 = vsel %vm835, %v990, 0.0
      %v992 = vsel %vm837, %v991, %v972
      %v993 = vsel %vm839, %v992, 0.0
      %v994 = vsel %vm841, %v993, %v975
      %v995 = vsel %vm843, %v994, 0.0
      %v996 = vsel %vm845, %v995, %v978
      %v997 = vsel %vm847, %v996, 0.0
      %v998 = vsel %vm849, %v997, %v981
      %v999 = vsel %vm851, %v998, 0.0
      %v1000 = vsel %vm853, %v999, %v984
      %v1001 = vperm.slane %v1000, 0
      %v1002 = vmul.f32 %v863, %v1001
      %v1003 = vmul.f32 %v912, %v1001
      %v1004 = vadd.f32 %v960, %v1002
      %v1005 = vadd.f32 %v961, %v1003
      %vm1006 = vcmp.gt.f32.partialorder %v1004, 0.0
      %vm1007 = vcmp.gt.f32.partialorder %v1005, 0.0
      %v1008 = vsel %vm1006, 0.0, -1e+30
      %v1009 = vsel %vm1007, 0.0, -1e+30
      %v1010 = vld [vmem:[%s6] sm:$0xff]
      %v1011 = vld [vmem:[%s6 + $0x8] sm:$0xff]
      %v1012 = vld [vmem:[%s6 + $0x10] sm:$0xff]
      %v1013 = vld [vmem:[%s6 + $0x18] sm:$0xff]
      %v1014 = vld [vmem:[%s6 + $0x20] sm:$0xff]
      %v1015 = vld [vmem:[%s6 + $0x28] sm:$0xff]
      %v1016 = vld [vmem:[%s6 + $0x30] sm:$0xff]
      %v1017 = vld [vmem:[%s6 + $0x38] sm:$0xff]
      %v1018 = vld [vmem:[%s6 + $0x40] sm:$0xff]
      %v1019 = vld [vmem:[%s6 + $0x48] sm:$0xff]
      %v1020 = vld [vmem:[%s6 + $0x50] sm:$0xff]
      %v1021 = vld [vmem:[%s6 + $0x58] sm:$0xff]
      %v1022 = vld [vmem:[%s6 + $0x60] sm:$0xff]
      %v1023 = vld [vmem:[%s6 + $0x68] sm:$0xff]
      %v1024 = vld [vmem:[%s6 + $0x70] sm:$0xff]
      %v1025 = vld [vmem:[%s6 + $0x78] sm:$0xff]
      %v1026 = vld [vmem:[%s7] sm:$0xff]
      %v1027 = vld [vmem:[%s7 + $0x8] sm:$0xff]
      %v1028 = vld [vmem:[%s7 + $0x10] sm:$0xff]
      %v1029 = vld [vmem:[%s7 + $0x18] sm:$0xff]
      %v1030 = vld [vmem:[%s7 + $0x20] sm:$0xff]
      %v1031 = vld [vmem:[%s7 + $0x28] sm:$0xff]
      %v1032 = vld [vmem:[%s7 + $0x30] sm:$0xff]
      %v1033 = vld [vmem:[%s7 + $0x38] sm:$0xff]
      %v1034 = vld [vmem:[%s7 + $0x40] sm:$0xff]
      %v1035 = vld [vmem:[%s7 + $0x48] sm:$0xff]
      %v1036 = vld [vmem:[%s7 + $0x50] sm:$0xff]
      %v1037 = vld [vmem:[%s7 + $0x58] sm:$0xff]
      %v1038 = vld [vmem:[%s7 + $0x60] sm:$0xff]
      %v1039 = vld [vmem:[%s7 + $0x68] sm:$0xff]
      %v1040 = vld [vmem:[%s7 + $0x70] sm:$0xff]
      %v1041 = vld [vmem:[%s7 + $0x78] sm:$0xff]
      %s1042 = scalar_lea.vmem %s8, 16
      %v1043 = vld [vmem:[%s1042] sm:$0xf]
      %v1044 = vld [vmem:[%s1042 + $0x4] sm:$0xf]
      %v1045 = vld [vmem:[%s1042 + $0x8] sm:$0xf]
      %v1046 = vld [vmem:[%s1042 + $0xc] sm:$0xf]
      %s1047 = scalar_lea.vmem %s9, 16
      %v1048 = vld [vmem:[%s1047] sm:$0xf]
      %v1049 = vld [vmem:[%s1047 + $0x4] sm:$0xf]
      %v1050 = vld [vmem:[%s1047 + $0x8] sm:$0xf]
      %v1051 = vld [vmem:[%s1047 + $0xc] sm:$0xf]
      %s1052 = scalar_lea.vmem %s10, 16
      %v1053 = vld [vmem:[%s1052] sm:$0xf]
      %v1054 = vld [vmem:[%s1052 + $0x4] sm:$0xf]
      %v1055 = vld [vmem:[%s1052 + $0x8] sm:$0xf]
      %v1056 = vld [vmem:[%s1052 + $0xc] sm:$0xf]
      %s1057 = scalar_lea.vmem %s11, 16
      %v1058 = vld [vmem:[%s1057] sm:$0xf]
      %v1059 = vld [vmem:[%s1057 + $0x4] sm:$0xf]
      %v1060 = vld [vmem:[%s1057 + $0x8] sm:$0xf]
      %v1061 = vld [vmem:[%s1057 + $0xc] sm:$0xf]
      %s1062 = scalar_lea.vmem %s12, 16
      %v1063 = vld [vmem:[%s1062] sm:$0xf]
      %v1064 = vld [vmem:[%s1062 + $0x4] sm:$0xf]
      %v1065 = vld [vmem:[%s1062 + $0x8] sm:$0xf]
      %v1066 = vld [vmem:[%s1062 + $0xc] sm:$0xf]
      %s1067 = scalar_lea.vmem %s13, 1
      %v1068 = vld [vmem:[%s1067] sm:$0x1]
      %s1069 = scalar_lea.vmem %s14, 64
      %v1070 = vld [vmem:[%s1069] sm:$0xf]
      %v1071 = vld [vmem:[%s1069 + $0x4] sm:$0xf]
      %v1072 = vld [vmem:[%s1069 + $0x8] sm:$0xf]
      %v1073 = vld [vmem:[%s1069 + $0xc] sm:$0xf]
      %v1074 = vld [vmem:[%s1069 + $0x10] sm:$0xf]
      %v1075 = vld [vmem:[%s1069 + $0x14] sm:$0xf]
      %v1076 = vld [vmem:[%s1069 + $0x18] sm:$0xf]
      %v1077 = vld [vmem:[%s1069 + $0x1c] sm:$0xf]
      %v1078 = vld [vmem:[%s1069 + $0x20] sm:$0xf]
      %v1079 = vld [vmem:[%s1069 + $0x24] sm:$0xf]
      %v1080 = vld [vmem:[%s1069 + $0x28] sm:$0xf]
      %v1081 = vld [vmem:[%s1069 + $0x2c] sm:$0xf]
      %v1082 = vld [vmem:[%s1069 + $0x30] sm:$0xf]
      %v1083 = vld [vmem:[%s1069 + $0x34] sm:$0xf]
      %v1084 = vld [vmem:[%s1069 + $0x38] sm:$0xf]
      %v1085 = vld [vmem:[%s1069 + $0x3c] sm:$0xf]
      %s1086 = scalar_lea.vmem %s15, 1
      %v1087 = vld [vmem:[%s1086] sm:$0x1]
      %s1088 = scalar_lea.vmem %s16, 1
      %v1089 = vld [vmem:[%s1088] sm:$0x1]
      %s1090 = scalar_lea.vmem %s17, 1
      %v1091 = vld [vmem:[%s1090] sm:$0x1]
      %s1092 = scalar_lea.vmem %s18, 1
      %v1093 = vld [vmem:[%s1092] sm:$0x1]
      %s1094 = scalar_lea.vmem %s19, 1
      %v1095 = vld [vmem:[%s1094] sm:$0x1]
      %v1096 = vpack.c.bf16 %v797, %v796
      %v1101 = vunpack.c.l.b16 %v1043
      %v1102 = vunpack.c.l.b16 %v1044
      %v1103 = vunpack.c.l.b16 %v1045
      %v1104 = vunpack.c.l.b16 %v1046
      %v1105 = vpack.c.b16 %v1102, %v1101
      %v1106 = vpack.c.b16 %v1104, %v1103
      %v1110 = vsel %vm831, %v1096, 0
      %1112 = vmatpush.bf16.msra.mxu0 0
      %1113 = vmatpush.bf16.msra.mxu0 0
      %1114 = vmatpush.bf16.msra.mxu0 0
      %1115 = vmatpush.bf16.msra.mxu0 0
      %1116 = vmatpush.bf16.msra.mxu0 0
      %1117 = vmatpush.bf16.msra.mxu0 0
      %1118 = vmatpush.bf16.msra.mxu0 %v1106
      %1119 = vmatpush.bf16.msra.mxu0 %v1105
      %1120 = vmatmul.bf16.gmra.mxu0 %v1110
      %v1121 = vpop.f32.mrf.mxu0
      %v1122 = vadd.f32 0.0, %v1121
      %v1123 = vpop.f32.mrf.mxu0
      %v1124 = vadd.f32 0.0, %v1123
      %1125 = vdwg.mxu0
      %v1126 = vpack.c.bf16 %v796, %v797
      %v1131 = vunpack.c.l.b16 %v1048
      %v1132 = vunpack.c.l.b16 %v1049
      %v1133 = vunpack.c.l.b16 %v1050
      %v1134 = vunpack.c.l.b16 %v1051
      %v1135 = vpack.c.b16 %v1132, %v1131
      %v1136 = vpack.c.b16 %v1134, %v1133
      %v1140 = vsel %vm831, %v1126, 0
      %1142 = vmatpush.bf16.msra.mxu0 0
      %1143 = vmatpush.bf16.msra.mxu0 0
      %1144 = vmatpush.bf16.msra.mxu0 0
      %1145 = vmatpush.bf16.msra.mxu0 0
      %1146 = vmatpush.bf16.msra.mxu0 0
      %1147 = vmatpush.bf16.msra.mxu0 0
      %1148 = vmatpush.bf16.msra.mxu0 %v1136
      %1149 = vmatpush.bf16.msra.mxu0 %v1135
      %1150 = vmatmul.bf16.gmra.mxu0 %v1140
      %v1151 = vpop.f32.mrf.mxu0
      %v1152 = vadd.f32 0.0, %v1151
      %v1153 = vpop.f32.mrf.mxu0
      %v1154 = vadd.f32 0.0, %v1153
      %1155 = vdwg.mxu0
      %v1160 = vunpack.c.l.b16 %v1053
      %v1161 = vunpack.c.l.b16 %v1054
      %v1162 = vunpack.c.l.b16 %v1055
      %v1163 = vunpack.c.l.b16 %v1056
      %v1164 = vpack.c.b16 %v1161, %v1160
      %v1165 = vpack.c.b16 %v1163, %v1162
      %1168 = vmatpush.bf16.msra.mxu0 0
      %1169 = vmatpush.bf16.msra.mxu0 0
      %1170 = vmatpush.bf16.msra.mxu0 0
      %1171 = vmatpush.bf16.msra.mxu0 0
      %1172 = vmatpush.bf16.msra.mxu0 0
      %1173 = vmatpush.bf16.msra.mxu0 0
      %1174 = vmatpush.bf16.msra.mxu0 %v1165
      %1175 = vmatpush.bf16.msra.mxu0 %v1164
      %1176 = vmatmul.bf16.gmra.mxu0 %v1140
      %v1177 = vpop.f32.mrf.mxu0
      %v1178 = vadd.f32 0.0, %v1177
      %v1179 = vpop.f32.mrf.mxu0
      %v1180 = vadd.f32 0.0, %v1179
      %1181 = vdwg.mxu0
      %v1182 = vmul.f32 %v1152, %v1010
      %v1183 = vmul.f32 %v1154, %v1011
      %v1184 = vmul.f32 %v1152, %v1012
      %v1185 = vmul.f32 %v1154, %v1013
      %v1186 = vmul.f32 %v1152, %v1014
      %v1187 = vmul.f32 %v1154, %v1015
      %v1188 = vmul.f32 %v1152, %v1016
      %v1189 = vmul.f32 %v1154, %v1017
      %v1190 = vmul.f32 %v1152, %v1018
      %v1191 = vmul.f32 %v1154, %v1019
      %v1192 = vmul.f32 %v1152, %v1020
      %v1193 = vmul.f32 %v1154, %v1021
      %v1194 = vmul.f32 %v1152, %v1022
      %v1195 = vmul.f32 %v1154, %v1023
      %v1196 = vmul.f32 %v1152, %v1024
      %v1197 = vmul.f32 %v1154, %v1025
      %v1198 = vpack.c.bf16 %v1183, %v1182
      %v1199 = vpack.c.bf16 %v1185, %v1184
      %v1200 = vpack.c.bf16 %v1187, %v1186
      %v1201 = vpack.c.bf16 %v1189, %v1188
      %v1202 = vpack.c.bf16 %v1191, %v1190
      %v1203 = vpack.c.bf16 %v1193, %v1192
      %v1204 = vpack.c.bf16 %v1195, %v1194
      %v1205 = vpack.c.bf16 %v1197, %v1196
      %v1206 = vmul.f32 %v1178, %v1010
      %v1207 = vmul.f32 %v1180, %v1011
      %v1208 = vmul.f32 %v1178, %v1012
      %v1209 = vmul.f32 %v1180, %v1013
      %v1210 = vmul.f32 %v1178, %v1014
      %v1211 = vmul.f32 %v1180, %v1015
      %v1212 = vmul.f32 %v1178, %v1016
      %v1213 = vmul.f32 %v1180, %v1017
      %v1214 = vmul.f32 %v1178, %v1018
      %v1215 = vmul.f32 %v1180, %v1019
      %v1216 = vmul.f32 %v1178, %v1020
      %v1217 = vmul.f32 %v1180, %v1021
      %v1218 = vmul.f32 %v1178, %v1022
      %v1219 = vmul.f32 %v1180, %v1023
      %v1220 = vmul.f32 %v1178, %v1024
      %v1221 = vmul.f32 %v1180, %v1025
      %v1222 = vpack.c.bf16 %v1207, %v1206
      %v1223 = vpack.c.bf16 %v1209, %v1208
      %v1224 = vpack.c.bf16 %v1211, %v1210
      %v1225 = vpack.c.bf16 %v1213, %v1212
      %v1226 = vpack.c.bf16 %v1215, %v1214
      %v1227 = vpack.c.bf16 %v1217, %v1216
      %v1228 = vpack.c.bf16 %v1219, %v1218
      %v1229 = vpack.c.bf16 %v1221, %v1220
      %v1230 = vpack.c.bf16 %v1124, %v1122
      %v1232 = vsel %vm831, %v1230, 0
      %v1235 = vsel %vm831, %v1198, 0
      %v1238 = vsel %vm831, %v1199, 0
      %v1241 = vsel %vm831, %v1200, 0
      %v1244 = vsel %vm831, %v1201, 0
      %v1247 = vsel %vm831, %v1202, 0
      %v1250 = vsel %vm831, %v1203, 0
      %v1253 = vsel %vm831, %v1204, 0
      %v1256 = vsel %vm831, %v1205, 0
      %1258 = vmatpush.bf16.xpose.msra.mxu0 %v1256
      %1259 = vmatpush.bf16.xpose.msra.mxu0 %v1253
      %1260 = vmatpush.bf16.xpose.msra.mxu0 %v1250
      %1261 = vmatpush.bf16.xpose.msra.mxu0 %v1247
      %1262 = vmatpush.bf16.xpose.msra.mxu0 %v1244
      %1263 = vmatpush.bf16.xpose.msra.mxu0 %v1241
      %1264 = vmatpush.bf16.xpose.msra.mxu0 %v1238
      %1265 = vmatpush.bf16.xpose.msra.mxu0 %v1235
      %1266 = vmatmul.bf16.gmra.mxu0 %v1232
      %v1267 = vpop.f32.mrf.mxu0
      %v1268 = vadd.f32 0.0, %v1267
      %v1269 = vpop.f32.mrf.mxu0
      %v1270 = vadd.f32 0.0, %v1269
      %1271 = vdwg.mxu0
      %v1272 = vmul.f32 %v1268, 0.5
      %v1273 = vmul.f32 %v1270, 0.5
      %v1274 = vadd.f32 %v1272, %v1008
      %v1275 = vadd.f32 %v1273, %v1009
      %1276 = vmax.xlane.f32.xlu0 %v1274
      %v1277 = vpop.xlane.xlu0 %1276
      %1278 = vmax.xlane.f32.xlu0 %v1275
      %v1279 = vpop.xlane.xlu0 %1278
      %v1280 = vsub.f32 %v1274, %v1277
      %v1281 = vsub.f32 %v1275, %v1279
      %v1282 = vmul.f32 %v1280, 1.442695
      %v1283 = vpow.pop %v1282
      %v1284 = vmul.f32 %v1281, 1.442695
      %v1285 = vpow.pop %v1284
      %v1286 = vmul.f32 %v1283, %v1004
      %v1287 = vmul.f32 %v1285, %v1005
      %1288 = vmatpush.msra.mxu0 %v1041
      %1289 = vmatpush.msra.mxu0 %v1040
      %1290 = vmatpush.msra.mxu0 %v1039
      %1291 = vmatpush.msra.mxu0 %v1038
      %1292 = vmatpush.msra.mxu0 %v1037
      %1293 = vmatpush.msra.mxu0 %v1036
      %1294 = vmatpush.msra.mxu0 %v1035
      %1295 = vmatpush.msra.mxu0 %v1034
      %1296 = vmatpush.msra.mxu0 %v1033
      %1297 = vmatpush.msra.mxu0 %v1032
      %1298 = vmatpush.msra.mxu0 %v1031
      %1299 = vmatpush.msra.mxu0 %v1030
      %1300 = vmatpush.msra.mxu0 %v1029
      %1301 = vmatpush.msra.mxu0 %v1028
      %1302 = vmatpush.msra.mxu0 %v1027
      %1303 = vmatpush.msra.mxu0 %v1026
      %1304 = vmatmul.f32.gmra.mxu0 %v1286
      %v1305 = vpop.f32.mrf.mxu0
      %v1306 = vadd.f32 0.0, %v1305
      %1307 = vmatmul.f32.gmra.mxu0 %v1287
      %v1308 = vpop.f32.mrf.mxu0
      %v1309 = vadd.f32 0.0, %v1308
      %1310 = vdwg.mxu0
      %v1311 = vmax.f32 %v1306, 1e-30
      %v1312 = vmax.f32 %v1309, 1e-30
      %v1313 = vrcp.pop %v1311
      %v1314 = vrcp.pop %v1312
      %v1315 = vmul.f32 %v1286, %v1313
      %v1316 = vmul.f32 %v1287, %v1314
      %v1317 = vpack.c.bf16 %v1316, %v1315
      %1318 = vmatpush.bf16.msra.mxu0 %v1229
      %1319 = vmatpush.bf16.msra.mxu0 %v1228
      %1320 = vmatpush.bf16.msra.mxu0 %v1227
      %1321 = vmatpush.bf16.msra.mxu0 %v1226
      %1322 = vmatpush.bf16.msra.mxu0 %v1225
      %1323 = vmatpush.bf16.msra.mxu0 %v1224
      %1324 = vmatpush.bf16.msra.mxu0 %v1223
      %1325 = vmatpush.bf16.msra.mxu0 %v1222
      %1326 = vmatmul.bf16.gmra.mxu0 %v1317
      %v1327 = vpop.f32.mrf.mxu0
      %v1328 = vadd.f32 0.0, %v1327
      %v1329 = vpop.f32.mrf.mxu0
      %v1330 = vadd.f32 0.0, %v1329
      %1331 = vdwg.mxu0
      %v1332 = vpack.c.bf16 %v1330, %v1328
      %v1337 = vunpack.c.l.b16 %v1058
      %v1338 = vunpack.c.l.b16 %v1059
      %v1339 = vunpack.c.l.b16 %v1060
      %v1340 = vunpack.c.l.b16 %v1061
      %v1341 = vpack.c.b16 %v1338, %v1337
      %v1342 = vpack.c.b16 %v1340, %v1339
      %v1346 = vsel %vm831, %v1332, 0
      %1348 = vmatpush.bf16.msra.mxu0 0
      %1349 = vmatpush.bf16.msra.mxu0 0
      %1350 = vmatpush.bf16.msra.mxu0 0
      %1351 = vmatpush.bf16.msra.mxu0 0
      %1352 = vmatpush.bf16.msra.mxu0 0
      %1353 = vmatpush.bf16.msra.mxu0 0
      %1354 = vmatpush.bf16.msra.mxu0 %v1342
      %1355 = vmatpush.bf16.msra.mxu0 %v1341
      %1356 = vmatmul.bf16.gmra.mxu0 %v1346
      %v1357 = vpop.f32.mrf.mxu0
      %v1358 = vadd.f32 0.0, %v1357
      %v1359 = vpop.f32.mrf.mxu0
      %v1360 = vadd.f32 0.0, %v1359
      %1361 = vdwg.mxu0
      %v1362 = vadd.f32 %v796, %v1358
      %v1363 = vadd.f32 %v797, %v1360
      %v1364 = vsel %vm831, %v1362, 0.0
      %1365 = vadd.xlane.f32.xlu0 %v1364
      %v1366 = vpop.xlane.xlu0 %1365
      %v1367 = vsel %vm831, %v1363, 0.0
      %1368 = vadd.xlane.f32.xlu0 %v1367
      %v1369 = vpop.xlane.xlu0 %1368
      %v1370 = vrcp.pop 32.0
      %v1371 = vmul.f32 32.0, %v1370
      %v1372 = vsub.f32 1.0, %v1371
      %v1373 = vmul.f32 %v1370, %v1372
      %v1374 = vadd.f32 %v1370, %v1373
      %vm1375 = vweird.f32 %v1370
      %v1376 = vsel %vm1375, %v1370, %v1374
      %v1377 = vmul.f32 %v1366, %v1376
      %v1378 = vmul.f32 %v1369, %v1376
      %v1379 = vsub.f32 %v1362, %v1377
      %v1380 = vsub.f32 %v1363, %v1378
      %v1381 = vmul.f32 %v1379, %v1379
      %v1382 = vmul.f32 %v1380, %v1380
      %v1383 = vsel %vm831, %v1381, 0.0
      %1384 = vadd.xlane.f32.xlu0 %v1383
      %v1385 = vpop.xlane.xlu0 %1384
      %v1386 = vsel %vm831, %v1382, 0.0
      %1387 = vadd.xlane.f32.xlu0 %v1386
      %v1388 = vpop.xlane.xlu0 %1387
      %v1389 = vmul.f32 %v1385, %v1376
      %v1390 = vmul.f32 %v1388, %v1376
      %v1391 = vadd.f32 %v1389, 1e-05
      %v1392 = vadd.f32 %v1390, 1e-05
      %v1393 = vrsqrt.pop %v1391
      %v1394 = vmul.f32 %v1393, %v1391
      %v1395 = vmul.f32 %v1394, %v1393
      %v1396 = vmul.f32 0.5, %v1395
      %v1397 = vsub.f32 1.5, %v1396
      %v1398 = vmul.f32 %v1393, %v1397
      %vm1399 = vweird.f32 %v1391
      %vm1400 = vweird.f32 %v1393
      %vm1401 = vmor %vm1399, %vm1400
      %v1402 = vsel %vm1401, %v1393, %v1398
      %v1403 = vrsqrt.pop %v1392
      %v1404 = vmul.f32 %v1403, %v1392
      %v1405 = vmul.f32 %v1404, %v1403
      %v1406 = vmul.f32 0.5, %v1405
      %v1407 = vsub.f32 1.5, %v1406
      %v1408 = vmul.f32 %v1403, %v1407
      %vm1409 = vweird.f32 %v1392
      %vm1410 = vweird.f32 %v1403
      %vm1411 = vmor %vm1409, %vm1410
      %v1412 = vsel %vm1411, %v1403, %v1408
      %v1413 = vmul.f32 %v1379, %v1402
      %v1414 = vmul.f32 %v1380, %v1412
      %v1416 = vperm.slane %v1089, 0
      %v1418 = vmul.f32 %v1413, %v1416
      %v1419 = vmul.f32 %v1414, %v1416
      %v1421 = vperm.slane %v1091, 0
      %v1423 = vadd.f32 %v1418, %v1421
      %v1424 = vadd.f32 %v1419, %v1421
      %v1425 = vpack.c.bf16 %v1424, %v1423
      %v1427 = vperm.slane %v1068, 0
      %v1433 = vunpack.c.l.b16 %v1063
      %v1434 = vunpack.c.l.b16 %v1064
      %v1435 = vunpack.c.l.b16 %v1065
      %v1436 = vunpack.c.l.b16 %v1066
      %v1437 = vpack.c.b16 %v1434, %v1433
      %v1438 = vpack.c.b16 %v1436, %v1435
      %v1442 = vsel %vm831, %v1425, 0
      %1444 = vmatpush.bf16.msra.mxu0 0
      %1445 = vmatpush.bf16.msra.mxu0 0
      %1446 = vmatpush.bf16.msra.mxu0 0
      %1447 = vmatpush.bf16.msra.mxu0 0
      %1448 = vmatpush.bf16.msra.mxu0 0
      %1449 = vmatpush.bf16.msra.mxu0 0
      %1450 = vmatpush.bf16.msra.mxu0 %v1438
      %1451 = vmatpush.bf16.msra.mxu0 %v1437
      %1452 = vmatmul.bf16.gmra.mxu0 %v1442
      %v1453 = vpop.f32.mrf.mxu0
      %v1454 = vadd.f32 %v1427, %v1453
      %v1455 = vpop.f32.mrf.mxu0
      %v1456 = vadd.f32 %v1427, %v1455
      %1457 = vdwg.mxu0
      %v1458 = vmax.f32 %v1454, 0.0
      %v1459 = vmax.f32 %v1456, 0.0
      %v1460 = vpack.c.bf16 %v1459, %v1458
      %v1462 = vperm.slane %v1087, 0
      %v1480 = vunpack.c.l.b16 %v1070
      %v1481 = vunpack.c.l.b16 %v1071
      %v1482 = vunpack.c.l.b16 %v1072
      %v1483 = vunpack.c.l.b16 %v1073
      %v1484 = vunpack.c.l.b16 %v1074
      %v1485 = vunpack.c.l.b16 %v1075
      %v1486 = vunpack.c.l.b16 %v1076
      %v1487 = vunpack.c.l.b16 %v1077
      %v1488 = vunpack.c.l.b16 %v1078
      %v1489 = vunpack.c.l.b16 %v1079
      %v1490 = vunpack.c.l.b16 %v1080
      %v1491 = vunpack.c.l.b16 %v1081
      %v1492 = vunpack.c.l.b16 %v1082
      %v1493 = vunpack.c.l.b16 %v1083
      %v1494 = vunpack.c.l.b16 %v1084
      %v1495 = vunpack.c.l.b16 %v1085
      %v1496 = vpack.c.b16 %v1481, %v1480
      %v1497 = vpack.c.b16 %v1483, %v1482
      %v1498 = vpack.c.b16 %v1485, %v1484
      %v1499 = vpack.c.b16 %v1487, %v1486
      %v1500 = vpack.c.b16 %v1489, %v1488
      %v1501 = vpack.c.b16 %v1491, %v1490
      %v1502 = vpack.c.b16 %v1493, %v1492
      %v1503 = vpack.c.b16 %v1495, %v1494
      %1512 = vmatpush.bf16.msra.mxu0 %v1503
      %1513 = vmatpush.bf16.msra.mxu0 %v1502
      %1514 = vmatpush.bf16.msra.mxu0 %v1501
      %1515 = vmatpush.bf16.msra.mxu0 %v1500
      %1516 = vmatpush.bf16.msra.mxu0 %v1499
      %1517 = vmatpush.bf16.msra.mxu0 %v1498
      %1518 = vmatpush.bf16.msra.mxu0 %v1497
      %1519 = vmatpush.bf16.msra.mxu0 %v1496
      %1520 = vmatmul.bf16.gmra.mxu0 %v1460
      %v1521 = vpop.f32.mrf.mxu0
      %v1522 = vadd.f32 %v1462, %v1521
      %v1523 = vpop.f32.mrf.mxu0
      %v1524 = vadd.f32 %v1462, %v1523
      %1525 = vdwg.mxu0
      %v1526 = vadd.f32 %v1423, %v1522
      %v1527 = vadd.f32 %v1424, %v1524
      %v1528 = vsel %vm831, %v1526, 0.0
      %1529 = vadd.xlane.f32.xlu0 %v1528
      %v1530 = vpop.xlane.xlu0 %1529
      %v1531 = vsel %vm831, %v1527, 0.0
      %1532 = vadd.xlane.f32.xlu0 %v1531
      %v1533 = vpop.xlane.xlu0 %1532
      %v1534 = vmul.f32 %v1530, %v1376
      %v1535 = vmul.f32 %v1533, %v1376
      %v1536 = vsub.f32 %v1526, %v1534
      %v1537 = vsub.f32 %v1527, %v1535
      %v1538 = vmul.f32 %v1536, %v1536
      %v1539 = vmul.f32 %v1537, %v1537
      %v1540 = vsel %vm831, %v1538, 0.0
      %1541 = vadd.xlane.f32.xlu0 %v1540
      %v1542 = vpop.xlane.xlu0 %1541
      %v1543 = vsel %vm831, %v1539, 0.0
      %1544 = vadd.xlane.f32.xlu0 %v1543
      %v1545 = vpop.xlane.xlu0 %1544
      %v1546 = vmul.f32 %v1542, %v1376
      %v1547 = vmul.f32 %v1545, %v1376
      %v1548 = vadd.f32 %v1546, 1e-05
      %v1549 = vadd.f32 %v1547, 1e-05
      %v1550 = vrsqrt.pop %v1548
      %v1551 = vmul.f32 %v1550, %v1548
      %v1552 = vmul.f32 %v1551, %v1550
      %v1553 = vmul.f32 0.5, %v1552
      %v1554 = vsub.f32 1.5, %v1553
      %v1555 = vmul.f32 %v1550, %v1554
      %vm1556 = vweird.f32 %v1548
      %vm1557 = vweird.f32 %v1550
      %vm1558 = vmor %vm1556, %vm1557
      %v1559 = vsel %vm1558, %v1550, %v1555
      %v1560 = vrsqrt.pop %v1549
      %v1561 = vmul.f32 %v1560, %v1549
      %v1562 = vmul.f32 %v1561, %v1560
      %v1563 = vmul.f32 0.5, %v1562
      %v1564 = vsub.f32 1.5, %v1563
      %v1565 = vmul.f32 %v1560, %v1564
      %vm1566 = vweird.f32 %v1549
      %vm1567 = vweird.f32 %v1560
      %vm1568 = vmor %vm1566, %vm1567
      %v1569 = vsel %vm1568, %v1560, %v1565
      %v1570 = vmul.f32 %v1536, %v1559
      %v1571 = vmul.f32 %v1537, %v1569
      %v1573 = vperm.slane %v1093, 0
      %v1575 = vmul.f32 %v1570, %v1573
      %v1576 = vmul.f32 %v1571, %v1573
      %v1578 = vperm.slane %v1095, 0
      %v1580 = vadd.f32 %v1575, %v1578
      %v1581 = vadd.f32 %v1576, %v1578
      %v1582 = vadd.f32 %v796, %v1580
      %v1583 = vadd.f32 %v797, %v1581
      %s1584 = scalar_lea.vmem %s8, 32
      %v1585 = vld [vmem:[%s1584] sm:$0xf]
      %v1586 = vld [vmem:[%s1584 + $0x4] sm:$0xf]
      %v1587 = vld [vmem:[%s1584 + $0x8] sm:$0xf]
      %v1588 = vld [vmem:[%s1584 + $0xc] sm:$0xf]
      %s1589 = scalar_lea.vmem %s9, 32
      %v1590 = vld [vmem:[%s1589] sm:$0xf]
      %v1591 = vld [vmem:[%s1589 + $0x4] sm:$0xf]
      %v1592 = vld [vmem:[%s1589 + $0x8] sm:$0xf]
      %v1593 = vld [vmem:[%s1589 + $0xc] sm:$0xf]
      %s1594 = scalar_lea.vmem %s10, 32
      %v1595 = vld [vmem:[%s1594] sm:$0xf]
      %v1596 = vld [vmem:[%s1594 + $0x4] sm:$0xf]
      %v1597 = vld [vmem:[%s1594 + $0x8] sm:$0xf]
      %v1598 = vld [vmem:[%s1594 + $0xc] sm:$0xf]
      %s1599 = scalar_lea.vmem %s11, 32
      %v1600 = vld [vmem:[%s1599] sm:$0xf]
      %v1601 = vld [vmem:[%s1599 + $0x4] sm:$0xf]
      %v1602 = vld [vmem:[%s1599 + $0x8] sm:$0xf]
      %v1603 = vld [vmem:[%s1599 + $0xc] sm:$0xf]
      %s1604 = scalar_lea.vmem %s12, 32
      %v1605 = vld [vmem:[%s1604] sm:$0xf]
      %v1606 = vld [vmem:[%s1604 + $0x4] sm:$0xf]
      %v1607 = vld [vmem:[%s1604 + $0x8] sm:$0xf]
      %v1608 = vld [vmem:[%s1604 + $0xc] sm:$0xf]
      %s1609 = scalar_lea.vmem %s13, 2
      %v1610 = vld [vmem:[%s1609] sm:$0x1]
      %s1611 = scalar_lea.vmem %s14, 128
      %v1612 = vld [vmem:[%s1611] sm:$0xf]
      %v1613 = vld [vmem:[%s1611 + $0x4] sm:$0xf]
      %v1614 = vld [vmem:[%s1611 + $0x8] sm:$0xf]
      %v1615 = vld [vmem:[%s1611 + $0xc] sm:$0xf]
      %v1616 = vld [vmem:[%s1611 + $0x10] sm:$0xf]
      %v1617 = vld [vmem:[%s1611 + $0x14] sm:$0xf]
      %v1618 = vld [vmem:[%s1611 + $0x18] sm:$0xf]
      %v1619 = vld [vmem:[%s1611 + $0x1c] sm:$0xf]
      %v1620 = vld [vmem:[%s1611 + $0x20] sm:$0xf]
      %v1621 = vld [vmem:[%s1611 + $0x24] sm:$0xf]
      %v1622 = vld [vmem:[%s1611 + $0x28] sm:$0xf]
      %v1623 = vld [vmem:[%s1611 + $0x2c] sm:$0xf]
      %v1624 = vld [vmem:[%s1611 + $0x30] sm:$0xf]
      %v1625 = vld [vmem:[%s1611 + $0x34] sm:$0xf]
      %v1626 = vld [vmem:[%s1611 + $0x38] sm:$0xf]
      %v1627 = vld [vmem:[%s1611 + $0x3c] sm:$0xf]
      %s1628 = scalar_lea.vmem %s15, 2
      %v1629 = vld [vmem:[%s1628] sm:$0x1]
      %s1630 = scalar_lea.vmem %s16, 2
      %v1631 = vld [vmem:[%s1630] sm:$0x1]
      %s1632 = scalar_lea.vmem %s17, 2
      %v1633 = vld [vmem:[%s1632] sm:$0x1]
      %s1634 = scalar_lea.vmem %s18, 2
      %v1635 = vld [vmem:[%s1634] sm:$0x1]
      %s1636 = scalar_lea.vmem %s19, 2
      %v1637 = vld [vmem:[%s1636] sm:$0x1]
      %v1638 = vpack.c.bf16 %v1583, %v1582
      %v1643 = vunpack.c.l.b16 %v1585
      %v1644 = vunpack.c.l.b16 %v1586
      %v1645 = vunpack.c.l.b16 %v1587
      %v1646 = vunpack.c.l.b16 %v1588
      %v1647 = vpack.c.b16 %v1644, %v1643
      %v1648 = vpack.c.b16 %v1646, %v1645
      %v1652 = vsel %vm831, %v1638, 0
      %1654 = vmatpush.bf16.msra.mxu0 0
      %1655 = vmatpush.bf16.msra.mxu0 0
      %1656 = vmatpush.bf16.msra.mxu0 0
      %1657 = vmatpush.bf16.msra.mxu0 0
      %1658 = vmatpush.bf16.msra.mxu0 0
      %1659 = vmatpush.bf16.msra.mxu0 0
      %1660 = vmatpush.bf16.msra.mxu0 %v1648
      %1661 = vmatpush.bf16.msra.mxu0 %v1647
      %1662 = vmatmul.bf16.gmra.mxu0 %v1652
      %v1663 = vpop.f32.mrf.mxu0
      %v1664 = vadd.f32 0.0, %v1663
      %v1665 = vpop.f32.mrf.mxu0
      %v1666 = vadd.f32 0.0, %v1665
      %1667 = vdwg.mxu0
      %v1672 = vunpack.c.l.b16 %v1590
      %v1673 = vunpack.c.l.b16 %v1591
      %v1674 = vunpack.c.l.b16 %v1592
      %v1675 = vunpack.c.l.b16 %v1593
      %v1676 = vpack.c.b16 %v1673, %v1672
      %v1677 = vpack.c.b16 %v1675, %v1674
      %1680 = vmatpush.bf16.msra.mxu0 0
      %1681 = vmatpush.bf16.msra.mxu0 0
      %1682 = vmatpush.bf16.msra.mxu0 0
      %1683 = vmatpush.bf16.msra.mxu0 0
      %1684 = vmatpush.bf16.msra.mxu0 0
      %1685 = vmatpush.bf16.msra.mxu0 0
      %1686 = vmatpush.bf16.msra.mxu0 %v1677
      %1687 = vmatpush.bf16.msra.mxu0 %v1676
      %1688 = vmatmul.bf16.gmra.mxu0 %v1652
      %v1689 = vpop.f32.mrf.mxu0
      %v1690 = vadd.f32 0.0, %v1689
      %v1691 = vpop.f32.mrf.mxu0
      %v1692 = vadd.f32 0.0, %v1691
      %1693 = vdwg.mxu0
      %v1698 = vunpack.c.l.b16 %v1595
      %v1699 = vunpack.c.l.b16 %v1596
      %v1700 = vunpack.c.l.b16 %v1597
      %v1701 = vunpack.c.l.b16 %v1598
      %v1702 = vpack.c.b16 %v1699, %v1698
      %v1703 = vpack.c.b16 %v1701, %v1700
      %1706 = vmatpush.bf16.msra.mxu0 0
      %1707 = vmatpush.bf16.msra.mxu0 0
      %1708 = vmatpush.bf16.msra.mxu0 0
      %1709 = vmatpush.bf16.msra.mxu0 0
      %1710 = vmatpush.bf16.msra.mxu0 0
      %1711 = vmatpush.bf16.msra.mxu0 0
      %1712 = vmatpush.bf16.msra.mxu0 %v1703
      %1713 = vmatpush.bf16.msra.mxu0 %v1702
      %1714 = vmatmul.bf16.gmra.mxu0 %v1652
      %v1715 = vpop.f32.mrf.mxu0
      %v1716 = vadd.f32 0.0, %v1715
      %v1717 = vpop.f32.mrf.mxu0
      %v1718 = vadd.f32 0.0, %v1717
      %1719 = vdwg.mxu0
      %v1720 = vmul.f32 %v1690, %v1010
      %v1721 = vmul.f32 %v1692, %v1011
      %v1722 = vmul.f32 %v1690, %v1012
      %v1723 = vmul.f32 %v1692, %v1013
      %v1724 = vmul.f32 %v1690, %v1014
      %v1725 = vmul.f32 %v1692, %v1015
      %v1726 = vmul.f32 %v1690, %v1016
      %v1727 = vmul.f32 %v1692, %v1017
      %v1728 = vmul.f32 %v1690, %v1018
      %v1729 = vmul.f32 %v1692, %v1019
      %v1730 = vmul.f32 %v1690, %v1020
      %v1731 = vmul.f32 %v1692, %v1021
      %v1732 = vmul.f32 %v1690, %v1022
      %v1733 = vmul.f32 %v1692, %v1023
      %v1734 = vmul.f32 %v1690, %v1024
      %v1735 = vmul.f32 %v1692, %v1025
      %v1736 = vpack.c.bf16 %v1721, %v1720
      %v1737 = vpack.c.bf16 %v1723, %v1722
      %v1738 = vpack.c.bf16 %v1725, %v1724
      %v1739 = vpack.c.bf16 %v1727, %v1726
      %v1740 = vpack.c.bf16 %v1729, %v1728
      %v1741 = vpack.c.bf16 %v1731, %v1730
      %v1742 = vpack.c.bf16 %v1733, %v1732
      %v1743 = vpack.c.bf16 %v1735, %v1734
      %v1744 = vmul.f32 %v1716, %v1010
      %v1745 = vmul.f32 %v1718, %v1011
      %v1746 = vmul.f32 %v1716, %v1012
      %v1747 = vmul.f32 %v1718, %v1013
      %v1748 = vmul.f32 %v1716, %v1014
      %v1749 = vmul.f32 %v1718, %v1015
      %v1750 = vmul.f32 %v1716, %v1016
      %v1751 = vmul.f32 %v1718, %v1017
      %v1752 = vmul.f32 %v1716, %v1018
      %v1753 = vmul.f32 %v1718, %v1019
      %v1754 = vmul.f32 %v1716, %v1020
      %v1755 = vmul.f32 %v1718, %v1021
      %v1756 = vmul.f32 %v1716, %v1022
      %v1757 = vmul.f32 %v1718, %v1023
      %v1758 = vmul.f32 %v1716, %v1024
      %v1759 = vmul.f32 %v1718, %v1025
      %v1760 = vpack.c.bf16 %v1745, %v1744
      %v1761 = vpack.c.bf16 %v1747, %v1746
      %v1762 = vpack.c.bf16 %v1749, %v1748
      %v1763 = vpack.c.bf16 %v1751, %v1750
      %v1764 = vpack.c.bf16 %v1753, %v1752
      %v1765 = vpack.c.bf16 %v1755, %v1754
      %v1766 = vpack.c.bf16 %v1757, %v1756
      %v1767 = vpack.c.bf16 %v1759, %v1758
      %v1768 = vpack.c.bf16 %v1666, %v1664
      %v1770 = vsel %vm831, %v1768, 0
      %v1773 = vsel %vm831, %v1736, 0
      %v1776 = vsel %vm831, %v1737, 0
      %v1779 = vsel %vm831, %v1738, 0
      %v1782 = vsel %vm831, %v1739, 0
      %v1785 = vsel %vm831, %v1740, 0
      %v1788 = vsel %vm831, %v1741, 0
      %v1791 = vsel %vm831, %v1742, 0
      %v1794 = vsel %vm831, %v1743, 0
      %1796 = vmatpush.bf16.xpose.msra.mxu0 %v1794
      %1797 = vmatpush.bf16.xpose.msra.mxu0 %v1791
      %1798 = vmatpush.bf16.xpose.msra.mxu0 %v1788
      %1799 = vmatpush.bf16.xpose.msra.mxu0 %v1785
      %1800 = vmatpush.bf16.xpose.msra.mxu0 %v1782
      %1801 = vmatpush.bf16.xpose.msra.mxu0 %v1779
      %1802 = vmatpush.bf16.xpose.msra.mxu0 %v1776
      %1803 = vmatpush.bf16.xpose.msra.mxu0 %v1773
      %1804 = vmatmul.bf16.gmra.mxu0 %v1770
      %v1805 = vpop.f32.mrf.mxu0
      %v1806 = vadd.f32 0.0, %v1805
      %v1807 = vpop.f32.mrf.mxu0
      %v1808 = vadd.f32 0.0, %v1807
      %1809 = vdwg.mxu0
      %v1810 = vmul.f32 %v1806, 0.5
      %v1811 = vmul.f32 %v1808, 0.5
      %v1812 = vadd.f32 %v1810, %v921
      %v1813 = vadd.f32 %v1811, %v922
      %1814 = vmax.xlane.f32.xlu0 %v1812
      %v1815 = vpop.xlane.xlu0 %1814
      %1816 = vmax.xlane.f32.xlu0 %v1813
      %v1817 = vpop.xlane.xlu0 %1816
      %v1818 = vsub.f32 %v1812, %v1815
      %v1819 = vsub.f32 %v1813, %v1817
      %v1820 = vmul.f32 %v1818, 1.442695
      %v1821 = vpow.pop %v1820
      %v1822 = vmul.f32 %v1819, 1.442695
      %v1823 = vpow.pop %v1822
      %v1824 = vmul.f32 %v1821, %v917
      %v1825 = vmul.f32 %v1823, %v918
      %1826 = vmatpush.msra.mxu0 %v1041
      %1827 = vmatpush.msra.mxu0 %v1040
      %1828 = vmatpush.msra.mxu0 %v1039
      %1829 = vmatpush.msra.mxu0 %v1038
      %1830 = vmatpush.msra.mxu0 %v1037
      %1831 = vmatpush.msra.mxu0 %v1036
      %1832 = vmatpush.msra.mxu0 %v1035
      %1833 = vmatpush.msra.mxu0 %v1034
      %1834 = vmatpush.msra.mxu0 %v1033
      %1835 = vmatpush.msra.mxu0 %v1032
      %1836 = vmatpush.msra.mxu0 %v1031
      %1837 = vmatpush.msra.mxu0 %v1030
      %1838 = vmatpush.msra.mxu0 %v1029
      %1839 = vmatpush.msra.mxu0 %v1028
      %1840 = vmatpush.msra.mxu0 %v1027
      %1841 = vmatpush.msra.mxu0 %v1026
      %1842 = vmatmul.f32.gmra.mxu0 %v1824
      %v1843 = vpop.f32.mrf.mxu0
      %v1844 = vadd.f32 0.0, %v1843
      %1845 = vmatmul.f32.gmra.mxu0 %v1825
      %v1846 = vpop.f32.mrf.mxu0
      %v1847 = vadd.f32 0.0, %v1846
      %1848 = vdwg.mxu0
      %v1849 = vmax.f32 %v1844, 1e-30
      %v1850 = vmax.f32 %v1847, 1e-30
      %v1851 = vrcp.pop %v1849
      %v1852 = vrcp.pop %v1850
      %v1853 = vmul.f32 %v1824, %v1851
      %v1854 = vmul.f32 %v1825, %v1852
      %v1855 = vpack.c.bf16 %v1854, %v1853
      %1856 = vmatpush.bf16.msra.mxu0 %v1767
      %1857 = vmatpush.bf16.msra.mxu0 %v1766
      %1858 = vmatpush.bf16.msra.mxu0 %v1765
      %1859 = vmatpush.bf16.msra.mxu0 %v1764
      %1860 = vmatpush.bf16.msra.mxu0 %v1763
      %1861 = vmatpush.bf16.msra.mxu0 %v1762
      %1862 = vmatpush.bf16.msra.mxu0 %v1761
      %1863 = vmatpush.bf16.msra.mxu0 %v1760
      %1864 = vmatmul.bf16.gmra.mxu0 %v1855
      %v1865 = vpop.f32.mrf.mxu0
      %v1866 = vadd.f32 0.0, %v1865
      %v1867 = vpop.f32.mrf.mxu0
      %v1868 = vadd.f32 0.0, %v1867
      %1869 = vdwg.mxu0
      %v1870 = vpack.c.bf16 %v1868, %v1866
      %v1875 = vunpack.c.l.b16 %v1600
      %v1876 = vunpack.c.l.b16 %v1601
      %v1877 = vunpack.c.l.b16 %v1602
      %v1878 = vunpack.c.l.b16 %v1603
      %v1879 = vpack.c.b16 %v1876, %v1875
      %v1880 = vpack.c.b16 %v1878, %v1877
      %v1884 = vsel %vm831, %v1870, 0
      %1886 = vmatpush.bf16.msra.mxu0 0
      %1887 = vmatpush.bf16.msra.mxu0 0
      %1888 = vmatpush.bf16.msra.mxu0 0
      %1889 = vmatpush.bf16.msra.mxu0 0
      %1890 = vmatpush.bf16.msra.mxu0 0
      %1891 = vmatpush.bf16.msra.mxu0 0
      %1892 = vmatpush.bf16.msra.mxu0 %v1880
      %1893 = vmatpush.bf16.msra.mxu0 %v1879
      %1894 = vmatmul.bf16.gmra.mxu0 %v1884
      %v1895 = vpop.f32.mrf.mxu0
      %v1896 = vadd.f32 0.0, %v1895
      %v1897 = vpop.f32.mrf.mxu0
      %v1898 = vadd.f32 0.0, %v1897
      %1899 = vdwg.mxu0
      %v1900 = vadd.f32 %v1582, %v1896
      %v1901 = vadd.f32 %v1583, %v1898
      %v1902 = vsel %vm831, %v1900, 0.0
      %1903 = vadd.xlane.f32.xlu0 %v1902
      %v1904 = vpop.xlane.xlu0 %1903
      %v1905 = vsel %vm831, %v1901, 0.0
      %1906 = vadd.xlane.f32.xlu0 %v1905
      %v1907 = vpop.xlane.xlu0 %1906
      %v1908 = vmul.f32 %v1904, %v1376
      %v1909 = vmul.f32 %v1907, %v1376
      %v1910 = vsub.f32 %v1900, %v1908
      %v1911 = vsub.f32 %v1901, %v1909
      %v1912 = vmul.f32 %v1910, %v1910
      %v1913 = vmul.f32 %v1911, %v1911
      %v1914 = vsel %vm831, %v1912, 0.0
      %1915 = vadd.xlane.f32.xlu0 %v1914
      %v1916 = vpop.xlane.xlu0 %1915
      %v1917 = vsel %vm831, %v1913, 0.0
      %1918 = vadd.xlane.f32.xlu0 %v1917
      %v1919 = vpop.xlane.xlu0 %1918
      %v1920 = vmul.f32 %v1916, %v1376
      %v1921 = vmul.f32 %v1919, %v1376
      %v1922 = vadd.f32 %v1920, 1e-05
      %v1923 = vadd.f32 %v1921, 1e-05
      %v1924 = vrsqrt.pop %v1922
      %v1925 = vmul.f32 %v1924, %v1922
      %v1926 = vmul.f32 %v1925, %v1924
      %v1927 = vmul.f32 0.5, %v1926
      %v1928 = vsub.f32 1.5, %v1927
      %v1929 = vmul.f32 %v1924, %v1928
      %vm1930 = vweird.f32 %v1922
      %vm1931 = vweird.f32 %v1924
      %vm1932 = vmor %vm1930, %vm1931
      %v1933 = vsel %vm1932, %v1924, %v1929
      %v1934 = vrsqrt.pop %v1923
      %v1935 = vmul.f32 %v1934, %v1923
      %v1936 = vmul.f32 %v1935, %v1934
      %v1937 = vmul.f32 0.5, %v1936
      %v1938 = vsub.f32 1.5, %v1937
      %v1939 = vmul.f32 %v1934, %v1938
      %vm1940 = vweird.f32 %v1923
      %vm1941 = vweird.f32 %v1934
      %vm1942 = vmor %vm1940, %vm1941
      %v1943 = vsel %vm1942, %v1934, %v1939
      %v1944 = vmul.f32 %v1910, %v1933
      %v1945 = vmul.f32 %v1911, %v1943
      %v1947 = vperm.slane %v1631, 0
      %v1949 = vmul.f32 %v1944, %v1947
      %v1950 = vmul.f32 %v1945, %v1947
      %v1952 = vperm.slane %v1633, 0
      %v1954 = vadd.f32 %v1949, %v1952
      %v1955 = vadd.f32 %v1950, %v1952
      %v1956 = vpack.c.bf16 %v1955, %v1954
      %v1958 = vperm.slane %v1610, 0
      %v1964 = vunpack.c.l.b16 %v1605
      %v1965 = vunpack.c.l.b16 %v1606
      %v1966 = vunpack.c.l.b16 %v1607
      %v1967 = vunpack.c.l.b16 %v1608
      %v1968 = vpack.c.b16 %v1965, %v1964
      %v1969 = vpack.c.b16 %v1967, %v1966
      %v1973 = vsel %vm831, %v1956, 0
      %1975 = vmatpush.bf16.msra.mxu0 0
      %1976 = vmatpush.bf16.msra.mxu0 0
      %1977 = vmatpush.bf16.msra.mxu0 0
      %1978 = vmatpush.bf16.msra.mxu0 0
      %1979 = vmatpush.bf16.msra.mxu0 0
      %1980 = vmatpush.bf16.msra.mxu0 0
      %1981 = vmatpush.bf16.msra.mxu0 %v1969
      %1982 = vmatpush.bf16.msra.mxu0 %v1968
      %1983 = vmatmul.bf16.gmra.mxu0 %v1973
      %v1984 = vpop.f32.mrf.mxu0
      %v1985 = vadd.f32 %v1958, %v1984
      %v1986 = vpop.f32.mrf.mxu0
      %v1987 = vadd.f32 %v1958, %v1986
      %1988 = vdwg.mxu0
      %v1989 = vmax.f32 %v1985, 0.0
      %v1990 = vmax.f32 %v1987, 0.0
      %v1991 = vpack.c.bf16 %v1990, %v1989
      %v1993 = vperm.slane %v1629, 0
      %v2011 = vunpack.c.l.b16 %v1612
      %v2012 = vunpack.c.l.b16 %v1613
      %v2013 = vunpack.c.l.b16 %v1614
      %v2014 = vunpack.c.l.b16 %v1615
      %v2015 = vunpack.c.l.b16 %v1616
      %v2016 = vunpack.c.l.b16 %v1617
      %v2017 = vunpack.c.l.b16 %v1618
      %v2018 = vunpack.c.l.b16 %v1619
      %v2019 = vunpack.c.l.b16 %v1620
      %v2020 = vunpack.c.l.b16 %v1621
      %v2021 = vunpack.c.l.b16 %v1622
      %v2022 = vunpack.c.l.b16 %v1623
      %v2023 = vunpack.c.l.b16 %v1624
      %v2024 = vunpack.c.l.b16 %v1625
      %v2025 = vunpack.c.l.b16 %v1626
      %v2026 = vunpack.c.l.b16 %v1627
      %v2027 = vpack.c.b16 %v2012, %v2011
      %v2028 = vpack.c.b16 %v2014, %v2013
      %v2029 = vpack.c.b16 %v2016, %v2015
      %v2030 = vpack.c.b16 %v2018, %v2017
      %v2031 = vpack.c.b16 %v2020, %v2019
      %v2032 = vpack.c.b16 %v2022, %v2021
      %v2033 = vpack.c.b16 %v2024, %v2023
      %v2034 = vpack.c.b16 %v2026, %v2025
      %2043 = vmatpush.bf16.msra.mxu0 %v2034
      %2044 = vmatpush.bf16.msra.mxu0 %v2033
      %2045 = vmatpush.bf16.msra.mxu0 %v2032
      %2046 = vmatpush.bf16.msra.mxu0 %v2031
      %2047 = vmatpush.bf16.msra.mxu0 %v2030
      %2048 = vmatpush.bf16.msra.mxu0 %v2029
      %2049 = vmatpush.bf16.msra.mxu0 %v2028
      %2050 = vmatpush.bf16.msra.mxu0 %v2027
      %2051 = vmatmul.bf16.gmra.mxu0 %v1991
      %v2052 = vpop.f32.mrf.mxu0
      %v2053 = vadd.f32 %v1993, %v2052
      %v2054 = vpop.f32.mrf.mxu0
      %v2055 = vadd.f32 %v1993, %v2054
      %2056 = vdwg.mxu0
      %v2057 = vadd.f32 %v1954, %v2053
      %v2058 = vadd.f32 %v1955, %v2055
      %v2059 = vsel %vm831, %v2057, 0.0
      %2060 = vadd.xlane.f32.xlu0 %v2059
      %v2061 = vpop.xlane.xlu0 %2060
      %v2062 = vsel %vm831, %v2058, 0.0
      %2063 = vadd.xlane.f32.xlu0 %v2062
      %v2064 = vpop.xlane.xlu0 %2063
      %v2065 = vmul.f32 %v2061, %v1376
      %v2066 = vmul.f32 %v2064, %v1376
      %v2067 = vsub.f32 %v2057, %v2065
      %v2068 = vsub.f32 %v2058, %v2066
      %v2069 = vmul.f32 %v2067, %v2067
      %v2070 = vmul.f32 %v2068, %v2068
      %v2071 = vsel %vm831, %v2069, 0.0
      %2072 = vadd.xlane.f32.xlu0 %v2071
      %v2073 = vpop.xlane.xlu0 %2072
      %v2074 = vsel %vm831, %v2070, 0.0
      %2075 = vadd.xlane.f32.xlu0 %v2074
      %v2076 = vpop.xlane.xlu0 %2075
      %v2077 = vmul.f32 %v2073, %v1376
      %v2078 = vmul.f32 %v2076, %v1376
      %v2079 = vadd.f32 %v2077, 1e-05
      %v2080 = vadd.f32 %v2078, 1e-05
      %v2081 = vrsqrt.pop %v2079
      %v2082 = vmul.f32 %v2081, %v2079
      %v2083 = vmul.f32 %v2082, %v2081
      %v2084 = vmul.f32 0.5, %v2083
      %v2085 = vsub.f32 1.5, %v2084
      %v2086 = vmul.f32 %v2081, %v2085
      %vm2087 = vweird.f32 %v2079
      %vm2088 = vweird.f32 %v2081
      %vm2089 = vmor %vm2087, %vm2088
      %v2090 = vsel %vm2089, %v2081, %v2086
      %v2091 = vrsqrt.pop %v2080
      %v2092 = vmul.f32 %v2091, %v2080
      %v2093 = vmul.f32 %v2092, %v2091
      %v2094 = vmul.f32 0.5, %v2093
      %v2095 = vsub.f32 1.5, %v2094
      %v2096 = vmul.f32 %v2091, %v2095
      %vm2097 = vweird.f32 %v2080
      %vm2098 = vweird.f32 %v2091
      %vm2099 = vmor %vm2097, %vm2098
      %v2100 = vsel %vm2099, %v2091, %v2096
      %v2101 = vmul.f32 %v2067, %v2090
      %v2102 = vmul.f32 %v2068, %v2100
      %v2104 = vperm.slane %v1635, 0
      %v2106 = vmul.f32 %v2101, %v2104
      %v2107 = vmul.f32 %v2102, %v2104
      %v2109 = vperm.slane %v1637, 0
      %v2111 = vadd.f32 %v2106, %v2109
      %v2112 = vadd.f32 %v2107, %v2109
      %s2113 = scalar_lea.vmem %s8, 48
      %v2114 = vld [vmem:[%s2113] sm:$0xf]
      %v2115 = vld [vmem:[%s2113 + $0x4] sm:$0xf]
      %v2116 = vld [vmem:[%s2113 + $0x8] sm:$0xf]
      %v2117 = vld [vmem:[%s2113 + $0xc] sm:$0xf]
      %s2118 = scalar_lea.vmem %s9, 48
      %v2119 = vld [vmem:[%s2118] sm:$0xf]
      %v2120 = vld [vmem:[%s2118 + $0x4] sm:$0xf]
      %v2121 = vld [vmem:[%s2118 + $0x8] sm:$0xf]
      %v2122 = vld [vmem:[%s2118 + $0xc] sm:$0xf]
      %s2123 = scalar_lea.vmem %s10, 48
      %v2124 = vld [vmem:[%s2123] sm:$0xf]
      %v2125 = vld [vmem:[%s2123 + $0x4] sm:$0xf]
      %v2126 = vld [vmem:[%s2123 + $0x8] sm:$0xf]
      %v2127 = vld [vmem:[%s2123 + $0xc] sm:$0xf]
      %s2128 = scalar_lea.vmem %s11, 48
      %v2129 = vld [vmem:[%s2128] sm:$0xf]
      %v2130 = vld [vmem:[%s2128 + $0x4] sm:$0xf]
      %v2131 = vld [vmem:[%s2128 + $0x8] sm:$0xf]
      %v2132 = vld [vmem:[%s2128 + $0xc] sm:$0xf]
      %s2133 = scalar_lea.vmem %s12, 48
      %v2134 = vld [vmem:[%s2133] sm:$0xf]
      %v2135 = vld [vmem:[%s2133 + $0x4] sm:$0xf]
      %v2136 = vld [vmem:[%s2133 + $0x8] sm:$0xf]
      %v2137 = vld [vmem:[%s2133 + $0xc] sm:$0xf]
      %s2138 = scalar_lea.vmem %s13, 3
      %v2139 = vld [vmem:[%s2138] sm:$0x1]
      %s2140 = scalar_lea.vmem %s14, 192
      %v2141 = vld [vmem:[%s2140] sm:$0xf]
      %v2142 = vld [vmem:[%s2140 + $0x4] sm:$0xf]
      %v2143 = vld [vmem:[%s2140 + $0x8] sm:$0xf]
      %v2144 = vld [vmem:[%s2140 + $0xc] sm:$0xf]
      %v2145 = vld [vmem:[%s2140 + $0x10] sm:$0xf]
      %v2146 = vld [vmem:[%s2140 + $0x14] sm:$0xf]
      %v2147 = vld [vmem:[%s2140 + $0x18] sm:$0xf]
      %v2148 = vld [vmem:[%s2140 + $0x1c] sm:$0xf]
      %v2149 = vld [vmem:[%s2140 + $0x20] sm:$0xf]
      %v2150 = vld [vmem:[%s2140 + $0x24] sm:$0xf]
      %v2151 = vld [vmem:[%s2140 + $0x28] sm:$0xf]
      %v2152 = vld [vmem:[%s2140 + $0x2c] sm:$0xf]
      %v2153 = vld [vmem:[%s2140 + $0x30] sm:$0xf]
      %v2154 = vld [vmem:[%s2140 + $0x34] sm:$0xf]
      %v2155 = vld [vmem:[%s2140 + $0x38] sm:$0xf]
      %v2156 = vld [vmem:[%s2140 + $0x3c] sm:$0xf]
      %s2157 = scalar_lea.vmem %s15, 3
      %v2158 = vld [vmem:[%s2157] sm:$0x1]
      %s2159 = scalar_lea.vmem %s16, 3
      %v2160 = vld [vmem:[%s2159] sm:$0x1]
      %s2161 = scalar_lea.vmem %s17, 3
      %v2162 = vld [vmem:[%s2161] sm:$0x1]
      %s2163 = scalar_lea.vmem %s18, 3
      %v2164 = vld [vmem:[%s2163] sm:$0x1]
      %s2165 = scalar_lea.vmem %s19, 3
      %v2166 = vld [vmem:[%s2165] sm:$0x1]
      %v2167 = vpack.c.bf16 %v2112, %v2111
      %v2172 = vunpack.c.l.b16 %v2114
      %v2173 = vunpack.c.l.b16 %v2115
      %v2174 = vunpack.c.l.b16 %v2116
      %v2175 = vunpack.c.l.b16 %v2117
      %v2176 = vpack.c.b16 %v2173, %v2172
      %v2177 = vpack.c.b16 %v2175, %v2174
      %v2181 = vsel %vm831, %v2167, 0
      %2183 = vmatpush.bf16.msra.mxu0 0
      %2184 = vmatpush.bf16.msra.mxu0 0
      %2185 = vmatpush.bf16.msra.mxu0 0
      %2186 = vmatpush.bf16.msra.mxu0 0
      %2187 = vmatpush.bf16.msra.mxu0 0
      %2188 = vmatpush.bf16.msra.mxu0 0
      %2189 = vmatpush.bf16.msra.mxu0 %v2177
      %2190 = vmatpush.bf16.msra.mxu0 %v2176
      %2191 = vmatmul.bf16.gmra.mxu0 %v2181
      %v2192 = vpop.f32.mrf.mxu0
      %v2193 = vadd.f32 0.0, %v2192
      %v2194 = vpop.f32.mrf.mxu0
      %v2195 = vadd.f32 0.0, %v2194
      %2196 = vdwg.mxu0
      %v2197 = vpack.c.bf16 %v2111, %v2112
      %v2202 = vunpack.c.l.b16 %v2119
      %v2203 = vunpack.c.l.b16 %v2120
      %v2204 = vunpack.c.l.b16 %v2121
      %v2205 = vunpack.c.l.b16 %v2122
      %v2206 = vpack.c.b16 %v2203, %v2202
      %v2207 = vpack.c.b16 %v2205, %v2204
      %v2211 = vsel %vm831, %v2197, 0
      %2213 = vmatpush.bf16.msra.mxu0 0
      %2214 = vmatpush.bf16.msra.mxu0 0
      %2215 = vmatpush.bf16.msra.mxu0 0
      %2216 = vmatpush.bf16.msra.mxu0 0
      %2217 = vmatpush.bf16.msra.mxu0 0
      %2218 = vmatpush.bf16.msra.mxu0 0
      %2219 = vmatpush.bf16.msra.mxu0 %v2207
      %2220 = vmatpush.bf16.msra.mxu0 %v2206
      %2221 = vmatmul.bf16.gmra.mxu0 %v2211
      %v2222 = vpop.f32.mrf.mxu0
      %v2223 = vadd.f32 0.0, %v2222
      %v2224 = vpop.f32.mrf.mxu0
      %v2225 = vadd.f32 0.0, %v2224
      %2226 = vdwg.mxu0
      %v2231 = vunpack.c.l.b16 %v2124
      %v2232 = vunpack.c.l.b16 %v2125
      %v2233 = vunpack.c.l.b16 %v2126
      %v2234 = vunpack.c.l.b16 %v2127
      %v2235 = vpack.c.b16 %v2232, %v2231
      %v2236 = vpack.c.b16 %v2234, %v2233
      %2239 = vmatpush.bf16.msra.mxu0 0
      %2240 = vmatpush.bf16.msra.mxu0 0
      %2241 = vmatpush.bf16.msra.mxu0 0
      %2242 = vmatpush.bf16.msra.mxu0 0
      %2243 = vmatpush.bf16.msra.mxu0 0
      %2244 = vmatpush.bf16.msra.mxu0 0
      %2245 = vmatpush.bf16.msra.mxu0 %v2236
      %2246 = vmatpush.bf16.msra.mxu0 %v2235
      %2247 = vmatmul.bf16.gmra.mxu0 %v2211
      %v2248 = vpop.f32.mrf.mxu0
      %v2249 = vadd.f32 0.0, %v2248
      %v2250 = vpop.f32.mrf.mxu0
      %v2251 = vadd.f32 0.0, %v2250
      %2252 = vdwg.mxu0
      %v2253 = vmul.f32 %v2223, %v1010
      %v2254 = vmul.f32 %v2225, %v1011
      %v2255 = vmul.f32 %v2223, %v1012
      %v2256 = vmul.f32 %v2225, %v1013
      %v2257 = vmul.f32 %v2223, %v1014
      %v2258 = vmul.f32 %v2225, %v1015
      %v2259 = vmul.f32 %v2223, %v1016
      %v2260 = vmul.f32 %v2225, %v1017
      %v2261 = vmul.f32 %v2223, %v1018
      %v2262 = vmul.f32 %v2225, %v1019
      %v2263 = vmul.f32 %v2223, %v1020
      %v2264 = vmul.f32 %v2225, %v1021
      %v2265 = vmul.f32 %v2223, %v1022
      %v2266 = vmul.f32 %v2225, %v1023
      %v2267 = vmul.f32 %v2223, %v1024
      %v2268 = vmul.f32 %v2225, %v1025
      %v2269 = vpack.c.bf16 %v2254, %v2253
      %v2270 = vpack.c.bf16 %v2256, %v2255
      %v2271 = vpack.c.bf16 %v2258, %v2257
      %v2272 = vpack.c.bf16 %v2260, %v2259
      %v2273 = vpack.c.bf16 %v2262, %v2261
      %v2274 = vpack.c.bf16 %v2264, %v2263
      %v2275 = vpack.c.bf16 %v2266, %v2265
      %v2276 = vpack.c.bf16 %v2268, %v2267
      %v2277 = vmul.f32 %v2249, %v1010
      %v2278 = vmul.f32 %v2251, %v1011
      %v2279 = vmul.f32 %v2249, %v1012
      %v2280 = vmul.f32 %v2251, %v1013
      %v2281 = vmul.f32 %v2249, %v1014
      %v2282 = vmul.f32 %v2251, %v1015
      %v2283 = vmul.f32 %v2249, %v1016
      %v2284 = vmul.f32 %v2251, %v1017
      %v2285 = vmul.f32 %v2249, %v1018
      %v2286 = vmul.f32 %v2251, %v1019
      %v2287 = vmul.f32 %v2249, %v1020
      %v2288 = vmul.f32 %v2251, %v1021
      %v2289 = vmul.f32 %v2249, %v1022
      %v2290 = vmul.f32 %v2251, %v1023
      %v2291 = vmul.f32 %v2249, %v1024
      %v2292 = vmul.f32 %v2251, %v1025
      %v2293 = vpack.c.bf16 %v2278, %v2277
      %v2294 = vpack.c.bf16 %v2280, %v2279
      %v2295 = vpack.c.bf16 %v2282, %v2281
      %v2296 = vpack.c.bf16 %v2284, %v2283
      %v2297 = vpack.c.bf16 %v2286, %v2285
      %v2298 = vpack.c.bf16 %v2288, %v2287
      %v2299 = vpack.c.bf16 %v2290, %v2289
      %v2300 = vpack.c.bf16 %v2292, %v2291
      %v2301 = vpack.c.bf16 %v2195, %v2193
      %v2303 = vsel %vm831, %v2301, 0
      %v2306 = vsel %vm831, %v2269, 0
      %v2309 = vsel %vm831, %v2270, 0
      %v2312 = vsel %vm831, %v2271, 0
      %v2315 = vsel %vm831, %v2272, 0
      %v2318 = vsel %vm831, %v2273, 0
      %v2321 = vsel %vm831, %v2274, 0
      %v2324 = vsel %vm831, %v2275, 0
      %v2327 = vsel %vm831, %v2276, 0
      %2329 = vmatpush.bf16.xpose.msra.mxu0 %v2327
      %2330 = vmatpush.bf16.xpose.msra.mxu0 %v2324
      %2331 = vmatpush.bf16.xpose.msra.mxu0 %v2321
      %2332 = vmatpush.bf16.xpose.msra.mxu0 %v2318
      %2333 = vmatpush.bf16.xpose.msra.mxu0 %v2315
      %2334 = vmatpush.bf16.xpose.msra.mxu0 %v2312
      %2335 = vmatpush.bf16.xpose.msra.mxu0 %v2309
      %2336 = vmatpush.bf16.xpose.msra.mxu0 %v2306
      %2337 = vmatmul.bf16.gmra.mxu0 %v2303
      %v2338 = vpop.f32.mrf.mxu0
      %v2339 = vadd.f32 0.0, %v2338
      %v2340 = vpop.f32.mrf.mxu0
      %v2341 = vadd.f32 0.0, %v2340
      %2342 = vdwg.mxu0
      %v2343 = vmul.f32 %v2339, 0.5
      %v2344 = vmul.f32 %v2341, 0.5
      %v2345 = vadd.f32 %v2343, %v1008
      %v2346 = vadd.f32 %v2344, %v1009
      %2347 = vmax.xlane.f32.xlu0 %v2345
      %v2348 = vpop.xlane.xlu0 %2347
      %2349 = vmax.xlane.f32.xlu0 %v2346
      %v2350 = vpop.xlane.xlu0 %2349
      %v2351 = vsub.f32 %v2345, %v2348
      %v2352 = vsub.f32 %v2346, %v2350
      %v2353 = vmul.f32 %v2351, 1.442695
      %v2354 = vpow.pop %v2353
      %v2355 = vmul.f32 %v2352, 1.442695
      %v2356 = vpow.pop %v2355
      %v2357 = vmul.f32 %v2354, %v1004
      %v2358 = vmul.f32 %v2356, %v1005
      %2359 = vmatpush.msra.mxu0 %v1041
      %2360 = vmatpush.msra.mxu0 %v1040
      %2361 = vmatpush.msra.mxu0 %v1039
      %2362 = vmatpush.msra.mxu0 %v1038
      %2363 = vmatpush.msra.mxu0 %v1037
      %2364 = vmatpush.msra.mxu0 %v1036
      %2365 = vmatpush.msra.mxu0 %v1035
      %2366 = vmatpush.msra.mxu0 %v1034
      %2367 = vmatpush.msra.mxu0 %v1033
      %2368 = vmatpush.msra.mxu0 %v1032
      %2369 = vmatpush.msra.mxu0 %v1031
      %2370 = vmatpush.msra.mxu0 %v1030
      %2371 = vmatpush.msra.mxu0 %v1029
      %2372 = vmatpush.msra.mxu0 %v1028
      %2373 = vmatpush.msra.mxu0 %v1027
      %2374 = vmatpush.msra.mxu0 %v1026
      %2375 = vmatmul.f32.gmra.mxu0 %v2357
      %v2376 = vpop.f32.mrf.mxu0
      %v2377 = vadd.f32 0.0, %v2376
      %2378 = vmatmul.f32.gmra.mxu0 %v2358
      %v2379 = vpop.f32.mrf.mxu0
      %v2380 = vadd.f32 0.0, %v2379
      %2381 = vdwg.mxu0
      %v2382 = vmax.f32 %v2377, 1e-30
      %v2383 = vmax.f32 %v2380, 1e-30
      %v2384 = vrcp.pop %v2382
      %v2385 = vrcp.pop %v2383
      %v2386 = vmul.f32 %v2357, %v2384
      %v2387 = vmul.f32 %v2358, %v2385
      %v2388 = vpack.c.bf16 %v2387, %v2386
      %2389 = vmatpush.bf16.msra.mxu0 %v2300
      %2390 = vmatpush.bf16.msra.mxu0 %v2299
      %2391 = vmatpush.bf16.msra.mxu0 %v2298
      %2392 = vmatpush.bf16.msra.mxu0 %v2297
      %2393 = vmatpush.bf16.msra.mxu0 %v2296
      %2394 = vmatpush.bf16.msra.mxu0 %v2295
      %2395 = vmatpush.bf16.msra.mxu0 %v2294
      %2396 = vmatpush.bf16.msra.mxu0 %v2293
      %2397 = vmatmul.bf16.gmra.mxu0 %v2388
      %v2398 = vpop.f32.mrf.mxu0
      %v2399 = vadd.f32 0.0, %v2398
      %v2400 = vpop.f32.mrf.mxu0
      %v2401 = vadd.f32 0.0, %v2400
      %2402 = vdwg.mxu0
      %v2403 = vpack.c.bf16 %v2401, %v2399
      %v2408 = vunpack.c.l.b16 %v2129
      %v2409 = vunpack.c.l.b16 %v2130
      %v2410 = vunpack.c.l.b16 %v2131
      %v2411 = vunpack.c.l.b16 %v2132
      %v2412 = vpack.c.b16 %v2409, %v2408
      %v2413 = vpack.c.b16 %v2411, %v2410
      %v2417 = vsel %vm831, %v2403, 0
      %2419 = vmatpush.bf16.msra.mxu0 0
      %2420 = vmatpush.bf16.msra.mxu0 0
      %2421 = vmatpush.bf16.msra.mxu0 0
      %2422 = vmatpush.bf16.msra.mxu0 0
      %2423 = vmatpush.bf16.msra.mxu0 0
      %2424 = vmatpush.bf16.msra.mxu0 0
      %2425 = vmatpush.bf16.msra.mxu0 %v2413
      %2426 = vmatpush.bf16.msra.mxu0 %v2412
      %2427 = vmatmul.bf16.gmra.mxu0 %v2417
      %v2428 = vpop.f32.mrf.mxu0
      %v2429 = vadd.f32 0.0, %v2428
      %v2430 = vpop.f32.mrf.mxu0
      %v2431 = vadd.f32 0.0, %v2430
      %2432 = vdwg.mxu0
      %v2433 = vadd.f32 %v2111, %v2429
      %v2434 = vadd.f32 %v2112, %v2431
      %v2435 = vsel %vm831, %v2433, 0.0
      %2436 = vadd.xlane.f32.xlu0 %v2435
      %v2437 = vpop.xlane.xlu0 %2436
      %v2438 = vsel %vm831, %v2434, 0.0
      %2439 = vadd.xlane.f32.xlu0 %v2438
      %v2440 = vpop.xlane.xlu0 %2439
      %v2441 = vmul.f32 %v2437, %v1376
      %v2442 = vmul.f32 %v2440, %v1376
      %v2443 = vsub.f32 %v2433, %v2441
      %v2444 = vsub.f32 %v2434, %v2442
      %v2445 = vmul.f32 %v2443, %v2443
      %v2446 = vmul.f32 %v2444, %v2444
      %v2447 = vsel %vm831, %v2445, 0.0
      %2448 = vadd.xlane.f32.xlu0 %v2447
      %v2449 = vpop.xlane.xlu0 %2448
      %v2450 = vsel %vm831, %v2446, 0.0
      %2451 = vadd.xlane.f32.xlu0 %v2450
      %v2452 = vpop.xlane.xlu0 %2451
      %v2453 = vmul.f32 %v2449, %v1376
      %v2454 = vmul.f32 %v2452, %v1376
      %v2455 = vadd.f32 %v2453, 1e-05
      %v2456 = vadd.f32 %v2454, 1e-05
      %v2457 = vrsqrt.pop %v2455
      %v2458 = vmul.f32 %v2457, %v2455
      %v2459 = vmul.f32 %v2458, %v2457
      %v2460 = vmul.f32 0.5, %v2459
      %v2461 = vsub.f32 1.5, %v2460
      %v2462 = vmul.f32 %v2457, %v2461
      %vm2463 = vweird.f32 %v2455
      %vm2464 = vweird.f32 %v2457
      %vm2465 = vmor %vm2463, %vm2464
      %v2466 = vsel %vm2465, %v2457, %v2462
      %v2467 = vrsqrt.pop %v2456
      %v2468 = vmul.f32 %v2467, %v2456
      %v2469 = vmul.f32 %v2468, %v2467
      %v2470 = vmul.f32 0.5, %v2469
      %v2471 = vsub.f32 1.5, %v2470
      %v2472 = vmul.f32 %v2467, %v2471
      %vm2473 = vweird.f32 %v2456
      %vm2474 = vweird.f32 %v2467
      %vm2475 = vmor %vm2473, %vm2474
      %v2476 = vsel %vm2475, %v2467, %v2472
      %v2477 = vmul.f32 %v2443, %v2466
      %v2478 = vmul.f32 %v2444, %v2476
      %v2480 = vperm.slane %v2160, 0
      %v2482 = vmul.f32 %v2477, %v2480
      %v2483 = vmul.f32 %v2478, %v2480
      %v2485 = vperm.slane %v2162, 0
      %v2487 = vadd.f32 %v2482, %v2485
      %v2488 = vadd.f32 %v2483, %v2485
      %v2489 = vpack.c.bf16 %v2488, %v2487
      %v2491 = vperm.slane %v2139, 0
      %v2497 = vunpack.c.l.b16 %v2134
      %v2498 = vunpack.c.l.b16 %v2135
      %v2499 = vunpack.c.l.b16 %v2136
      %v2500 = vunpack.c.l.b16 %v2137
      %v2501 = vpack.c.b16 %v2498, %v2497
      %v2502 = vpack.c.b16 %v2500, %v2499
      %v2506 = vsel %vm831, %v2489, 0
      %2508 = vmatpush.bf16.msra.mxu0 0
      %2509 = vmatpush.bf16.msra.mxu0 0
      %2510 = vmatpush.bf16.msra.mxu0 0
      %2511 = vmatpush.bf16.msra.mxu0 0
      %2512 = vmatpush.bf16.msra.mxu0 0
      %2513 = vmatpush.bf16.msra.mxu0 0
      %2514 = vmatpush.bf16.msra.mxu0 %v2502
      %2515 = vmatpush.bf16.msra.mxu0 %v2501
      %2516 = vmatmul.bf16.gmra.mxu0 %v2506
      %v2517 = vpop.f32.mrf.mxu0
      %v2518 = vadd.f32 %v2491, %v2517
      %v2519 = vpop.f32.mrf.mxu0
      %v2520 = vadd.f32 %v2491, %v2519
      %2521 = vdwg.mxu0
      %v2522 = vmax.f32 %v2518, 0.0
      %v2523 = vmax.f32 %v2520, 0.0
      %v2524 = vpack.c.bf16 %v2523, %v2522
      %v2526 = vperm.slane %v2158, 0
      %v2544 = vunpack.c.l.b16 %v2141
      %v2545 = vunpack.c.l.b16 %v2142
      %v2546 = vunpack.c.l.b16 %v2143
      %v2547 = vunpack.c.l.b16 %v2144
      %v2548 = vunpack.c.l.b16 %v2145
      %v2549 = vunpack.c.l.b16 %v2146
      %v2550 = vunpack.c.l.b16 %v2147
      %v2551 = vunpack.c.l.b16 %v2148
      %v2552 = vunpack.c.l.b16 %v2149
      %v2553 = vunpack.c.l.b16 %v2150
      %v2554 = vunpack.c.l.b16 %v2151
      %v2555 = vunpack.c.l.b16 %v2152
      %v2556 = vunpack.c.l.b16 %v2153
      %v2557 = vunpack.c.l.b16 %v2154
      %v2558 = vunpack.c.l.b16 %v2155
      %v2559 = vunpack.c.l.b16 %v2156
      %v2560 = vpack.c.b16 %v2545, %v2544
      %v2561 = vpack.c.b16 %v2547, %v2546
      %v2562 = vpack.c.b16 %v2549, %v2548
      %v2563 = vpack.c.b16 %v2551, %v2550
      %v2564 = vpack.c.b16 %v2553, %v2552
      %v2565 = vpack.c.b16 %v2555, %v2554
      %v2566 = vpack.c.b16 %v2557, %v2556
      %v2567 = vpack.c.b16 %v2559, %v2558
      %2576 = vmatpush.bf16.msra.mxu0 %v2567
      %2577 = vmatpush.bf16.msra.mxu0 %v2566
      %2578 = vmatpush.bf16.msra.mxu0 %v2565
      %2579 = vmatpush.bf16.msra.mxu0 %v2564
      %2580 = vmatpush.bf16.msra.mxu0 %v2563
      %2581 = vmatpush.bf16.msra.mxu0 %v2562
      %2582 = vmatpush.bf16.msra.mxu0 %v2561
      %2583 = vmatpush.bf16.msra.mxu0 %v2560
      %2584 = vmatmul.bf16.gmra.mxu0 %v2524
      %v2585 = vpop.f32.mrf.mxu0
      %v2586 = vadd.f32 %v2526, %v2585
      %v2587 = vpop.f32.mrf.mxu0
      %v2588 = vadd.f32 %v2526, %v2587
      %2589 = vdwg.mxu0
      %v2590 = vadd.f32 %v2487, %v2586
      %v2591 = vadd.f32 %v2488, %v2588
      %v2592 = vsel %vm831, %v2590, 0.0
      %2593 = vadd.xlane.f32.xlu0 %v2592
      %v2594 = vpop.xlane.xlu0 %2593
      %v2595 = vsel %vm831, %v2591, 0.0
      %2596 = vadd.xlane.f32.xlu0 %v2595
      %v2597 = vpop.xlane.xlu0 %2596
      %v2598 = vmul.f32 %v2594, %v1376
      %v2599 = vmul.f32 %v2597, %v1376
      %v2600 = vsub.f32 %v2590, %v2598
      %v2601 = vsub.f32 %v2591, %v2599
      %v2602 = vmul.f32 %v2600, %v2600
      %v2603 = vmul.f32 %v2601, %v2601
      %v2604 = vsel %vm831, %v2602, 0.0
      %2605 = vadd.xlane.f32.xlu0 %v2604
      %v2606 = vpop.xlane.xlu0 %2605
      %v2607 = vsel %vm831, %v2603, 0.0
      %2608 = vadd.xlane.f32.xlu0 %v2607
      %v2609 = vpop.xlane.xlu0 %2608
      %v2610 = vmul.f32 %v2606, %v1376
      %v2611 = vmul.f32 %v2609, %v1376
      %v2612 = vadd.f32 %v2610, 1e-05
      %v2613 = vadd.f32 %v2611, 1e-05
      %v2614 = vrsqrt.pop %v2612
      %v2615 = vmul.f32 %v2614, %v2612
      %v2616 = vmul.f32 %v2615, %v2614
      %v2617 = vmul.f32 0.5, %v2616
      %v2618 = vsub.f32 1.5, %v2617
      %v2619 = vmul.f32 %v2614, %v2618
      %vm2620 = vweird.f32 %v2612
      %vm2621 = vweird.f32 %v2614
      %vm2622 = vmor %vm2620, %vm2621
      %v2623 = vsel %vm2622, %v2614, %v2619
      %v2624 = vrsqrt.pop %v2613
      %v2625 = vmul.f32 %v2624, %v2613
      %v2626 = vmul.f32 %v2625, %v2624
      %v2627 = vmul.f32 0.5, %v2626
      %v2628 = vsub.f32 1.5, %v2627
      %v2629 = vmul.f32 %v2624, %v2628
      %vm2630 = vweird.f32 %v2613
      %vm2631 = vweird.f32 %v2624
      %vm2632 = vmor %vm2630, %vm2631
      %v2633 = vsel %vm2632, %v2624, %v2629
      %v2634 = vmul.f32 %v2600, %v2623
      %v2635 = vmul.f32 %v2601, %v2633
      %v2637 = vperm.slane %v2164, 0
      %v2639 = vmul.f32 %v2634, %v2637
      %v2640 = vmul.f32 %v2635, %v2637
      %v2642 = vperm.slane %v2166, 0
      %v2644 = vadd.f32 %v2639, %v2642
      %v2645 = vadd.f32 %v2640, %v2642
      %v2646 = vadd.f32 %v2111, %v2644
      %v2647 = vadd.f32 %v2112, %v2645
      %v2648 = vpack.c.bf16 %v2646, %v2646
      %v2649 = vld [vmem:[%s20] sm:$0xf]
      %v2650 = vld [vmem:[%s20 + $0x4] sm:$0xf]
      %v2651 = vld [vmem:[%s20 + $0x8] sm:$0xf]
      %v2652 = vld [vmem:[%s20 + $0xc] sm:$0xf]
      %v2657 = vunpack.c.l.b16 %v2649
      %v2658 = vunpack.c.l.b16 %v2650
      %v2659 = vunpack.c.l.b16 %v2651
      %v2660 = vunpack.c.l.b16 %v2652
      %v2661 = vpack.c.b16 %v2658, %v2657
      %v2662 = vpack.c.b16 %v2660, %v2659
      %v2666 = vsel %vm831, %v2648, 0
      %2668 = vmatpush.bf16.msra.mxu0 0
      %2669 = vmatpush.bf16.msra.mxu0 0
      %2670 = vmatpush.bf16.msra.mxu0 0
      %2671 = vmatpush.bf16.msra.mxu0 0
      %2672 = vmatpush.bf16.msra.mxu0 0
      %2673 = vmatpush.bf16.msra.mxu0 0
      %2674 = vmatpush.bf16.msra.mxu0 %v2662
      %2675 = vmatpush.bf16.msra.mxu0 %v2661
      %2676 = vmatmul.bf16.gmra.mxu0 %v2666
      %v2677 = vpop.f32.mrf.mxu0
      %v2678 = vadd.f32 0.0, %v2677
      %v2679 = vpop.f32.mrf.mxu0
      %2680 = vdwg.mxu0
      %v2681 = vpack.c.bf16 %v2647, %v2647
      %v2682 = vld [vmem:[%s21] sm:$0xf]
      %v2683 = vld [vmem:[%s21 + $0x4] sm:$0xf]
      %v2684 = vld [vmem:[%s21 + $0x8] sm:$0xf]
      %v2685 = vld [vmem:[%s21 + $0xc] sm:$0xf]
      %v2690 = vunpack.c.l.b16 %v2682
      %v2691 = vunpack.c.l.b16 %v2683
      %v2692 = vunpack.c.l.b16 %v2684
      %v2693 = vunpack.c.l.b16 %v2685
      %v2694 = vpack.c.b16 %v2691, %v2690
      %v2695 = vpack.c.b16 %v2693, %v2692
      %v2699 = vsel %vm831, %v2681, 0
      %2701 = vmatpush.bf16.msra.mxu0 0
      %2702 = vmatpush.bf16.msra.mxu0 0
      %2703 = vmatpush.bf16.msra.mxu0 0
      %2704 = vmatpush.bf16.msra.mxu0 0
      %2705 = vmatpush.bf16.msra.mxu0 0
      %2706 = vmatpush.bf16.msra.mxu0 0
      %2707 = vmatpush.bf16.msra.mxu0 %v2695
      %2708 = vmatpush.bf16.msra.mxu0 %v2694
      %2709 = vmatmul.bf16.gmra.mxu0 %v2699
      %v2710 = vpop.f32.mrf.mxu0
      %v2711 = vadd.f32 0.0, %v2710
      %v2712 = vpop.f32.mrf.mxu0
      %2713 = vdwg.mxu0
      %v2715 = vmul.f32 %v858, %v869
      %v2717 = vsel %vm825, %v2715, 0
      %2719 = vmatpush.msra.mxu0 0.0
      %2720 = vmatpush.msra.mxu0 0.0
      %2721 = vmatpush.msra.mxu0 0.0
      %2722 = vmatpush.msra.mxu0 0.0
      %2723 = vmatpush.msra.mxu0 0.0
      %2724 = vmatpush.msra.mxu0 0.0
      %2725 = vmatpush.msra.mxu0 0.0
      %2726 = vmatpush.msra.mxu0 0.0
      %2727 = vmatpush.msra.mxu0 0.0
      %2728 = vmatpush.msra.mxu0 0.0
      %2729 = vmatpush.msra.mxu0 0.0
      %2730 = vmatpush.msra.mxu0 0.0
      %2731 = vmatpush.msra.mxu0 0.0
      %2732 = vmatpush.msra.mxu0 0.0
      %2733 = vmatpush.msra.mxu0 0.0
      %2734 = vmatpush.msra.mxu0 %v2711
      %2735 = vmatmul.f32.gmra.mxu0 %v2717
      %v2736 = vpop.f32.mrf.mxu0
      %v2737 = vadd.f32 0.0, %v2736
      %2738 = vdwg.mxu0
      %v2739 = vmul.f32 %v2678, %v2737
      %v2740 = vsel %vm831, %v2739, 0.0
      %v2741 = vrot.slane %v2740, 4
      %v2742 = vadd.f32 %v2740, %v2741
      %v2743 = vrot.slane %v2742, 2
      %v2744 = vadd.f32 %v2742, %v2743
      %v2745 = vrot.slane %v2744, 1
      %v2746 = vadd.f32 %v2744, %v2745
      %v2747 = vld [vmem:[%s22] sm:$0x1]
      %v2748 = vmul.f32 %v2746, %v2747
      %vm2749 = vcmask 253952
      %v2750 = vsel %vm2749, %v2748, 0.0
      %2751 = vadd.xlane.f32.xlu0 %v2750
      %v2752 = vpop.xlane.xlu0 %2751
      %v2753 = vsel %vm825, %v2715, 0.0
      %v2754 = vrot.slane %v2753, 4
      %v2755 = vadd.f32 %v2753, %v2754
      %v2756 = vrot.slane %v2755, 2
      %v2757 = vadd.f32 %v2755, %v2756
      %v2758 = vrot.slane %v2757, 1
      %v2759 = vadd.f32 %v2757, %v2758
      %v2760 = vsel %vm825, %v2759, 0.0
      %2761 = vadd.xlane.f32.xlu0 %v2760
      %v2762 = vpop.xlane.xlu0 %2761
      %v2763 = vmax.f32 %v2762, 1e-30
      %v2764 = vrcp.pop %v2763
      %v2765 = vmul.f32 %v2752, %v2764
      %p2766 = scmp.eq.s32.totalorder %s39, 0
      // Predicated region
      $region113: #{set_matching_forward.5} parent=111 // pred_check
        %p2767 = pneg %p2766
      $region114: #{set_matching_forward.5} parent=111 // pred_check_branch
        %2769 = sbr.rel (%p2767) target = $region116
      $region115: #{set_matching_forward.5} parent=111 // pred_region
        %vm2770 = vcmask 8192
        %2771 = vst.msk [vmem:[%s794] sm:$0x1] %vm2770, 0.0
      $region116: #{set_matching_forward.5} parent=111 // pred_fallthru
        _
      %v2772 = vlaneseq
      %v2773 = vand.u32 %v2772, 127
      %v2774 = vld [vmem:[%s794] sm:$0x1]
      %v2775 = vstv %s39
      %vm2776 = vcmp.eq.s32.totalorder %v2773, %v2775
      %v2777 = vsel %vm2776, %v2765, 0.0
      %v2778 = vadd.f32 %v2774, %v2777
      %vm2779 = vcmask 8192
      %2780 = vst.msk [vmem:[%s794] sm:$0x1] %vm2779, %v2778
      %p2781 = scmp.lt.s32.totalorder %s38, 1
      %s2782 = scalar_select %p2781, %s38, 1
      %s2783 = scalar_lea.vmem %s23, %s2782
      // Predicated region
      $region117: #{set_matching_forward.5} parent=111 // pred_check
        %p2784 = pneg %p577
      $region118: #{set_matching_forward.5} parent=111 // pred_check_branch
        %2786 = sbr.rel (%p2784) target = $region120
      $region119: #{set_matching_forward.5} parent=111 // pred_region
        _
      $region120: #{set_matching_forward.5} parent=111 // pred_fallthru
        _
    $region112: #{set_matching_forward.5} parent=5 // pred_fallthru
      _
    %p2787 = scmp.le.s32.totalorder 2, %s29
    // Predicated region
    $region121: #{set_matching_forward.5} parent=5 // pred_check
      %p2788 = pneg %p2787
    $region122: #{set_matching_forward.5} parent=5 // pred_check_branch
      %2790 = sbr.rel (%p2788) target = $region124
    $region123: #{set_matching_forward.5} parent=5 // pred_region
      %s2791 = ssub.s32 %s29, 2
      // Predicated region
      $region125: #{set_matching_forward.5} parent=123 // pred_check
        %p2792 = pneg %p583
      $region126: #{set_matching_forward.5} parent=123 // pred_check_branch
        %2794 = sbr.rel (%p2792) target = $region128
      $region127: #{set_matching_forward.5} parent=123 // pred_region
        %p2795 = scmp.lt.s32.totalorder %s40, 1
        %s2796 = scalar_select %p2795, %s40, 1
        %s2797 = scalar_lea.vmem %s23, %s2796
      $region128: #{set_matching_forward.5} parent=123 // pred_fallthru
        _
    $region124: #{set_matching_forward.5} parent=5 // pred_fallthru
      _
  $region6: #{set_matching_forward.5} parent=0 // loop_footer
    %s33 = sadd.s32 1, %s29
  $region7: #{set_matching_forward.5} parent=0 // loop_footer_branch
    %28 = sbr.rel target = $region3
  $region8: #{set_matching_forward.5} parent=0 // loop_exit
    _

</llo_original>
